<compile_context>
chip_gen: v7x
topology: tpu7x:2x2x1
jax: 0.10.0
libtpu: 0.0.40
codegen_flags: <defaults>
</compile_context>

<pallas_src>
from functools import partial

import jax
import jax.numpy as jnp
from jax.experimental import pallas as pl
from jax.experimental.pallas import tpu as pltpu


# ---------------------------------------------------------------------------
# Static planning (pure Python, trace time only)
# ---------------------------------------------------------------------------
def _pool_out_size(size, k, s, p, d, ceil_mode):
    """PyTorch pooling_output_shape semantics (incl. ceil-mode drop rule)."""
    eff = (k - 1) * d + 1
    num = size + 2 * p - eff
    if ceil_mode:
        out = -(-num // s) + 1
        if (out - 1) * s >= size + p:
            out -= 1
    else:
        out = num // s + 1
    assert out >= 1, "pool output size too small"
    return out


# The six max_pool3d stages shared by both branches:
#   (kernel, stride, padding, dilation, ceil_mode)
_STAGES = (
    ((3, 3, 3), (3, 3, 3), (0, 0, 0), (1, 1, 1), False),
    ((4, 4, 4), (2, 2, 2), (2, 2, 2), (1, 1, 1), False),
    ((1, 2, 3), (1, 1, 1), (0, 0, 1), (1, 1, 1), False),
    ((3, 4, 5), (1, 2, 2), (1, 2, 2), (1, 1, 1), True),
    ((2, 3, 3), (1, 1, 1), (1, 1, 1), (1, 2, 2), False),
    ((2, 2, 2), (1, 1, 1), (0, 0, 0), (1, 1, 1), True),
)
# Final stage of the x branch (return_indices=True).
_ARGMAX_STAGE = ((5, 4, 4), (1, 1, 1), (2, 2, 2), (1, 1, 1), False)


def _plan_chain(spatial, stages):
    """Static separable plan: one 1-D pooling pass per (stage, axis).

    Each pass records the -inf padding needed on both sides of the pooled
    axis (so every tap becomes a full contiguous slice of the padded value),
    the tap start offsets and the stride subsample.
    """
    sizes = list(spatial)
    steps = []
    for ks, st, pad, dil, ceil in stages:
        for ax in range(3):
            k, s, p, d = ks[ax], st[ax], pad[ax], dil[ax]
            S = sizes[ax]
            S_out = _pool_out_size(S, k, s, p, d, ceil)
            if k == 1 and s == 1 and p == 0:
                continue                        # identity pass
            L_den = (S_out - 1) * s + 1         # dense (stride-1) extent
            pad_l = p
            # Highest padded-coordinate index any tap touches is
            # (L_den - 1) + (k - 1) * d; pad the right so it is in range.
            pad_r = max(0, (L_den - 1) + (k - 1) * d + 1 - (pad_l + S))
            taps = []
            for t in range(k):
                start = t * d                   # tap start in padded coords
                # Taps living entirely inside the -inf padding never change
                # the max -> skip them statically.
                if start + L_den <= pad_l or start >= pad_l + S:
                    continue
                taps.append(start)
            assert taps, "pooling window has no in-bounds taps"
            steps.append(dict(ax=ax, s=s, S_out=S_out, L_den=L_den,
                              pad_l=pad_l, pad_r=pad_r, taps=tuple(taps)))
            sizes[ax] = S_out
    return steps, tuple(sizes)


def _plan_argmax(spatial, stage):
    """Static plan for the stride-1 max pooling stage that returns indices."""
    ks, st, pad, dil, ceil = stage
    assert st == (1, 1, 1) and dil == (1, 1, 1) and not ceil
    outs = tuple(_pool_out_size(S, k, 1, p, 1, False)
                 for S, k, p in zip(spatial, ks, pad))
    # -inf padding so every tap is a full (Do,Ho,Wo) slice of the padded
    # volume (output o, tap t reads padded index o + t on each axis).
    pads_r = tuple(max(0, (o - 1) + (k - 1) + 1 - (p + S))
                   for S, o, k, p in zip(spatial, outs, ks, pad))
    Din, Hin, Win = spatial
    Do, Ho, Wo = outs
    taps = []
    for td in range(ks[0]):            # kd -> kh -> kw scan order == PyTorch
        for th in range(ks[1]):
            for tw in range(ks[2]):
                dd, dh, dw = td - pad[0], th - pad[1], tw - pad[2]
                # Skip taps that are -inf padding for every output position.
                if (max(0, -dd) >= min(Do, Din - dd)
                        or max(0, -dh) >= min(Ho, Hin - dh)
                        or max(0, -dw) >= min(Wo, Win - dw)):
                    continue
                off = (dd * Hin + dh) * Win + dw
                taps.append((td, th, tw, off))
    return dict(ins=tuple(spatial), outs=outs, pads_l=tuple(pad),
                pads_r=pads_r, taps=tuple(taps))


# ---------------------------------------------------------------------------
# In-kernel value helpers (everything stays in vregs / VMEM values)
# ---------------------------------------------------------------------------
def _neg_fill(dtype):
    dtype = jnp.dtype(dtype)
    if jnp.issubdtype(dtype, jnp.floating):
        return float("-inf")
    return int(jnp.iinfo(dtype).min)


def _slice_axis(v, dim, start, size):
    idx = [slice(None)] * v.ndim
    idx[dim] = slice(start, start + size)
    return v[tuple(idx)]


def _pad_axis(v, dim, pad_l, pad_r, fill):
    """Pad `v` along `dim` with `fill` (pure value op, no scratch)."""
    if pad_l == 0 and pad_r == 0:
        return v
    parts = []
    if pad_l:
        shp = list(v.shape)
        shp[dim] = pad_l
        parts.append(jnp.full(shp, fill, v.dtype))
    parts.append(v)
    if pad_r:
        shp = list(v.shape)
        shp[dim] = pad_r
        parts.append(jnp.full(shp, fill, v.dtype))
    return jnp.concatenate(parts, axis=dim)


def _run_chain(steps, cur, fill):
    """Apply the planned separable max-pool chain to the value `cur`.

    Per pass: -inf pad the pooled axis once, fold k contiguous tap slices
    with jnp.maximum (no masked stores, no accumulator scratch), then keep
    every s-th position with a single slice+concat subsample.
    """
    for st in steps:
        dim = st["ax"] + 2                       # spatial axis -> array dim
        cur = _pad_axis(cur, dim, st["pad_l"], st["pad_r"], fill)
        den = None
        for start in st["taps"]:
            tap = _slice_axis(cur, dim, start, st["L_den"])
            den = tap if den is None else jnp.maximum(den, tap)
        s, S_out = st["s"], st["S_out"]
        if s == 1:
            cur = den                            # L_den == S_out
        elif S_out == 1:
            cur = _slice_axis(den, dim, 0, 1)
        else:
            cur = jnp.concatenate(
                [_slice_axis(den, dim, o * s, 1) for o in range(S_out)],
                axis=dim)
    return cur


def _run_argmax(plan, xv, fill):
    """return_indices max pool on register values (no scratch buffers)."""
    assert xv.shape[2:] == plan["ins"]
    Din, Hin, Win = plan["ins"]
    Do, Ho, Wo = plan["outs"]
    xp = xv
    for ax in range(3):
        xp = _pad_axis(xp, ax + 2, plan["pads_l"][ax], plan["pads_r"][ax],
                       fill)
    out_shape = xv.shape[:2] + (Do, Ho, Wo)
    best = jnp.full(out_shape, fill, xv.dtype)
    bidx = jnp.zeros(out_shape, jnp.int32)
    for td, th, tw, off in plan["taps"]:
        tap = xp[:, :, td:td + Do, th:th + Ho, tw:tw + Wo]
        upd = tap > best            # strict '>': first max in kd->kh->kw order
        best = jnp.where(upd, tap, best)
        # Only the scalar tap offset is tracked; the per-position base index
        # is added once at the end.
        bidx = jnp.where(upd, jnp.int32(off), bidx)
    od = jax.lax.broadcasted_iota(jnp.int32, out_shape, 2)
    oh = jax.lax.broadcasted_iota(jnp.int32, out_shape, 3)
    ow = jax.lax.broadcasted_iota(jnp.int32, out_shape, 4)
    base = (od * Hin + oh) * Win + ow            # flat index of window origin
    return best, base + bidx


# ---------------------------------------------------------------------------
# Kernel
# ---------------------------------------------------------------------------
def _fused_kernel(x_steps, y_steps, amax, x_ref, y_ref,
                  xo_ref, idx_ref, yo_ref):
    # ------------------------------ x branch ------------------------------
    fx = _neg_fill(x_ref.dtype)
    xv = _run_chain(x_steps, x_ref[...], fx)
    best, idx = _run_argmax(amax, xv, fx)
    xo_ref[...] = best.astype(xo_ref.dtype)
    # TODO(synk): PyTorch returns int64 indices; the TPU kernel emits int32.
    idx_ref[...] = idx
    # ------------------------------ y branch ------------------------------
    fy = _neg_fill(y_ref.dtype)
    yo_ref[...] = _run_chain(y_steps, y_ref[...], fy).astype(yo_ref.dtype)


# ---------------------------------------------------------------------------
# Model.forward
# ---------------------------------------------------------------------------
def _single_tensorcore_chip():
    """True on chips with a single TensorCore per JAX device (v5e / v6e)."""
    try:
        kind = jax.devices()[0].device_kind.lower()
    except Exception:
        return False
    return any(tag in kind for tag in
               ("v5e", "v5 lite", "v6e", "v6 lite", "lite"))


def model_forward(x, y, *, fold_channels=None):
    assert x.ndim == 5 and y.ndim == 5 and x.shape[:2] == y.shape[:2]
    N, C = x.shape[:2]
    x_steps, x_mid = _plan_chain(x.shape[2:], _STAGES)
    y_steps, y_out = _plan_chain(y.shape[2:], _STAGES)
    amax = _plan_argmax(x_mid, _ARGMAX_STAGE)
    x_out = amax["outs"]

    if fold_channels is None:
        # Megacore chips (v7x): keep (N, C) "parallel" so both TensorCores
        # get work.  Single-TC chips (v5e/v6e): fold C into the block for
        # fewer, fatter grid steps.
        fold_channels = _single_tensorcore_chip()

    if fold_channels:
        grid = (N,)
        cb = C
        index_map = lambda n: (n, 0, 0, 0, 0)
    else:
        grid = (N, C)
        cb = 1
        index_map = lambda n, c: (n, c, 0, 0, 0)

    kernel = partial(_fused_kernel, x_steps, y_steps, amax)
    return pl.pallas_call(
        kernel,
        grid=grid,
        in_specs=[
            pl.BlockSpec((1, cb) + tuple(x.shape[2:]), index_map),
            pl.BlockSpec((1, cb) + tuple(y.shape[2:]), index_map),
        ],
        out_specs=(
            pl.BlockSpec((1, cb) + x_out, index_map),
            pl.BlockSpec((1, cb) + x_out, index_map),
            pl.BlockSpec((1, cb) + y_out, index_map),
        ),
        out_shape=(
            jax.ShapeDtypeStruct((N, C) + x_out, x.dtype),
            jax.ShapeDtypeStruct((N, C) + x_out, jnp.int32),
            jax.ShapeDtypeStruct((N, C) + y_out, y.dtype),
        ),
        compiler_params=pltpu.CompilerParams(
            dimension_semantics=("parallel",) * len(grid)),
    )(x, y)


if __name__ == "__main__":
    key = jax.random.PRNGKey(0)
    kx, ky = jax.random.split(key)
    # Smallest convenient shapes that keep every pool in the chain valid.
    x = jax.random.uniform(kx, (1, 2, 30, 30, 30), dtype=jnp.float32)
    y = jax.random.uniform(ky, (1, 2, 33, 32, 31), dtype=jnp.float32)

    out_x, out_idx, out_y = jax.jit(model_forward)(x, y)
    jax.block_until_ready((out_x, out_idx, out_y))

    # Expected (PyTorch) shapes for these inputs.
    assert out_x.shape == (1, 2, 6, 2, 2), out_x.shape
    assert out_idx.shape == (1, 2, 6, 2, 2), out_idx.shape
    assert out_y.shape == (1, 2, 6, 1, 1), out_y.shape
    assert out_idx.dtype == jnp.int32
    print("KERNEL_OK")
</pallas_src>

<mosaic_0001>
module attributes {stable_mosaic.version = 11 : i64} {
  func.func @_fused_kernel(%arg0: i32, %arg1: i32, %arg2: memref<1x1x30x30x30xf32, #tpu.memory_space<vmem>>, %arg3: memref<1x1x33x32x31xf32, #tpu.memory_space<vmem>>, %arg4: memref<1x1x6x2x2xf32, #tpu.memory_space<vmem>>, %arg5: memref<1x1x6x2x2xi32, #tpu.memory_space<vmem>>, %arg6: memref<1x1x6x1x1xf32, #tpu.memory_space<vmem>>) attributes {dimension_semantics = [#tpu.dimension_semantics<parallel>, #tpu.dimension_semantics<parallel>], iteration_bounds = array<i64: 1, 2>, scalar_prefetch = 0 : i64, scratch_operands = 0 : i64, tpu.core_type = #tpu.core_type<tc>, window_params = [{transform_indices = @transform_0, window_bounds = array<i64: 1, 1, 30, 30, 30>}, {transform_indices = @transform_1, window_bounds = array<i64: 1, 1, 33, 32, 31>}, {transform_indices = @transform_2, window_bounds = array<i64: 1, 1, 6, 2, 2>}, {transform_indices = @transform_3, window_bounds = array<i64: 1, 1, 6, 2, 2>}, {transform_indices = @transform_4, window_bounds = array<i64: 1, 1, 6, 1, 1>}]} {
    %c0 = arith.constant 0 : index
    %c0_0 = arith.constant 0 : index
    %c0_1 = arith.constant 0 : index
    %c0_2 = arith.constant 0 : index
    %c0_3 = arith.constant 0 : index
    %0 = vector.load %arg2[%c0, %c0_0, %c0_1, %c0_2, %c0_3] : memref<1x1x30x30x30xf32, #tpu.memory_space<vmem>>, vector<1x1x30x30x30xf32>
    %1 = vector.extract_strided_slice %0 {offsets = [0, 0, 0, 0, 0], sizes = [1, 1, 28, 30, 30], strides = [1, 1, 1, 1, 1]} : vector<1x1x30x30x30xf32> to vector<1x1x28x30x30xf32>
    %2 = vector.extract_strided_slice %0 {offsets = [0, 0, 1, 0, 0], sizes = [1, 1, 28, 30, 30], strides = [1, 1, 1, 1, 1]} : vector<1x1x30x30x30xf32> to vector<1x1x28x30x30xf32>
    %3 = arith.maximumf %1, %2 : vector<1x1x28x30x30xf32>
    %4 = vector.extract_strided_slice %0 {offsets = [0, 0, 2, 0, 0], sizes = [1, 1, 28, 30, 30], strides = [1, 1, 1, 1, 1]} : vector<1x1x30x30x30xf32> to vector<1x1x28x30x30xf32>
    %5 = arith.maximumf %3, %4 : vector<1x1x28x30x30xf32>
    %6 = vector.extract_strided_slice %5 {offsets = [0, 0, 0, 0, 0], sizes = [1, 1, 1, 30, 30], strides = [1, 1, 1, 1, 1]} : vector<1x1x28x30x30xf32> to vector<1x1x1x30x30xf32>
    %7 = vector.extract_strided_slice %5 {offsets = [0, 0, 3, 0, 0], sizes = [1, 1, 1, 30, 30], strides = [1, 1, 1, 1, 1]} : vector<1x1x28x30x30xf32> to vector<1x1x1x30x30xf32>
    %8 = vector.extract_strided_slice %5 {offsets = [0, 0, 6, 0, 0], sizes = [1, 1, 1, 30, 30], strides = [1, 1, 1, 1, 1]} : vector<1x1x28x30x30xf32> to vector<1x1x1x30x30xf32>
    %9 = vector.extract_strided_slice %5 {offsets = [0, 0, 9, 0, 0], sizes = [1, 1, 1, 30, 30], strides = [1, 1, 1, 1, 1]} : vector<1x1x28x30x30xf32> to vector<1x1x1x30x30xf32>
    %10 = vector.extract_strided_slice %5 {offsets = [0, 0, 12, 0, 0], sizes = [1, 1, 1, 30, 30], strides = [1, 1, 1, 1, 1]} : vector<1x1x28x30x30xf32> to vector<1x1x1x30x30xf32>
    %11 = vector.extract_strided_slice %5 {offsets = [0, 0, 15, 0, 0], sizes = [1, 1, 1, 30, 30], strides = [1, 1, 1, 1, 1]} : vector<1x1x28x30x30xf32> to vector<1x1x1x30x30xf32>
    %12 = vector.extract_strided_slice %5 {offsets = [0, 0, 18, 0, 0], sizes = [1, 1, 1, 30, 30], strides = [1, 1, 1, 1, 1]} : vector<1x1x28x30x30xf32> to vector<1x1x1x30x30xf32>
    %13 = vector.extract_strided_slice %5 {offsets = [0, 0, 21, 0, 0], sizes = [1, 1, 1, 30, 30], strides = [1, 1, 1, 1, 1]} : vector<1x1x28x30x30xf32> to vector<1x1x1x30x30xf32>
    %14 = vector.extract_strided_slice %5 {offsets = [0, 0, 24, 0, 0], sizes = [1, 1, 1, 30, 30], strides = [1, 1, 1, 1, 1]} : vector<1x1x28x30x30xf32> to vector<1x1x1x30x30xf32>
    %15 = vector.extract_strided_slice %5 {offsets = [0, 0, 27, 0, 0], sizes = [1, 1, 1, 30, 30], strides = [1, 1, 1, 1, 1]} : vector<1x1x28x30x30xf32> to vector<1x1x1x30x30xf32>
    %16 = tpu.concatenate %6, %7, %8, %9, %10, %11, %12, %13, %14, %15 in 2 : vector<1x1x1x30x30xf32>, vector<1x1x1x30x30xf32>, vector<1x1x1x30x30xf32>, vector<1x1x1x30x30xf32>, vector<1x1x1x30x30xf32>, vector<1x1x1x30x30xf32>, vector<1x1x1x30x30xf32>, vector<1x1x1x30x30xf32>, vector<1x1x1x30x30xf32>, vector<1x1x1x30x30xf32> -> vector<1x1x10x30x30xf32>
    %17 = vector.extract_strided_slice %16 {offsets = [0, 0, 0, 0, 0], sizes = [1, 1, 10, 28, 30], strides = [1, 1, 1, 1, 1]} : vector<1x1x10x30x30xf32> to vector<1x1x10x28x30xf32>
    %18 = vector.extract_strided_slice %16 {offsets = [0, 0, 0, 1, 0], sizes = [1, 1, 10, 28, 30], strides = [1, 1, 1, 1, 1]} : vector<1x1x10x30x30xf32> to vector<1x1x10x28x30xf32>
    %19 = arith.maximumf %17, %18 : vector<1x1x10x28x30xf32>
    %20 = vector.extract_strided_slice %16 {offsets = [0, 0, 0, 2, 0], sizes = [1, 1, 10, 28, 30], strides = [1, 1, 1, 1, 1]} : vector<1x1x10x30x30xf32> to vector<1x1x10x28x30xf32>
    %21 = arith.maximumf %19, %20 : vector<1x1x10x28x30xf32>
    %22 = vector.extract_strided_slice %21 {offsets = [0, 0, 0, 0, 0], sizes = [1, 1, 10, 1, 30], strides = [1, 1, 1, 1, 1]} : vector<1x1x10x28x30xf32> to vector<1x1x10x1x30xf32>
    %23 = vector.extract_strided_slice %21 {offsets = [0, 0, 0, 3, 0], sizes = [1, 1, 10, 1, 30], strides = [1, 1, 1, 1, 1]} : vector<1x1x10x28x30xf32> to vector<1x1x10x1x30xf32>
    %24 = vector.extract_strided_slice %21 {offsets = [0, 0, 0, 6, 0], sizes = [1, 1, 10, 1, 30], strides = [1, 1, 1, 1, 1]} : vector<1x1x10x28x30xf32> to vector<1x1x10x1x30xf32>
    %25 = vector.extract_strided_slice %21 {offsets = [0, 0, 0, 9, 0], sizes = [1, 1, 10, 1, 30], strides = [1, 1, 1, 1, 1]} : vector<1x1x10x28x30xf32> to vector<1x1x10x1x30xf32>
    %26 = vector.extract_strided_slice %21 {offsets = [0, 0, 0, 12, 0], sizes = [1, 1, 10, 1, 30], strides = [1, 1, 1, 1, 1]} : vector<1x1x10x28x30xf32> to vector<1x1x10x1x30xf32>
    %27 = vector.extract_strided_slice %21 {offsets = [0, 0, 0, 15, 0], sizes = [1, 1, 10, 1, 30], strides = [1, 1, 1, 1, 1]} : vector<1x1x10x28x30xf32> to vector<1x1x10x1x30xf32>
    %28 = vector.extract_strided_slice %21 {offsets = [0, 0, 0, 18, 0], sizes = [1, 1, 10, 1, 30], strides = [1, 1, 1, 1, 1]} : vector<1x1x10x28x30xf32> to vector<1x1x10x1x30xf32>
    %29 = vector.extract_strided_slice %21 {offsets = [0, 0, 0, 21, 0], sizes = [1, 1, 10, 1, 30], strides = [1, 1, 1, 1, 1]} : vector<1x1x10x28x30xf32> to vector<1x1x10x1x30xf32>
    %30 = vector.extract_strided_slice %21 {offsets = [0, 0, 0, 24, 0], sizes = [1, 1, 10, 1, 30], strides = [1, 1, 1, 1, 1]} : vector<1x1x10x28x30xf32> to vector<1x1x10x1x30xf32>
    %31 = vector.extract_strided_slice %21 {offsets = [0, 0, 0, 27, 0], sizes = [1, 1, 10, 1, 30], strides = [1, 1, 1, 1, 1]} : vector<1x1x10x28x30xf32> to vector<1x1x10x1x30xf32>
    %32 = tpu.concatenate %22, %23, %24, %25, %26, %27, %28, %29, %30, %31 in 3 : vector<1x1x10x1x30xf32>, vector<1x1x10x1x30xf32>, vector<1x1x10x1x30xf32>, vector<1x1x10x1x30xf32>, vector<1x1x10x1x30xf32>, vector<1x1x10x1x30xf32>, vector<1x1x10x1x30xf32>, vector<1x1x10x1x30xf32>, vector<1x1x10x1x30xf32>, vector<1x1x10x1x30xf32> -> vector<1x1x10x10x30xf32>
    %33 = vector.extract_strided_slice %32 {offsets = [0, 0, 0, 0, 0], sizes = [1, 1, 10, 10, 28], strides = [1, 1, 1, 1, 1]} : vector<1x1x10x10x30xf32> to vector<1x1x10x10x28xf32>
    %34 = vector.extract_strided_slice %32 {offsets = [0, 0, 0, 0, 1], sizes = [1, 1, 10, 10, 28], strides = [1, 1, 1, 1, 1]} : vector<1x1x10x10x30xf32> to vector<1x1x10x10x28xf32>
    %35 = arith.maximumf %33, %34 : vector<1x1x10x10x28xf32>
    %36 = vector.extract_strided_slice %32 {offsets = [0, 0, 0, 0, 2], sizes = [1, 1, 10, 10, 28], strides = [1, 1, 1, 1, 1]} : vector<1x1x10x10x30xf32> to vector<1x1x10x10x28xf32>
    %37 = arith.maximumf %35, %36 : vector<1x1x10x10x28xf32>
    %38 = vector.extract_strided_slice %37 {offsets = [0, 0, 0, 0, 0], sizes = [1, 1, 10, 10, 1], strides = [1, 1, 1, 1, 1]} : vector<1x1x10x10x28xf32> to vector<1x1x10x10x1xf32>
    %39 = vector.extract_strided_slice %37 {offsets = [0, 0, 0, 0, 3], sizes = [1, 1, 10, 10, 1], strides = [1, 1, 1, 1, 1]} : vector<1x1x10x10x28xf32> to vector<1x1x10x10x1xf32>
    %40 = vector.extract_strided_slice %37 {offsets = [0, 0, 0, 0, 6], sizes = [1, 1, 10, 10, 1], strides = [1, 1, 1, 1, 1]} : vector<1x1x10x10x28xf32> to vector<1x1x10x10x1xf32>
    %41 = vector.extract_strided_slice %37 {offsets = [0, 0, 0, 0, 9], sizes = [1, 1, 10, 10, 1], strides = [1, 1, 1, 1, 1]} : vector<1x1x10x10x28xf32> to vector<1x1x10x10x1xf32>
    %42 = vector.extract_strided_slice %37 {offsets = [0, 0, 0, 0, 12], sizes = [1, 1, 10, 10, 1], strides = [1, 1, 1, 1, 1]} : vector<1x1x10x10x28xf32> to vector<1x1x10x10x1xf32>
    %43 = vector.extract_strided_slice %37 {offsets = [0, 0, 0, 0, 15], sizes = [1, 1, 10, 10, 1], strides = [1, 1, 1, 1, 1]} : vector<1x1x10x10x28xf32> to vector<1x1x10x10x1xf32>
    %44 = vector.extract_strided_slice %37 {offsets = [0, 0, 0, 0, 18], sizes = [1, 1, 10, 10, 1], strides = [1, 1, 1, 1, 1]} : vector<1x1x10x10x28xf32> to vector<1x1x10x10x1xf32>
    %45 = vector.extract_strided_slice %37 {offsets = [0, 0, 0, 0, 21], sizes = [1, 1, 10, 10, 1], strides = [1, 1, 1, 1, 1]} : vector<1x1x10x10x28xf32> to vector<1x1x10x10x1xf32>
    %46 = vector.extract_strided_slice %37 {offsets = [0, 0, 0, 0, 24], sizes = [1, 1, 10, 10, 1], strides = [1, 1, 1, 1, 1]} : vector<1x1x10x10x28xf32> to vector<1x1x10x10x1xf32>
    %47 = vector.extract_strided_slice %37 {offsets = [0, 0, 0, 0, 27], sizes = [1, 1, 10, 10, 1], strides = [1, 1, 1, 1, 1]} : vector<1x1x10x10x28xf32> to vector<1x1x10x10x1xf32>
    %48 = tpu.concatenate %38, %39, %40, %41, %42, %43, %44, %45, %46, %47 in 4 : vector<1x1x10x10x1xf32>, vector<1x1x10x10x1xf32>, vector<1x1x10x10x1xf32>, vector<1x1x10x10x1xf32>, vector<1x1x10x10x1xf32>, vector<1x1x10x10x1xf32>, vector<1x1x10x10x1xf32>, vector<1x1x10x10x1xf32>, vector<1x1x10x10x1xf32>, vector<1x1x10x10x1xf32> -> vector<1x1x10x10x10xf32>
    %cst = arith.constant 0xFF800000 : f32
    %49 = vector.broadcast %cst : f32 to vector<1x1x2x10x10xf32>
    %cst_4 = arith.constant 0xFF800000 : f32
    %50 = vector.broadcast %cst_4 : f32 to vector<1x1x2x10x10xf32>
    %51 = tpu.concatenate %49, %48, %50 in 2 : vector<1x1x2x10x10xf32>, vector<1x1x10x10x10xf32>, vector<1x1x2x10x10xf32> -> vector<1x1x14x10x10xf32>
    %52 = vector.extract_strided_slice %51 {offsets = [0, 0, 0, 0, 0], sizes = [1, 1, 11, 10, 10], strides = [1, 1, 1, 1, 1]} : vector<1x1x14x10x10xf32> to vector<1x1x11x10x10xf32>
    %53 = vector.extract_strided_slice %51 {offsets = [0, 0, 1, 0, 0], sizes = [1, 1, 11, 10, 10], strides = [1, 1, 1, 1, 1]} : vector<1x1x14x10x10xf32> to vector<1x1x11x10x10xf32>
    %54 = arith.maximumf %52, %53 : vector<1x1x11x10x10xf32>
    %55 = vector.extract_strided_slice %51 {offsets = [0, 0, 2, 0, 0], sizes = [1, 1, 11, 10, 10], strides = [1, 1, 1, 1, 1]} : vector<1x1x14x10x10xf32> to vector<1x1x11x10x10xf32>
    %56 = arith.maximumf %54, %55 : vector<1x1x11x10x10xf32>
    %57 = vector.extract_strided_slice %51 {offsets = [0, 0, 3, 0, 0], sizes = [1, 1, 11, 10, 10], strides = [1, 1, 1, 1, 1]} : vector<1x1x14x10x10xf32> to vector<1x1x11x10x10xf32>
    %58 = arith.maximumf %56, %57 : vector<1x1x11x10x10xf32>
    %59 = vector.extract_strided_slice %58 {offsets = [0, 0, 0, 0, 0], sizes = [1, 1, 1, 10, 10], strides = [1, 1, 1, 1, 1]} : vector<1x1x11x10x10xf32> to vector<1x1x1x10x10xf32>
    %60 = vector.extract_strided_slice %58 {offsets = [0, 0, 2, 0, 0], sizes = [1, 1, 1, 10, 10], strides = [1, 1, 1, 1, 1]} : vector<1x1x11x10x10xf32> to vector<1x1x1x10x10xf32>
    %61 = vector.extract_strided_slice %58 {offsets = [0, 0, 4, 0, 0], sizes = [1, 1, 1, 10, 10], strides = [1, 1, 1, 1, 1]} : vector<1x1x11x10x10xf32> to vector<1x1x1x10x10xf32>
    %62 = vector.extract_strided_slice %58 {offsets = [0, 0, 6, 0, 0], sizes = [1, 1, 1, 10, 10], strides = [1, 1, 1, 1, 1]} : vector<1x1x11x10x10xf32> to vector<1x1x1x10x10xf32>
    %63 = vector.extract_strided_slice %58 {offsets = [0, 0, 8, 0, 0], sizes = [1, 1, 1, 10, 10], strides = [1, 1, 1, 1, 1]} : vector<1x1x11x10x10xf32> to vector<1x1x1x10x10xf32>
    %64 = vector.extract_strided_slice %58 {offsets = [0, 0, 10, 0, 0], sizes = [1, 1, 1, 10, 10], strides = [1, 1, 1, 1, 1]} : vector<1x1x11x10x10xf32> to vector<1x1x1x10x10xf32>
    %65 = tpu.concatenate %59, %60, %61, %62, %63, %64 in 2 : vector<1x1x1x10x10xf32>, vector<1x1x1x10x10xf32>, vector<1x1x1x10x10xf32>, vector<1x1x1x10x10xf32>, vector<1x1x1x10x10xf32>, vector<1x1x1x10x10xf32> -> vector<1x1x6x10x10xf32>
    %cst_5 = arith.constant 0xFF800000 : f32
    %66 = vector.broadcast %cst_5 : f32 to vector<1x1x6x2x10xf32>
    %cst_6 = arith.constant 0xFF800000 : f32
    %67 = vector.broadcast %cst_6 : f32 to vector<1x1x6x2x10xf32>
    %68 = tpu.concatenate %66, %65, %67 in 3 : vector<1x1x6x2x10xf32>, vector<1x1x6x10x10xf32>, vector<1x1x6x2x10xf32> -> vector<1x1x6x14x10xf32>
    %69 = vector.extract_strided_slice %68 {offsets = [0, 0, 0, 0, 0], sizes = [1, 1, 6, 11, 10], strides = [1, 1, 1, 1, 1]} : vector<1x1x6x14x10xf32> to vector<1x1x6x11x10xf32>
    %70 = vector.extract_strided_slice %68 {offsets = [0, 0, 0, 1, 0], sizes = [1, 1, 6, 11, 10], strides = [1, 1, 1, 1, 1]} : vector<1x1x6x14x10xf32> to vector<1x1x6x11x10xf32>
    %71 = arith.maximumf %69, %70 : vector<1x1x6x11x10xf32>
    %72 = vector.extract_strided_slice %68 {offsets = [0, 0, 0, 2, 0], sizes = [1, 1, 6, 11, 10], strides = [1, 1, 1, 1, 1]} : vector<1x1x6x14x10xf32> to vector<1x1x6x11x10xf32>
    %73 = arith.maximumf %71, %72 : vector<1x1x6x11x10xf32>
    %74 = vector.extract_strided_slice %68 {offsets = [0, 0, 0, 3, 0], sizes = [1, 1, 6, 11, 10], strides = [1, 1, 1, 1, 1]} : vector<1x1x6x14x10xf32> to vector<1x1x6x11x10xf32>
    %75 = arith.maximumf %73, %74 : vector<1x1x6x11x10xf32>
    %76 = vector.extract_strided_slice %75 {offsets = [0, 0, 0, 0, 0], sizes = [1, 1, 6, 1, 10], strides = [1, 1, 1, 1, 1]} : vector<1x1x6x11x10xf32> to vector<1x1x6x1x10xf32>
    %77 = vector.extract_strided_slice %75 {offsets = [0, 0, 0, 2, 0], sizes = [1, 1, 6, 1, 10], strides = [1, 1, 1, 1, 1]} : vector<1x1x6x11x10xf32> to vector<1x1x6x1x10xf32>
    %78 = vector.extract_strided_slice %75 {offsets = [0, 0, 0, 4, 0], sizes = [1, 1, 6, 1, 10], strides = [1, 1, 1, 1, 1]} : vector<1x1x6x11x10xf32> to vector<1x1x6x1x10xf32>
    %79 = vector.extract_strided_slice %75 {offsets = [0, 0, 0, 6, 0], sizes = [1, 1, 6, 1, 10], strides = [1, 1, 1, 1, 1]} : vector<1x1x6x11x10xf32> to vector<1x1x6x1x10xf32>
    %80 = vector.extract_strided_slice %75 {offsets = [0, 0, 0, 8, 0], sizes = [1, 1, 6, 1, 10], strides = [1, 1, 1, 1, 1]} : vector<1x1x6x11x10xf32> to vector<1x1x6x1x10xf32>
    %81 = vector.extract_strided_slice %75 {offsets = [0, 0, 0, 10, 0], sizes = [1, 1, 6, 1, 10], strides = [1, 1, 1, 1, 1]} : vector<1x1x6x11x10xf32> to vector<1x1x6x1x10xf32>
    %82 = tpu.concatenate %76, %77, %78, %79, %80, %81 in 3 : vector<1x1x6x1x10xf32>, vector<1x1x6x1x10xf32>, vector<1x1x6x1x10xf32>, vector<1x1x6x1x10xf32>, vector<1x1x6x1x10xf32>, vector<1x1x6x1x10xf32> -> vector<1x1x6x6x10xf32>
    %cst_7 = arith.constant 0xFF800000 : f32
    %83 = vector.broadcast %cst_7 : f32 to vector<1x1x6x6x2xf32>
    %cst_8 = arith.constant 0xFF800000 : f32
    %84 = vector.broadcast %cst_8 : f32 to vector<1x1x6x6x2xf32>
    %85 = tpu.concatenate %83, %82, %84 in 4 : vector<1x1x6x6x2xf32>, vector<1x1x6x6x10xf32>, vector<1x1x6x6x2xf32> -> vector<1x1x6x6x14xf32>
    %86 = vector.extract_strided_slice %85 {offsets = [0, 0, 0, 0, 0], sizes = [1, 1, 6, 6, 11], strides = [1, 1, 1, 1, 1]} : vector<1x1x6x6x14xf32> to vector<1x1x6x6x11xf32>
    %87 = vector.extract_strided_slice %85 {offsets = [0, 0, 0, 0, 1], sizes = [1, 1, 6, 6, 11], strides = [1, 1, 1, 1, 1]} : vector<1x1x6x6x14xf32> to vector<1x1x6x6x11xf32>
    %88 = arith.maximumf %86, %87 : vector<1x1x6x6x11xf32>
    %89 = vector.extract_strided_slice %85 {offsets = [0, 0, 0, 0, 2], sizes = [1, 1, 6, 6, 11], strides = [1, 1, 1, 1, 1]} : vector<1x1x6x6x14xf32> to vector<1x1x6x6x11xf32>
    %90 = arith.maximumf %88, %89 : vector<1x1x6x6x11xf32>
    %91 = vector.extract_strided_slice %85 {offsets = [0, 0, 0, 0, 3], sizes = [1, 1, 6, 6, 11], strides = [1, 1, 1, 1, 1]} : vector<1x1x6x6x14xf32> to vector<1x1x6x6x11xf32>
    %92 = arith.maximumf %90, %91 : vector<1x1x6x6x11xf32>
    %93 = vector.extract_strided_slice %92 {offsets = [0, 0, 0, 0, 0], sizes = [1, 1, 6, 6, 1], strides = [1, 1, 1, 1, 1]} : vector<1x1x6x6x11xf32> to vector<1x1x6x6x1xf32>
    %94 = vector.extract_strided_slice %92 {offsets = [0, 0, 0, 0, 2], sizes = [1, 1, 6, 6, 1], strides = [1, 1, 1, 1, 1]} : vector<1x1x6x6x11xf32> to vector<1x1x6x6x1xf32>
    %95 = vector.extract_strided_slice %92 {offsets = [0, 0, 0, 0, 4], sizes = [1, 1, 6, 6, 1], strides = [1, 1, 1, 1, 1]} : vector<1x1x6x6x11xf32> to vector<1x1x6x6x1xf32>
    %96 = vector.extract_strided_slice %92 {offsets = [0, 0, 0, 0, 6], sizes = [1, 1, 6, 6, 1], strides = [1, 1, 1, 1, 1]} : vector<1x1x6x6x11xf32> to vector<1x1x6x6x1xf32>
    %97 = vector.extract_strided_slice %92 {offsets = [0, 0, 0, 0, 8], sizes = [1, 1, 6, 6, 1], strides = [1, 1, 1, 1, 1]} : vector<1x1x6x6x11xf32> to vector<1x1x6x6x1xf32>
    %98 = vector.extract_strided_slice %92 {offsets = [0, 0, 0, 0, 10], sizes = [1, 1, 6, 6, 1], strides = [1, 1, 1, 1, 1]} : vector<1x1x6x6x11xf32> to vector<1x1x6x6x1xf32>
    %99 = tpu.concatenate %93, %94, %95, %96, %97, %98 in 4 : vector<1x1x6x6x1xf32>, vector<1x1x6x6x1xf32>, vector<1x1x6x6x1xf32>, vector<1x1x6x6x1xf32>, vector<1x1x6x6x1xf32>, vector<1x1x6x6x1xf32> -> vector<1x1x6x6x6xf32>
    %100 = vector.extract_strided_slice %99 {offsets = [0, 0, 0, 0, 0], sizes = [1, 1, 6, 5, 6], strides = [1, 1, 1, 1, 1]} : vector<1x1x6x6x6xf32> to vector<1x1x6x5x6xf32>
    %101 = vector.extract_strided_slice %99 {offsets = [0, 0, 0, 1, 0], sizes = [1, 1, 6, 5, 6], strides = [1, 1, 1, 1, 1]} : vector<1x1x6x6x6xf32> to vector<1x1x6x5x6xf32>
    %102 = arith.maximumf %100, %101 : vector<1x1x6x5x6xf32>
    %cst_9 = arith.constant 0xFF800000 : f32
    %103 = vector.broadcast %cst_9 : f32 to vector<1x1x6x5x1xf32>
    %cst_10 = arith.constant 0xFF800000 : f32
    %104 = vector.broadcast %cst_10 : f32 to vector<1x1x6x5x1xf32>
    %105 = tpu.concatenate %103, %102, %104 in 4 : vector<1x1x6x5x1xf32>, vector<1x1x6x5x6xf32>, vector<1x1x6x5x1xf32> -> vector<1x1x6x5x8xf32>
    %106 = vector.extract_strided_slice %105 {offsets = [0, 0, 0, 0, 0], sizes = [1, 1, 6, 5, 6], strides = [1, 1, 1, 1, 1]} : vector<1x1x6x5x8xf32> to vector<1x1x6x5x6xf32>
    %107 = vector.extract_strided_slice %105 {offsets = [0, 0, 0, 0, 1], sizes = [1, 1, 6, 5, 6], strides = [1, 1, 1, 1, 1]} : vector<1x1x6x5x8xf32> to vector<1x1x6x5x6xf32>
    %108 = arith.maximumf %106, %107 : vector<1x1x6x5x6xf32>
    %109 = vector.extract_strided_slice %105 {offsets = [0, 0, 0, 0, 2], sizes = [1, 1, 6, 5, 6], strides = [1, 1, 1, 1, 1]} : vector<1x1x6x5x8xf32> to vector<1x1x6x5x6xf32>
    %110 = arith.maximumf %108, %109 : vector<1x1x6x5x6xf32>
    %cst_11 = arith.constant 0xFF800000 : f32
    %111 = vector.broadcast %cst_11 : f32 to vector<1x1x1x5x6xf32>
    %cst_12 = arith.constant 0xFF800000 : f32
    %112 = vector.broadcast %cst_12 : f32 to vector<1x1x1x5x6xf32>
    %113 = tpu.concatenate %111, %110, %112 in 2 : vector<1x1x1x5x6xf32>, vector<1x1x6x5x6xf32>, vector<1x1x1x5x6xf32> -> vector<1x1x8x5x6xf32>
    %114 = vector.extract_strided_slice %113 {offsets = [0, 0, 0, 0, 0], sizes = [1, 1, 6, 5, 6], strides = [1, 1, 1, 1, 1]} : vector<1x1x8x5x6xf32> to vector<1x1x6x5x6xf32>
    %115 = vector.extract_strided_slice %113 {offsets = [0, 0, 1, 0, 0], sizes = [1, 1, 6, 5, 6], strides = [1, 1, 1, 1, 1]} : vector<1x1x8x5x6xf32> to vector<1x1x6x5x6xf32>
    %116 = arith.maximumf %114, %115 : vector<1x1x6x5x6xf32>
    %117 = vector.extract_strided_slice %113 {offsets = [0, 0, 2, 0, 0], sizes = [1, 1, 6, 5, 6], strides = [1, 1, 1, 1, 1]} : vector<1x1x8x5x6xf32> to vector<1x1x6x5x6xf32>
    %118 = arith.maximumf %116, %117 : vector<1x1x6x5x6xf32>
    %cst_13 = arith.constant 0xFF800000 : f32
    %119 = vector.broadcast %cst_13 : f32 to vector<1x1x6x2x6xf32>
    %cst_14 = arith.constant 0xFF800000 : f32
    %120 = vector.broadcast %cst_14 : f32 to vector<1x1x6x3x6xf32>
    %121 = tpu.concatenate %119, %118, %120 in 3 : vector<1x1x6x2x6xf32>, vector<1x1x6x5x6xf32>, vector<1x1x6x3x6xf32> -> vector<1x1x6x10x6xf32>
    %122 = vector.extract_strided_slice %121 {offsets = [0, 0, 0, 0, 0], sizes = [1, 1, 6, 7, 6], strides = [1, 1, 1, 1, 1]} : vector<1x1x6x10x6xf32> to vector<1x1x6x7x6xf32>
    %123 = vector.extract_strided_slice %121 {offsets = [0, 0, 0, 1, 0], sizes = [1, 1, 6, 7, 6], strides = [1, 1, 1, 1, 1]} : vector<1x1x6x10x6xf32> to vector<1x1x6x7x6xf32>
    %124 = arith.maximumf %122, %123 : vector<1x1x6x7x6xf32>
    %125 = vector.extract_strided_slice %121 {offsets = [0, 0, 0, 2, 0], sizes = [1, 1, 6, 7, 6], strides = [1, 1, 1, 1, 1]} : vector<1x1x6x10x6xf32> to vector<1x1x6x7x6xf32>
    %126 = arith.maximumf %124, %125 : vector<1x1x6x7x6xf32>
    %127 = vector.extract_strided_slice %121 {offsets = [0, 0, 0, 3, 0], sizes = [1, 1, 6, 7, 6], strides = [1, 1, 1, 1, 1]} : vector<1x1x6x10x6xf32> to vector<1x1x6x7x6xf32>
    %128 = arith.maximumf %126, %127 : vector<1x1x6x7x6xf32>
    %129 = vector.extract_strided_slice %128 {offsets = [0, 0, 0, 0, 0], sizes = [1, 1, 6, 1, 6], strides = [1, 1, 1, 1, 1]} : vector<1x1x6x7x6xf32> to vector<1x1x6x1x6xf32>
    %130 = vector.extract_strided_slice %128 {offsets = [0, 0, 0, 2, 0], sizes = [1, 1, 6, 1, 6], strides = [1, 1, 1, 1, 1]} : vector<1x1x6x7x6xf32> to vector<1x1x6x1x6xf32>
    %131 = vector.extract_strided_slice %128 {offsets = [0, 0, 0, 4, 0], sizes = [1, 1, 6, 1, 6], strides = [1, 1, 1, 1, 1]} : vector<1x1x6x7x6xf32> to vector<1x1x6x1x6xf32>
    %132 = vector.extract_strided_slice %128 {offsets = [0, 0, 0, 6, 0], sizes = [1, 1, 6, 1, 6], strides = [1, 1, 1, 1, 1]} : vector<1x1x6x7x6xf32> to vector<1x1x6x1x6xf32>
    %133 = tpu.concatenate %129, %130, %131, %132 in 3 : vector<1x1x6x1x6xf32>, vector<1x1x6x1x6xf32>, vector<1x1x6x1x6xf32>, vector<1x1x6x1x6xf32> -> vector<1x1x6x4x6xf32>
    %cst_15 = arith.constant 0xFF800000 : f32
    %134 = vector.broadcast %cst_15 : f32 to vector<1x1x6x4x2xf32>
    %cst_16 = arith.constant 0xFF800000 : f32
    %135 = vector.broadcast %cst_16 : f32 to vector<1x1x6x4x3xf32>
    %136 = tpu.concatenate %134, %133, %135 in 4 : vector<1x1x6x4x2xf32>, vector<1x1x6x4x6xf32>, vector<1x1x6x4x3xf32> -> vector<1x1x6x4x11xf32>
    %137 = vector.extract_strided_slice %136 {offsets = [0, 0, 0, 0, 0], sizes = [1, 1, 6, 4, 7], strides = [1, 1, 1, 1, 1]} : vector<1x1x6x4x11xf32> to vector<1x1x6x4x7xf32>
    %138 = vector.extract_strided_slice %136 {offsets = [0, 0, 0, 0, 1], sizes = [1, 1, 6, 4, 7], strides = [1, 1, 1, 1, 1]} : vector<1x1x6x4x11xf32> to vector<1x1x6x4x7xf32>
    %139 = arith.maximumf %137, %138 : vector<1x1x6x4x7xf32>
    %140 = vector.extract_strided_slice %136 {offsets = [0, 0, 0, 0, 2], sizes = [1, 1, 6, 4, 7], strides = [1, 1, 1, 1, 1]} : vector<1x1x6x4x11xf32> to vector<1x1x6x4x7xf32>
    %141 = arith.maximumf %139, %140 : vector<1x1x6x4x7xf32>
    %142 = vector.extract_strided_slice %136 {offsets = [0, 0, 0, 0, 3], sizes = [1, 1, 6, 4, 7], strides = [1, 1, 1, 1, 1]} : vector<1x1x6x4x11xf32> to vector<1x1x6x4x7xf32>
    %143 = arith.maximumf %141, %142 : vector<1x1x6x4x7xf32>
    %144 = vector.extract_strided_slice %136 {offsets = [0, 0, 0, 0, 4], sizes = [1, 1, 6, 4, 7], strides = [1, 1, 1, 1, 1]} : vector<1x1x6x4x11xf32> to vector<1x1x6x4x7xf32>
    %145 = arith.maximumf %143, %144 : vector<1x1x6x4x7xf32>
    %146 = vector.extract_strided_slice %145 {offsets = [0, 0, 0, 0, 0], sizes = [1, 1, 6, 4, 1], strides = [1, 1, 1, 1, 1]} : vector<1x1x6x4x7xf32> to vector<1x1x6x4x1xf32>
    %147 = vector.extract_strided_slice %145 {offsets = [0, 0, 0, 0, 2], sizes = [1, 1, 6, 4, 1], strides = [1, 1, 1, 1, 1]} : vector<1x1x6x4x7xf32> to vector<1x1x6x4x1xf32>
    %148 = vector.extract_strided_slice %145 {offsets = [0, 0, 0, 0, 4], sizes = [1, 1, 6, 4, 1], strides = [1, 1, 1, 1, 1]} : vector<1x1x6x4x7xf32> to vector<1x1x6x4x1xf32>
    %149 = vector.extract_strided_slice %145 {offsets = [0, 0, 0, 0, 6], sizes = [1, 1, 6, 4, 1], strides = [1, 1, 1, 1, 1]} : vector<1x1x6x4x7xf32> to vector<1x1x6x4x1xf32>
    %150 = tpu.concatenate %146, %147, %148, %149 in 4 : vector<1x1x6x4x1xf32>, vector<1x1x6x4x1xf32>, vector<1x1x6x4x1xf32>, vector<1x1x6x4x1xf32> -> vector<1x1x6x4x4xf32>
    %cst_17 = arith.constant 0xFF800000 : f32
    %151 = vector.broadcast %cst_17 : f32 to vector<1x1x1x4x4xf32>
    %cst_18 = arith.constant 0xFF800000 : f32
    %152 = vector.broadcast %cst_18 : f32 to vector<1x1x1x4x4xf32>
    %153 = tpu.concatenate %151, %150, %152 in 2 : vector<1x1x1x4x4xf32>, vector<1x1x6x4x4xf32>, vector<1x1x1x4x4xf32> -> vector<1x1x8x4x4xf32>
    %154 = vector.extract_strided_slice %153 {offsets = [0, 0, 0, 0, 0], sizes = [1, 1, 7, 4, 4], strides = [1, 1, 1, 1, 1]} : vector<1x1x8x4x4xf32> to vector<1x1x7x4x4xf32>
    %155 = vector.extract_strided_slice %153 {offsets = [0, 0, 1, 0, 0], sizes = [1, 1, 7, 4, 4], strides = [1, 1, 1, 1, 1]} : vector<1x1x8x4x4xf32> to vector<1x1x7x4x4xf32>
    %156 = arith.maximumf %154, %155 : vector<1x1x7x4x4xf32>
    %cst_19 = arith.constant 0xFF800000 : f32
    %157 = vector.broadcast %cst_19 : f32 to vector<1x1x7x1x4xf32>
    %cst_20 = arith.constant 0xFF800000 : f32
    %158 = vector.broadcast %cst_20 : f32 to vector<1x1x7x1x4xf32>
    %159 = tpu.concatenate %157, %156, %158 in 3 : vector<1x1x7x1x4xf32>, vector<1x1x7x4x4xf32>, vector<1x1x7x1x4xf32> -> vector<1x1x7x6x4xf32>
    %160 = vector.extract_strided_slice %159 {offsets = [0, 0, 0, 0, 0], sizes = [1, 1, 7, 2, 4], strides = [1, 1, 1, 1, 1]} : vector<1x1x7x6x4xf32> to vector<1x1x7x2x4xf32>
    %161 = vector.extract_strided_slice %159 {offsets = [0, 0, 0, 2, 0], sizes = [1, 1, 7, 2, 4], strides = [1, 1, 1, 1, 1]} : vector<1x1x7x6x4xf32> to vector<1x1x7x2x4xf32>
    %162 = arith.maximumf %160, %161 : vector<1x1x7x2x4xf32>
    %163 = vector.extract_strided_slice %159 {offsets = [0, 0, 0, 4, 0], sizes = [1, 1, 7, 2, 4], strides = [1, 1, 1, 1, 1]} : vector<1x1x7x6x4xf32> to vector<1x1x7x2x4xf32>
    %164 = arith.maximumf %162, %163 : vector<1x1x7x2x4xf32>
    %cst_21 = arith.constant 0xFF800000 : f32
    %165 = vector.broadcast %cst_21 : f32 to vector<1x1x7x2x1xf32>
    %cst_22 = arith.constant 0xFF800000 : f32
    %166 = vector.broadcast %cst_22 : f32 to vector<1x1x7x2x1xf32>
    %167 = tpu.concatenate %165, %164, %166 in 4 : vector<1x1x7x2x1xf32>, vector<1x1x7x2x4xf32>, vector<1x1x7x2x1xf32> -> vector<1x1x7x2x6xf32>
    %168 = vector.extract_strided_slice %167 {offsets = [0, 0, 0, 0, 0], sizes = [1, 1, 7, 2, 2], strides = [1, 1, 1, 1, 1]} : vector<1x1x7x2x6xf32> to vector<1x1x7x2x2xf32>
    %169 = vector.extract_strided_slice %167 {offsets = [0, 0, 0, 0, 2], sizes = [1, 1, 7, 2, 2], strides = [1, 1, 1, 1, 1]} : vector<1x1x7x2x6xf32> to vector<1x1x7x2x2xf32>
    %170 = arith.maximumf %168, %169 : vector<1x1x7x2x2xf32>
    %171 = vector.extract_strided_slice %167 {offsets = [0, 0, 0, 0, 4], sizes = [1, 1, 7, 2, 2], strides = [1, 1, 1, 1, 1]} : vector<1x1x7x2x6xf32> to vector<1x1x7x2x2xf32>
    %172 = arith.maximumf %170, %171 : vector<1x1x7x2x2xf32>
    %173 = vector.extract_strided_slice %172 {offsets = [0, 0, 0, 0, 0], sizes = [1, 1, 6, 2, 2], strides = [1, 1, 1, 1, 1]} : vector<1x1x7x2x2xf32> to vector<1x1x6x2x2xf32>
    %174 = vector.extract_strided_slice %172 {offsets = [0, 0, 1, 0, 0], sizes = [1, 1, 6, 2, 2], strides = [1, 1, 1, 1, 1]} : vector<1x1x7x2x2xf32> to vector<1x1x6x2x2xf32>
    %175 = arith.maximumf %173, %174 : vector<1x1x6x2x2xf32>
    %176 = vector.extract_strided_slice %175 {offsets = [0, 0, 0, 0, 0], sizes = [1, 1, 6, 1, 2], strides = [1, 1, 1, 1, 1]} : vector<1x1x6x2x2xf32> to vector<1x1x6x1x2xf32>
    %177 = vector.extract_strided_slice %175 {offsets = [0, 0, 0, 1, 0], sizes = [1, 1, 6, 1, 2], strides = [1, 1, 1, 1, 1]} : vector<1x1x6x2x2xf32> to vector<1x1x6x1x2xf32>
    %178 = arith.maximumf %176, %177 : vector<1x1x6x1x2xf32>
    %179 = vector.extract_strided_slice %178 {offsets = [0, 0, 0, 0, 0], sizes = [1, 1, 6, 1, 1], strides = [1, 1, 1, 1, 1]} : vector<1x1x6x1x2xf32> to vector<1x1x6x1x1xf32>
    %180 = vector.extract_strided_slice %178 {offsets = [0, 0, 0, 0, 1], sizes = [1, 1, 6, 1, 1], strides = [1, 1, 1, 1, 1]} : vector<1x1x6x1x2xf32> to vector<1x1x6x1x1xf32>
    %181 = arith.maximumf %179, %180 : vector<1x1x6x1x1xf32>
    %cst_23 = arith.constant 0xFF800000 : f32
    %182 = vector.broadcast %cst_23 : f32 to vector<1x1x2x1x1xf32>
    %cst_24 = arith.constant 0xFF800000 : f32
    %183 = vector.broadcast %cst_24 : f32 to vector<1x1x2x1x1xf32>
    %184 = tpu.concatenate %182, %181, %183 in 2 : vector<1x1x2x1x1xf32>, vector<1x1x6x1x1xf32>, vector<1x1x2x1x1xf32> -> vector<1x1x10x1x1xf32>
    %cst_25 = arith.constant 0xFF800000 : f32
    %185 = vector.broadcast %cst_25 : f32 to vector<1x1x10x2x1xf32>
    %cst_26 = arith.constant 0xFF800000 : f32
    %186 = vector.broadcast %cst_26 : f32 to vector<1x1x10x2x1xf32>
    %187 = tpu.concatenate %185, %184, %186 in 3 : vector<1x1x10x2x1xf32>, vector<1x1x10x1x1xf32>, vector<1x1x10x2x1xf32> -> vector<1x1x10x5x1xf32>
    %cst_27 = arith.constant 0xFF800000 : f32
    %188 = vector.broadcast %cst_27 : f32 to vector<1x1x10x5x2xf32>
    %cst_28 = arith.constant 0xFF800000 : f32
    %189 = vector.broadcast %cst_28 : f32 to vector<1x1x10x5x2xf32>
    %190 = tpu.concatenate %188, %187, %189 in 4 : vector<1x1x10x5x2xf32>, vector<1x1x10x5x1xf32>, vector<1x1x10x5x2xf32> -> vector<1x1x10x5x5xf32>
    %cst_29 = arith.constant 0xFF800000 : f32
    %191 = vector.broadcast %cst_29 : f32 to vector<1x1x6x2x2xf32>
    %c0_i32 = arith.constant 0 : i32
    %192 = vector.broadcast %c0_i32 : i32 to vector<1x1x6x2x2xi32>
    %193 = vector.extract_strided_slice %190 {offsets = [0, 0, 0, 1, 1], sizes = [1, 1, 6, 2, 2], strides = [1, 1, 1, 1, 1]} : vector<1x1x10x5x5xf32> to vector<1x1x6x2x2xf32>
    %194 = arith.cmpf ogt, %193, %191 : vector<1x1x6x2x2xf32>
    %195 = arith.select %194, %193, %191 : vector<1x1x6x2x2xi1>, vector<1x1x6x2x2xf32>
    %c-4_i32 = arith.constant -4 : i32
    %196 = vector.broadcast %c-4_i32 : i32 to vector<1x1x6x2x2xi32>
    %197 = arith.select %194, %196, %192 : vector<1x1x6x2x2xi1>, vector<1x1x6x2x2xi32>
    %198 = vector.extract_strided_slice %190 {offsets = [0, 0, 0, 1, 2], sizes = [1, 1, 6, 2, 2], strides = [1, 1, 1, 1, 1]} : vector<1x1x10x5x5xf32> to vector<1x1x6x2x2xf32>
    %199 = arith.cmpf ogt, %198, %195 : vector<1x1x6x2x2xf32>
    %200 = arith.select %199, %198, %195 : vector<1x1x6x2x2xi1>, vector<1x1x6x2x2xf32>
    %c-3_i32 = arith.constant -3 : i32
    %201 = vector.broadcast %c-3_i32 : i32 to vector<1x1x6x2x2xi32>
    %202 = arith.select %199, %201, %197 : vector<1x1x6x2x2xi1>, vector<1x1x6x2x2xi32>
    %203 = vector.extract_strided_slice %190 {offsets = [0, 0, 0, 2, 1], sizes = [1, 1, 6, 2, 2], strides = [1, 1, 1, 1, 1]} : vector<1x1x10x5x5xf32> to vector<1x1x6x2x2xf32>
    %204 = arith.cmpf ogt, %203, %200 : vector<1x1x6x2x2xf32>
    %205 = arith.select %204, %203, %200 : vector<1x1x6x2x2xi1>, vector<1x1x6x2x2xf32>
    %c-3_i32_30 = arith.constant -3 : i32
    %206 = vector.broadcast %c-3_i32_30 : i32 to vector<1x1x6x2x2xi32>
    %207 = arith.select %204, %206, %202 : vector<1x1x6x2x2xi1>, vector<1x1x6x2x2xi32>
    %208 = vector.extract_strided_slice %190 {offsets = [0, 0, 0, 2, 2], sizes = [1, 1, 6, 2, 2], strides = [1, 1, 1, 1, 1]} : vector<1x1x10x5x5xf32> to vector<1x1x6x2x2xf32>
    %209 = arith.cmpf ogt, %208, %205 : vector<1x1x6x2x2xf32>
    %210 = arith.select %209, %208, %205 : vector<1x1x6x2x2xi1>, vector<1x1x6x2x2xf32>
    %c-2_i32 = arith.constant -2 : i32
    %211 = vector.broadcast %c-2_i32 : i32 to vector<1x1x6x2x2xi32>
    %212 = arith.select %209, %211, %207 : vector<1x1x6x2x2xi1>, vector<1x1x6x2x2xi32>
    %213 = vector.extract_strided_slice %190 {offsets = [0, 0, 1, 1, 1], sizes = [1, 1, 6, 2, 2], strides = [1, 1, 1, 1, 1]} : vector<1x1x10x5x5xf32> to vector<1x1x6x2x2xf32>
    %214 = arith.cmpf ogt, %213, %210 : vector<1x1x6x2x2xf32>
    %215 = arith.select %214, %213, %210 : vector<1x1x6x2x2xi1>, vector<1x1x6x2x2xf32>
    %c-3_i32_31 = arith.constant -3 : i32
    %216 = vector.broadcast %c-3_i32_31 : i32 to vector<1x1x6x2x2xi32>
    %217 = arith.select %214, %216, %212 : vector<1x1x6x2x2xi1>, vector<1x1x6x2x2xi32>
    %218 = vector.extract_strided_slice %190 {offsets = [0, 0, 1, 1, 2], sizes = [1, 1, 6, 2, 2], strides = [1, 1, 1, 1, 1]} : vector<1x1x10x5x5xf32> to vector<1x1x6x2x2xf32>
    %219 = arith.cmpf ogt, %218, %215 : vector<1x1x6x2x2xf32>
    %220 = arith.select %219, %218, %215 : vector<1x1x6x2x2xi1>, vector<1x1x6x2x2xf32>
    %c-2_i32_32 = arith.constant -2 : i32
    %221 = vector.broadcast %c-2_i32_32 : i32 to vector<1x1x6x2x2xi32>
    %222 = arith.select %219, %221, %217 : vector<1x1x6x2x2xi1>, vector<1x1x6x2x2xi32>
    %223 = vector.extract_strided_slice %190 {offsets = [0, 0, 1, 2, 1], sizes = [1, 1, 6, 2, 2], strides = [1, 1, 1, 1, 1]} : vector<1x1x10x5x5xf32> to vector<1x1x6x2x2xf32>
    %224 = arith.cmpf ogt, %223, %220 : vector<1x1x6x2x2xf32>
    %225 = arith.select %224, %223, %220 : vector<1x1x6x2x2xi1>, vector<1x1x6x2x2xf32>
    %c-2_i32_33 = arith.constant -2 : i32
    %226 = vector.broadcast %c-2_i32_33 : i32 to vector<1x1x6x2x2xi32>
    %227 = arith.select %224, %226, %222 : vector<1x1x6x2x2xi1>, vector<1x1x6x2x2xi32>
    %228 = vector.extract_strided_slice %190 {offsets = [0, 0, 1, 2, 2], sizes = [1, 1, 6, 2, 2], strides = [1, 1, 1, 1, 1]} : vector<1x1x10x5x5xf32> to vector<1x1x6x2x2xf32>
    %229 = arith.cmpf ogt, %228, %225 : vector<1x1x6x2x2xf32>
    %230 = arith.select %229, %228, %225 : vector<1x1x6x2x2xi1>, vector<1x1x6x2x2xf32>
    %c-1_i32 = arith.constant -1 : i32
    %231 = vector.broadcast %c-1_i32 : i32 to vector<1x1x6x2x2xi32>
    %232 = arith.select %229, %231, %227 : vector<1x1x6x2x2xi1>, vector<1x1x6x2x2xi32>
    %233 = vector.extract_strided_slice %190 {offsets = [0, 0, 2, 1, 1], sizes = [1, 1, 6, 2, 2], strides = [1, 1, 1, 1, 1]} : vector<1x1x10x5x5xf32> to vector<1x1x6x2x2xf32>
    %234 = arith.cmpf ogt, %233, %230 : vector<1x1x6x2x2xf32>
    %235 = arith.select %234, %233, %230 : vector<1x1x6x2x2xi1>, vector<1x1x6x2x2xf32>
    %c-2_i32_34 = arith.constant -2 : i32
    %236 = vector.broadcast %c-2_i32_34 : i32 to vector<1x1x6x2x2xi32>
    %237 = arith.select %234, %236, %232 : vector<1x1x6x2x2xi1>, vector<1x1x6x2x2xi32>
    %238 = vector.extract_strided_slice %190 {offsets = [0, 0, 2, 1, 2], sizes = [1, 1, 6, 2, 2], strides = [1, 1, 1, 1, 1]} : vector<1x1x10x5x5xf32> to vector<1x1x6x2x2xf32>
    %239 = arith.cmpf ogt, %238, %235 : vector<1x1x6x2x2xf32>
    %240 = arith.select %239, %238, %235 : vector<1x1x6x2x2xi1>, vector<1x1x6x2x2xf32>
    %c-1_i32_35 = arith.constant -1 : i32
    %241 = vector.broadcast %c-1_i32_35 : i32 to vector<1x1x6x2x2xi32>
    %242 = arith.select %239, %241, %237 : vector<1x1x6x2x2xi1>, vector<1x1x6x2x2xi32>
    %243 = vector.extract_strided_slice %190 {offsets = [0, 0, 2, 2, 1], sizes = [1, 1, 6, 2, 2], strides = [1, 1, 1, 1, 1]} : vector<1x1x10x5x5xf32> to vector<1x1x6x2x2xf32>
    %244 = arith.cmpf ogt, %243, %240 : vector<1x1x6x2x2xf32>
    %245 = arith.select %244, %243, %240 : vector<1x1x6x2x2xi1>, vector<1x1x6x2x2xf32>
    %c-1_i32_36 = arith.constant -1 : i32
    %246 = vector.broadcast %c-1_i32_36 : i32 to vector<1x1x6x2x2xi32>
    %247 = arith.select %244, %246, %242 : vector<1x1x6x2x2xi1>, vector<1x1x6x2x2xi32>
    %248 = vector.extract_strided_slice %190 {offsets = [0, 0, 2, 2, 2], sizes = [1, 1, 6, 2, 2], strides = [1, 1, 1, 1, 1]} : vector<1x1x10x5x5xf32> to vector<1x1x6x2x2xf32>
    %249 = arith.cmpf ogt, %248, %245 : vector<1x1x6x2x2xf32>
    %250 = arith.select %249, %248, %245 : vector<1x1x6x2x2xi1>, vector<1x1x6x2x2xf32>
    %c0_i32_37 = arith.constant 0 : i32
    %251 = vector.broadcast %c0_i32_37 : i32 to vector<1x1x6x2x2xi32>
    %252 = arith.select %249, %251, %247 : vector<1x1x6x2x2xi1>, vector<1x1x6x2x2xi32>
    %253 = vector.extract_strided_slice %190 {offsets = [0, 0, 3, 1, 1], sizes = [1, 1, 6, 2, 2], strides = [1, 1, 1, 1, 1]} : vector<1x1x10x5x5xf32> to vector<1x1x6x2x2xf32>
    %254 = arith.cmpf ogt, %253, %250 : vector<1x1x6x2x2xf32>
    %255 = arith.select %254, %253, %250 : vector<1x1x6x2x2xi1>, vector<1x1x6x2x2xf32>
    %c-1_i32_38 = arith.constant -1 : i32
    %256 = vector.broadcast %c-1_i32_38 : i32 to vector<1x1x6x2x2xi32>
    %257 = arith.select %254, %256, %252 : vector<1x1x6x2x2xi1>, vector<1x1x6x2x2xi32>
    %258 = vector.extract_strided_slice %190 {offsets = [0, 0, 3, 1, 2], sizes = [1, 1, 6, 2, 2], strides = [1, 1, 1, 1, 1]} : vector<1x1x10x5x5xf32> to vector<1x1x6x2x2xf32>
    %259 = arith.cmpf ogt, %258, %255 : vector<1x1x6x2x2xf32>
    %260 = arith.select %259, %258, %255 : vector<1x1x6x2x2xi1>, vector<1x1x6x2x2xf32>
    %c0_i32_39 = arith.constant 0 : i32
    %261 = vector.broadcast %c0_i32_39 : i32 to vector<1x1x6x2x2xi32>
    %262 = arith.select %259, %261, %257 : vector<1x1x6x2x2xi1>, vector<1x1x6x2x2xi32>
    %263 = vector.extract_strided_slice %190 {offsets = [0, 0, 3, 2, 1], sizes = [1, 1, 6, 2, 2], strides = [1, 1, 1, 1, 1]} : vector<1x1x10x5x5xf32> to vector<1x1x6x2x2xf32>
    %264 = arith.cmpf ogt, %263, %260 : vector<1x1x6x2x2xf32>
    %265 = arith.select %264, %263, %260 : vector<1x1x6x2x2xi1>, vector<1x1x6x2x2xf32>
    %c0_i32_40 = arith.constant 0 : i32
    %266 = vector.broadcast %c0_i32_40 : i32 to vector<1x1x6x2x2xi32>
    %267 = arith.select %264, %266, %262 : vector<1x1x6x2x2xi1>, vector<1x1x6x2x2xi32>
    %268 = vector.extract_strided_slice %190 {offsets = [0, 0, 3, 2, 2], sizes = [1, 1, 6, 2, 2], strides = [1, 1, 1, 1, 1]} : vector<1x1x10x5x5xf32> to vector<1x1x6x2x2xf32>
    %269 = arith.cmpf ogt, %268, %265 : vector<1x1x6x2x2xf32>
    %270 = arith.select %269, %268, %265 : vector<1x1x6x2x2xi1>, vector<1x1x6x2x2xf32>
    %c1_i32 = arith.constant 1 : i32
    %271 = vector.broadcast %c1_i32 : i32 to vector<1x1x6x2x2xi32>
    %272 = arith.select %269, %271, %267 : vector<1x1x6x2x2xi1>, vector<1x1x6x2x2xi32>
    %273 = vector.extract_strided_slice %190 {offsets = [0, 0, 4, 1, 1], sizes = [1, 1, 6, 2, 2], strides = [1, 1, 1, 1, 1]} : vector<1x1x10x5x5xf32> to vector<1x1x6x2x2xf32>
    %274 = arith.cmpf ogt, %273, %270 : vector<1x1x6x2x2xf32>
    %275 = arith.select %274, %273, %270 : vector<1x1x6x2x2xi1>, vector<1x1x6x2x2xf32>
    %c0_i32_41 = arith.constant 0 : i32
    %276 = vector.broadcast %c0_i32_41 : i32 to vector<1x1x6x2x2xi32>
    %277 = arith.select %274, %276, %272 : vector<1x1x6x2x2xi1>, vector<1x1x6x2x2xi32>
    %278 = vector.extract_strided_slice %190 {offsets = [0, 0, 4, 1, 2], sizes = [1, 1, 6, 2, 2], strides = [1, 1, 1, 1, 1]} : vector<1x1x10x5x5xf32> to vector<1x1x6x2x2xf32>
    %279 = arith.cmpf ogt, %278, %275 : vector<1x1x6x2x2xf32>
    %280 = arith.select %279, %278, %275 : vector<1x1x6x2x2xi1>, vector<1x1x6x2x2xf32>
    %c1_i32_42 = arith.constant 1 : i32
    %281 = vector.broadcast %c1_i32_42 : i32 to vector<1x1x6x2x2xi32>
    %282 = arith.select %279, %281, %277 : vector<1x1x6x2x2xi1>, vector<1x1x6x2x2xi32>
    %283 = vector.extract_strided_slice %190 {offsets = [0, 0, 4, 2, 1], sizes = [1, 1, 6, 2, 2], strides = [1, 1, 1, 1, 1]} : vector<1x1x10x5x5xf32> to vector<1x1x6x2x2xf32>
    %284 = arith.cmpf ogt, %283, %280 : vector<1x1x6x2x2xf32>
    %285 = arith.select %284, %283, %280 : vector<1x1x6x2x2xi1>, vector<1x1x6x2x2xf32>
    %c1_i32_43 = arith.constant 1 : i32
    %286 = vector.broadcast %c1_i32_43 : i32 to vector<1x1x6x2x2xi32>
    %287 = arith.select %284, %286, %282 : vector<1x1x6x2x2xi1>, vector<1x1x6x2x2xi32>
    %288 = vector.extract_strided_slice %190 {offsets = [0, 0, 4, 2, 2], sizes = [1, 1, 6, 2, 2], strides = [1, 1, 1, 1, 1]} : vector<1x1x10x5x5xf32> to vector<1x1x6x2x2xf32>
    %289 = arith.cmpf ogt, %288, %285 : vector<1x1x6x2x2xf32>
    %290 = arith.select %289, %288, %285 : vector<1x1x6x2x2xi1>, vector<1x1x6x2x2xf32>
    %c2_i32 = arith.constant 2 : i32
    %291 = vector.broadcast %c2_i32 : i32 to vector<1x1x6x2x2xi32>
    %292 = arith.select %289, %291, %287 : vector<1x1x6x2x2xi1>, vector<1x1x6x2x2xi32>
    %293 = tpu.iota {dimensions = array<i32: 2>} : vector<1x1x6x2x2xi32>
    %294 = tpu.iota {dimensions = array<i32: 3>} : vector<1x1x6x2x2xi32>
    %295 = tpu.iota {dimensions = array<i32: 4>} : vector<1x1x6x2x2xi32>
    %c1_i32_44 = arith.constant 1 : i32
    %296 = vector.broadcast %c1_i32_44 : i32 to vector<1x1x6x2x2xi32>
    %297 = arith.muli %293, %296 : vector<1x1x6x2x2xi32>
    %298 = arith.addi %297, %294 : vector<1x1x6x2x2xi32>
    %c1_i32_45 = arith.constant 1 : i32
    %299 = vector.broadcast %c1_i32_45 : i32 to vector<1x1x6x2x2xi32>
    %300 = arith.muli %298, %299 : vector<1x1x6x2x2xi32>
    %301 = arith.addi %300, %295 : vector<1x1x6x2x2xi32>
    %302 = arith.addi %301, %292 : vector<1x1x6x2x2xi32>
    %c0_46 = arith.constant 0 : index
    %c0_47 = arith.constant 0 : index
    %c0_48 = arith.constant 0 : index
    %c0_49 = arith.constant 0 : index
    %c0_50 = arith.constant 0 : index
    %303 = vector.load %arg4[%c0_46, %c0_47, %c0_48, %c0_49, %c0_50] : memref<1x1x6x2x2xf32, #tpu.memory_space<vmem>>, vector<1x1x6x2x2xf32>
    tpu.vector_store %arg4[%c0_46, %c0_47, %c0_48, %c0_49, %c0_50], %290 {strides = array<i32>} : memref<1x1x6x2x2xf32, #tpu.memory_space<vmem>>, vector<1x1x6x2x2xf32>,
    %c0_51 = arith.constant 0 : index
    %c0_52 = arith.constant 0 : index
    %c0_53 = arith.constant 0 : index
    %c0_54 = arith.constant 0 : index
    %c0_55 = arith.constant 0 : index
    %304 = vector.load %arg5[%c0_51, %c0_52, %c0_53, %c0_54, %c0_55] : memref<1x1x6x2x2xi32, #tpu.memory_space<vmem>>, vector<1x1x6x2x2xi32>
    tpu.vector_store %arg5[%c0_51, %c0_52, %c0_53, %c0_54, %c0_55], %302 {strides = array<i32>} : memref<1x1x6x2x2xi32, #tpu.memory_space<vmem>>, vector<1x1x6x2x2xi32>,
    %c0_56 = arith.constant 0 : index
    %c0_57 = arith.constant 0 : index
    %c0_58 = arith.constant 0 : index
    %c0_59 = arith.constant 0 : index
    %c0_60 = arith.constant 0 : index
    %305 = vector.load %arg3[%c0_56, %c0_57, %c0_58, %c0_59, %c0_60] : memref<1x1x33x32x31xf32, #tpu.memory_space<vmem>>, vector<1x1x33x32x31xf32>
    %306 = vector.extract_strided_slice %305 {offsets = [0, 0, 0, 0, 0], sizes = [1, 1, 31, 32, 31], strides = [1, 1, 1, 1, 1]} : vector<1x1x33x32x31xf32> to vector<1x1x31x32x31xf32>
    %307 = vector.extract_strided_slice %305 {offsets = [0, 0, 1, 0, 0], sizes = [1, 1, 31, 32, 31], strides = [1, 1, 1, 1, 1]} : vector<1x1x33x32x31xf32> to vector<1x1x31x32x31xf32>
    %308 = arith.maximumf %306, %307 : vector<1x1x31x32x31xf32>
    %309 = vector.extract_strided_slice %305 {offsets = [0, 0, 2, 0, 0], sizes = [1, 1, 31, 32, 31], strides = [1, 1, 1, 1, 1]} : vector<1x1x33x32x31xf32> to vector<1x1x31x32x31xf32>
    %310 = arith.maximumf %308, %309 : vector<1x1x31x32x31xf32>
    %311 = vector.extract_strided_slice %310 {offsets = [0, 0, 0, 0, 0], sizes = [1, 1, 1, 32, 31], strides = [1, 1, 1, 1, 1]} : vector<1x1x31x32x31xf32> to vector<1x1x1x32x31xf32>
    %312 = vector.extract_strided_slice %310 {offsets = [0, 0, 3, 0, 0], sizes = [1, 1, 1, 32, 31], strides = [1, 1, 1, 1, 1]} : vector<1x1x31x32x31xf32> to vector<1x1x1x32x31xf32>
    %313 = vector.extract_strided_slice %310 {offsets = [0, 0, 6, 0, 0], sizes = [1, 1, 1, 32, 31], strides = [1, 1, 1, 1, 1]} : vector<1x1x31x32x31xf32> to vector<1x1x1x32x31xf32>
    %314 = vector.extract_strided_slice %310 {offsets = [0, 0, 9, 0, 0], sizes = [1, 1, 1, 32, 31], strides = [1, 1, 1, 1, 1]} : vector<1x1x31x32x31xf32> to vector<1x1x1x32x31xf32>
    %315 = vector.extract_strided_slice %310 {offsets = [0, 0, 12, 0, 0], sizes = [1, 1, 1, 32, 31], strides = [1, 1, 1, 1, 1]} : vector<1x1x31x32x31xf32> to vector<1x1x1x32x31xf32>
    %316 = vector.extract_strided_slice %310 {offsets = [0, 0, 15, 0, 0], sizes = [1, 1, 1, 32, 31], strides = [1, 1, 1, 1, 1]} : vector<1x1x31x32x31xf32> to vector<1x1x1x32x31xf32>
    %317 = vector.extract_strided_slice %310 {offsets = [0, 0, 18, 0, 0], sizes = [1, 1, 1, 32, 31], strides = [1, 1, 1, 1, 1]} : vector<1x1x31x32x31xf32> to vector<1x1x1x32x31xf32>
    %318 = vector.extract_strided_slice %310 {offsets = [0, 0, 21, 0, 0], sizes = [1, 1, 1, 32, 31], strides = [1, 1, 1, 1, 1]} : vector<1x1x31x32x31xf32> to vector<1x1x1x32x31xf32>
    %319 = vector.extract_strided_slice %310 {offsets = [0, 0, 24, 0, 0], sizes = [1, 1, 1, 32, 31], strides = [1, 1, 1, 1, 1]} : vector<1x1x31x32x31xf32> to vector<1x1x1x32x31xf32>
    %320 = vector.extract_strided_slice %310 {offsets = [0, 0, 27, 0, 0], sizes = [1, 1, 1, 32, 31], strides = [1, 1, 1, 1, 1]} : vector<1x1x31x32x31xf32> to vector<1x1x1x32x31xf32>
    %321 = vector.extract_strided_slice %310 {offsets = [0, 0, 30, 0, 0], sizes = [1, 1, 1, 32, 31], strides = [1, 1, 1, 1, 1]} : vector<1x1x31x32x31xf32> to vector<1x1x1x32x31xf32>
    %322 = tpu.concatenate %311, %312, %313, %314, %315, %316, %317, %318, %319, %320, %321 in 2 : vector<1x1x1x32x31xf32>, vector<1x1x1x32x31xf32>, vector<1x1x1x32x31xf32>, vector<1x1x1x32x31xf32>, vector<1x1x1x32x31xf32>, vector<1x1x1x32x31xf32>, vector<1x1x1x32x31xf32>, vector<1x1x1x32x31xf32>, vector<1x1x1x32x31xf32>, vector<1x1x1x32x31xf32>, vector<1x1x1x32x31xf32> -> vector<1x1x11x32x31xf32>
    %323 = vector.extract_strided_slice %322 {offsets = [0, 0, 0, 0, 0], sizes = [1, 1, 11, 28, 31], strides = [1, 1, 1, 1, 1]} : vector<1x1x11x32x31xf32> to vector<1x1x11x28x31xf32>
    %324 = vector.extract_strided_slice %322 {offsets = [0, 0, 0, 1, 0], sizes = [1, 1, 11, 28, 31], strides = [1, 1, 1, 1, 1]} : vector<1x1x11x32x31xf32> to vector<1x1x11x28x31xf32>
    %325 = arith.maximumf %323, %324 : vector<1x1x11x28x31xf32>
    %326 = vector.extract_strided_slice %322 {offsets = [0, 0, 0, 2, 0], sizes = [1, 1, 11, 28, 31], strides = [1, 1, 1, 1, 1]} : vector<1x1x11x32x31xf32> to vector<1x1x11x28x31xf32>
    %327 = arith.maximumf %325, %326 : vector<1x1x11x28x31xf32>
    %328 = vector.extract_strided_slice %327 {offsets = [0, 0, 0, 0, 0], sizes = [1, 1, 11, 1, 31], strides = [1, 1, 1, 1, 1]} : vector<1x1x11x28x31xf32> to vector<1x1x11x1x31xf32>
    %329 = vector.extract_strided_slice %327 {offsets = [0, 0, 0, 3, 0], sizes = [1, 1, 11, 1, 31], strides = [1, 1, 1, 1, 1]} : vector<1x1x11x28x31xf32> to vector<1x1x11x1x31xf32>
    %330 = vector.extract_strided_slice %327 {offsets = [0, 0, 0, 6, 0], sizes = [1, 1, 11, 1, 31], strides = [1, 1, 1, 1, 1]} : vector<1x1x11x28x31xf32> to vector<1x1x11x1x31xf32>
    %331 = vector.extract_strided_slice %327 {offsets = [0, 0, 0, 9, 0], sizes = [1, 1, 11, 1, 31], strides = [1, 1, 1, 1, 1]} : vector<1x1x11x28x31xf32> to vector<1x1x11x1x31xf32>
    %332 = vector.extract_strided_slice %327 {offsets = [0, 0, 0, 12, 0], sizes = [1, 1, 11, 1, 31], strides = [1, 1, 1, 1, 1]} : vector<1x1x11x28x31xf32> to vector<1x1x11x1x31xf32>
    %333 = vector.extract_strided_slice %327 {offsets = [0, 0, 0, 15, 0], sizes = [1, 1, 11, 1, 31], strides = [1, 1, 1, 1, 1]} : vector<1x1x11x28x31xf32> to vector<1x1x11x1x31xf32>
    %334 = vector.extract_strided_slice %327 {offsets = [0, 0, 0, 18, 0], sizes = [1, 1, 11, 1, 31], strides = [1, 1, 1, 1, 1]} : vector<1x1x11x28x31xf32> to vector<1x1x11x1x31xf32>
    %335 = vector.extract_strided_slice %327 {offsets = [0, 0, 0, 21, 0], sizes = [1, 1, 11, 1, 31], strides = [1, 1, 1, 1, 1]} : vector<1x1x11x28x31xf32> to vector<1x1x11x1x31xf32>
    %336 = vector.extract_strided_slice %327 {offsets = [0, 0, 0, 24, 0], sizes = [1, 1, 11, 1, 31], strides = [1, 1, 1, 1, 1]} : vector<1x1x11x28x31xf32> to vector<1x1x11x1x31xf32>
    %337 = vector.extract_strided_slice %327 {offsets = [0, 0, 0, 27, 0], sizes = [1, 1, 11, 1, 31], strides = [1, 1, 1, 1, 1]} : vector<1x1x11x28x31xf32> to vector<1x1x11x1x31xf32>
    %338 = tpu.concatenate %328, %329, %330, %331, %332, %333, %334, %335, %336, %337 in 3 : vector<1x1x11x1x31xf32>, vector<1x1x11x1x31xf32>, vector<1x1x11x1x31xf32>, vector<1x1x11x1x31xf32>, vector<1x1x11x1x31xf32>, vector<1x1x11x1x31xf32>, vector<1x1x11x1x31xf32>, vector<1x1x11x1x31xf32>, vector<1x1x11x1x31xf32>, vector<1x1x11x1x31xf32> -> vector<1x1x11x10x31xf32>
    %339 = vector.extract_strided_slice %338 {offsets = [0, 0, 0, 0, 0], sizes = [1, 1, 11, 10, 28], strides = [1, 1, 1, 1, 1]} : vector<1x1x11x10x31xf32> to vector<1x1x11x10x28xf32>
    %340 = vector.extract_strided_slice %338 {offsets = [0, 0, 0, 0, 1], sizes = [1, 1, 11, 10, 28], strides = [1, 1, 1, 1, 1]} : vector<1x1x11x10x31xf32> to vector<1x1x11x10x28xf32>
    %341 = arith.maximumf %339, %340 : vector<1x1x11x10x28xf32>
    %342 = vector.extract_strided_slice %338 {offsets = [0, 0, 0, 0, 2], sizes = [1, 1, 11, 10, 28], strides = [1, 1, 1, 1, 1]} : vector<1x1x11x10x31xf32> to vector<1x1x11x10x28xf32>
    %343 = arith.maximumf %341, %342 : vector<1x1x11x10x28xf32>
    %344 = vector.extract_strided_slice %343 {offsets = [0, 0, 0, 0, 0], sizes = [1, 1, 11, 10, 1], strides = [1, 1, 1, 1, 1]} : vector<1x1x11x10x28xf32> to vector<1x1x11x10x1xf32>
    %345 = vector.extract_strided_slice %343 {offsets = [0, 0, 0, 0, 3], sizes = [1, 1, 11, 10, 1], strides = [1, 1, 1, 1, 1]} : vector<1x1x11x10x28xf32> to vector<1x1x11x10x1xf32>
    %346 = vector.extract_strided_slice %343 {offsets = [0, 0, 0, 0, 6], sizes = [1, 1, 11, 10, 1], strides = [1, 1, 1, 1, 1]} : vector<1x1x11x10x28xf32> to vector<1x1x11x10x1xf32>
    %347 = vector.extract_strided_slice %343 {offsets = [0, 0, 0, 0, 9], sizes = [1, 1, 11, 10, 1], strides = [1, 1, 1, 1, 1]} : vector<1x1x11x10x28xf32> to vector<1x1x11x10x1xf32>
    %348 = vector.extract_strided_slice %343 {offsets = [0, 0, 0, 0, 12], sizes = [1, 1, 11, 10, 1], strides = [1, 1, 1, 1, 1]} : vector<1x1x11x10x28xf32> to vector<1x1x11x10x1xf32>
    %349 = vector.extract_strided_slice %343 {offsets = [0, 0, 0, 0, 15], sizes = [1, 1, 11, 10, 1], strides = [1, 1, 1, 1, 1]} : vector<1x1x11x10x28xf32> to vector<1x1x11x10x1xf32>
    %350 = vector.extract_strided_slice %343 {offsets = [0, 0, 0, 0, 18], sizes = [1, 1, 11, 10, 1], strides = [1, 1, 1, 1, 1]} : vector<1x1x11x10x28xf32> to vector<1x1x11x10x1xf32>
    %351 = vector.extract_strided_slice %343 {offsets = [0, 0, 0, 0, 21], sizes = [1, 1, 11, 10, 1], strides = [1, 1, 1, 1, 1]} : vector<1x1x11x10x28xf32> to vector<1x1x11x10x1xf32>
    %352 = vector.extract_strided_slice %343 {offsets = [0, 0, 0, 0, 24], sizes = [1, 1, 11, 10, 1], strides = [1, 1, 1, 1, 1]} : vector<1x1x11x10x28xf32> to vector<1x1x11x10x1xf32>
    %353 = vector.extract_strided_slice %343 {offsets = [0, 0, 0, 0, 27], sizes = [1, 1, 11, 10, 1], strides = [1, 1, 1, 1, 1]} : vector<1x1x11x10x28xf32> to vector<1x1x11x10x1xf32>
    %354 = tpu.concatenate %344, %345, %346, %347, %348, %349, %350, %351, %352, %353 in 4 : vector<1x1x11x10x1xf32>, vector<1x1x11x10x1xf32>, vector<1x1x11x10x1xf32>, vector<1x1x11x10x1xf32>, vector<1x1x11x10x1xf32>, vector<1x1x11x10x1xf32>, vector<1x1x11x10x1xf32>, vector<1x1x11x10x1xf32>, vector<1x1x11x10x1xf32>, vector<1x1x11x10x1xf32> -> vector<1x1x11x10x10xf32>
    %cst_61 = arith.constant 0xFF800000 : f32
    %355 = vector.broadcast %cst_61 : f32 to vector<1x1x2x10x10xf32>
    %cst_62 = arith.constant 0xFF800000 : f32
    %356 = vector.broadcast %cst_62 : f32 to vector<1x1x1x10x10xf32>
    %357 = tpu.concatenate %355, %354, %356 in 2 : vector<1x1x2x10x10xf32>, vector<1x1x11x10x10xf32>, vector<1x1x1x10x10xf32> -> vector<1x1x14x10x10xf32>
    %358 = vector.extract_strided_slice %357 {offsets = [0, 0, 0, 0, 0], sizes = [1, 1, 11, 10, 10], strides = [1, 1, 1, 1, 1]} : vector<1x1x14x10x10xf32> to vector<1x1x11x10x10xf32>
    %359 = vector.extract_strided_slice %357 {offsets = [0, 0, 1, 0, 0], sizes = [1, 1, 11, 10, 10], strides = [1, 1, 1, 1, 1]} : vector<1x1x14x10x10xf32> to vector<1x1x11x10x10xf32>
    %360 = arith.maximumf %358, %359 : vector<1x1x11x10x10xf32>
    %361 = vector.extract_strided_slice %357 {offsets = [0, 0, 2, 0, 0], sizes = [1, 1, 11, 10, 10], strides = [1, 1, 1, 1, 1]} : vector<1x1x14x10x10xf32> to vector<1x1x11x10x10xf32>
    %362 = arith.maximumf %360, %361 : vector<1x1x11x10x10xf32>
    %363 = vector.extract_strided_slice %357 {offsets = [0, 0, 3, 0, 0], sizes = [1, 1, 11, 10, 10], strides = [1, 1, 1, 1, 1]} : vector<1x1x14x10x10xf32> to vector<1x1x11x10x10xf32>
    %364 = arith.maximumf %362, %363 : vector<1x1x11x10x10xf32>
    %365 = vector.extract_strided_slice %364 {offsets = [0, 0, 0, 0, 0], sizes = [1, 1, 1, 10, 10], strides = [1, 1, 1, 1, 1]} : vector<1x1x11x10x10xf32> to vector<1x1x1x10x10xf32>
    %366 = vector.extract_strided_slice %364 {offsets = [0, 0, 2, 0, 0], sizes = [1, 1, 1, 10, 10], strides = [1, 1, 1, 1, 1]} : vector<1x1x11x10x10xf32> to vector<1x1x1x10x10xf32>
    %367 = vector.extract_strided_slice %364 {offsets = [0, 0, 4, 0, 0], sizes = [1, 1, 1, 10, 10], strides = [1, 1, 1, 1, 1]} : vector<1x1x11x10x10xf32> to vector<1x1x1x10x10xf32>
    %368 = vector.extract_strided_slice %364 {offsets = [0, 0, 6, 0, 0], sizes = [1, 1, 1, 10, 10], strides = [1, 1, 1, 1, 1]} : vector<1x1x11x10x10xf32> to vector<1x1x1x10x10xf32>
    %369 = vector.extract_strided_slice %364 {offsets = [0, 0, 8, 0, 0], sizes = [1, 1, 1, 10, 10], strides = [1, 1, 1, 1, 1]} : vector<1x1x11x10x10xf32> to vector<1x1x1x10x10xf32>
    %370 = vector.extract_strided_slice %364 {offsets = [0, 0, 10, 0, 0], sizes = [1, 1, 1, 10, 10], strides = [1, 1, 1, 1, 1]} : vector<1x1x11x10x10xf32> to vector<1x1x1x10x10xf32>
    %371 = tpu.concatenate %365, %366, %367, %368, %369, %370 in 2 : vector<1x1x1x10x10xf32>, vector<1x1x1x10x10xf32>, vector<1x1x1x10x10xf32>, vector<1x1x1x10x10xf32>, vector<1x1x1x10x10xf32>, vector<1x1x1x10x10xf32> -> vector<1x1x6x10x10xf32>
    %cst_63 = arith.constant 0xFF800000 : f32
    %372 = vector.broadcast %cst_63 : f32 to vector<1x1x6x2x10xf32>
    %cst_64 = arith.constant 0xFF800000 : f32
    %373 = vector.broadcast %cst_64 : f32 to vector<1x1x6x2x10xf32>
    %374 = tpu.concatenate %372, %371, %373 in 3 : vector<1x1x6x2x10xf32>, vector<1x1x6x10x10xf32>, vector<1x1x6x2x10xf32> -> vector<1x1x6x14x10xf32>
    %375 = vector.extract_strided_slice %374 {offsets = [0, 0, 0, 0, 0], sizes = [1, 1, 6, 11, 10], strides = [1, 1, 1, 1, 1]} : vector<1x1x6x14x10xf32> to vector<1x1x6x11x10xf32>
    %376 = vector.extract_strided_slice %374 {offsets = [0, 0, 0, 1, 0], sizes = [1, 1, 6, 11, 10], strides = [1, 1, 1, 1, 1]} : vector<1x1x6x14x10xf32> to vector<1x1x6x11x10xf32>
    %377 = arith.maximumf %375, %376 : vector<1x1x6x11x10xf32>
    %378 = vector.extract_strided_slice %374 {offsets = [0, 0, 0, 2, 0], sizes = [1, 1, 6, 11, 10], strides = [1, 1, 1, 1, 1]} : vector<1x1x6x14x10xf32> to vector<1x1x6x11x10xf32>
    %379 = arith.maximumf %377, %378 : vector<1x1x6x11x10xf32>
    %380 = vector.extract_strided_slice %374 {offsets = [0, 0, 0, 3, 0], sizes = [1, 1, 6, 11, 10], strides = [1, 1, 1, 1, 1]} : vector<1x1x6x14x10xf32> to vector<1x1x6x11x10xf32>
    %381 = arith.maximumf %379, %380 : vector<1x1x6x11x10xf32>
    %382 = vector.extract_strided_slice %381 {offsets = [0, 0, 0, 0, 0], sizes = [1, 1, 6, 1, 10], strides = [1, 1, 1, 1, 1]} : vector<1x1x6x11x10xf32> to vector<1x1x6x1x10xf32>
    %383 = vector.extract_strided_slice %381 {offsets = [0, 0, 0, 2, 0], sizes = [1, 1, 6, 1, 10], strides = [1, 1, 1, 1, 1]} : vector<1x1x6x11x10xf32> to vector<1x1x6x1x10xf32>
    %384 = vector.extract_strided_slice %381 {offsets = [0, 0, 0, 4, 0], sizes = [1, 1, 6, 1, 10], strides = [1, 1, 1, 1, 1]} : vector<1x1x6x11x10xf32> to vector<1x1x6x1x10xf32>
    %385 = vector.extract_strided_slice %381 {offsets = [0, 0, 0, 6, 0], sizes = [1, 1, 6, 1, 10], strides = [1, 1, 1, 1, 1]} : vector<1x1x6x11x10xf32> to vector<1x1x6x1x10xf32>
    %386 = vector.extract_strided_slice %381 {offsets = [0, 0, 0, 8, 0], sizes = [1, 1, 6, 1, 10], strides = [1, 1, 1, 1, 1]} : vector<1x1x6x11x10xf32> to vector<1x1x6x1x10xf32>
    %387 = vector.extract_strided_slice %381 {offsets = [0, 0, 0, 10, 0], sizes = [1, 1, 6, 1, 10], strides = [1, 1, 1, 1, 1]} : vector<1x1x6x11x10xf32> to vector<1x1x6x1x10xf32>
    %388 = tpu.concatenate %382, %383, %384, %385, %386, %387 in 3 : vector<1x1x6x1x10xf32>, vector<1x1x6x1x10xf32>, vector<1x1x6x1x10xf32>, vector<1x1x6x1x10xf32>, vector<1x1x6x1x10xf32>, vector<1x1x6x1x10xf32> -> vector<1x1x6x6x10xf32>
    %cst_65 = arith.constant 0xFF800000 : f32
    %389 = vector.broadcast %cst_65 : f32 to vector<1x1x6x6x2xf32>
    %cst_66 = arith.constant 0xFF800000 : f32
    %390 = vector.broadcast %cst_66 : f32 to vector<1x1x6x6x2xf32>
    %391 = tpu.concatenate %389, %388, %390 in 4 : vector<1x1x6x6x2xf32>, vector<1x1x6x6x10xf32>, vector<1x1x6x6x2xf32> -> vector<1x1x6x6x14xf32>
    %392 = vector.extract_strided_slice %391 {offsets = [0, 0, 0, 0, 0], sizes = [1, 1, 6, 6, 11], strides = [1, 1, 1, 1, 1]} : vector<1x1x6x6x14xf32> to vector<1x1x6x6x11xf32>
    %393 = vector.extract_strided_slice %391 {offsets = [0, 0, 0, 0, 1], sizes = [1, 1, 6, 6, 11], strides = [1, 1, 1, 1, 1]} : vector<1x1x6x6x14xf32> to vector<1x1x6x6x11xf32>
    %394 = arith.maximumf %392, %393 : vector<1x1x6x6x11xf32>
    %395 = vector.extract_strided_slice %391 {offsets = [0, 0, 0, 0, 2], sizes = [1, 1, 6, 6, 11], strides = [1, 1, 1, 1, 1]} : vector<1x1x6x6x14xf32> to vector<1x1x6x6x11xf32>
    %396 = arith.maximumf %394, %395 : vector<1x1x6x6x11xf32>
    %397 = vector.extract_strided_slice %391 {offsets = [0, 0, 0, 0, 3], sizes = [1, 1, 6, 6, 11], strides = [1, 1, 1, 1, 1]} : vector<1x1x6x6x14xf32> to vector<1x1x6x6x11xf32>
    %398 = arith.maximumf %396, %397 : vector<1x1x6x6x11xf32>
    %399 = vector.extract_strided_slice %398 {offsets = [0, 0, 0, 0, 0], sizes = [1, 1, 6, 6, 1], strides = [1, 1, 1, 1, 1]} : vector<1x1x6x6x11xf32> to vector<1x1x6x6x1xf32>
    %400 = vector.extract_strided_slice %398 {offsets = [0, 0, 0, 0, 2], sizes = [1, 1, 6, 6, 1], strides = [1, 1, 1, 1, 1]} : vector<1x1x6x6x11xf32> to vector<1x1x6x6x1xf32>
    %401 = vector.extract_strided_slice %398 {offsets = [0, 0, 0, 0, 4], sizes = [1, 1, 6, 6, 1], strides = [1, 1, 1, 1, 1]} : vector<1x1x6x6x11xf32> to vector<1x1x6x6x1xf32>
    %402 = vector.extract_strided_slice %398 {offsets = [0, 0, 0, 0, 6], sizes = [1, 1, 6, 6, 1], strides = [1, 1, 1, 1, 1]} : vector<1x1x6x6x11xf32> to vector<1x1x6x6x1xf32>
    %403 = vector.extract_strided_slice %398 {offsets = [0, 0, 0, 0, 8], sizes = [1, 1, 6, 6, 1], strides = [1, 1, 1, 1, 1]} : vector<1x1x6x6x11xf32> to vector<1x1x6x6x1xf32>
    %404 = vector.extract_strided_slice %398 {offsets = [0, 0, 0, 0, 10], sizes = [1, 1, 6, 6, 1], strides = [1, 1, 1, 1, 1]} : vector<1x1x6x6x11xf32> to vector<1x1x6x6x1xf32>
    %405 = tpu.concatenate %399, %400, %401, %402, %403, %404 in 4 : vector<1x1x6x6x1xf32>, vector<1x1x6x6x1xf32>, vector<1x1x6x6x1xf32>, vector<1x1x6x6x1xf32>, vector<1x1x6x6x1xf32>, vector<1x1x6x6x1xf32> -> vector<1x1x6x6x6xf32>
    %406 = vector.extract_strided_slice %405 {offsets = [0, 0, 0, 0, 0], sizes = [1, 1, 6, 5, 6], strides = [1, 1, 1, 1, 1]} : vector<1x1x6x6x6xf32> to vector<1x1x6x5x6xf32>
    %407 = vector.extract_strided_slice %405 {offsets = [0, 0, 0, 1, 0], sizes = [1, 1, 6, 5, 6], strides = [1, 1, 1, 1, 1]} : vector<1x1x6x6x6xf32> to vector<1x1x6x5x6xf32>
    %408 = arith.maximumf %406, %407 : vector<1x1x6x5x6xf32>
    %cst_67 = arith.constant 0xFF800000 : f32
    %409 = vector.broadcast %cst_67 : f32 to vector<1x1x6x5x1xf32>
    %cst_68 = arith.constant 0xFF800000 : f32
    %410 = vector.broadcast %cst_68 : f32 to vector<1x1x6x5x1xf32>
    %411 = tpu.concatenate %409, %408, %410 in 4 : vector<1x1x6x5x1xf32>, vector<1x1x6x5x6xf32>, vector<1x1x6x5x1xf32> -> vector<1x1x6x5x8xf32>
    %412 = vector.extract_strided_slice %411 {offsets = [0, 0, 0, 0, 0], sizes = [1, 1, 6, 5, 6], strides = [1, 1, 1, 1, 1]} : vector<1x1x6x5x8xf32> to vector<1x1x6x5x6xf32>
    %413 = vector.extract_strided_slice %411 {offsets = [0, 0, 0, 0, 1], sizes = [1, 1, 6, 5, 6], strides = [1, 1, 1, 1, 1]} : vector<1x1x6x5x8xf32> to vector<1x1x6x5x6xf32>
    %414 = arith.maximumf %412, %413 : vector<1x1x6x5x6xf32>
    %415 = vector.extract_strided_slice %411 {offsets = [0, 0, 0, 0, 2], sizes = [1, 1, 6, 5, 6], strides = [1, 1, 1, 1, 1]} : vector<1x1x6x5x8xf32> to vector<1x1x6x5x6xf32>
    %416 = arith.maximumf %414, %415 : vector<1x1x6x5x6xf32>
    %cst_69 = arith.constant 0xFF800000 : f32
    %417 = vector.broadcast %cst_69 : f32 to vector<1x1x1x5x6xf32>
    %cst_70 = arith.constant 0xFF800000 : f32
    %418 = vector.broadcast %cst_70 : f32 to vector<1x1x1x5x6xf32>
    %419 = tpu.concatenate %417, %416, %418 in 2 : vector<1x1x1x5x6xf32>, vector<1x1x6x5x6xf32>, vector<1x1x1x5x6xf32> -> vector<1x1x8x5x6xf32>
    %420 = vector.extract_strided_slice %419 {offsets = [0, 0, 0, 0, 0], sizes = [1, 1, 6, 5, 6], strides = [1, 1, 1, 1, 1]} : vector<1x1x8x5x6xf32> to vector<1x1x6x5x6xf32>
    %421 = vector.extract_strided_slice %419 {offsets = [0, 0, 1, 0, 0], sizes = [1, 1, 6, 5, 6], strides = [1, 1, 1, 1, 1]} : vector<1x1x8x5x6xf32> to vector<1x1x6x5x6xf32>
    %422 = arith.maximumf %420, %421 : vector<1x1x6x5x6xf32>
    %423 = vector.extract_strided_slice %419 {offsets = [0, 0, 2, 0, 0], sizes = [1, 1, 6, 5, 6], strides = [1, 1, 1, 1, 1]} : vector<1x1x8x5x6xf32> to vector<1x1x6x5x6xf32>
    %424 = arith.maximumf %422, %423 : vector<1x1x6x5x6xf32>
    %cst_71 = arith.constant 0xFF800000 : f32
    %425 = vector.broadcast %cst_71 : f32 to vector<1x1x6x2x6xf32>
    %cst_72 = arith.constant 0xFF800000 : f32
    %426 = vector.broadcast %cst_72 : f32 to vector<1x1x6x3x6xf32>
    %427 = tpu.concatenate %425, %424, %426 in 3 : vector<1x1x6x2x6xf32>, vector<1x1x6x5x6xf32>, vector<1x1x6x3x6xf32> -> vector<1x1x6x10x6xf32>
    %428 = vector.extract_strided_slice %427 {offsets = [0, 0, 0, 0, 0], sizes = [1, 1, 6, 7, 6], strides = [1, 1, 1, 1, 1]} : vector<1x1x6x10x6xf32> to vector<1x1x6x7x6xf32>
    %429 = vector.extract_strided_slice %427 {offsets = [0, 0, 0, 1, 0], sizes = [1, 1, 6, 7, 6], strides = [1, 1, 1, 1, 1]} : vector<1x1x6x10x6xf32> to vector<1x1x6x7x6xf32>
    %430 = arith.maximumf %428, %429 : vector<1x1x6x7x6xf32>
    %431 = vector.extract_strided_slice %427 {offsets = [0, 0, 0, 2, 0], sizes = [1, 1, 6, 7, 6], strides = [1, 1, 1, 1, 1]} : vector<1x1x6x10x6xf32> to vector<1x1x6x7x6xf32>
    %432 = arith.maximumf %430, %431 : vector<1x1x6x7x6xf32>
    %433 = vector.extract_strided_slice %427 {offsets = [0, 0, 0, 3, 0], sizes = [1, 1, 6, 7, 6], strides = [1, 1, 1, 1, 1]} : vector<1x1x6x10x6xf32> to vector<1x1x6x7x6xf32>
    %434 = arith.maximumf %432, %433 : vector<1x1x6x7x6xf32>
    %435 = vector.extract_strided_slice %434 {offsets = [0, 0, 0, 0, 0], sizes = [1, 1, 6, 1, 6], strides = [1, 1, 1, 1, 1]} : vector<1x1x6x7x6xf32> to vector<1x1x6x1x6xf32>
    %436 = vector.extract_strided_slice %434 {offsets = [0, 0, 0, 2, 0], sizes = [1, 1, 6, 1, 6], strides = [1, 1, 1, 1, 1]} : vector<1x1x6x7x6xf32> to vector<1x1x6x1x6xf32>
    %437 = vector.extract_strided_slice %434 {offsets = [0, 0, 0, 4, 0], sizes = [1, 1, 6, 1, 6], strides = [1, 1, 1, 1, 1]} : vector<1x1x6x7x6xf32> to vector<1x1x6x1x6xf32>
    %438 = vector.extract_strided_slice %434 {offsets = [0, 0, 0, 6, 0], sizes = [1, 1, 6, 1, 6], strides = [1, 1, 1, 1, 1]} : vector<1x1x6x7x6xf32> to vector<1x1x6x1x6xf32>
    %439 = tpu.concatenate %435, %436, %437, %438 in 3 : vector<1x1x6x1x6xf32>, vector<1x1x6x1x6xf32>, vector<1x1x6x1x6xf32>, vector<1x1x6x1x6xf32> -> vector<1x1x6x4x6xf32>
    %cst_73 = arith.constant 0xFF800000 : f32
    %440 = vector.broadcast %cst_73 : f32 to vector<1x1x6x4x2xf32>
    %cst_74 = arith.constant 0xFF800000 : f32
    %441 = vector.broadcast %cst_74 : f32 to vector<1x1x6x4x3xf32>
    %442 = tpu.concatenate %440, %439, %441 in 4 : vector<1x1x6x4x2xf32>, vector<1x1x6x4x6xf32>, vector<1x1x6x4x3xf32> -> vector<1x1x6x4x11xf32>
    %443 = vector.extract_strided_slice %442 {offsets = [0, 0, 0, 0, 0], sizes = [1, 1, 6, 4, 7], strides = [1, 1, 1, 1, 1]} : vector<1x1x6x4x11xf32> to vector<1x1x6x4x7xf32>
    %444 = vector.extract_strided_slice %442 {offsets = [0, 0, 0, 0, 1], sizes = [1, 1, 6, 4, 7], strides = [1, 1, 1, 1, 1]} : vector<1x1x6x4x11xf32> to vector<1x1x6x4x7xf32>
    %445 = arith.maximumf %443, %444 : vector<1x1x6x4x7xf32>
    %446 = vector.extract_strided_slice %442 {offsets = [0, 0, 0, 0, 2], sizes = [1, 1, 6, 4, 7], strides = [1, 1, 1, 1, 1]} : vector<1x1x6x4x11xf32> to vector<1x1x6x4x7xf32>
    %447 = arith.maximumf %445, %446 : vector<1x1x6x4x7xf32>
    %448 = vector.extract_strided_slice %442 {offsets = [0, 0, 0, 0, 3], sizes = [1, 1, 6, 4, 7], strides = [1, 1, 1, 1, 1]} : vector<1x1x6x4x11xf32> to vector<1x1x6x4x7xf32>
    %449 = arith.maximumf %447, %448 : vector<1x1x6x4x7xf32>
    %450 = vector.extract_strided_slice %442 {offsets = [0, 0, 0, 0, 4], sizes = [1, 1, 6, 4, 7], strides = [1, 1, 1, 1, 1]} : vector<1x1x6x4x11xf32> to vector<1x1x6x4x7xf32>
    %451 = arith.maximumf %449, %450 : vector<1x1x6x4x7xf32>
    %452 = vector.extract_strided_slice %451 {offsets = [0, 0, 0, 0, 0], sizes = [1, 1, 6, 4, 1], strides = [1, 1, 1, 1, 1]} : vector<1x1x6x4x7xf32> to vector<1x1x6x4x1xf32>
    %453 = vector.extract_strided_slice %451 {offsets = [0, 0, 0, 0, 2], sizes = [1, 1, 6, 4, 1], strides = [1, 1, 1, 1, 1]} : vector<1x1x6x4x7xf32> to vector<1x1x6x4x1xf32>
    %454 = vector.extract_strided_slice %451 {offsets = [0, 0, 0, 0, 4], sizes = [1, 1, 6, 4, 1], strides = [1, 1, 1, 1, 1]} : vector<1x1x6x4x7xf32> to vector<1x1x6x4x1xf32>
    %455 = vector.extract_strided_slice %451 {offsets = [0, 0, 0, 0, 6], sizes = [1, 1, 6, 4, 1], strides = [1, 1, 1, 1, 1]} : vector<1x1x6x4x7xf32> to vector<1x1x6x4x1xf32>
    %456 = tpu.concatenate %452, %453, %454, %455 in 4 : vector<1x1x6x4x1xf32>, vector<1x1x6x4x1xf32>, vector<1x1x6x4x1xf32>, vector<1x1x6x4x1xf32> -> vector<1x1x6x4x4xf32>
    %cst_75 = arith.constant 0xFF800000 : f32
    %457 = vector.broadcast %cst_75 : f32 to vector<1x1x1x4x4xf32>
    %cst_76 = arith.constant 0xFF800000 : f32
    %458 = vector.broadcast %cst_76 : f32 to vector<1x1x1x4x4xf32>
    %459 = tpu.concatenate %457, %456, %458 in 2 : vector<1x1x1x4x4xf32>, vector<1x1x6x4x4xf32>, vector<1x1x1x4x4xf32> -> vector<1x1x8x4x4xf32>
    %460 = vector.extract_strided_slice %459 {offsets = [0, 0, 0, 0, 0], sizes = [1, 1, 7, 4, 4], strides = [1, 1, 1, 1, 1]} : vector<1x1x8x4x4xf32> to vector<1x1x7x4x4xf32>
    %461 = vector.extract_strided_slice %459 {offsets = [0, 0, 1, 0, 0], sizes = [1, 1, 7, 4, 4], strides = [1, 1, 1, 1, 1]} : vector<1x1x8x4x4xf32> to vector<1x1x7x4x4xf32>
    %462 = arith.maximumf %460, %461 : vector<1x1x7x4x4xf32>
    %cst_77 = arith.constant 0xFF800000 : f32
    %463 = vector.broadcast %cst_77 : f32 to vector<1x1x7x1x4xf32>
    %cst_78 = arith.constant 0xFF800000 : f32
    %464 = vector.broadcast %cst_78 : f32 to vector<1x1x7x1x4xf32>
    %465 = tpu.concatenate %463, %462, %464 in 3 : vector<1x1x7x1x4xf32>, vector<1x1x7x4x4xf32>, vector<1x1x7x1x4xf32> -> vector<1x1x7x6x4xf32>
    %466 = vector.extract_strided_slice %465 {offsets = [0, 0, 0, 0, 0], sizes = [1, 1, 7, 2, 4], strides = [1, 1, 1, 1, 1]} : vector<1x1x7x6x4xf32> to vector<1x1x7x2x4xf32>
    %467 = vector.extract_strided_slice %465 {offsets = [0, 0, 0, 2, 0], sizes = [1, 1, 7, 2, 4], strides = [1, 1, 1, 1, 1]} : vector<1x1x7x6x4xf32> to vector<1x1x7x2x4xf32>
    %468 = arith.maximumf %466, %467 : vector<1x1x7x2x4xf32>
    %469 = vector.extract_strided_slice %465 {offsets = [0, 0, 0, 4, 0], sizes = [1, 1, 7, 2, 4], strides = [1, 1, 1, 1, 1]} : vector<1x1x7x6x4xf32> to vector<1x1x7x2x4xf32>
    %470 = arith.maximumf %468, %469 : vector<1x1x7x2x4xf32>
    %cst_79 = arith.constant 0xFF800000 : f32
    %471 = vector.broadcast %cst_79 : f32 to vector<1x1x7x2x1xf32>
    %cst_80 = arith.constant 0xFF800000 : f32
    %472 = vector.broadcast %cst_80 : f32 to vector<1x1x7x2x1xf32>
    %473 = tpu.concatenate %471, %470, %472 in 4 : vector<1x1x7x2x1xf32>, vector<1x1x7x2x4xf32>, vector<1x1x7x2x1xf32> -> vector<1x1x7x2x6xf32>
    %474 = vector.extract_strided_slice %473 {offsets = [0, 0, 0, 0, 0], sizes = [1, 1, 7, 2, 2], strides = [1, 1, 1, 1, 1]} : vector<1x1x7x2x6xf32> to vector<1x1x7x2x2xf32>
    %475 = vector.extract_strided_slice %473 {offsets = [0, 0, 0, 0, 2], sizes = [1, 1, 7, 2, 2], strides = [1, 1, 1, 1, 1]} : vector<1x1x7x2x6xf32> to vector<1x1x7x2x2xf32>
    %476 = arith.maximumf %474, %475 : vector<1x1x7x2x2xf32>
    %477 = vector.extract_strided_slice %473 {offsets = [0, 0, 0, 0, 4], sizes = [1, 1, 7, 2, 2], strides = [1, 1, 1, 1, 1]} : vector<1x1x7x2x6xf32> to vector<1x1x7x2x2xf32>
    %478 = arith.maximumf %476, %477 : vector<1x1x7x2x2xf32>
    %479 = vector.extract_strided_slice %478 {offsets = [0, 0, 0, 0, 0], sizes = [1, 1, 6, 2, 2], strides = [1, 1, 1, 1, 1]} : vector<1x1x7x2x2xf32> to vector<1x1x6x2x2xf32>
    %480 = vector.extract_strided_slice %478 {offsets = [0, 0, 1, 0, 0], sizes = [1, 1, 6, 2, 2], strides = [1, 1, 1, 1, 1]} : vector<1x1x7x2x2xf32> to vector<1x1x6x2x2xf32>
    %481 = arith.maximumf %479, %480 : vector<1x1x6x2x2xf32>
    %482 = vector.extract_strided_slice %481 {offsets = [0, 0, 0, 0, 0], sizes = [1, 1, 6, 1, 2], strides = [1, 1, 1, 1, 1]} : vector<1x1x6x2x2xf32> to vector<1x1x6x1x2xf32>
    %483 = vector.extract_strided_slice %481 {offsets = [0, 0, 0, 1, 0], sizes = [1, 1, 6, 1, 2], strides = [1, 1, 1, 1, 1]} : vector<1x1x6x2x2xf32> to vector<1x1x6x1x2xf32>
    %484 = arith.maximumf %482, %483 : vector<1x1x6x1x2xf32>
    %485 = vector.extract_strided_slice %484 {offsets = [0, 0, 0, 0, 0], sizes = [1, 1, 6, 1, 1], strides = [1, 1, 1, 1, 1]} : vector<1x1x6x1x2xf32> to vector<1x1x6x1x1xf32>
    %486 = vector.extract_strided_slice %484 {offsets = [0, 0, 0, 0, 1], sizes = [1, 1, 6, 1, 1], strides = [1, 1, 1, 1, 1]} : vector<1x1x6x1x2xf32> to vector<1x1x6x1x1xf32>
    %487 = arith.maximumf %485, %486 : vector<1x1x6x1x1xf32>
    %c0_81 = arith.constant 0 : index
    %c0_82 = arith.constant 0 : index
    %c0_83 = arith.constant 0 : index
    %c0_84 = arith.constant 0 : index
    %c0_85 = arith.constant 0 : index
    %488 = vector.load %arg6[%c0_81, %c0_82, %c0_83, %c0_84, %c0_85] : memref<1x1x6x1x1xf32, #tpu.memory_space<vmem>>, vector<1x1x6x1x1xf32>
    tpu.vector_store %arg6[%c0_81, %c0_82, %c0_83, %c0_84, %c0_85], %487 {strides = array<i32>} : memref<1x1x6x1x1xf32, #tpu.memory_space<vmem>>, vector<1x1x6x1x1xf32>,
    return
  }
  func.func @transform_0(%arg0: i32, %arg1: i32) -> (i32, i32, i32, i32, i32) {
    %c0_i32 = arith.constant 0 : i32
    %c0_i32_0 = arith.constant 0 : i32
    %c0_i32_1 = arith.constant 0 : i32
    %c0_i32_2 = arith.constant 0 : i32
    return %arg0, %arg1, %c0_i32, %c0_i32_0, %c0_i32_1 : i32, i32, i32, i32, i32
  }
  func.func @transform_1(%arg0: i32, %arg1: i32) -> (i32, i32, i32, i32, i32) {
    %c0_i32 = arith.constant 0 : i32
    %c0_i32_0 = arith.constant 0 : i32
    %c0_i32_1 = arith.constant 0 : i32
    %c0_i32_2 = arith.constant 0 : i32
    return %arg0, %arg1, %c0_i32, %c0_i32_0, %c0_i32_1 : i32, i32, i32, i32, i32
  }
  func.func @transform_2(%arg0: i32, %arg1: i32) -> (i32, i32, i32, i32, i32) {
    %c0_i32 = arith.constant 0 : i32
    %c0_i32_0 = arith.constant 0 : i32
    %c0_i32_1 = arith.constant 0 : i32
    %c0_i32_2 = arith.constant 0 : i32
    return %arg0, %arg1, %c0_i32, %c0_i32_0, %c0_i32_1 : i32, i32, i32, i32, i32
  }
  func.func @transform_3(%arg0: i32, %arg1: i32) -> (i32, i32, i32, i32, i32) {
    %c0_i32 = arith.constant 0 : i32
    %c0_i32_0 = arith.constant 0 : i32
    %c0_i32_1 = arith.constant 0 : i32
    %c0_i32_2 = arith.constant 0 : i32
    return %arg0, %arg1, %c0_i32, %c0_i32_0, %c0_i32_1 : i32, i32, i32, i32, i32
  }
  func.func @transform_4(%arg0: i32, %arg1: i32) -> (i32, i32, i32, i32, i32) {
    %c0_i32 = arith.constant 0 : i32
    %c0_i32_0 = arith.constant 0 : i32
    %c0_i32_1 = arith.constant 0 : i32
    %c0_i32_2 = arith.constant 0 : i32
    return %arg0, %arg1, %c0_i32, %c0_i32_0, %c0_i32_1 : i32, i32, i32, i32, i32
  }
}

</mosaic_0001>

<llo_original>
// kernel: model_forward.1
$region0: #{model_forward.1}
  #allocation0 [shape = 'u32[]', space=smem, size = 0x4, offset = 0x4, fixed_abs, tag = 'smem constant byte address 0x4 - core index']
  #allocation1 [shape = 'u32[144,128]{1,0:T(1,128)}', space=vmem, size = 0x12000, scoped, tag = 'internal scratch']
  %s0 = inlined_call_operand.vmem [shape: f32[1,2,30,30,30], index: 0, kind: input, shape index: {}]
  %s1 = inlined_call_operand.vmem [shape: f32[1,2,33,32,31], index: 1, kind: input, shape index: {}]
  %s2 = inlined_call_operand.vmem [shape: f32[1,2,6,2,2], index: 2, kind: output, shape index: {0}]
  %s3 = inlined_call_operand.vmem [shape: s32[1,2,6,2,2], index: 3, kind: output, shape index: {1}]
  %s4 = inlined_call_operand.vmem [shape: f32[1,2,6,1,1], index: 4, kind: output, shape index: {2}]
  %5 = xla_tuple %s2, %s3, %s4
  %s6 = sld [smem:[#allocation0]]
  $region57: #{model_forward.1} parent=0
    _
  %s8 = ssub.s32 1, %s6
  %s9 = scalar_select 0, %s8, %s6
  loop: start=0, step=1, limit=4
  $region2: #{model_forward.1} parent=0 // loop_pre_header
    _
  $region3: #{model_forward.1} parent=0 // loop_header
    %s11 = sphi 0, %s15
    %p12 = scmp.ge.s32.totalorder %s11, 4
    %s18 = sphi 0, %s30
    %s19 = sphi 0, %s26
    %s20 = sphi 0, %s18
    %s21 = sphi 0, %s19
    %s22 = sphi 0, %s20
    %s23 = sphi 0, %s21
    %s35 = sphi 0, %s37
    %s38 = sphi 0, %s35
    %s39 = sphi 0, %s38
    %s55 = sphi 0, %s39
    %s63 = sphi 0, %s65
    %s66 = sphi 0, %s63
    %s67 = sphi 0, %s66
    %s83 = sphi 0, %s67
    %s91 = sphi 0, %s93
    %s94 = sphi 0, %s91
    %s95 = sphi 0, %s94
    %s111 = sphi 0, %s95
    %s119 = sphi 0, %s121
    %s122 = sphi 0, %s119
    %s123 = sphi 0, %s122
    %s139 = sphi 0, %s123
    %s147 = sphi 0, %s149
    %s150 = sphi 0, %s147
    %s151 = sphi 0, %s150
    %s167 = sphi 0, %s151
  $region4: #{model_forward.1} parent=0 // loop_header_branch
    %14 = sbr.rel (%p12) target = $region8
  $region5: #{model_forward.1} parent=0 // loop_body
    %s16 = ssub.s32 %s11, 1
    %s17 = ssub.s32 %s11, 2
    %s24 = sadd.s32 1, %s19
    %p25 = scmp.ge.s32.totalorder %s24, 2
    %s26 = scalar_select %p25, 0, %s24
    %s27 = sadd.s32 1, %s18
    %s28 = scalar_select %p25, %s27, %s18
    %p29 = scmp.ge.s32.totalorder %s28, 1
    %s30 = scalar_select %p29, 0, %s28
    %s31 = ssub.s32 %s18, %s30
    %s32 = ssub.s32 %s19, %s26
    %s33 = sor.u32 %s31, %s32
    %p34 = scmp.eq.s32.totalorder %s33, 0
    %s36 = sadd.s32 %s35, 1
    %s37 = scalar_select %p34, %s35, %s36
    %p40 = pneg %p34
    %p41 = scmp.eq.s32.totalorder %s11, 1
    %p42 = por %p40, %p41
    %p43 = scmp.ne.s32.totalorder %s35, %s38
    %p44 = scmp.eq.s32.totalorder %s11, 0
    %p45 = por %p43, %p44
    %p46 = scmp.ne.s32.totalorder %s35, %s38
    %p47 = scmp.eq.s32.totalorder %s16, 1
    %p48 = por %p46, %p47
    %p49 = scmp.ne.s32.totalorder %s38, %s39
    %p50 = scmp.eq.s32.totalorder %s16, 0
    %p51 = por %p49, %p50
    %p52 = scmp.ne.s32.totalorder %s38, %s39
    %p53 = scmp.eq.s32.totalorder %s17, 1
    %p54 = por %p52, %p53
    %p56 = scmp.ne.s32.totalorder %s39, %s55
    %p57 = scmp.eq.s32.totalorder %s17, 0
    %p58 = por %p56, %p57
    %s59 = ssub.s32 %s18, %s30
    %s60 = ssub.s32 %s19, %s26
    %s61 = sor.u32 %s59, %s60
    %p62 = scmp.eq.s32.totalorder %s61, 0
    %s64 = sadd.s32 %s63, 1
    %s65 = scalar_select %p62, %s63, %s64
    %p68 = pneg %p62
    %p69 = scmp.eq.s32.totalorder %s11, 1
    %p70 = por %p68, %p69
    %p71 = scmp.ne.s32.totalorder %s63, %s66
    %p72 = scmp.eq.s32.totalorder %s11, 0
    %p73 = por %p71, %p72
    %p74 = scmp.ne.s32.totalorder %s63, %s66
    %p75 = scmp.eq.s32.totalorder %s16, 1
    %p76 = por %p74, %p75
    %p77 = scmp.ne.s32.totalorder %s66, %s67
    %p78 = scmp.eq.s32.totalorder %s16, 0
    %p79 = por %p77, %p78
    %p80 = scmp.ne.s32.totalorder %s66, %s67
    %p81 = scmp.eq.s32.totalorder %s17, 1
    %p82 = por %p80, %p81
    %p84 = scmp.ne.s32.totalorder %s67, %s83
    %p85 = scmp.eq.s32.totalorder %s17, 0
    %p86 = por %p84, %p85
    %s87 = ssub.s32 %s18, %s30
    %s88 = ssub.s32 %s19, %s26
    %s89 = sor.u32 %s87, %s88
    %p90 = scmp.eq.s32.totalorder %s89, 0
    %s92 = sadd.s32 %s91, 1
    %s93 = scalar_select %p90, %s91, %s92
    %p96 = pneg %p90
    %p97 = scmp.eq.s32.totalorder %s11, 1
    %p98 = por %p96, %p97
    %p99 = scmp.ne.s32.totalorder %s91, %s94
    %p100 = scmp.eq.s32.totalorder %s11, 0
    %p101 = por %p99, %p100
    %p102 = scmp.ne.s32.totalorder %s91, %s94
    %p103 = scmp.eq.s32.totalorder %s16, 1
    %p104 = por %p102, %p103
    %p105 = scmp.ne.s32.totalorder %s94, %s95
    %p106 = scmp.eq.s32.totalorder %s16, 0
    %p107 = por %p105, %p106
    %p108 = scmp.ne.s32.totalorder %s94, %s95
    %p109 = scmp.eq.s32.totalorder %s17, 1
    %p110 = por %p108, %p109
    %p112 = scmp.ne.s32.totalorder %s95, %s111
    %p113 = scmp.eq.s32.totalorder %s17, 0
    %p114 = por %p112, %p113
    %s115 = ssub.s32 %s18, %s30
    %s116 = ssub.s32 %s19, %s26
    %s117 = sor.u32 %s115, %s116
    %p118 = scmp.eq.s32.totalorder %s117, 0
    %s120 = sadd.s32 %s119, 1
    %s121 = scalar_select %p118, %s119, %s120
    %p124 = pneg %p118
    %p125 = scmp.eq.s32.totalorder %s11, 1
    %p126 = por %p124, %p125
    %p127 = scmp.ne.s32.totalorder %s119, %s122
    %p128 = scmp.eq.s32.totalorder %s11, 0
    %p129 = por %p127, %p128
    %p130 = scmp.ne.s32.totalorder %s119, %s122
    %p131 = scmp.eq.s32.totalorder %s16, 1
    %p132 = por %p130, %p131
    %p133 = scmp.ne.s32.totalorder %s122, %s123
    %p134 = scmp.eq.s32.totalorder %s16, 0
    %p135 = por %p133, %p134
    %p136 = scmp.ne.s32.totalorder %s122, %s123
    %p137 = scmp.eq.s32.totalorder %s17, 1
    %p138 = por %p136, %p137
    %p140 = scmp.ne.s32.totalorder %s123, %s139
    %p141 = scmp.eq.s32.totalorder %s17, 0
    %p142 = por %p140, %p141
    %s143 = ssub.s32 %s18, %s30
    %s144 = ssub.s32 %s19, %s26
    %s145 = sor.u32 %s143, %s144
    %p146 = scmp.eq.s32.totalorder %s145, 0
    %s148 = sadd.s32 %s147, 1
    %s149 = scalar_select %p146, %s147, %s148
    %p152 = pneg %p146
    %p153 = scmp.eq.s32.totalorder %s11, 1
    %p154 = por %p152, %p153
    %p155 = scmp.ne.s32.totalorder %s147, %s150
    %p156 = scmp.eq.s32.totalorder %s11, 0
    %p157 = por %p155, %p156
    %p158 = scmp.ne.s32.totalorder %s147, %s150
    %p159 = scmp.eq.s32.totalorder %s16, 1
    %p160 = por %p158, %p159
    %p161 = scmp.ne.s32.totalorder %s150, %s151
    %p162 = scmp.eq.s32.totalorder %s16, 0
    %p163 = por %p161, %p162
    %p164 = scmp.ne.s32.totalorder %s150, %s151
    %p165 = scmp.eq.s32.totalorder %s17, 1
    %p166 = por %p164, %p165
    %p168 = scmp.ne.s32.totalorder %s151, %s167
    %p169 = scmp.eq.s32.totalorder %s17, 0
    %p170 = por %p168, %p169
    %p171 = scmp.le.s32.totalorder 1, %s11
    %p172 = scmp.lt.s32.totalorder %s11, 3
    %p173 = pnand %p171, %p172
    %p174 = pneg %p173
    // Predicated region
    $region9: #{model_forward.1} parent=5 // pred_check
      _
    $region10: #{model_forward.1} parent=5 // pred_check_branch
      %176 = sbr.rel (%p173) target = $region12
    $region11: #{model_forward.1} parent=5 // pred_region
      %s177 = ssub.s32 %s11, 1
    $region12: #{model_forward.1} parent=5 // pred_fallthru
      _
    %p178 = scmp.lt.s32.totalorder %s11, 2
    // Predicated region
    $region13: #{model_forward.1} parent=5 // pred_check
      %p179 = pneg %p178
    $region14: #{model_forward.1} parent=5 // pred_check_branch
      %181 = sbr.rel (%p179) target = $region16
    $region15: #{model_forward.1} parent=5 // pred_region
      // Predicated region
      $region17: #{model_forward.1} parent=15 // pred_check
        %p182 = pneg %p45
      $region18: #{model_forward.1} parent=15 // pred_check_branch
        %184 = sbr.rel (%p182) target = $region20
      $region19: #{model_forward.1} parent=15 // pred_region
        %p185 = scmp.lt.s32.totalorder %s18, 0
        %s186 = scalar_select %p185, %s18, 0
        %p187 = scmp.lt.s32.totalorder %s19, 1
        %s188 = scalar_select %p187, %s19, 1
        %s189 = smul.addr %s188, 120
        %s190 = smul.addr %s186, 240
        %s191 = sadd.s32 %s189, %s190
        %s192 = smul.addr %s191, 8
        %s193 = scalar_lea.vmem %s0, %s192
      $region20: #{model_forward.1} parent=15 // pred_fallthru
        _
      // Predicated region
      $region21: #{model_forward.1} parent=15 // pred_check
        %p194 = pneg %p73
      $region22: #{model_forward.1} parent=15 // pred_check_branch
        %196 = sbr.rel (%p194) target = $region24
      $region23: #{model_forward.1} parent=15 // pred_region
        %p197 = scmp.lt.s32.totalorder %s18, 0
        %s198 = scalar_select %p197, %s18, 0
        %p199 = scmp.lt.s32.totalorder %s19, 1
        %s200 = scalar_select %p199, %s19, 1
        %s201 = smul.addr %s200, 132
        %s202 = smul.addr %s198, 264
        %s203 = sadd.s32 %s201, %s202
        %s204 = smul.addr %s203, 8
        %s205 = scalar_lea.vmem %s1, %s204
      $region24: #{model_forward.1} parent=15 // pred_fallthru
        _
    $region16: #{model_forward.1} parent=5 // pred_fallthru
      _
    %p206 = scmp.le.s32.totalorder 1, %s11
    %p207 = scmp.lt.s32.totalorder %s11, 3
    %p208 = pnand %p206, %p207
    %p209 = pneg %p208
    // Predicated region
    $region25: #{model_forward.1} parent=5 // pred_check
      _
    $region26: #{model_forward.1} parent=5 // pred_check_branch
      %211 = sbr.rel (%p208) target = $region28
    $region27: #{model_forward.1} parent=5 // pred_region
      %s212 = ssub.s32 %s11, 1
      %p213 = scmp.lt.s32.totalorder %s20, 0
      %s214 = scalar_select %p213, %s20, 0
      %p215 = scmp.lt.s32.totalorder %s21, 1
      %s216 = scalar_select %p215, %s21, 1
      %s217 = smul.addr %s216, 120
      %s218 = smul.addr %s214, 240
      %s219 = sadd.s32 %s217, %s218
      %s220 = smul.addr %s219, 8
      %s221 = scalar_lea.vmem %s0, %s220
      %p222 = pneg %p51
      %p223 = pneg %p48
      %p224 = scmp.lt.s32.totalorder %s20, 0
      %s225 = scalar_select %p224, %s20, 0
      %p226 = scmp.lt.s32.totalorder %s21, 1
      %s227 = scalar_select %p226, %s21, 1
      %s228 = smul.addr %s227, 132
      %s229 = smul.addr %s225, 264
      %s230 = sadd.s32 %s228, %s229
      %s231 = smul.addr %s230, 8
      %s232 = scalar_lea.vmem %s1, %s231
      %p233 = pneg %p79
      %p234 = pneg %p76
      %p235 = pneg %p107
      %p236 = pneg %p104
      %p237 = scmp.lt.s32.totalorder %s20, 0
      %s238 = scalar_select %p237, %s20, 0
      %p239 = scmp.lt.s32.totalorder %s21, 1
      %s240 = scalar_select %p239, %s21, 1
      %s241 = smul.addr %s240, 6
      %s242 = smul.addr %s238, 12
      %s243 = sadd.s32 %s241, %s242
      %s244 = smul.addr %s243, 2
      %s245 = scalar_lea.vmem %s2, %s244
      %p246 = pneg %p135
      %p247 = pneg %p132
      %p248 = scmp.lt.s32.totalorder %s20, 0
      %s249 = scalar_select %p248, %s20, 0
      %p250 = scmp.lt.s32.totalorder %s21, 1
      %s251 = scalar_select %p250, %s21, 1
      %s252 = smul.addr %s251, 6
      %s253 = smul.addr %s249, 12
      %s254 = sadd.s32 %s252, %s253
      %s255 = smul.addr %s254, 2
      %s256 = scalar_lea.vmem %s3, %s255
      %p257 = pneg %p163
      %p258 = pneg %p160
      %p259 = scmp.lt.s32.totalorder %s20, 0
      %s260 = scalar_select %p259, %s20, 0
      %p261 = scmp.lt.s32.totalorder %s21, 1
      %s262 = scalar_select %p261, %s21, 1
      %s263 = smul.addr %s262, 6
      %s264 = smul.addr %s260, 12
      %s265 = sadd.s32 %s263, %s264
      %s266 = scalar_lea.vmem %s4, %s265
      %p267 = scmp.lt.s32.totalorder %s20, 0
      %s268 = scalar_select %p267, %s20, 0
      %p269 = scmp.lt.s32.totalorder %s21, 1
      %s270 = scalar_select %p269, %s21, 1
      %s271 = smul.addr %s270, 120
      %s272 = smul.addr %s268, 240
      %s273 = sadd.s32 %s271, %s272
      %s274 = smul.addr %s273, 8
      %s275 = scalar_lea.vmem %s0, %s274
      %p276 = scmp.lt.s32.totalorder %s20, 0
      %s277 = scalar_select %p276, %s20, 0
      %p278 = scmp.lt.s32.totalorder %s21, 1
      %s279 = scalar_select %p278, %s21, 1
      %s280 = smul.addr %s279, 132
      %s281 = smul.addr %s277, 264
      %s282 = sadd.s32 %s280, %s281
      %s283 = smul.addr %s282, 8
      %s284 = scalar_lea.vmem %s1, %s283
      %p285 = scmp.lt.s32.totalorder %s20, 0
      %s286 = scalar_select %p285, %s20, 0
      %p287 = scmp.lt.s32.totalorder %s21, 1
      %s288 = scalar_select %p287, %s21, 1
      %s289 = smul.addr %s288, 6
      %s290 = smul.addr %s286, 12
      %s291 = sadd.s32 %s289, %s290
      %s292 = smul.addr %s291, 2
      %s293 = scalar_lea.vmem %s2, %s292
      %p294 = scmp.lt.s32.totalorder %s20, 0
      %s295 = scalar_select %p294, %s20, 0
      %p296 = scmp.lt.s32.totalorder %s21, 1
      %s297 = scalar_select %p296, %s21, 1
      %s298 = smul.addr %s297, 6
      %s299 = smul.addr %s295, 12
      %s300 = sadd.s32 %s298, %s299
      %s301 = smul.addr %s300, 2
      %s302 = scalar_lea.vmem %s3, %s301
      %p303 = scmp.lt.s32.totalorder %s20, 0
      %s304 = scalar_select %p303, %s20, 0
      %p305 = scmp.lt.s32.totalorder %s21, 1
      %s306 = scalar_select %p305, %s21, 1
      %s307 = smul.addr %s306, 6
      %s308 = smul.addr %s304, 12
      %s309 = sadd.s32 %s307, %s308
      %s310 = scalar_lea.vmem %s4, %s309
      %v311 = vld [vmem:[%s275] sm:$0xff]
      %v312 = vld [vmem:[%s275 + $0x8] sm:$0xff]
      %v313 = vld [vmem:[%s275 + $0x10] sm:$0xff]
      %v314 = vld [vmem:[%s275 + $0x18] sm:$0x3f]
      %v315 = vld [vmem:[%s275 + $0x20] sm:$0xff]
      %v316 = vld [vmem:[%s275 + $0x28] sm:$0xff]
      %v317 = vld [vmem:[%s275 + $0x30] sm:$0xff]
      %v318 = vld [vmem:[%s275 + $0x38] sm:$0x3f]
      %v319 = vld [vmem:[%s275 + $0x40] sm:$0xff]
      %v320 = vld [vmem:[%s275 + $0x48] sm:$0xff]
      %v321 = vld [vmem:[%s275 + $0x50] sm:$0xff]
      %v322 = vld [vmem:[%s275 + $0x58] sm:$0x3f]
      %v323 = vld [vmem:[%s275 + $0x60] sm:$0xff]
      %v324 = vld [vmem:[%s275 + $0x68] sm:$0xff]
      %v325 = vld [vmem:[%s275 + $0x70] sm:$0xff]
      %v326 = vld [vmem:[%s275 + $0x78] sm:$0x3f]
      %v327 = vld [vmem:[%s275 + $0x80] sm:$0xff]
      %v328 = vld [vmem:[%s275 + $0x88] sm:$0xff]
      %v329 = vld [vmem:[%s275 + $0x90] sm:$0xff]
      %v330 = vld [vmem:[%s275 + $0x98] sm:$0x3f]
      %v331 = vld [vmem:[%s275 + $0xa0] sm:$0xff]
      %v332 = vld [vmem:[%s275 + $0xa8] sm:$0xff]
      %v333 = vld [vmem:[%s275 + $0xb0] sm:$0xff]
      %v334 = vld [vmem:[%s275 + $0xb8] sm:$0x3f]
      %v335 = vld [vmem:[%s275 + $0xc0] sm:$0xff]
      %v336 = vld [vmem:[%s275 + $0xc8] sm:$0xff]
      %v337 = vld [vmem:[%s275 + $0xd0] sm:$0xff]
      %v338 = vld [vmem:[%s275 + $0xd8] sm:$0x3f]
      %v339 = vld [vmem:[%s275 + $0xe0] sm:$0xff]
      %v340 = vld [vmem:[%s275 + $0xe8] sm:$0xff]
      %v341 = vld [vmem:[%s275 + $0xf0] sm:$0xff]
      %v342 = vld [vmem:[%s275 + $0xf8] sm:$0x3f]
      %v343 = vld [vmem:[%s275 + $0x100] sm:$0xff]
      %v344 = vld [vmem:[%s275 + $0x108] sm:$0xff]
      %v345 = vld [vmem:[%s275 + $0x110] sm:$0xff]
      %v346 = vld [vmem:[%s275 + $0x118] sm:$0x3f]
      %v347 = vld [vmem:[%s275 + $0x120] sm:$0xff]
      %v348 = vld [vmem:[%s275 + $0x128] sm:$0xff]
      %v349 = vld [vmem:[%s275 + $0x130] sm:$0xff]
      %v350 = vld [vmem:[%s275 + $0x138] sm:$0x3f]
      %v351 = vld [vmem:[%s275 + $0x140] sm:$0xff]
      %v352 = vld [vmem:[%s275 + $0x148] sm:$0xff]
      %v353 = vld [vmem:[%s275 + $0x150] sm:$0xff]
      %v354 = vld [vmem:[%s275 + $0x158] sm:$0x3f]
      %v355 = vld [vmem:[%s275 + $0x160] sm:$0xff]
      %v356 = vld [vmem:[%s275 + $0x168] sm:$0xff]
      %v357 = vld [vmem:[%s275 + $0x170] sm:$0xff]
      %v358 = vld [vmem:[%s275 + $0x178] sm:$0x3f]
      %v359 = vld [vmem:[%s275 + $0x180] sm:$0xff]
      %v360 = vld [vmem:[%s275 + $0x188] sm:$0xff]
      %v361 = vld [vmem:[%s275 + $0x190] sm:$0xff]
      %v362 = vld [vmem:[%s275 + $0x198] sm:$0x3f]
      %v363 = vld [vmem:[%s275 + $0x1a0] sm:$0xff]
      %v364 = vld [vmem:[%s275 + $0x1a8] sm:$0xff]
      %v365 = vld [vmem:[%s275 + $0x1b0] sm:$0xff]
      %v366 = vld [vmem:[%s275 + $0x1b8] sm:$0x3f]
      %v367 = vld [vmem:[%s275 + $0x1c0] sm:$0xff]
      %v368 = vld [vmem:[%s275 + $0x1c8] sm:$0xff]
      %v369 = vld [vmem:[%s275 + $0x1d0] sm:$0xff]
      %v370 = vld [vmem:[%s275 + $0x1d8] sm:$0x3f]
      %v371 = vld [vmem:[%s275 + $0x1e0] sm:$0xff]
      %v372 = vld [vmem:[%s275 + $0x1e8] sm:$0xff]
      %v373 = vld [vmem:[%s275 + $0x1f0] sm:$0xff]
      %v374 = vld [vmem:[%s275 + $0x1f8] sm:$0x3f]
      %v375 = vld [vmem:[%s275 + $0x200] sm:$0xff]
      %v376 = vld [vmem:[%s275 + $0x208] sm:$0xff]
      %v377 = vld [vmem:[%s275 + $0x210] sm:$0xff]
      %v378 = vld [vmem:[%s275 + $0x218] sm:$0x3f]
      %v379 = vld [vmem:[%s275 + $0x220] sm:$0xff]
      %v380 = vld [vmem:[%s275 + $0x228] sm:$0xff]
      %v381 = vld [vmem:[%s275 + $0x230] sm:$0xff]
      %v382 = vld [vmem:[%s275 + $0x238] sm:$0x3f]
      %v383 = vld [vmem:[%s275 + $0x240] sm:$0xff]
      %v384 = vld [vmem:[%s275 + $0x248] sm:$0xff]
      %v385 = vld [vmem:[%s275 + $0x250] sm:$0xff]
      %v386 = vld [vmem:[%s275 + $0x258] sm:$0x3f]
      %v387 = vld [vmem:[%s275 + $0x260] sm:$0xff]
      %v388 = vld [vmem:[%s275 + $0x268] sm:$0xff]
      %v389 = vld [vmem:[%s275 + $0x270] sm:$0xff]
      %v390 = vld [vmem:[%s275 + $0x278] sm:$0x3f]
      %v391 = vld [vmem:[%s275 + $0x280] sm:$0xff]
      %v392 = vld [vmem:[%s275 + $0x288] sm:$0xff]
      %v393 = vld [vmem:[%s275 + $0x290] sm:$0xff]
      %v394 = vld [vmem:[%s275 + $0x298] sm:$0x3f]
      %v395 = vld [vmem:[%s275 + $0x2a0] sm:$0xff]
      %v396 = vld [vmem:[%s275 + $0x2a8] sm:$0xff]
      %v397 = vld [vmem:[%s275 + $0x2b0] sm:$0xff]
      %v398 = vld [vmem:[%s275 + $0x2b8] sm:$0x3f]
      %v399 = vld [vmem:[%s275 + $0x2c0] sm:$0xff]
      %v400 = vld [vmem:[%s275 + $0x2c8] sm:$0xff]
      %v401 = vld [vmem:[%s275 + $0x2d0] sm:$0xff]
      %v402 = vld [vmem:[%s275 + $0x2d8] sm:$0x3f]
      %v403 = vld [vmem:[%s275 + $0x2e0] sm:$0xff]
      %v404 = vld [vmem:[%s275 + $0x2e8] sm:$0xff]
      %v405 = vld [vmem:[%s275 + $0x2f0] sm:$0xff]
      %v406 = vld [vmem:[%s275 + $0x2f8] sm:$0x3f]
      %v407 = vld [vmem:[%s275 + $0x300] sm:$0xff]
      %v408 = vld [vmem:[%s275 + $0x308] sm:$0xff]
      %v409 = vld [vmem:[%s275 + $0x310] sm:$0xff]
      %v410 = vld [vmem:[%s275 + $0x318] sm:$0x3f]
      %v411 = vld [vmem:[%s275 + $0x320] sm:$0xff]
      %v412 = vld [vmem:[%s275 + $0x328] sm:$0xff]
      %v413 = vld [vmem:[%s275 + $0x330] sm:$0xff]
      %v414 = vld [vmem:[%s275 + $0x338] sm:$0x3f]
      %v415 = vld [vmem:[%s275 + $0x340] sm:$0xff]
      %v416 = vld [vmem:[%s275 + $0x348] sm:$0xff]
      %v417 = vld [vmem:[%s275 + $0x350] sm:$0xff]
      %v418 = vld [vmem:[%s275 + $0x358] sm:$0x3f]
      %v419 = vld [vmem:[%s275 + $0x360] sm:$0xff]
      %v420 = vld [vmem:[%s275 + $0x368] sm:$0xff]
      %v421 = vld [vmem:[%s275 + $0x370] sm:$0xff]
      %v422 = vld [vmem:[%s275 + $0x378] sm:$0x3f]
      %v423 = vld [vmem:[%s275 + $0x380] sm:$0xff]
      %v424 = vld [vmem:[%s275 + $0x388] sm:$0xff]
      %v425 = vld [vmem:[%s275 + $0x390] sm:$0xff]
      %v426 = vld [vmem:[%s275 + $0x398] sm:$0x3f]
      %v427 = vld [vmem:[%s275 + $0x3a0] sm:$0xff]
      %v428 = vld [vmem:[%s275 + $0x3a8] sm:$0xff]
      %v429 = vld [vmem:[%s275 + $0x3b0] sm:$0xff]
      %v430 = vld [vmem:[%s275 + $0x3b8] sm:$0x3f]
      %v431 = vmax.f32 %v311, %v315
      %v432 = vmax.f32 %v312, %v316
      %v433 = vmax.f32 %v313, %v317
      %v434 = vmax.f32 %v314, %v318
      %v435 = vmax.f32 %v323, %v327
      %v436 = vmax.f32 %v324, %v328
      %v437 = vmax.f32 %v325, %v329
      %v438 = vmax.f32 %v326, %v330
      %v439 = vmax.f32 %v335, %v339
      %v440 = vmax.f32 %v336, %v340
      %v441 = vmax.f32 %v337, %v341
      %v442 = vmax.f32 %v338, %v342
      %v443 = vmax.f32 %v347, %v351
      %v444 = vmax.f32 %v348, %v352
      %v445 = vmax.f32 %v349, %v353
      %v446 = vmax.f32 %v350, %v354
      %v447 = vmax.f32 %v359, %v363
      %v448 = vmax.f32 %v360, %v364
      %v449 = vmax.f32 %v361, %v365
      %v450 = vmax.f32 %v362, %v366
      %v451 = vmax.f32 %v371, %v375
      %v452 = vmax.f32 %v372, %v376
      %v453 = vmax.f32 %v373, %v377
      %v454 = vmax.f32 %v374, %v378
      %v455 = vmax.f32 %v383, %v387
      %v456 = vmax.f32 %v384, %v388
      %v457 = vmax.f32 %v385, %v389
      %v458 = vmax.f32 %v386, %v390
      %v459 = vmax.f32 %v395, %v399
      %v460 = vmax.f32 %v396, %v400
      %v461 = vmax.f32 %v397, %v401
      %v462 = vmax.f32 %v398, %v402
      %v463 = vmax.f32 %v407, %v411
      %v464 = vmax.f32 %v408, %v412
      %v465 = vmax.f32 %v409, %v413
      %v466 = vmax.f32 %v410, %v414
      %v467 = vmax.f32 %v419, %v423
      %v468 = vmax.f32 %v420, %v424
      %v469 = vmax.f32 %v421, %v425
      %v470 = vmax.f32 %v422, %v426
      %v471 = vmax.f32 %v431, %v319
      %v472 = vmax.f32 %v432, %v320
      %v473 = vmax.f32 %v433, %v321
      %v474 = vmax.f32 %v434, %v322
      %v475 = vmax.f32 %v435, %v331
      %v476 = vmax.f32 %v436, %v332
      %v477 = vmax.f32 %v437, %v333
      %v478 = vmax.f32 %v438, %v334
      %v479 = vmax.f32 %v439, %v343
      %v480 = vmax.f32 %v440, %v344
      %v481 = vmax.f32 %v441, %v345
      %v482 = vmax.f32 %v442, %v346
      %v483 = vmax.f32 %v443, %v355
      %v484 = vmax.f32 %v444, %v356
      %v485 = vmax.f32 %v445, %v357
      %v486 = vmax.f32 %v446, %v358
      %v487 = vmax.f32 %v447, %v367
      %v488 = vmax.f32 %v448, %v368
      %v489 = vmax.f32 %v449, %v369
      %v490 = vmax.f32 %v450, %v370
      %v491 = vmax.f32 %v451, %v379
      %v492 = vmax.f32 %v452, %v380
      %v493 = vmax.f32 %v453, %v381
      %v494 = vmax.f32 %v454, %v382
      %v495 = vmax.f32 %v455, %v391
      %v496 = vmax.f32 %v456, %v392
      %v497 = vmax.f32 %v457, %v393
      %v498 = vmax.f32 %v458, %v394
      %v499 = vmax.f32 %v459, %v403
      %v500 = vmax.f32 %v460, %v404
      %v501 = vmax.f32 %v461, %v405
      %v502 = vmax.f32 %v462, %v406
      %v503 = vmax.f32 %v463, %v415
      %v504 = vmax.f32 %v464, %v416
      %v505 = vmax.f32 %v465, %v417
      %v506 = vmax.f32 %v466, %v418
      %v507 = vmax.f32 %v467, %v427
      %v508 = vmax.f32 %v468, %v428
      %v509 = vmax.f32 %v469, %v429
      %v510 = vmax.f32 %v470, %v430
      %vm551 = vcmask 1046528
      %v552 = vrot.slane %v471, 1
      %v553 = vrot.slane %v472, 1
      %v554 = vsel %vm551, %v552, %v553
      %v555 = vrot.slane %v473, 1
      %v556 = vsel %vm551, %v553, %v555
      %v557 = vrot.slane %v474, 1
      %v558 = vsel %vm551, %v555, %v557
      %v559 = vrot.slane %v475, 1
      %v560 = vrot.slane %v476, 1
      %v561 = vsel %vm551, %v559, %v560
      %v562 = vrot.slane %v477, 1
      %v563 = vsel %vm551, %v560, %v562
      %v564 = vrot.slane %v478, 1
      %v565 = vsel %vm551, %v562, %v564
      %v566 = vrot.slane %v479, 1
      %v567 = vrot.slane %v480, 1
      %v568 = vsel %vm551, %v566, %v567
      %v569 = vrot.slane %v481, 1
      %v570 = vsel %vm551, %v567, %v569
      %v571 = vrot.slane %v482, 1
      %v572 = vsel %vm551, %v569, %v571
      %v573 = vrot.slane %v483, 1
      %v574 = vrot.slane %v484, 1
      %v575 = vsel %vm551, %v573, %v574
      %v576 = vrot.slane %v485, 1
      %v577 = vsel %vm551, %v574, %v576
      %v578 = vrot.slane %v486, 1
      %v579 = vsel %vm551, %v576, %v578
      %v580 = vrot.slane %v487, 1
      %v581 = vrot.slane %v488, 1
      %v582 = vsel %vm551, %v580, %v581
      %v583 = vrot.slane %v489, 1
      %v584 = vsel %vm551, %v581, %v583
      %v585 = vrot.slane %v490, 1
      %v586 = vsel %vm551, %v583, %v585
      %v587 = vrot.slane %v491, 1
      %v588 = vrot.slane %v492, 1
      %v589 = vsel %vm551, %v587, %v588
      %v590 = vrot.slane %v493, 1
      %v591 = vsel %vm551, %v588, %v590
      %v592 = vrot.slane %v494, 1
      %v593 = vsel %vm551, %v590, %v592
      %v594 = vrot.slane %v495, 1
      %v595 = vrot.slane %v496, 1
      %v596 = vsel %vm551, %v594, %v595
      %v597 = vrot.slane %v497, 1
      %v598 = vsel %vm551, %v595, %v597
      %v599 = vrot.slane %v498, 1
      %v600 = vsel %vm551, %v597, %v599
      %v601 = vrot.slane %v499, 1
      %v602 = vrot.slane %v500, 1
      %v603 = vsel %vm551, %v601, %v602
      %v604 = vrot.slane %v501, 1
      %v605 = vsel %vm551, %v602, %v604
      %v606 = vrot.slane %v502, 1
      %v607 = vsel %vm551, %v604, %v606
      %v608 = vrot.slane %v503, 1
      %v609 = vrot.slane %v504, 1
      %v610 = vsel %vm551, %v608, %v609
      %v611 = vrot.slane %v505, 1
      %v612 = vsel %vm551, %v609, %v611
      %v613 = vrot.slane %v506, 1
      %v614 = vsel %vm551, %v611, %v613
      %v615 = vrot.slane %v507, 1
      %v616 = vrot.slane %v508, 1
      %v617 = vsel %vm551, %v615, %v616
      %v618 = vrot.slane %v509, 1
      %v619 = vsel %vm551, %v616, %v618
      %v620 = vrot.slane %v510, 1
      %v621 = vsel %vm551, %v618, %v620
      %v662 = vmax.f32 %v471, %v554
      %v663 = vmax.f32 %v472, %v556
      %v664 = vmax.f32 %v473, %v558
      %v665 = vmax.f32 %v474, %v557
      %v666 = vmax.f32 %v475, %v561
      %v667 = vmax.f32 %v476, %v563
      %v668 = vmax.f32 %v477, %v565
      %v669 = vmax.f32 %v478, %v564
      %v670 = vmax.f32 %v479, %v568
      %v671 = vmax.f32 %v480, %v570
      %v672 = vmax.f32 %v481, %v572
      %v673 = vmax.f32 %v482, %v571
      %v674 = vmax.f32 %v483, %v575
      %v675 = vmax.f32 %v484, %v577
      %v676 = vmax.f32 %v485, %v579
      %v677 = vmax.f32 %v486, %v578
      %v678 = vmax.f32 %v487, %v582
      %v679 = vmax.f32 %v488, %v584
      %v680 = vmax.f32 %v489, %v586
      %v681 = vmax.f32 %v490, %v585
      %v682 = vmax.f32 %v491, %v589
      %v683 = vmax.f32 %v492, %v591
      %v684 = vmax.f32 %v493, %v593
      %v685 = vmax.f32 %v494, %v592
      %v686 = vmax.f32 %v495, %v596
      %v687 = vmax.f32 %v496, %v598
      %v688 = vmax.f32 %v497, %v600
      %v689 = vmax.f32 %v498, %v599
      %v690 = vmax.f32 %v499, %v603
      %v691 = vmax.f32 %v500, %v605
      %v692 = vmax.f32 %v501, %v607
      %v693 = vmax.f32 %v502, %v606
      %v694 = vmax.f32 %v503, %v610
      %v695 = vmax.f32 %v504, %v612
      %v696 = vmax.f32 %v505, %v614
      %v697 = vmax.f32 %v506, %v613
      %v698 = vmax.f32 %v507, %v617
      %v699 = vmax.f32 %v508, %v619
      %v700 = vmax.f32 %v509, %v621
      %v701 = vmax.f32 %v510, %v620
      %vm702 = vcmask 1045504
      %v703 = vrot.slane %v471, 2
      %v704 = vrot.slane %v472, 2
      %v705 = vsel %vm702, %v703, %v704
      %v706 = vrot.slane %v473, 2
      %v707 = vsel %vm702, %v704, %v706
      %v708 = vrot.slane %v474, 2
      %v709 = vsel %vm702, %v706, %v708
      %v710 = vrot.slane %v475, 2
      %v711 = vrot.slane %v476, 2
      %v712 = vsel %vm702, %v710, %v711
      %v713 = vrot.slane %v477, 2
      %v714 = vsel %vm702, %v711, %v713
      %v715 = vrot.slane %v478, 2
      %v716 = vsel %vm702, %v713, %v715
      %v717 = vrot.slane %v479, 2
      %v718 = vrot.slane %v480, 2
      %v719 = vsel %vm702, %v717, %v718
      %v720 = vrot.slane %v481, 2
      %v721 = vsel %vm702, %v718, %v720
      %v722 = vrot.slane %v482, 2
      %v723 = vsel %vm702, %v720, %v722
      %v724 = vrot.slane %v483, 2
      %v725 = vrot.slane %v484, 2
      %v726 = vsel %vm702, %v724, %v725
      %v727 = vrot.slane %v485, 2
      %v728 = vsel %vm702, %v725, %v727
      %v729 = vrot.slane %v486, 2
      %v730 = vsel %vm702, %v727, %v729
      %v731 = vrot.slane %v487, 2
      %v732 = vrot.slane %v488, 2
      %v733 = vsel %vm702, %v731, %v732
      %v734 = vrot.slane %v489, 2
      %v735 = vsel %vm702, %v732, %v734
      %v736 = vrot.slane %v490, 2
      %v737 = vsel %vm702, %v734, %v736
      %v738 = vrot.slane %v491, 2
      %v739 = vrot.slane %v492, 2
      %v740 = vsel %vm702, %v738, %v739
      %v741 = vrot.slane %v493, 2
      %v742 = vsel %vm702, %v739, %v741
      %v743 = vrot.slane %v494, 2
      %v744 = vsel %vm702, %v741, %v743
      %v745 = vrot.slane %v495, 2
      %v746 = vrot.slane %v496, 2
      %v747 = vsel %vm702, %v745, %v746
      %v748 = vrot.slane %v497, 2
      %v749 = vsel %vm702, %v746, %v748
      %v750 = vrot.slane %v498, 2
      %v751 = vsel %vm702, %v748, %v750
      %v752 = vrot.slane %v499, 2
      %v753 = vrot.slane %v500, 2
      %v754 = vsel %vm702, %v752, %v753
      %v755 = vrot.slane %v501, 2
      %v756 = vsel %vm702, %v753, %v755
      %v757 = vrot.slane %v502, 2
      %v758 = vsel %vm702, %v755, %v757
      %v759 = vrot.slane %v503, 2
      %v760 = vrot.slane %v504, 2
      %v761 = vsel %vm702, %v759, %v760
      %v762 = vrot.slane %v505, 2
      %v763 = vsel %vm702, %v760, %v762
      %v764 = vrot.slane %v506, 2
      %v765 = vsel %vm702, %v762, %v764
      %v766 = vrot.slane %v507, 2
      %v767 = vrot.slane %v508, 2
      %v768 = vsel %vm702, %v766, %v767
      %v769 = vrot.slane %v509, 2
      %v770 = vsel %vm702, %v767, %v769
      %v771 = vrot.slane %v510, 2
      %v772 = vsel %vm702, %v769, %v771
      %v813 = vmax.f32 %v662, %v705
      %v814 = vmax.f32 %v663, %v707
      %v815 = vmax.f32 %v664, %v709
      %v816 = vmax.f32 %v665, %v708
      %v817 = vmax.f32 %v666, %v712
      %v818 = vmax.f32 %v667, %v714
      %v819 = vmax.f32 %v668, %v716
      %v820 = vmax.f32 %v669, %v715
      %v821 = vmax.f32 %v670, %v719
      %v822 = vmax.f32 %v671, %v721
      %v823 = vmax.f32 %v672, %v723
      %v824 = vmax.f32 %v673, %v722
      %v825 = vmax.f32 %v674, %v726
      %v826 = vmax.f32 %v675, %v728
      %v827 = vmax.f32 %v676, %v730
      %v828 = vmax.f32 %v677, %v729
      %v829 = vmax.f32 %v678, %v733
      %v830 = vmax.f32 %v679, %v735
      %v831 = vmax.f32 %v680, %v737
      %v832 = vmax.f32 %v681, %v736
      %v833 = vmax.f32 %v682, %v740
      %v834 = vmax.f32 %v683, %v742
      %v835 = vmax.f32 %v684, %v744
      %v836 = vmax.f32 %v685, %v743
      %v837 = vmax.f32 %v686, %v747
      %v838 = vmax.f32 %v687, %v749
      %v839 = vmax.f32 %v688, %v751
      %v840 = vmax.f32 %v689, %v750
      %v841 = vmax.f32 %v690, %v754
      %v842 = vmax.f32 %v691, %v756
      %v843 = vmax.f32 %v692, %v758
      %v844 = vmax.f32 %v693, %v757
      %v845 = vmax.f32 %v694, %v761
      %v846 = vmax.f32 %v695, %v763
      %v847 = vmax.f32 %v696, %v765
      %v848 = vmax.f32 %v697, %v764
      %v849 = vmax.f32 %v698, %v768
      %v850 = vmax.f32 %v699, %v770
      %v851 = vmax.f32 %v700, %v772
      %v852 = vmax.f32 %v701, %v771
      %v863 = vrot.slane %v813, 2
      %v864 = vrot.slane %v817, 2
      %v865 = vrot.slane %v821, 2
      %v866 = vrot.slane %v825, 2
      %v867 = vrot.slane %v829, 2
      %v868 = vrot.slane %v833, 2
      %v869 = vrot.slane %v837, 2
      %v870 = vrot.slane %v841, 2
      %v871 = vrot.slane %v845, 2
      %v872 = vrot.slane %v849, 2
      %v883 = vrot.slane %v813, 4
      %v884 = vrot.slane %v817, 4
      %v885 = vrot.slane %v821, 4
      %v886 = vrot.slane %v825, 4
      %v887 = vrot.slane %v829, 4
      %v888 = vrot.slane %v833, 4
      %v889 = vrot.slane %v837, 4
      %v890 = vrot.slane %v841, 4
      %v891 = vrot.slane %v845, 4
      %v892 = vrot.slane %v849, 4
      %v913 = vrot.slane %v814, 6
      %v914 = vrot.slane %v818, 6
      %v915 = vrot.slane %v822, 6
      %v916 = vrot.slane %v826, 6
      %v917 = vrot.slane %v830, 6
      %v918 = vrot.slane %v834, 6
      %v919 = vrot.slane %v838, 6
      %v920 = vrot.slane %v842, 6
      %v921 = vrot.slane %v846, 6
      %v922 = vrot.slane %v850, 6
      %v933 = vrot.slane %v814, 2
      %v934 = vrot.slane %v818, 2
      %v935 = vrot.slane %v822, 2
      %v936 = vrot.slane %v826, 2
      %v937 = vrot.slane %v830, 2
      %v938 = vrot.slane %v834, 2
      %v939 = vrot.slane %v838, 2
      %v940 = vrot.slane %v842, 2
      %v941 = vrot.slane %v846, 2
      %v942 = vrot.slane %v850, 2
      %v963 = vrot.slane %v815, 4
      %v964 = vrot.slane %v819, 4
      %v965 = vrot.slane %v823, 4
      %v966 = vrot.slane %v827, 4
      %v967 = vrot.slane %v831, 4
      %v968 = vrot.slane %v835, 4
      %v969 = vrot.slane %v839, 4
      %v970 = vrot.slane %v843, 4
      %v971 = vrot.slane %v847, 4
      %v972 = vrot.slane %v851, 4
      %v983 = vrot.slane %v815, 6
      %v984 = vrot.slane %v819, 6
      %v985 = vrot.slane %v823, 6
      %v986 = vrot.slane %v827, 6
      %v987 = vrot.slane %v831, 6
      %v988 = vrot.slane %v835, 6
      %v989 = vrot.slane %v839, 6
      %v990 = vrot.slane %v843, 6
      %v991 = vrot.slane %v847, 6
      %v992 = vrot.slane %v851, 6
      %v1013 = vrot.slane %v816, 2
      %v1014 = vrot.slane %v820, 2
      %v1015 = vrot.slane %v824, 2
      %v1016 = vrot.slane %v828, 2
      %v1017 = vrot.slane %v832, 2
      %v1018 = vrot.slane %v836, 2
      %v1019 = vrot.slane %v840, 2
      %v1020 = vrot.slane %v844, 2
      %v1021 = vrot.slane %v848, 2
      %v1022 = vrot.slane %v852, 2
      %vm1033 = vcmask 1040384
      %v1034 = vsel %vm1033, %v813, %v863
      %v1035 = vsel %vm1033, %v817, %v864
      %v1036 = vsel %vm1033, %v821, %v865
      %v1037 = vsel %vm1033, %v825, %v866
      %v1038 = vsel %vm1033, %v829, %v867
      %v1039 = vsel %vm1033, %v833, %v868
      %v1040 = vsel %vm1033, %v837, %v869
      %v1041 = vsel %vm1033, %v841, %v870
      %v1042 = vsel %vm1033, %v845, %v871
      %v1043 = vsel %vm1033, %v849, %v872
      %vm1044 = vcmask 1041408
      %v1045 = vsel %vm1044, %v1034, %v883
      %v1046 = vsel %vm1044, %v1035, %v884
      %v1047 = vsel %vm1044, %v1036, %v885
      %v1048 = vsel %vm1044, %v1037, %v886
      %v1049 = vsel %vm1044, %v1038, %v887
      %v1050 = vsel %vm1044, %v1039, %v888
      %v1051 = vsel %vm1044, %v1040, %v889
      %v1052 = vsel %vm1044, %v1041, %v890
      %v1053 = vsel %vm1044, %v1042, %v891
      %v1054 = vsel %vm1044, %v1043, %v892
      %vm1055 = vcmask 1042432
      %v1056 = vsel %vm1055, %v1045, %v913
      %v1057 = vsel %vm1055, %v1046, %v914
      %v1058 = vsel %vm1055, %v1047, %v915
      %v1059 = vsel %vm1055, %v1048, %v916
      %v1060 = vsel %vm1055, %v1049, %v917
      %v1061 = vsel %vm1055, %v1050, %v918
      %v1062 = vsel %vm1055, %v1051, %v919
      %v1063 = vsel %vm1055, %v1052, %v920
      %v1064 = vsel %vm1055, %v1053, %v921
      %v1065 = vsel %vm1055, %v1054, %v922
      %vm1066 = vcmask 1043456
      %v1067 = vsel %vm1066, %v1056, %v814
      %v1068 = vsel %vm1066, %v1057, %v818
      %v1069 = vsel %vm1066, %v1058, %v822
      %v1070 = vsel %vm1066, %v1059, %v826
      %v1071 = vsel %vm1066, %v1060, %v830
      %v1072 = vsel %vm1066, %v1061, %v834
      %v1073 = vsel %vm1066, %v1062, %v838
      %v1074 = vsel %vm1066, %v1063, %v842
      %v1075 = vsel %vm1066, %v1064, %v846
      %v1076 = vsel %vm1066, %v1065, %v850
      %vm1077 = vcmask 1044480
      %v1078 = vsel %vm1077, %v1067, %v933
      %v1079 = vsel %vm1077, %v1068, %v934
      %v1080 = vsel %vm1077, %v1069, %v935
      %v1081 = vsel %vm1077, %v1070, %v936
      %v1082 = vsel %vm1077, %v1071, %v937
      %v1083 = vsel %vm1077, %v1072, %v938
      %v1084 = vsel %vm1077, %v1073, %v939
      %v1085 = vsel %vm1077, %v1074, %v940
      %v1086 = vsel %vm1077, %v1075, %v941
      %v1087 = vsel %vm1077, %v1076, %v942
      %v1088 = vsel %vm702, %v1078, %v963
      %v1089 = vsel %vm702, %v1079, %v964
      %v1090 = vsel %vm702, %v1080, %v965
      %v1091 = vsel %vm702, %v1081, %v966
      %v1092 = vsel %vm702, %v1082, %v967
      %v1093 = vsel %vm702, %v1083, %v968
      %v1094 = vsel %vm702, %v1084, %v969
      %v1095 = vsel %vm702, %v1085, %v970
      %v1096 = vsel %vm702, %v1086, %v971
      %v1097 = vsel %vm702, %v1087, %v972
      %v1098 = vsel %vm551, %v1088, %v983
      %v1099 = vsel %vm551, %v1089, %v984
      %v1100 = vsel %vm551, %v1090, %v985
      %v1101 = vsel %vm551, %v1091, %v986
      %v1102 = vsel %vm551, %v1092, %v987
      %v1103 = vsel %vm551, %v1093, %v988
      %v1104 = vsel %vm551, %v1094, %v989
      %v1105 = vsel %vm551, %v1095, %v990
      %v1106 = vsel %vm551, %v1096, %v991
      %v1107 = vsel %vm551, %v1097, %v992
      %v1108 = vsel %vm1033, %v816, %v1013
      %v1109 = vsel %vm1033, %v820, %v1014
      %v1110 = vsel %vm1033, %v824, %v1015
      %v1111 = vsel %vm1033, %v828, %v1016
      %v1112 = vsel %vm1033, %v832, %v1017
      %v1113 = vsel %vm1033, %v836, %v1018
      %v1114 = vsel %vm1033, %v840, %v1019
      %v1115 = vsel %vm1033, %v844, %v1020
      %v1116 = vsel %vm1033, %v848, %v1021
      %v1117 = vsel %vm1033, %v852, %v1022
      %1138 = vrot.lane.b32.xlu0 %v1098, 127
      %v1139 = vpop.permute.xlu0 %1138
      %1140 = vrot.lane.b32.xlu0 %v1108, 127
      %v1141 = vpop.permute.xlu0 %1140
      %1142 = vrot.lane.b32.xlu0 %v1099, 127
      %v1143 = vpop.permute.xlu0 %1142
      %1144 = vrot.lane.b32.xlu0 %v1109, 127
      %v1145 = vpop.permute.xlu0 %1144
      %1146 = vrot.lane.b32.xlu0 %v1100, 127
      %v1147 = vpop.permute.xlu0 %1146
      %1148 = vrot.lane.b32.xlu0 %v1110, 127
      %v1149 = vpop.permute.xlu0 %1148
      %1150 = vrot.lane.b32.xlu0 %v1101, 127
      %v1151 = vpop.permute.xlu0 %1150
      %1152 = vrot.lane.b32.xlu0 %v1111, 127
      %v1153 = vpop.permute.xlu0 %1152
      %1154 = vrot.lane.b32.xlu0 %v1102, 127
      %v1155 = vpop.permute.xlu0 %1154
      %1156 = vrot.lane.b32.xlu0 %v1112, 127
      %v1157 = vpop.permute.xlu0 %1156
      %1158 = vrot.lane.b32.xlu0 %v1103, 127
      %v1159 = vpop.permute.xlu0 %1158
      %1160 = vrot.lane.b32.xlu0 %v1113, 127
      %v1161 = vpop.permute.xlu0 %1160
      %1162 = vrot.lane.b32.xlu0 %v1104, 127
      %v1163 = vpop.permute.xlu0 %1162
      %1164 = vrot.lane.b32.xlu0 %v1114, 127
      %v1165 = vpop.permute.xlu0 %1164
      %1166 = vrot.lane.b32.xlu0 %v1105, 127
      %v1167 = vpop.permute.xlu0 %1166
      %1168 = vrot.lane.b32.xlu0 %v1115, 127
      %v1169 = vpop.permute.xlu0 %1168
      %1170 = vrot.lane.b32.xlu0 %v1106, 127
      %v1171 = vpop.permute.xlu0 %1170
      %1172 = vrot.lane.b32.xlu0 %v1116, 127
      %v1173 = vpop.permute.xlu0 %1172
      %1174 = vrot.lane.b32.xlu0 %v1107, 127
      %v1175 = vpop.permute.xlu0 %1174
      %1176 = vrot.lane.b32.xlu0 %v1117, 127
      %v1177 = vpop.permute.xlu0 %1176
      %v1198 = vmax.f32 %v1098, %v1139
      %v1199 = vmax.f32 %v1108, %v1141
      %v1200 = vmax.f32 %v1099, %v1143
      %v1201 = vmax.f32 %v1109, %v1145
      %v1202 = vmax.f32 %v1100, %v1147
      %v1203 = vmax.f32 %v1110, %v1149
      %v1204 = vmax.f32 %v1101, %v1151
      %v1205 = vmax.f32 %v1111, %v1153
      %v1206 = vmax.f32 %v1102, %v1155
      %v1207 = vmax.f32 %v1112, %v1157
      %v1208 = vmax.f32 %v1103, %v1159
      %v1209 = vmax.f32 %v1113, %v1161
      %v1210 = vmax.f32 %v1104, %v1163
      %v1211 = vmax.f32 %v1114, %v1165
      %v1212 = vmax.f32 %v1105, %v1167
      %v1213 = vmax.f32 %v1115, %v1169
      %v1214 = vmax.f32 %v1106, %v1171
      %v1215 = vmax.f32 %v1116, %v1173
      %v1216 = vmax.f32 %v1107, %v1175
      %v1217 = vmax.f32 %v1117, %v1177
      %1218 = vrot.lane.b32.xlu0 %v1098, 126
      %v1219 = vpop.permute.xlu0 %1218
      %1220 = vrot.lane.b32.xlu0 %v1108, 126
      %v1221 = vpop.permute.xlu0 %1220
      %1222 = vrot.lane.b32.xlu0 %v1099, 126
      %v1223 = vpop.permute.xlu0 %1222
      %1224 = vrot.lane.b32.xlu0 %v1109, 126
      %v1225 = vpop.permute.xlu0 %1224
      %1226 = vrot.lane.b32.xlu0 %v1100, 126
      %v1227 = vpop.permute.xlu0 %1226
      %1228 = vrot.lane.b32.xlu0 %v1110, 126
      %v1229 = vpop.permute.xlu0 %1228
      %1230 = vrot.lane.b32.xlu0 %v1101, 126
      %v1231 = vpop.permute.xlu0 %1230
      %1232 = vrot.lane.b32.xlu0 %v1111, 126
      %v1233 = vpop.permute.xlu0 %1232
      %1234 = vrot.lane.b32.xlu0 %v1102, 126
      %v1235 = vpop.permute.xlu0 %1234
      %1236 = vrot.lane.b32.xlu0 %v1112, 126
      %v1237 = vpop.permute.xlu0 %1236
      %1238 = vrot.lane.b32.xlu0 %v1103, 126
      %v1239 = vpop.permute.xlu0 %1238
      %1240 = vrot.lane.b32.xlu0 %v1113, 126
      %v1241 = vpop.permute.xlu0 %1240
      %1242 = vrot.lane.b32.xlu0 %v1104, 126
      %v1243 = vpop.permute.xlu0 %1242
      %1244 = vrot.lane.b32.xlu0 %v1114, 126
      %v1245 = vpop.permute.xlu0 %1244
      %1246 = vrot.lane.b32.xlu0 %v1105, 126
      %v1247 = vpop.permute.xlu0 %1246
      %1248 = vrot.lane.b32.xlu0 %v1115, 126
      %v1249 = vpop.permute.xlu0 %1248
      %1250 = vrot.lane.b32.xlu0 %v1106, 126
      %v1251 = vpop.permute.xlu0 %1250
      %1252 = vrot.lane.b32.xlu0 %v1116, 126
      %v1253 = vpop.permute.xlu0 %1252
      %1254 = vrot.lane.b32.xlu0 %v1107, 126
      %v1255 = vpop.permute.xlu0 %1254
      %1256 = vrot.lane.b32.xlu0 %v1117, 126
      %v1257 = vpop.permute.xlu0 %1256
      %v1278 = vmax.f32 %v1198, %v1219
      %v1279 = vmax.f32 %v1199, %v1221
      %v1280 = vmax.f32 %v1200, %v1223
      %v1281 = vmax.f32 %v1201, %v1225
      %v1282 = vmax.f32 %v1202, %v1227
      %v1283 = vmax.f32 %v1203, %v1229
      %v1284 = vmax.f32 %v1204, %v1231
      %v1285 = vmax.f32 %v1205, %v1233
      %v1286 = vmax.f32 %v1206, %v1235
      %v1287 = vmax.f32 %v1207, %v1237
      %v1288 = vmax.f32 %v1208, %v1239
      %v1289 = vmax.f32 %v1209, %v1241
      %v1290 = vmax.f32 %v1210, %v1243
      %v1291 = vmax.f32 %v1211, %v1245
      %v1292 = vmax.f32 %v1212, %v1247
      %v1293 = vmax.f32 %v1213, %v1249
      %v1294 = vmax.f32 %v1214, %v1251
      %v1295 = vmax.f32 %v1215, %v1253
      %v1296 = vmax.f32 %v1216, %v1255
      %v1297 = vmax.f32 %v1217, %v1257
      %1318 = vrot.lane.b32.xlu0 %v1278, 126
      %v1319 = vpop.permute.xlu0 %1318
      %1320 = vrot.lane.b32.xlu0 %v1279, 126
      %v1321 = vpop.permute.xlu0 %1320
      %1322 = vrot.lane.b32.xlu0 %v1280, 126
      %v1323 = vpop.permute.xlu0 %1322
      %1324 = vrot.lane.b32.xlu0 %v1281, 126
      %v1325 = vpop.permute.xlu0 %1324
      %1326 = vrot.lane.b32.xlu0 %v1282, 126
      %v1327 = vpop.permute.xlu0 %1326
      %1328 = vrot.lane.b32.xlu0 %v1283, 126
      %v1329 = vpop.permute.xlu0 %1328
      %1330 = vrot.lane.b32.xlu0 %v1284, 126
      %v1331 = vpop.permute.xlu0 %1330
      %1332 = vrot.lane.b32.xlu0 %v1285, 126
      %v1333 = vpop.permute.xlu0 %1332
      %1334 = vrot.lane.b32.xlu0 %v1286, 126
      %v1335 = vpop.permute.xlu0 %1334
      %1336 = vrot.lane.b32.xlu0 %v1287, 126
      %v1337 = vpop.permute.xlu0 %1336
      %1338 = vrot.lane.b32.xlu0 %v1288, 126
      %v1339 = vpop.permute.xlu0 %1338
      %1340 = vrot.lane.b32.xlu0 %v1289, 126
      %v1341 = vpop.permute.xlu0 %1340
      %1342 = vrot.lane.b32.xlu0 %v1290, 126
      %v1343 = vpop.permute.xlu0 %1342
      %1344 = vrot.lane.b32.xlu0 %v1291, 126
      %v1345 = vpop.permute.xlu0 %1344
      %1346 = vrot.lane.b32.xlu0 %v1292, 126
      %v1347 = vpop.permute.xlu0 %1346
      %1348 = vrot.lane.b32.xlu0 %v1293, 126
      %v1349 = vpop.permute.xlu0 %1348
      %1350 = vrot.lane.b32.xlu0 %v1294, 126
      %v1351 = vpop.permute.xlu0 %1350
      %1352 = vrot.lane.b32.xlu0 %v1295, 126
      %v1353 = vpop.permute.xlu0 %1352
      %1354 = vrot.lane.b32.xlu0 %v1296, 126
      %v1355 = vpop.permute.xlu0 %1354
      %1356 = vrot.lane.b32.xlu0 %v1297, 126
      %v1357 = vpop.permute.xlu0 %1356
      %1378 = vrot.lane.b32.xlu0 %v1278, 124
      %v1379 = vpop.permute.xlu0 %1378
      %1380 = vrot.lane.b32.xlu0 %v1279, 124
      %v1381 = vpop.permute.xlu0 %1380
      %1382 = vrot.lane.b32.xlu0 %v1280, 124
      %v1383 = vpop.permute.xlu0 %1382
      %1384 = vrot.lane.b32.xlu0 %v1281, 124
      %v1385 = vpop.permute.xlu0 %1384
      %1386 = vrot.lane.b32.xlu0 %v1282, 124
      %v1387 = vpop.permute.xlu0 %1386
      %1388 = vrot.lane.b32.xlu0 %v1283, 124
      %v1389 = vpop.permute.xlu0 %1388
      %1390 = vrot.lane.b32.xlu0 %v1284, 124
      %v1391 = vpop.permute.xlu0 %1390
      %1392 = vrot.lane.b32.xlu0 %v1285, 124
      %v1393 = vpop.permute.xlu0 %1392
      %1394 = vrot.lane.b32.xlu0 %v1286, 124
      %v1395 = vpop.permute.xlu0 %1394
      %1396 = vrot.lane.b32.xlu0 %v1287, 124
      %v1397 = vpop.permute.xlu0 %1396
      %1398 = vrot.lane.b32.xlu0 %v1288, 124
      %v1399 = vpop.permute.xlu0 %1398
      %1400 = vrot.lane.b32.xlu0 %v1289, 124
      %v1401 = vpop.permute.xlu0 %1400
      %1402 = vrot.lane.b32.xlu0 %v1290, 124
      %v1403 = vpop.permute.xlu0 %1402
      %1404 = vrot.lane.b32.xlu0 %v1291, 124
      %v1405 = vpop.permute.xlu0 %1404
      %1406 = vrot.lane.b32.xlu0 %v1292, 124
      %v1407 = vpop.permute.xlu0 %1406
      %1408 = vrot.lane.b32.xlu0 %v1293, 124
      %v1409 = vpop.permute.xlu0 %1408
      %1410 = vrot.lane.b32.xlu0 %v1294, 124
      %v1411 = vpop.permute.xlu0 %1410
      %1412 = vrot.lane.b32.xlu0 %v1295, 124
      %v1413 = vpop.permute.xlu0 %1412
      %1414 = vrot.lane.b32.xlu0 %v1296, 124
      %v1415 = vpop.permute.xlu0 %1414
      %1416 = vrot.lane.b32.xlu0 %v1297, 124
      %v1417 = vpop.permute.xlu0 %1416
      %1438 = vrot.lane.b32.xlu0 %v1278, 122
      %v1439 = vpop.permute.xlu0 %1438
      %1440 = vrot.lane.b32.xlu0 %v1279, 122
      %v1441 = vpop.permute.xlu0 %1440
      %1442 = vrot.lane.b32.xlu0 %v1280, 122
      %v1443 = vpop.permute.xlu0 %1442
      %1444 = vrot.lane.b32.xlu0 %v1281, 122
      %v1445 = vpop.permute.xlu0 %1444
      %1446 = vrot.lane.b32.xlu0 %v1282, 122
      %v1447 = vpop.permute.xlu0 %1446
      %1448 = vrot.lane.b32.xlu0 %v1283, 122
      %v1449 = vpop.permute.xlu0 %1448
      %1450 = vrot.lane.b32.xlu0 %v1284, 122
      %v1451 = vpop.permute.xlu0 %1450
      %1452 = vrot.lane.b32.xlu0 %v1285, 122
      %v1453 = vpop.permute.xlu0 %1452
      %1454 = vrot.lane.b32.xlu0 %v1286, 122
      %v1455 = vpop.permute.xlu0 %1454
      %1456 = vrot.lane.b32.xlu0 %v1287, 122
      %v1457 = vpop.permute.xlu0 %1456
      %1458 = vrot.lane.b32.xlu0 %v1288, 122
      %v1459 = vpop.permute.xlu0 %1458
      %1460 = vrot.lane.b32.xlu0 %v1289, 122
      %v1461 = vpop.permute.xlu0 %1460
      %1462 = vrot.lane.b32.xlu0 %v1290, 122
      %v1463 = vpop.permute.xlu0 %1462
      %1464 = vrot.lane.b32.xlu0 %v1291, 122
      %v1465 = vpop.permute.xlu0 %1464
      %1466 = vrot.lane.b32.xlu0 %v1292, 122
      %v1467 = vpop.permute.xlu0 %1466
      %1468 = vrot.lane.b32.xlu0 %v1293, 122
      %v1469 = vpop.permute.xlu0 %1468
      %1470 = vrot.lane.b32.xlu0 %v1294, 122
      %v1471 = vpop.permute.xlu0 %1470
      %1472 = vrot.lane.b32.xlu0 %v1295, 122
      %v1473 = vpop.permute.xlu0 %1472
      %1474 = vrot.lane.b32.xlu0 %v1296, 122
      %v1475 = vpop.permute.xlu0 %1474
      %1476 = vrot.lane.b32.xlu0 %v1297, 122
      %v1477 = vpop.permute.xlu0 %1476
      %1498 = vrot.lane.b32.xlu0 %v1278, 120
      %v1499 = vpop.permute.xlu0 %1498
      %1500 = vrot.lane.b32.xlu0 %v1279, 120
      %v1501 = vpop.permute.xlu0 %1500
      %1502 = vrot.lane.b32.xlu0 %v1280, 120
      %v1503 = vpop.permute.xlu0 %1502
      %1504 = vrot.lane.b32.xlu0 %v1281, 120
      %v1505 = vpop.permute.xlu0 %1504
      %1506 = vrot.lane.b32.xlu0 %v1282, 120
      %v1507 = vpop.permute.xlu0 %1506
      %1508 = vrot.lane.b32.xlu0 %v1283, 120
      %v1509 = vpop.permute.xlu0 %1508
      %1510 = vrot.lane.b32.xlu0 %v1284, 120
      %v1511 = vpop.permute.xlu0 %1510
      %1512 = vrot.lane.b32.xlu0 %v1285, 120
      %v1513 = vpop.permute.xlu0 %1512
      %1514 = vrot.lane.b32.xlu0 %v1286, 120
      %v1515 = vpop.permute.xlu0 %1514
      %1516 = vrot.lane.b32.xlu0 %v1287, 120
      %v1517 = vpop.permute.xlu0 %1516
      %1518 = vrot.lane.b32.xlu0 %v1288, 120
      %v1519 = vpop.permute.xlu0 %1518
      %1520 = vrot.lane.b32.xlu0 %v1289, 120
      %v1521 = vpop.permute.xlu0 %1520
      %1522 = vrot.lane.b32.xlu0 %v1290, 120
      %v1523 = vpop.permute.xlu0 %1522
      %1524 = vrot.lane.b32.xlu0 %v1291, 120
      %v1525 = vpop.permute.xlu0 %1524
      %1526 = vrot.lane.b32.xlu0 %v1292, 120
      %v1527 = vpop.permute.xlu0 %1526
      %1528 = vrot.lane.b32.xlu0 %v1293, 120
      %v1529 = vpop.permute.xlu0 %1528
      %1530 = vrot.lane.b32.xlu0 %v1294, 120
      %v1531 = vpop.permute.xlu0 %1530
      %1532 = vrot.lane.b32.xlu0 %v1295, 120
      %v1533 = vpop.permute.xlu0 %1532
      %1534 = vrot.lane.b32.xlu0 %v1296, 120
      %v1535 = vpop.permute.xlu0 %1534
      %1536 = vrot.lane.b32.xlu0 %v1297, 120
      %v1537 = vpop.permute.xlu0 %1536
      %1558 = vrot.lane.b32.xlu0 %v1278, 118
      %v1559 = vpop.permute.xlu0 %1558
      %1560 = vrot.lane.b32.xlu0 %v1279, 118
      %v1561 = vpop.permute.xlu0 %1560
      %1562 = vrot.lane.b32.xlu0 %v1280, 118
      %v1563 = vpop.permute.xlu0 %1562
      %1564 = vrot.lane.b32.xlu0 %v1281, 118
      %v1565 = vpop.permute.xlu0 %1564
      %1566 = vrot.lane.b32.xlu0 %v1282, 118
      %v1567 = vpop.permute.xlu0 %1566
      %1568 = vrot.lane.b32.xlu0 %v1283, 118
      %v1569 = vpop.permute.xlu0 %1568
      %1570 = vrot.lane.b32.xlu0 %v1284, 118
      %v1571 = vpop.permute.xlu0 %1570
      %1572 = vrot.lane.b32.xlu0 %v1285, 118
      %v1573 = vpop.permute.xlu0 %1572
      %1574 = vrot.lane.b32.xlu0 %v1286, 118
      %v1575 = vpop.permute.xlu0 %1574
      %1576 = vrot.lane.b32.xlu0 %v1287, 118
      %v1577 = vpop.permute.xlu0 %1576
      %1578 = vrot.lane.b32.xlu0 %v1288, 118
      %v1579 = vpop.permute.xlu0 %1578
      %1580 = vrot.lane.b32.xlu0 %v1289, 118
      %v1581 = vpop.permute.xlu0 %1580
      %1582 = vrot.lane.b32.xlu0 %v1290, 118
      %v1583 = vpop.permute.xlu0 %1582
      %1584 = vrot.lane.b32.xlu0 %v1291, 118
      %v1585 = vpop.permute.xlu0 %1584
      %1586 = vrot.lane.b32.xlu0 %v1292, 118
      %v1587 = vpop.permute.xlu0 %1586
      %1588 = vrot.lane.b32.xlu0 %v1293, 118
      %v1589 = vpop.permute.xlu0 %1588
      %1590 = vrot.lane.b32.xlu0 %v1294, 118
      %v1591 = vpop.permute.xlu0 %1590
      %1592 = vrot.lane.b32.xlu0 %v1295, 118
      %v1593 = vpop.permute.xlu0 %1592
      %1594 = vrot.lane.b32.xlu0 %v1296, 118
      %v1595 = vpop.permute.xlu0 %1594
      %1596 = vrot.lane.b32.xlu0 %v1297, 118
      %v1597 = vpop.permute.xlu0 %1596
      %1618 = vrot.lane.b32.xlu0 %v1278, 116
      %v1619 = vpop.permute.xlu0 %1618
      %1620 = vrot.lane.b32.xlu0 %v1279, 116
      %v1621 = vpop.permute.xlu0 %1620
      %1622 = vrot.lane.b32.xlu0 %v1280, 116
      %v1623 = vpop.permute.xlu0 %1622
      %1624 = vrot.lane.b32.xlu0 %v1281, 116
      %v1625 = vpop.permute.xlu0 %1624
      %1626 = vrot.lane.b32.xlu0 %v1282, 116
      %v1627 = vpop.permute.xlu0 %1626
      %1628 = vrot.lane.b32.xlu0 %v1283, 116
      %v1629 = vpop.permute.xlu0 %1628
      %1630 = vrot.lane.b32.xlu0 %v1284, 116
      %v1631 = vpop.permute.xlu0 %1630
      %1632 = vrot.lane.b32.xlu0 %v1285, 116
      %v1633 = vpop.permute.xlu0 %1632
      %1634 = vrot.lane.b32.xlu0 %v1286, 116
      %v1635 = vpop.permute.xlu0 %1634
      %1636 = vrot.lane.b32.xlu0 %v1287, 116
      %v1637 = vpop.permute.xlu0 %1636
      %1638 = vrot.lane.b32.xlu0 %v1288, 116
      %v1639 = vpop.permute.xlu0 %1638
      %1640 = vrot.lane.b32.xlu0 %v1289, 116
      %v1641 = vpop.permute.xlu0 %1640
      %1642 = vrot.lane.b32.xlu0 %v1290, 116
      %v1643 = vpop.permute.xlu0 %1642
      %1644 = vrot.lane.b32.xlu0 %v1291, 116
      %v1645 = vpop.permute.xlu0 %1644
      %1646 = vrot.lane.b32.xlu0 %v1292, 116
      %v1647 = vpop.permute.xlu0 %1646
      %1648 = vrot.lane.b32.xlu0 %v1293, 116
      %v1649 = vpop.permute.xlu0 %1648
      %1650 = vrot.lane.b32.xlu0 %v1294, 116
      %v1651 = vpop.permute.xlu0 %1650
      %1652 = vrot.lane.b32.xlu0 %v1295, 116
      %v1653 = vpop.permute.xlu0 %1652
      %1654 = vrot.lane.b32.xlu0 %v1296, 116
      %v1655 = vpop.permute.xlu0 %1654
      %1656 = vrot.lane.b32.xlu0 %v1297, 116
      %v1657 = vpop.permute.xlu0 %1656
      %1678 = vrot.lane.b32.xlu0 %v1278, 114
      %v1679 = vpop.permute.xlu0 %1678
      %1680 = vrot.lane.b32.xlu0 %v1279, 114
      %v1681 = vpop.permute.xlu0 %1680
      %1682 = vrot.lane.b32.xlu0 %v1280, 114
      %v1683 = vpop.permute.xlu0 %1682
      %1684 = vrot.lane.b32.xlu0 %v1281, 114
      %v1685 = vpop.permute.xlu0 %1684
      %1686 = vrot.lane.b32.xlu0 %v1282, 114
      %v1687 = vpop.permute.xlu0 %1686
      %1688 = vrot.lane.b32.xlu0 %v1283, 114
      %v1689 = vpop.permute.xlu0 %1688
      %1690 = vrot.lane.b32.xlu0 %v1284, 114
      %v1691 = vpop.permute.xlu0 %1690
      %1692 = vrot.lane.b32.xlu0 %v1285, 114
      %v1693 = vpop.permute.xlu0 %1692
      %1694 = vrot.lane.b32.xlu0 %v1286, 114
      %v1695 = vpop.permute.xlu0 %1694
      %1696 = vrot.lane.b32.xlu0 %v1287, 114
      %v1697 = vpop.permute.xlu0 %1696
      %1698 = vrot.lane.b32.xlu0 %v1288, 114
      %v1699 = vpop.permute.xlu0 %1698
      %1700 = vrot.lane.b32.xlu0 %v1289, 114
      %v1701 = vpop.permute.xlu0 %1700
      %1702 = vrot.lane.b32.xlu0 %v1290, 114
      %v1703 = vpop.permute.xlu0 %1702
      %1704 = vrot.lane.b32.xlu0 %v1291, 114
      %v1705 = vpop.permute.xlu0 %1704
      %1706 = vrot.lane.b32.xlu0 %v1292, 114
      %v1707 = vpop.permute.xlu0 %1706
      %1708 = vrot.lane.b32.xlu0 %v1293, 114
      %v1709 = vpop.permute.xlu0 %1708
      %1710 = vrot.lane.b32.xlu0 %v1294, 114
      %v1711 = vpop.permute.xlu0 %1710
      %1712 = vrot.lane.b32.xlu0 %v1295, 114
      %v1713 = vpop.permute.xlu0 %1712
      %1714 = vrot.lane.b32.xlu0 %v1296, 114
      %v1715 = vpop.permute.xlu0 %1714
      %1716 = vrot.lane.b32.xlu0 %v1297, 114
      %v1717 = vpop.permute.xlu0 %1716
      %1738 = vrot.lane.b32.xlu0 %v1278, 112
      %v1739 = vpop.permute.xlu0 %1738
      %1740 = vrot.lane.b32.xlu0 %v1279, 112
      %v1741 = vpop.permute.xlu0 %1740
      %1742 = vrot.lane.b32.xlu0 %v1280, 112
      %v1743 = vpop.permute.xlu0 %1742
      %1744 = vrot.lane.b32.xlu0 %v1281, 112
      %v1745 = vpop.permute.xlu0 %1744
      %1746 = vrot.lane.b32.xlu0 %v1282, 112
      %v1747 = vpop.permute.xlu0 %1746
      %1748 = vrot.lane.b32.xlu0 %v1283, 112
      %v1749 = vpop.permute.xlu0 %1748
      %1750 = vrot.lane.b32.xlu0 %v1284, 112
      %v1751 = vpop.permute.xlu0 %1750
      %1752 = vrot.lane.b32.xlu0 %v1285, 112
      %v1753 = vpop.permute.xlu0 %1752
      %1754 = vrot.lane.b32.xlu0 %v1286, 112
      %v1755 = vpop.permute.xlu0 %1754
      %1756 = vrot.lane.b32.xlu0 %v1287, 112
      %v1757 = vpop.permute.xlu0 %1756
      %1758 = vrot.lane.b32.xlu0 %v1288, 112
      %v1759 = vpop.permute.xlu0 %1758
      %1760 = vrot.lane.b32.xlu0 %v1289, 112
      %v1761 = vpop.permute.xlu0 %1760
      %1762 = vrot.lane.b32.xlu0 %v1290, 112
      %v1763 = vpop.permute.xlu0 %1762
      %1764 = vrot.lane.b32.xlu0 %v1291, 112
      %v1765 = vpop.permute.xlu0 %1764
      %1766 = vrot.lane.b32.xlu0 %v1292, 112
      %v1767 = vpop.permute.xlu0 %1766
      %1768 = vrot.lane.b32.xlu0 %v1293, 112
      %v1769 = vpop.permute.xlu0 %1768
      %1770 = vrot.lane.b32.xlu0 %v1294, 112
      %v1771 = vpop.permute.xlu0 %1770
      %1772 = vrot.lane.b32.xlu0 %v1295, 112
      %v1773 = vpop.permute.xlu0 %1772
      %1774 = vrot.lane.b32.xlu0 %v1296, 112
      %v1775 = vpop.permute.xlu0 %1774
      %1776 = vrot.lane.b32.xlu0 %v1297, 112
      %v1777 = vpop.permute.xlu0 %1776
      %1798 = vrot.lane.b32.xlu0 %v1278, 110
      %v1799 = vpop.permute.xlu0 %1798
      %1800 = vrot.lane.b32.xlu0 %v1279, 110
      %v1801 = vpop.permute.xlu0 %1800
      %1802 = vrot.lane.b32.xlu0 %v1280, 110
      %v1803 = vpop.permute.xlu0 %1802
      %1804 = vrot.lane.b32.xlu0 %v1281, 110
      %v1805 = vpop.permute.xlu0 %1804
      %1806 = vrot.lane.b32.xlu0 %v1282, 110
      %v1807 = vpop.permute.xlu0 %1806
      %1808 = vrot.lane.b32.xlu0 %v1283, 110
      %v1809 = vpop.permute.xlu0 %1808
      %1810 = vrot.lane.b32.xlu0 %v1284, 110
      %v1811 = vpop.permute.xlu0 %1810
      %1812 = vrot.lane.b32.xlu0 %v1285, 110
      %v1813 = vpop.permute.xlu0 %1812
      %1814 = vrot.lane.b32.xlu0 %v1286, 110
      %v1815 = vpop.permute.xlu0 %1814
      %1816 = vrot.lane.b32.xlu0 %v1287, 110
      %v1817 = vpop.permute.xlu0 %1816
      %1818 = vrot.lane.b32.xlu0 %v1288, 110
      %v1819 = vpop.permute.xlu0 %1818
      %1820 = vrot.lane.b32.xlu0 %v1289, 110
      %v1821 = vpop.permute.xlu0 %1820
      %1822 = vrot.lane.b32.xlu0 %v1290, 110
      %v1823 = vpop.permute.xlu0 %1822
      %1824 = vrot.lane.b32.xlu0 %v1291, 110
      %v1825 = vpop.permute.xlu0 %1824
      %1826 = vrot.lane.b32.xlu0 %v1292, 110
      %v1827 = vpop.permute.xlu0 %1826
      %1828 = vrot.lane.b32.xlu0 %v1293, 110
      %v1829 = vpop.permute.xlu0 %1828
      %1830 = vrot.lane.b32.xlu0 %v1294, 110
      %v1831 = vpop.permute.xlu0 %1830
      %1832 = vrot.lane.b32.xlu0 %v1295, 110
      %v1833 = vpop.permute.xlu0 %1832
      %1834 = vrot.lane.b32.xlu0 %v1296, 110
      %v1835 = vpop.permute.xlu0 %1834
      %1836 = vrot.lane.b32.xlu0 %v1297, 110
      %v1837 = vpop.permute.xlu0 %1836
      %vm1858 = vcmask 7168
      %v1859 = vsel %vm1858, %v1278, %v1319
      %v1860 = vsel %vm1858, %v1279, %v1321
      %v1861 = vsel %vm1858, %v1280, %v1323
      %v1862 = vsel %vm1858, %v1281, %v1325
      %v1863 = vsel %vm1858, %v1282, %v1327
      %v1864 = vsel %vm1858, %v1283, %v1329
      %v1865 = vsel %vm1858, %v1284, %v1331
      %v1866 = vsel %vm1858, %v1285, %v1333
      %v1867 = vsel %vm1858, %v1286, %v1335
      %v1868 = vsel %vm1858, %v1287, %v1337
      %v1869 = vsel %vm1858, %v1288, %v1339
      %v1870 = vsel %vm1858, %v1289, %v1341
      %v1871 = vsel %vm1858, %v1290, %v1343
      %v1872 = vsel %vm1858, %v1291, %v1345
      %v1873 = vsel %vm1858, %v1292, %v1347
      %v1874 = vsel %vm1858, %v1293, %v1349
      %v1875 = vsel %vm1858, %v1294, %v1351
      %v1876 = vsel %vm1858, %v1295, %v1353
      %v1877 = vsel %vm1858, %v1296, %v1355
      %v1878 = vsel %vm1858, %v1297, %v1357
      %vm1879 = vcmask 15360
      %v1880 = vsel %vm1879, %v1859, %v1379
      %v1881 = vsel %vm1879, %v1860, %v1381
      %v1882 = vsel %vm1879, %v1861, %v1383
      %v1883 = vsel %vm1879, %v1862, %v1385
      %v1884 = vsel %vm1879, %v1863, %v1387
      %v1885 = vsel %vm1879, %v1864, %v1389
      %v1886 = vsel %vm1879, %v1865, %v1391
      %v1887 = vsel %vm1879, %v1866, %v1393
      %v1888 = vsel %vm1879, %v1867, %v1395
      %v1889 = vsel %vm1879, %v1868, %v1397
      %v1890 = vsel %vm1879, %v1869, %v1399
      %v1891 = vsel %vm1879, %v1870, %v1401
      %v1892 = vsel %vm1879, %v1871, %v1403
      %v1893 = vsel %vm1879, %v1872, %v1405
      %v1894 = vsel %vm1879, %v1873, %v1407
      %v1895 = vsel %vm1879, %v1874, %v1409
      %v1896 = vsel %vm1879, %v1875, %v1411
      %v1897 = vsel %vm1879, %v1876, %v1413
      %v1898 = vsel %vm1879, %v1877, %v1415
      %v1899 = vsel %vm1879, %v1878, %v1417
      %vm1900 = vcmask 23552
      %v1901 = vsel %vm1900, %v1880, %v1439
      %v1902 = vsel %vm1900, %v1881, %v1441
      %v1903 = vsel %vm1900, %v1882, %v1443
      %v1904 = vsel %vm1900, %v1883, %v1445
      %v1905 = vsel %vm1900, %v1884, %v1447
      %v1906 = vsel %vm1900, %v1885, %v1449
      %v1907 = vsel %vm1900, %v1886, %v1451
      %v1908 = vsel %vm1900, %v1887, %v1453
      %v1909 = vsel %vm1900, %v1888, %v1455
      %v1910 = vsel %vm1900, %v1889, %v1457
      %v1911 = vsel %vm1900, %v1890, %v1459
      %v1912 = vsel %vm1900, %v1891, %v1461
      %v1913 = vsel %vm1900, %v1892, %v1463
      %v1914 = vsel %vm1900, %v1893, %v1465
      %v1915 = vsel %vm1900, %v1894, %v1467
      %v1916 = vsel %vm1900, %v1895, %v1469
      %v1917 = vsel %vm1900, %v1896, %v1471
      %v1918 = vsel %vm1900, %v1897, %v1473
      %v1919 = vsel %vm1900, %v1898, %v1475
      %v1920 = vsel %vm1900, %v1899, %v1477
      %vm1921 = vcmask 31744
      %v1922 = vsel %vm1921, %v1901, %v1499
      %v1923 = vsel %vm1921, %v1902, %v1501
      %v1924 = vsel %vm1921, %v1903, %v1503
      %v1925 = vsel %vm1921, %v1904, %v1505
      %v1926 = vsel %vm1921, %v1905, %v1507
      %v1927 = vsel %vm1921, %v1906, %v1509
      %v1928 = vsel %vm1921, %v1907, %v1511
      %v1929 = vsel %vm1921, %v1908, %v1513
      %v1930 = vsel %vm1921, %v1909, %v1515
      %v1931 = vsel %vm1921, %v1910, %v1517
      %v1932 = vsel %vm1921, %v1911, %v1519
      %v1933 = vsel %vm1921, %v1912, %v1521
      %v1934 = vsel %vm1921, %v1913, %v1523
      %v1935 = vsel %vm1921, %v1914, %v1525
      %v1936 = vsel %vm1921, %v1915, %v1527
      %v1937 = vsel %vm1921, %v1916, %v1529
      %v1938 = vsel %vm1921, %v1917, %v1531
      %v1939 = vsel %vm1921, %v1918, %v1533
      %v1940 = vsel %vm1921, %v1919, %v1535
      %v1941 = vsel %vm1921, %v1920, %v1537
      %vm1942 = vcmask 39936
      %v1943 = vsel %vm1942, %v1922, %v1559
      %v1944 = vsel %vm1942, %v1923, %v1561
      %v1945 = vsel %vm1942, %v1924, %v1563
      %v1946 = vsel %vm1942, %v1925, %v1565
      %v1947 = vsel %vm1942, %v1926, %v1567
      %v1948 = vsel %vm1942, %v1927, %v1569
      %v1949 = vsel %vm1942, %v1928, %v1571
      %v1950 = vsel %vm1942, %v1929, %v1573
      %v1951 = vsel %vm1942, %v1930, %v1575
      %v1952 = vsel %vm1942, %v1931, %v1577
      %v1953 = vsel %vm1942, %v1932, %v1579
      %v1954 = vsel %vm1942, %v1933, %v1581
      %v1955 = vsel %vm1942, %v1934, %v1583
      %v1956 = vsel %vm1942, %v1935, %v1585
      %v1957 = vsel %vm1942, %v1936, %v1587
      %v1958 = vsel %vm1942, %v1937, %v1589
      %v1959 = vsel %vm1942, %v1938, %v1591
      %v1960 = vsel %vm1942, %v1939, %v1593
      %v1961 = vsel %vm1942, %v1940, %v1595
      %v1962 = vsel %vm1942, %v1941, %v1597
      %vm1963 = vcmask 48128
      %v1964 = vsel %vm1963, %v1943, %v1619
      %v1965 = vsel %vm1963, %v1944, %v1621
      %v1966 = vsel %vm1963, %v1945, %v1623
      %v1967 = vsel %vm1963, %v1946, %v1625
      %v1968 = vsel %vm1963, %v1947, %v1627
      %v1969 = vsel %vm1963, %v1948, %v1629
      %v1970 = vsel %vm1963, %v1949, %v1631
      %v1971 = vsel %vm1963, %v1950, %v1633
      %v1972 = vsel %vm1963, %v1951, %v1635
      %v1973 = vsel %vm1963, %v1952, %v1637
      %v1974 = vsel %vm1963, %v1953, %v1639
      %v1975 = vsel %vm1963, %v1954, %v1641
      %v1976 = vsel %vm1963, %v1955, %v1643
      %v1977 = vsel %vm1963, %v1956, %v1645
      %v1978 = vsel %vm1963, %v1957, %v1647
      %v1979 = vsel %vm1963, %v1958, %v1649
      %v1980 = vsel %vm1963, %v1959, %v1651
      %v1981 = vsel %vm1963, %v1960, %v1653
      %v1982 = vsel %vm1963, %v1961, %v1655
      %v1983 = vsel %vm1963, %v1962, %v1657
      %vm1984 = vcmask 56320
      %v1985 = vsel %vm1984, %v1964, %v1679
      %v1986 = vsel %vm1984, %v1965, %v1681
      %v1987 = vsel %vm1984, %v1966, %v1683
      %v1988 = vsel %vm1984, %v1967, %v1685
      %v1989 = vsel %vm1984, %v1968, %v1687
      %v1990 = vsel %vm1984, %v1969, %v1689
      %v1991 = vsel %vm1984, %v1970, %v1691
      %v1992 = vsel %vm1984, %v1971, %v1693
      %v1993 = vsel %vm1984, %v1972, %v1695
      %v1994 = vsel %vm1984, %v1973, %v1697
      %v1995 = vsel %vm1984, %v1974, %v1699
      %v1996 = vsel %vm1984, %v1975, %v1701
      %v1997 = vsel %vm1984, %v1976, %v1703
      %v1998 = vsel %vm1984, %v1977, %v1705
      %v1999 = vsel %vm1984, %v1978, %v1707
      %v2000 = vsel %vm1984, %v1979, %v1709
      %v2001 = vsel %vm1984, %v1980, %v1711
      %v2002 = vsel %vm1984, %v1981, %v1713
      %v2003 = vsel %vm1984, %v1982, %v1715
      %v2004 = vsel %vm1984, %v1983, %v1717
      %vm2005 = vcmask 64512
      %v2006 = vsel %vm2005, %v1985, %v1739
      %v2007 = vsel %vm2005, %v1986, %v1741
      %v2008 = vsel %vm2005, %v1987, %v1743
      %v2009 = vsel %vm2005, %v1988, %v1745
      %v2010 = vsel %vm2005, %v1989, %v1747
      %v2011 = vsel %vm2005, %v1990, %v1749
      %v2012 = vsel %vm2005, %v1991, %v1751
      %v2013 = vsel %vm2005, %v1992, %v1753
      %v2014 = vsel %vm2005, %v1993, %v1755
      %v2015 = vsel %vm2005, %v1994, %v1757
      %v2016 = vsel %vm2005, %v1995, %v1759
      %v2017 = vsel %vm2005, %v1996, %v1761
      %v2018 = vsel %vm2005, %v1997, %v1763
      %v2019 = vsel %vm2005, %v1998, %v1765
      %v2020 = vsel %vm2005, %v1999, %v1767
      %v2021 = vsel %vm2005, %v2000, %v1769
      %v2022 = vsel %vm2005, %v2001, %v1771
      %v2023 = vsel %vm2005, %v2002, %v1773
      %v2024 = vsel %vm2005, %v2003, %v1775
      %v2025 = vsel %vm2005, %v2004, %v1777
      %vm2026 = vcmask 72704
      %v2027 = vsel %vm2026, %v2006, %v1799
      %v2028 = vsel %vm2026, %v2007, %v1801
      %v2029 = vsel %vm2026, %v2008, %v1803
      %v2030 = vsel %vm2026, %v2009, %v1805
      %v2031 = vsel %vm2026, %v2010, %v1807
      %v2032 = vsel %vm2026, %v2011, %v1809
      %v2033 = vsel %vm2026, %v2012, %v1811
      %v2034 = vsel %vm2026, %v2013, %v1813
      %v2035 = vsel %vm2026, %v2014, %v1815
      %v2036 = vsel %vm2026, %v2015, %v1817
      %v2037 = vsel %vm2026, %v2016, %v1819
      %v2038 = vsel %vm2026, %v2017, %v1821
      %v2039 = vsel %vm2026, %v2018, %v1823
      %v2040 = vsel %vm2026, %v2019, %v1825
      %v2041 = vsel %vm2026, %v2020, %v1827
      %v2042 = vsel %vm2026, %v2021, %v1829
      %v2043 = vsel %vm2026, %v2022, %v1831
      %v2044 = vsel %vm2026, %v2023, %v1833
      %v2045 = vsel %vm2026, %v2024, %v1835
      %v2046 = vsel %vm2026, %v2025, %v1837
      %v2047 = vmax.f32 %v2027, %v2029
      %v2048 = vmax.f32 %v2028, %v2030
      %v2049 = vmax.f32 %v2031, %v2033
      %v2050 = vmax.f32 %v2032, %v2034
      %v2051 = vmax.f32 %v2035, %v2037
      %v2052 = vmax.f32 %v2036, %v2038
      %v2053 = vmax.f32 %v2039, %v2041
      %v2054 = vmax.f32 %v2040, %v2042
      %v2055 = vmax.f32 %v2043, %v2045
      %v2056 = vmax.f32 %v2044, %v2046
      %v2057 = vmax.f32 %v2047, %v2031
      %v2058 = vmax.f32 %v2048, %v2032
      %v2059 = vmax.f32 %v2049, %v2035
      %v2060 = vmax.f32 %v2050, %v2036
      %v2061 = vmax.f32 %v2051, %v2039
      %v2062 = vmax.f32 %v2052, %v2040
      %v2063 = vmax.f32 %v2053, %v2043
      %v2064 = vmax.f32 %v2054, %v2044
      %v2065 = vmax.f32 %v2057, %v2033
      %v2066 = vmax.f32 %v2058, %v2034
      %v2067 = vmax.f32 %v2059, %v2037
      %v2068 = vmax.f32 %v2060, %v2038
      %v2069 = vmax.f32 %v2061, %v2041
      %v2070 = vmax.f32 %v2062, %v2042
      %v2071 = vmax.f32 %v2063, %v2045
      %v2072 = vmax.f32 %v2064, %v2046
      %v2085 = vrot.slane %v2047, 6
      %v2086 = vrot.slane %v2048, 6
      %v2087 = vsel %vm1044, %v2085, %v2086
      %v2088 = vrot.slane %v2065, 6
      %v2089 = vrot.slane %v2066, 6
      %v2090 = vsel %vm1044, %v2088, %v2089
      %v2091 = vrot.slane %v2067, 6
      %v2092 = vrot.slane %v2068, 6
      %v2093 = vsel %vm1044, %v2091, %v2092
      %v2094 = vrot.slane %v2069, 6
      %v2095 = vrot.slane %v2070, 6
      %v2096 = vsel %vm1044, %v2094, %v2095
      %v2097 = vrot.slane %v2071, 6
      %v2098 = vrot.slane %v2072, 6
      %v2099 = vsel %vm1044, %v2097, %v2098
      %v2100 = vrot.slane %v2055, 6
      %v2101 = vrot.slane %v2056, 6
      %v2102 = vsel %vm1044, %v2100, %v2101
      %v2115 = vsel %vm1044, -inf, %v2085
      %v2116 = vsel %vm1044, -inf, %v2088
      %v2117 = vsel %vm1044, -inf, %v2091
      %v2118 = vsel %vm1044, -inf, %v2094
      %v2119 = vsel %vm1044, -inf, %v2097
      %v2120 = vsel %vm1044, -inf, %v2100
      %v2121 = vsel %vm1066, %v2087, -inf
      %v2122 = vsel %vm1066, %v2090, -inf
      %v2123 = vsel %vm1066, %v2093, -inf
      %v2124 = vsel %vm1066, %v2096, -inf
      %v2125 = vsel %vm1066, %v2099, -inf
      %v2126 = vsel %vm1066, %v2102, -inf
      %v2139 = vrot.slane %v2115, 1
      %v2140 = vrot.slane %v2121, 1
      %v2141 = vsel %vm551, %v2139, %v2140
      %v2142 = vrot.slane %v2116, 1
      %v2143 = vrot.slane %v2122, 1
      %v2144 = vsel %vm551, %v2142, %v2143
      %v2145 = vrot.slane %v2117, 1
      %v2146 = vrot.slane %v2123, 1
      %v2147 = vsel %vm551, %v2145, %v2146
      %v2148 = vrot.slane %v2118, 1
      %v2149 = vrot.slane %v2124, 1
      %v2150 = vsel %vm551, %v2148, %v2149
      %v2151 = vrot.slane %v2119, 1
      %v2152 = vrot.slane %v2125, 1
      %v2153 = vsel %vm551, %v2151, %v2152
      %v2154 = vrot.slane %v2120, 1
      %v2155 = vrot.slane %v2126, 1
      %v2156 = vsel %vm551, %v2154, %v2155
      %v2169 = vmax.f32 %v2115, %v2141
      %v2170 = vmax.f32 %v2121, %v2140
      %v2171 = vmax.f32 %v2116, %v2144
      %v2172 = vmax.f32 %v2122, %v2143
      %v2173 = vmax.f32 %v2117, %v2147
      %v2174 = vmax.f32 %v2123, %v2146
      %v2175 = vmax.f32 %v2118, %v2150
      %v2176 = vmax.f32 %v2124, %v2149
      %v2177 = vmax.f32 %v2119, %v2153
      %v2178 = vmax.f32 %v2125, %v2152
      %v2179 = vmax.f32 %v2120, %v2156
      %v2180 = vmax.f32 %v2126, %v2155
      %v2181 = vrot.slane %v2115, 2
      %v2182 = vrot.slane %v2121, 2
      %v2183 = vsel %vm702, %v2181, %v2182
      %v2184 = vrot.slane %v2116, 2
      %v2185 = vrot.slane %v2122, 2
      %v2186 = vsel %vm702, %v2184, %v2185
      %v2187 = vrot.slane %v2117, 2
      %v2188 = vrot.slane %v2123, 2
      %v2189 = vsel %vm702, %v2187, %v2188
      %v2190 = vrot.slane %v2118, 2
      %v2191 = vrot.slane %v2124, 2
      %v2192 = vsel %vm702, %v2190, %v2191
      %v2193 = vrot.slane %v2119, 2
      %v2194 = vrot.slane %v2125, 2
      %v2195 = vsel %vm702, %v2193, %v2194
      %v2196 = vrot.slane %v2120, 2
      %v2197 = vrot.slane %v2126, 2
      %v2198 = vsel %vm702, %v2196, %v2197
      %v2211 = vmax.f32 %v2169, %v2183
      %v2212 = vmax.f32 %v2170, %v2182
      %v2213 = vmax.f32 %v2171, %v2186
      %v2214 = vmax.f32 %v2172, %v2185
      %v2215 = vmax.f32 %v2173, %v2189
      %v2216 = vmax.f32 %v2174, %v2188
      %v2217 = vmax.f32 %v2175, %v2192
      %v2218 = vmax.f32 %v2176, %v2191
      %v2219 = vmax.f32 %v2177, %v2195
      %v2220 = vmax.f32 %v2178, %v2194
      %v2221 = vmax.f32 %v2179, %v2198
      %v2222 = vmax.f32 %v2180, %v2197
      %v2223 = vrot.slane %v2115, 3
      %v2224 = vrot.slane %v2121, 3
      %v2225 = vsel %vm1077, %v2223, %v2224
      %v2226 = vrot.slane %v2116, 3
      %v2227 = vrot.slane %v2122, 3
      %v2228 = vsel %vm1077, %v2226, %v2227
      %v2229 = vrot.slane %v2117, 3
      %v2230 = vrot.slane %v2123, 3
      %v2231 = vsel %vm1077, %v2229, %v2230
      %v2232 = vrot.slane %v2118, 3
      %v2233 = vrot.slane %v2124, 3
      %v2234 = vsel %vm1077, %v2232, %v2233
      %v2235 = vrot.slane %v2119, 3
      %v2236 = vrot.slane %v2125, 3
      %v2237 = vsel %vm1077, %v2235, %v2236
      %v2238 = vrot.slane %v2120, 3
      %v2239 = vrot.slane %v2126, 3
      %v2240 = vsel %vm1077, %v2238, %v2239
      %v2253 = vmax.f32 %v2211, %v2225
      %v2254 = vmax.f32 %v2212, %v2224
      %v2255 = vmax.f32 %v2213, %v2228
      %v2256 = vmax.f32 %v2214, %v2227
      %v2257 = vmax.f32 %v2215, %v2231
      %v2258 = vmax.f32 %v2216, %v2230
      %v2259 = vmax.f32 %v2217, %v2234
      %v2260 = vmax.f32 %v2218, %v2233
      %v2261 = vmax.f32 %v2219, %v2237
      %v2262 = vmax.f32 %v2220, %v2236
      %v2263 = vmax.f32 %v2221, %v2240
      %v2264 = vmax.f32 %v2222, %v2239
      %v2271 = vrot.slane %v2253, 1
      %v2272 = vrot.slane %v2255, 1
      %v2273 = vrot.slane %v2257, 1
      %v2274 = vrot.slane %v2259, 1
      %v2275 = vrot.slane %v2261, 1
      %v2276 = vrot.slane %v2263, 1
      %v2283 = vrot.slane %v2253, 2
      %v2284 = vrot.slane %v2255, 2
      %v2285 = vrot.slane %v2257, 2
      %v2286 = vrot.slane %v2259, 2
      %v2287 = vrot.slane %v2261, 2
      %v2288 = vrot.slane %v2263, 2
      %v2295 = vrot.slane %v2253, 3
      %v2296 = vrot.slane %v2255, 3
      %v2297 = vrot.slane %v2257, 3
      %v2298 = vrot.slane %v2259, 3
      %v2299 = vrot.slane %v2261, 3
      %v2300 = vrot.slane %v2263, 3
      %v2313 = vrot.slane %v2254, 4
      %v2314 = vrot.slane %v2256, 4
      %v2315 = vrot.slane %v2258, 4
      %v2316 = vrot.slane %v2260, 4
      %v2317 = vrot.slane %v2262, 4
      %v2318 = vrot.slane %v2264, 4
      %v2325 = vrot.slane %v2254, 5
      %v2326 = vrot.slane %v2256, 5
      %v2327 = vrot.slane %v2258, 5
      %v2328 = vrot.slane %v2260, 5
      %v2329 = vrot.slane %v2262, 5
      %v2330 = vrot.slane %v2264, 5
      %v2337 = vsel %vm1033, %v2253, %v2271
      %v2338 = vsel %vm1033, %v2255, %v2272
      %v2339 = vsel %vm1033, %v2257, %v2273
      %v2340 = vsel %vm1033, %v2259, %v2274
      %v2341 = vsel %vm1033, %v2261, %v2275
      %v2342 = vsel %vm1033, %v2263, %v2276
      %v2343 = vsel %vm1044, %v2337, %v2283
      %v2344 = vsel %vm1044, %v2338, %v2284
      %v2345 = vsel %vm1044, %v2339, %v2285
      %v2346 = vsel %vm1044, %v2340, %v2286
      %v2347 = vsel %vm1044, %v2341, %v2287
      %v2348 = vsel %vm1044, %v2342, %v2288
      %v2349 = vsel %vm1055, %v2343, %v2295
      %v2350 = vsel %vm1055, %v2344, %v2296
      %v2351 = vsel %vm1055, %v2345, %v2297
      %v2352 = vsel %vm1055, %v2346, %v2298
      %v2353 = vsel %vm1055, %v2347, %v2299
      %v2354 = vsel %vm1055, %v2348, %v2300
      %v2355 = vsel %vm1066, %v2349, %v2313
      %v2356 = vsel %vm1066, %v2350, %v2314
      %v2357 = vsel %vm1066, %v2351, %v2315
      %v2358 = vsel %vm1066, %v2352, %v2316
      %v2359 = vsel %vm1066, %v2353, %v2317
      %v2360 = vsel %vm1066, %v2354, %v2318
      %v2361 = vsel %vm1077, %v2355, %v2325
      %v2362 = vsel %vm1077, %v2356, %v2326
      %v2363 = vsel %vm1077, %v2357, %v2327
      %v2364 = vsel %vm1077, %v2358, %v2328
      %v2365 = vsel %vm1077, %v2359, %v2329
      %v2366 = vsel %vm1077, %v2360, %v2330
      %2373 = vrot.lane.b32.xlu0 %v2361, 2
      %v2374 = vpop.permute.xlu0 %2373
      %2375 = vrot.lane.b32.xlu0 %v2362, 2
      %v2376 = vpop.permute.xlu0 %2375
      %2377 = vrot.lane.b32.xlu0 %v2363, 2
      %v2378 = vpop.permute.xlu0 %2377
      %2379 = vrot.lane.b32.xlu0 %v2364, 2
      %v2380 = vpop.permute.xlu0 %2379
      %2381 = vrot.lane.b32.xlu0 %v2365, 2
      %v2382 = vpop.permute.xlu0 %2381
      %2383 = vrot.lane.b32.xlu0 %v2366, 2
      %v2384 = vpop.permute.xlu0 %2383
      %v2391 = vsel %vm1879, -inf, %v2374
      %v2392 = vsel %vm1879, -inf, %v2376
      %v2393 = vsel %vm1879, -inf, %v2378
      %v2394 = vsel %vm1879, -inf, %v2380
      %v2395 = vsel %vm1879, -inf, %v2382
      %v2396 = vsel %vm1879, -inf, %v2384
      %vm2397 = vcmask 97280
      %v2398 = vsel %vm2397, %v2391, -inf
      %v2399 = vsel %vm2397, %v2392, -inf
      %v2400 = vsel %vm2397, %v2393, -inf
      %v2401 = vsel %vm2397, %v2394, -inf
      %v2402 = vsel %vm2397, %v2395, -inf
      %v2403 = vsel %vm2397, %v2396, -inf
      %2410 = vrot.lane.b32.xlu0 %v2398, 127
      %v2411 = vpop.permute.xlu0 %2410
      %2412 = vrot.lane.b32.xlu0 %v2399, 127
      %v2413 = vpop.permute.xlu0 %2412
      %2414 = vrot.lane.b32.xlu0 %v2400, 127
      %v2415 = vpop.permute.xlu0 %2414
      %2416 = vrot.lane.b32.xlu0 %v2401, 127
      %v2417 = vpop.permute.xlu0 %2416
      %2418 = vrot.lane.b32.xlu0 %v2402, 127
      %v2419 = vpop.permute.xlu0 %2418
      %2420 = vrot.lane.b32.xlu0 %v2403, 127
      %v2421 = vpop.permute.xlu0 %2420
      %v2428 = vmax.f32 %v2398, %v2411
      %v2429 = vmax.f32 %v2399, %v2413
      %v2430 = vmax.f32 %v2400, %v2415
      %v2431 = vmax.f32 %v2401, %v2417
      %v2432 = vmax.f32 %v2402, %v2419
      %v2433 = vmax.f32 %v2403, %v2421
      %2434 = vrot.lane.b32.xlu0 %v2398, 126
      %v2435 = vpop.permute.xlu0 %2434
      %2436 = vrot.lane.b32.xlu0 %v2399, 126
      %v2437 = vpop.permute.xlu0 %2436
      %2438 = vrot.lane.b32.xlu0 %v2400, 126
      %v2439 = vpop.permute.xlu0 %2438
      %2440 = vrot.lane.b32.xlu0 %v2401, 126
      %v2441 = vpop.permute.xlu0 %2440
      %2442 = vrot.lane.b32.xlu0 %v2402, 126
      %v2443 = vpop.permute.xlu0 %2442
      %2444 = vrot.lane.b32.xlu0 %v2403, 126
      %v2445 = vpop.permute.xlu0 %2444
      %v2452 = vmax.f32 %v2428, %v2435
      %v2453 = vmax.f32 %v2429, %v2437
      %v2454 = vmax.f32 %v2430, %v2439
      %v2455 = vmax.f32 %v2431, %v2441
      %v2456 = vmax.f32 %v2432, %v2443
      %v2457 = vmax.f32 %v2433, %v2445
      %2458 = vrot.lane.b32.xlu0 %v2398, 125
      %v2459 = vpop.permute.xlu0 %2458
      %2460 = vrot.lane.b32.xlu0 %v2399, 125
      %v2461 = vpop.permute.xlu0 %2460
      %2462 = vrot.lane.b32.xlu0 %v2400, 125
      %v2463 = vpop.permute.xlu0 %2462
      %2464 = vrot.lane.b32.xlu0 %v2401, 125
      %v2465 = vpop.permute.xlu0 %2464
      %2466 = vrot.lane.b32.xlu0 %v2402, 125
      %v2467 = vpop.permute.xlu0 %2466
      %2468 = vrot.lane.b32.xlu0 %v2403, 125
      %v2469 = vpop.permute.xlu0 %2468
      %v2476 = vmax.f32 %v2452, %v2459
      %v2477 = vmax.f32 %v2453, %v2461
      %v2478 = vmax.f32 %v2454, %v2463
      %v2479 = vmax.f32 %v2455, %v2465
      %v2480 = vmax.f32 %v2456, %v2467
      %v2481 = vmax.f32 %v2457, %v2469
      %2488 = vrot.lane.b32.xlu0 %v2476, 127
      %v2489 = vpop.permute.xlu0 %2488
      %2490 = vrot.lane.b32.xlu0 %v2477, 127
      %v2491 = vpop.permute.xlu0 %2490
      %2492 = vrot.lane.b32.xlu0 %v2478, 127
      %v2493 = vpop.permute.xlu0 %2492
      %2494 = vrot.lane.b32.xlu0 %v2479, 127
      %v2495 = vpop.permute.xlu0 %2494
      %2496 = vrot.lane.b32.xlu0 %v2480, 127
      %v2497 = vpop.permute.xlu0 %2496
      %2498 = vrot.lane.b32.xlu0 %v2481, 127
      %v2499 = vpop.permute.xlu0 %2498
      %2506 = vrot.lane.b32.xlu0 %v2476, 126
      %v2507 = vpop.permute.xlu0 %2506
      %2508 = vrot.lane.b32.xlu0 %v2477, 126
      %v2509 = vpop.permute.xlu0 %2508
      %2510 = vrot.lane.b32.xlu0 %v2478, 126
      %v2511 = vpop.permute.xlu0 %2510
      %2512 = vrot.lane.b32.xlu0 %v2479, 126
      %v2513 = vpop.permute.xlu0 %2512
      %2514 = vrot.lane.b32.xlu0 %v2480, 126
      %v2515 = vpop.permute.xlu0 %2514
      %2516 = vrot.lane.b32.xlu0 %v2481, 126
      %v2517 = vpop.permute.xlu0 %2516
      %2524 = vrot.lane.b32.xlu0 %v2476, 125
      %v2525 = vpop.permute.xlu0 %2524
      %2526 = vrot.lane.b32.xlu0 %v2477, 125
      %v2527 = vpop.permute.xlu0 %2526
      %2528 = vrot.lane.b32.xlu0 %v2478, 125
      %v2529 = vpop.permute.xlu0 %2528
      %2530 = vrot.lane.b32.xlu0 %v2479, 125
      %v2531 = vpop.permute.xlu0 %2530
      %2532 = vrot.lane.b32.xlu0 %v2480, 125
      %v2533 = vpop.permute.xlu0 %2532
      %2534 = vrot.lane.b32.xlu0 %v2481, 125
      %v2535 = vpop.permute.xlu0 %2534
      %2542 = vrot.lane.b32.xlu0 %v2476, 124
      %v2543 = vpop.permute.xlu0 %2542
      %2544 = vrot.lane.b32.xlu0 %v2477, 124
      %v2545 = vpop.permute.xlu0 %2544
      %2546 = vrot.lane.b32.xlu0 %v2478, 124
      %v2547 = vpop.permute.xlu0 %2546
      %2548 = vrot.lane.b32.xlu0 %v2479, 124
      %v2549 = vpop.permute.xlu0 %2548
      %2550 = vrot.lane.b32.xlu0 %v2480, 124
      %v2551 = vpop.permute.xlu0 %2550
      %2552 = vrot.lane.b32.xlu0 %v2481, 124
      %v2553 = vpop.permute.xlu0 %2552
      %2560 = vrot.lane.b32.xlu0 %v2476, 123
      %v2561 = vpop.permute.xlu0 %2560
      %2562 = vrot.lane.b32.xlu0 %v2477, 123
      %v2563 = vpop.permute.xlu0 %2562
      %2564 = vrot.lane.b32.xlu0 %v2478, 123
      %v2565 = vpop.permute.xlu0 %2564
      %2566 = vrot.lane.b32.xlu0 %v2479, 123
      %v2567 = vpop.permute.xlu0 %2566
      %2568 = vrot.lane.b32.xlu0 %v2480, 123
      %v2569 = vpop.permute.xlu0 %2568
      %2570 = vrot.lane.b32.xlu0 %v2481, 123
      %v2571 = vpop.permute.xlu0 %2570
      %v2578 = vsel %vm1858, %v2476, %v2489
      %v2579 = vsel %vm1858, %v2477, %v2491
      %v2580 = vsel %vm1858, %v2478, %v2493
      %v2581 = vsel %vm1858, %v2479, %v2495
      %v2582 = vsel %vm1858, %v2480, %v2497
      %v2583 = vsel %vm1858, %v2481, %v2499
      %v2584 = vsel %vm1879, %v2578, %v2507
      %v2585 = vsel %vm1879, %v2579, %v2509
      %v2586 = vsel %vm1879, %v2580, %v2511
      %v2587 = vsel %vm1879, %v2581, %v2513
      %v2588 = vsel %vm1879, %v2582, %v2515
      %v2589 = vsel %vm1879, %v2583, %v2517
      %v2590 = vsel %vm1900, %v2584, %v2525
      %v2591 = vsel %vm1900, %v2585, %v2527
      %v2592 = vsel %vm1900, %v2586, %v2529
      %v2593 = vsel %vm1900, %v2587, %v2531
      %v2594 = vsel %vm1900, %v2588, %v2533
      %v2595 = vsel %vm1900, %v2589, %v2535
      %v2596 = vsel %vm1921, %v2590, %v2543
      %v2597 = vsel %vm1921, %v2591, %v2545
      %v2598 = vsel %vm1921, %v2592, %v2547
      %v2599 = vsel %vm1921, %v2593, %v2549
      %v2600 = vsel %vm1921, %v2594, %v2551
      %v2601 = vsel %vm1921, %v2595, %v2553
      %v2602 = vsel %vm1942, %v2596, %v2561
      %v2603 = vsel %vm1942, %v2597, %v2563
      %v2604 = vsel %vm1942, %v2598, %v2565
      %v2605 = vsel %vm1942, %v2599, %v2567
      %v2606 = vsel %vm1942, %v2600, %v2569
      %v2607 = vsel %vm1942, %v2601, %v2571
      %v2614 = vrot.slane %v2602, 1
      %v2615 = vrot.slane %v2603, 1
      %v2616 = vrot.slane %v2604, 1
      %v2617 = vrot.slane %v2605, 1
      %v2618 = vrot.slane %v2606, 1
      %v2619 = vrot.slane %v2607, 1
      %v2626 = vmax.f32 %v2602, %v2614
      %v2627 = vmax.f32 %v2603, %v2615
      %v2628 = vmax.f32 %v2604, %v2616
      %v2629 = vmax.f32 %v2605, %v2617
      %v2630 = vmax.f32 %v2606, %v2618
      %v2631 = vmax.f32 %v2607, %v2619
      %2638 = vrot.lane.b32.xlu0 %v2626, 1
      %v2639 = vpop.permute.xlu0 %2638
      %2640 = vrot.lane.b32.xlu0 %v2627, 1
      %v2641 = vpop.permute.xlu0 %2640
      %2642 = vrot.lane.b32.xlu0 %v2628, 1
      %v2643 = vpop.permute.xlu0 %2642
      %2644 = vrot.lane.b32.xlu0 %v2629, 1
      %v2645 = vpop.permute.xlu0 %2644
      %2646 = vrot.lane.b32.xlu0 %v2630, 1
      %v2647 = vpop.permute.xlu0 %2646
      %2648 = vrot.lane.b32.xlu0 %v2631, 1
      %v2649 = vpop.permute.xlu0 %2648
      %v2656 = vsel %vm1858, -inf, %v2639
      %v2657 = vsel %vm1858, -inf, %v2641
      %v2658 = vsel %vm1858, -inf, %v2643
      %v2659 = vsel %vm1858, -inf, %v2645
      %v2660 = vsel %vm1858, -inf, %v2647
      %v2661 = vsel %vm1858, -inf, %v2649
      %v2662 = vsel %vm1984, %v2656, -inf
      %v2663 = vsel %vm1984, %v2657, -inf
      %v2664 = vsel %vm1984, %v2658, -inf
      %v2665 = vsel %vm1984, %v2659, -inf
      %v2666 = vsel %vm1984, %v2660, -inf
      %v2667 = vsel %vm1984, %v2661, -inf
      %2674 = vrot.lane.b32.xlu0 %v2662, 127
      %v2675 = vpop.permute.xlu0 %2674
      %2676 = vrot.lane.b32.xlu0 %v2663, 127
      %v2677 = vpop.permute.xlu0 %2676
      %2678 = vrot.lane.b32.xlu0 %v2664, 127
      %v2679 = vpop.permute.xlu0 %2678
      %2680 = vrot.lane.b32.xlu0 %v2665, 127
      %v2681 = vpop.permute.xlu0 %2680
      %2682 = vrot.lane.b32.xlu0 %v2666, 127
      %v2683 = vpop.permute.xlu0 %2682
      %2684 = vrot.lane.b32.xlu0 %v2667, 127
      %v2685 = vpop.permute.xlu0 %2684
      %v2692 = vmax.f32 %v2662, %v2675
      %v2693 = vmax.f32 %v2663, %v2677
      %v2694 = vmax.f32 %v2664, %v2679
      %v2695 = vmax.f32 %v2665, %v2681
      %v2696 = vmax.f32 %v2666, %v2683
      %v2697 = vmax.f32 %v2667, %v2685
      %2698 = vrot.lane.b32.xlu0 %v2662, 126
      %v2699 = vpop.permute.xlu0 %2698
      %2700 = vrot.lane.b32.xlu0 %v2663, 126
      %v2701 = vpop.permute.xlu0 %2700
      %2702 = vrot.lane.b32.xlu0 %v2664, 126
      %v2703 = vpop.permute.xlu0 %2702
      %2704 = vrot.lane.b32.xlu0 %v2665, 126
      %v2705 = vpop.permute.xlu0 %2704
      %2706 = vrot.lane.b32.xlu0 %v2666, 126
      %v2707 = vpop.permute.xlu0 %2706
      %2708 = vrot.lane.b32.xlu0 %v2667, 126
      %v2709 = vpop.permute.xlu0 %2708
      %v2716 = vmax.f32 %v2692, %v2699
      %v2717 = vmax.f32 %v2693, %v2701
      %v2718 = vmax.f32 %v2694, %v2703
      %v2719 = vmax.f32 %v2695, %v2705
      %v2720 = vmax.f32 %v2696, %v2707
      %v2721 = vmax.f32 %v2697, %v2709
      %v2722 = vmax.f32 %v2716, %v2717
      %v2723 = vmax.f32 %v2717, %v2718
      %v2724 = vmax.f32 %v2718, %v2719
      %v2725 = vmax.f32 %v2719, %v2720
      %v2726 = vmax.f32 %v2720, %v2721
      %v2727 = vmax.f32 %v2722, %v2718
      %v2728 = vmax.f32 %v2723, %v2719
      %v2729 = vmax.f32 %v2724, %v2720
      %v2730 = vmax.f32 %v2725, %v2721
      %v2737 = vrot.slane %v2722, 6
      %v2738 = vrot.slane %v2727, 6
      %v2739 = vrot.slane %v2728, 6
      %v2740 = vrot.slane %v2729, 6
      %v2741 = vrot.slane %v2730, 6
      %v2742 = vrot.slane %v2726, 6
      %v2749 = vsel %vm1044, -inf, %v2737
      %v2750 = vsel %vm1044, -inf, %v2738
      %v2751 = vsel %vm1044, -inf, %v2739
      %v2752 = vsel %vm1044, -inf, %v2740
      %v2753 = vsel %vm1044, -inf, %v2741
      %v2754 = vsel %vm1044, -inf, %v2742
      %v2755 = vsel %vm551, %v2749, -inf
      %v2756 = vsel %vm551, %v2750, -inf
      %v2757 = vsel %vm551, %v2751, -inf
      %v2758 = vsel %vm551, %v2752, -inf
      %v2759 = vsel %vm551, %v2753, -inf
      %v2760 = vsel %vm551, %v2754, -inf
      %v2767 = vrot.slane %v2755, 1
      %v2768 = vrot.slane %v2756, 1
      %v2769 = vrot.slane %v2757, 1
      %v2770 = vrot.slane %v2758, 1
      %v2771 = vrot.slane %v2759, 1
      %v2772 = vrot.slane %v2760, 1
      %v2779 = vmax.f32 %v2755, %v2767
      %v2780 = vmax.f32 %v2756, %v2768
      %v2781 = vmax.f32 %v2757, %v2769
      %v2782 = vmax.f32 %v2758, %v2770
      %v2783 = vmax.f32 %v2759, %v2771
      %v2784 = vmax.f32 %v2760, %v2772
      %v2786 = vrot.slane %v2755, 2
      %v2787 = vrot.slane -inf, 2
      %v2788 = vsel %vm702, %v2786, %v2787
      %v2789 = vrot.slane %v2756, 2
      %v2790 = vsel %vm702, %v2789, %v2787
      %v2791 = vrot.slane %v2757, 2
      %v2792 = vsel %vm702, %v2791, %v2787
      %v2793 = vrot.slane %v2758, 2
      %v2794 = vsel %vm702, %v2793, %v2787
      %v2795 = vrot.slane %v2759, 2
      %v2796 = vsel %vm702, %v2795, %v2787
      %v2797 = vrot.slane %v2760, 2
      %v2798 = vsel %vm702, %v2797, %v2787
      %v2805 = vmax.f32 %v2779, %v2788
      %v2806 = vmax.f32 %v2780, %v2790
      %v2807 = vmax.f32 %v2781, %v2792
      %v2808 = vmax.f32 %v2782, %v2794
      %v2809 = vmax.f32 %v2783, %v2796
      %v2810 = vmax.f32 %v2784, %v2798
      %v2811 = vrot.slane %v2755, 3
      %v2812 = vrot.slane -inf, 3
      %v2813 = vsel %vm1077, %v2811, %v2812
      %v2814 = vrot.slane %v2756, 3
      %v2815 = vsel %vm1077, %v2814, %v2812
      %v2816 = vrot.slane %v2757, 3
      %v2817 = vsel %vm1077, %v2816, %v2812
      %v2818 = vrot.slane %v2758, 3
      %v2819 = vsel %vm1077, %v2818, %v2812
      %v2820 = vrot.slane %v2759, 3
      %v2821 = vsel %vm1077, %v2820, %v2812
      %v2822 = vrot.slane %v2760, 3
      %v2823 = vsel %vm1077, %v2822, %v2812
      %v2830 = vmax.f32 %v2805, %v2813
      %v2831 = vmax.f32 %v2806, %v2815
      %v2832 = vmax.f32 %v2807, %v2817
      %v2833 = vmax.f32 %v2808, %v2819
      %v2834 = vmax.f32 %v2809, %v2821
      %v2835 = vmax.f32 %v2810, %v2823
      %v2842 = vrot.slane %v2830, 1
      %v2843 = vrot.slane %v2831, 1
      %v2844 = vrot.slane %v2832, 1
      %v2845 = vrot.slane %v2833, 1
      %v2846 = vrot.slane %v2834, 1
      %v2847 = vrot.slane %v2835, 1
      %v2854 = vrot.slane %v2830, 2
      %v2855 = vrot.slane %v2831, 2
      %v2856 = vrot.slane %v2832, 2
      %v2857 = vrot.slane %v2833, 2
      %v2858 = vrot.slane %v2834, 2
      %v2859 = vrot.slane %v2835, 2
      %v2866 = vrot.slane %v2830, 3
      %v2867 = vrot.slane %v2831, 3
      %v2868 = vrot.slane %v2832, 3
      %v2869 = vrot.slane %v2833, 3
      %v2870 = vrot.slane %v2834, 3
      %v2871 = vrot.slane %v2835, 3
      %v2878 = vsel %vm1033, %v2830, %v2842
      %v2879 = vsel %vm1033, %v2831, %v2843
      %v2880 = vsel %vm1033, %v2832, %v2844
      %v2881 = vsel %vm1033, %v2833, %v2845
      %v2882 = vsel %vm1033, %v2834, %v2846
      %v2883 = vsel %vm1033, %v2835, %v2847
      %v2884 = vsel %vm1044, %v2878, %v2854
      %v2885 = vsel %vm1044, %v2879, %v2855
      %v2886 = vsel %vm1044, %v2880, %v2856
      %v2887 = vsel %vm1044, %v2881, %v2857
      %v2888 = vsel %vm1044, %v2882, %v2858
      %v2889 = vsel %vm1044, %v2883, %v2859
      %v2890 = vsel %vm1055, %v2884, %v2866
      %v2891 = vsel %vm1055, %v2885, %v2867
      %v2892 = vsel %vm1055, %v2886, %v2868
      %v2893 = vsel %vm1055, %v2887, %v2869
      %v2894 = vsel %vm1055, %v2888, %v2870
      %v2895 = vsel %vm1055, %v2889, %v2871
      %2902 = vrot.lane.b32.xlu0 %v2890, 2
      %v2903 = vpop.permute.xlu0 %2902
      %2904 = vrot.lane.b32.xlu0 %v2891, 2
      %v2905 = vpop.permute.xlu0 %2904
      %2906 = vrot.lane.b32.xlu0 %v2892, 2
      %v2907 = vpop.permute.xlu0 %2906
      %2908 = vrot.lane.b32.xlu0 %v2893, 2
      %v2909 = vpop.permute.xlu0 %2908
      %2910 = vrot.lane.b32.xlu0 %v2894, 2
      %v2911 = vpop.permute.xlu0 %2910
      %2912 = vrot.lane.b32.xlu0 %v2895, 2
      %v2913 = vpop.permute.xlu0 %2912
      %v2920 = vsel %vm1879, -inf, %v2903
      %v2921 = vsel %vm1879, -inf, %v2905
      %v2922 = vsel %vm1879, -inf, %v2907
      %v2923 = vsel %vm1879, -inf, %v2909
      %v2924 = vsel %vm1879, -inf, %v2911
      %v2925 = vsel %vm1879, -inf, %v2913
      %v2926 = vsel %vm2005, %v2920, -inf
      %v2927 = vsel %vm2005, %v2921, -inf
      %v2928 = vsel %vm2005, %v2922, -inf
      %v2929 = vsel %vm2005, %v2923, -inf
      %v2930 = vsel %vm2005, %v2924, -inf
      %v2931 = vsel %vm2005, %v2925, -inf
      %2938 = vrot.lane.b32.xlu0 %v2926, 127
      %v2939 = vpop.permute.xlu0 %2938
      %2940 = vrot.lane.b32.xlu0 %v2927, 127
      %v2941 = vpop.permute.xlu0 %2940
      %2942 = vrot.lane.b32.xlu0 %v2928, 127
      %v2943 = vpop.permute.xlu0 %2942
      %2944 = vrot.lane.b32.xlu0 %v2929, 127
      %v2945 = vpop.permute.xlu0 %2944
      %2946 = vrot.lane.b32.xlu0 %v2930, 127
      %v2947 = vpop.permute.xlu0 %2946
      %2948 = vrot.lane.b32.xlu0 %v2931, 127
      %v2949 = vpop.permute.xlu0 %2948
      %v2956 = vmax.f32 %v2926, %v2939
      %v2957 = vmax.f32 %v2927, %v2941
      %v2958 = vmax.f32 %v2928, %v2943
      %v2959 = vmax.f32 %v2929, %v2945
      %v2960 = vmax.f32 %v2930, %v2947
      %v2961 = vmax.f32 %v2931, %v2949
      %2962 = vrot.lane.b32.xlu0 %v2926, 126
      %v2963 = vpop.permute.xlu0 %2962
      %2964 = vrot.lane.b32.xlu0 %v2927, 126
      %v2965 = vpop.permute.xlu0 %2964
      %2966 = vrot.lane.b32.xlu0 %v2928, 126
      %v2967 = vpop.permute.xlu0 %2966
      %2968 = vrot.lane.b32.xlu0 %v2929, 126
      %v2969 = vpop.permute.xlu0 %2968
      %2970 = vrot.lane.b32.xlu0 %v2930, 126
      %v2971 = vpop.permute.xlu0 %2970
      %2972 = vrot.lane.b32.xlu0 %v2931, 126
      %v2973 = vpop.permute.xlu0 %2972
      %v2980 = vmax.f32 %v2956, %v2963
      %v2981 = vmax.f32 %v2957, %v2965
      %v2982 = vmax.f32 %v2958, %v2967
      %v2983 = vmax.f32 %v2959, %v2969
      %v2984 = vmax.f32 %v2960, %v2971
      %v2985 = vmax.f32 %v2961, %v2973
      %2986 = vrot.lane.b32.xlu0 %v2926, 125
      %v2987 = vpop.permute.xlu0 %2986
      %2988 = vrot.lane.b32.xlu0 %v2927, 125
      %v2989 = vpop.permute.xlu0 %2988
      %2990 = vrot.lane.b32.xlu0 %v2928, 125
      %v2991 = vpop.permute.xlu0 %2990
      %2992 = vrot.lane.b32.xlu0 %v2929, 125
      %v2993 = vpop.permute.xlu0 %2992
      %2994 = vrot.lane.b32.xlu0 %v2930, 125
      %v2995 = vpop.permute.xlu0 %2994
      %2996 = vrot.lane.b32.xlu0 %v2931, 125
      %v2997 = vpop.permute.xlu0 %2996
      %v3004 = vmax.f32 %v2980, %v2987
      %v3005 = vmax.f32 %v2981, %v2989
      %v3006 = vmax.f32 %v2982, %v2991
      %v3007 = vmax.f32 %v2983, %v2993
      %v3008 = vmax.f32 %v2984, %v2995
      %v3009 = vmax.f32 %v2985, %v2997
      %3010 = vrot.lane.b32.xlu0 %v2926, 124
      %v3011 = vpop.permute.xlu0 %3010
      %3012 = vrot.lane.b32.xlu0 %v2927, 124
      %v3013 = vpop.permute.xlu0 %3012
      %3014 = vrot.lane.b32.xlu0 %v2928, 124
      %v3015 = vpop.permute.xlu0 %3014
      %3016 = vrot.lane.b32.xlu0 %v2929, 124
      %v3017 = vpop.permute.xlu0 %3016
      %3018 = vrot.lane.b32.xlu0 %v2930, 124
      %v3019 = vpop.permute.xlu0 %3018
      %3020 = vrot.lane.b32.xlu0 %v2931, 124
      %v3021 = vpop.permute.xlu0 %3020
      %v3028 = vmax.f32 %v3004, %v3011
      %v3029 = vmax.f32 %v3005, %v3013
      %v3030 = vmax.f32 %v3006, %v3015
      %v3031 = vmax.f32 %v3007, %v3017
      %v3032 = vmax.f32 %v3008, %v3019
      %v3033 = vmax.f32 %v3009, %v3021
      %3040 = vrot.lane.b32.xlu0 %v3028, 127
      %v3041 = vpop.permute.xlu0 %3040
      %3042 = vrot.lane.b32.xlu0 %v3029, 127
      %v3043 = vpop.permute.xlu0 %3042
      %3044 = vrot.lane.b32.xlu0 %v3030, 127
      %v3045 = vpop.permute.xlu0 %3044
      %3046 = vrot.lane.b32.xlu0 %v3031, 127
      %v3047 = vpop.permute.xlu0 %3046
      %3048 = vrot.lane.b32.xlu0 %v3032, 127
      %v3049 = vpop.permute.xlu0 %3048
      %3050 = vrot.lane.b32.xlu0 %v3033, 127
      %v3051 = vpop.permute.xlu0 %3050
      %3058 = vrot.lane.b32.xlu0 %v3028, 126
      %v3059 = vpop.permute.xlu0 %3058
      %3060 = vrot.lane.b32.xlu0 %v3029, 126
      %v3061 = vpop.permute.xlu0 %3060
      %3062 = vrot.lane.b32.xlu0 %v3030, 126
      %v3063 = vpop.permute.xlu0 %3062
      %3064 = vrot.lane.b32.xlu0 %v3031, 126
      %v3065 = vpop.permute.xlu0 %3064
      %3066 = vrot.lane.b32.xlu0 %v3032, 126
      %v3067 = vpop.permute.xlu0 %3066
      %3068 = vrot.lane.b32.xlu0 %v3033, 126
      %v3069 = vpop.permute.xlu0 %3068
      %3076 = vrot.lane.b32.xlu0 %v3028, 125
      %v3077 = vpop.permute.xlu0 %3076
      %3078 = vrot.lane.b32.xlu0 %v3029, 125
      %v3079 = vpop.permute.xlu0 %3078
      %3080 = vrot.lane.b32.xlu0 %v3030, 125
      %v3081 = vpop.permute.xlu0 %3080
      %3082 = vrot.lane.b32.xlu0 %v3031, 125
      %v3083 = vpop.permute.xlu0 %3082
      %3084 = vrot.lane.b32.xlu0 %v3032, 125
      %v3085 = vpop.permute.xlu0 %3084
      %3086 = vrot.lane.b32.xlu0 %v3033, 125
      %v3087 = vpop.permute.xlu0 %3086
      %v3094 = vsel %vm1858, %v3028, %v3041
      %v3095 = vsel %vm1858, %v3029, %v3043
      %v3096 = vsel %vm1858, %v3030, %v3045
      %v3097 = vsel %vm1858, %v3031, %v3047
      %v3098 = vsel %vm1858, %v3032, %v3049
      %v3099 = vsel %vm1858, %v3033, %v3051
      %v3100 = vsel %vm1879, %v3094, %v3059
      %v3101 = vsel %vm1879, %v3095, %v3061
      %v3102 = vsel %vm1879, %v3096, %v3063
      %v3103 = vsel %vm1879, %v3097, %v3065
      %v3104 = vsel %vm1879, %v3098, %v3067
      %v3105 = vsel %vm1879, %v3099, %v3069
      %v3106 = vsel %vm1900, %v3100, %v3077
      %v3107 = vsel %vm1900, %v3101, %v3079
      %v3108 = vsel %vm1900, %v3102, %v3081
      %v3109 = vsel %vm1900, %v3103, %v3083
      %v3110 = vsel %vm1900, %v3104, %v3085
      %v3111 = vsel %vm1900, %v3105, %v3087
      %v3112 = vmax.f32 %v3106, %v3107
      %v3113 = vmax.f32 %v3107, %v3108
      %v3114 = vmax.f32 %v3108, %v3109
      %v3115 = vmax.f32 %v3109, %v3110
      %v3116 = vmax.f32 %v3110, %v3111
      %v3124 = vrot.slane %v3106, 7
      %v3125 = vrot.slane %v3112, 7
      %v3126 = vrot.slane %v3113, 7
      %v3127 = vrot.slane %v3114, 7
      %v3128 = vrot.slane %v3115, 7
      %v3129 = vrot.slane %v3116, 7
      %v3130 = vrot.slane %v3111, 7
      %v3138 = vsel %vm1033, -inf, %v3124
      %v3139 = vsel %vm1033, -inf, %v3125
      %v3140 = vsel %vm1033, -inf, %v3126
      %v3141 = vsel %vm1033, -inf, %v3127
      %v3142 = vsel %vm1033, -inf, %v3128
      %v3143 = vsel %vm1033, -inf, %v3129
      %v3144 = vsel %vm1033, -inf, %v3130
      %v3145 = vsel %vm1077, %v3138, -inf
      %v3146 = vsel %vm1077, %v3139, -inf
      %v3147 = vsel %vm1077, %v3140, -inf
      %v3148 = vsel %vm1077, %v3141, -inf
      %v3149 = vsel %vm1077, %v3142, -inf
      %v3150 = vsel %vm1077, %v3143, -inf
      %v3151 = vsel %vm1077, %v3144, -inf
      %v3159 = vrot.slane %v3145, 2
      %v3160 = vrot.slane %v3146, 2
      %v3161 = vrot.slane %v3147, 2
      %v3162 = vrot.slane %v3148, 2
      %v3163 = vrot.slane %v3149, 2
      %v3164 = vrot.slane %v3150, 2
      %v3165 = vrot.slane %v3151, 2
      %v3173 = vmax.f32 %v3145, %v3159
      %v3174 = vmax.f32 %v3146, %v3160
      %v3175 = vmax.f32 %v3147, %v3161
      %v3176 = vmax.f32 %v3148, %v3162
      %v3177 = vmax.f32 %v3149, %v3163
      %v3178 = vmax.f32 %v3150, %v3164
      %v3179 = vmax.f32 %v3151, %v3165
      %v3180 = vrot.slane %v3145, 4
      %v3181 = vrot.slane %v3146, 4
      %v3182 = vrot.slane %v3147, 4
      %v3183 = vrot.slane %v3148, 4
      %v3184 = vrot.slane %v3149, 4
      %v3185 = vrot.slane %v3150, 4
      %v3186 = vrot.slane %v3151, 4
      %v3194 = vmax.f32 %v3173, %v3180
      %v3195 = vmax.f32 %v3174, %v3181
      %v3196 = vmax.f32 %v3175, %v3182
      %v3197 = vmax.f32 %v3176, %v3183
      %v3198 = vmax.f32 %v3177, %v3184
      %v3199 = vmax.f32 %v3178, %v3185
      %v3200 = vmax.f32 %v3179, %v3186
      %3208 = vrot.lane.b32.xlu0 %v3194, 1
      %v3209 = vpop.permute.xlu0 %3208
      %3210 = vrot.lane.b32.xlu0 %v3195, 1
      %v3211 = vpop.permute.xlu0 %3210
      %3212 = vrot.lane.b32.xlu0 %v3196, 1
      %v3213 = vpop.permute.xlu0 %3212
      %3214 = vrot.lane.b32.xlu0 %v3197, 1
      %v3215 = vpop.permute.xlu0 %3214
      %3216 = vrot.lane.b32.xlu0 %v3198, 1
      %v3217 = vpop.permute.xlu0 %3216
      %3218 = vrot.lane.b32.xlu0 %v3199, 1
      %v3219 = vpop.permute.xlu0 %3218
      %3220 = vrot.lane.b32.xlu0 %v3200, 1
      %v3221 = vpop.permute.xlu0 %3220
      %v3229 = vsel %vm1858, -inf, %v3209
      %v3230 = vsel %vm1858, -inf, %v3211
      %v3231 = vsel %vm1858, -inf, %v3213
      %v3232 = vsel %vm1858, -inf, %v3215
      %v3233 = vsel %vm1858, -inf, %v3217
      %v3234 = vsel %vm1858, -inf, %v3219
      %v3235 = vsel %vm1858, -inf, %v3221
      %v3236 = vsel %vm1942, %v3229, -inf
      %v3237 = vsel %vm1942, %v3230, -inf
      %v3238 = vsel %vm1942, %v3231, -inf
      %v3239 = vsel %vm1942, %v3232, -inf
      %v3240 = vsel %vm1942, %v3233, -inf
      %v3241 = vsel %vm1942, %v3234, -inf
      %v3242 = vsel %vm1942, %v3235, -inf
      %3250 = vrot.lane.b32.xlu0 %v3236, 126
      %v3251 = vpop.permute.xlu0 %3250
      %3252 = vrot.lane.b32.xlu0 %v3237, 126
      %v3253 = vpop.permute.xlu0 %3252
      %3254 = vrot.lane.b32.xlu0 %v3238, 126
      %v3255 = vpop.permute.xlu0 %3254
      %3256 = vrot.lane.b32.xlu0 %v3239, 126
      %v3257 = vpop.permute.xlu0 %3256
      %3258 = vrot.lane.b32.xlu0 %v3240, 126
      %v3259 = vpop.permute.xlu0 %3258
      %3260 = vrot.lane.b32.xlu0 %v3241, 126
      %v3261 = vpop.permute.xlu0 %3260
      %3262 = vrot.lane.b32.xlu0 %v3242, 126
      %v3263 = vpop.permute.xlu0 %3262
      %v3271 = vmax.f32 %v3236, %v3251
      %v3272 = vmax.f32 %v3237, %v3253
      %v3273 = vmax.f32 %v3238, %v3255
      %v3274 = vmax.f32 %v3239, %v3257
      %v3275 = vmax.f32 %v3240, %v3259
      %v3276 = vmax.f32 %v3241, %v3261
      %v3277 = vmax.f32 %v3242, %v3263
      %3278 = vrot.lane.b32.xlu0 %v3236, 124
      %v3279 = vpop.permute.xlu0 %3278
      %3280 = vrot.lane.b32.xlu0 %v3237, 124
      %v3281 = vpop.permute.xlu0 %3280
      %3282 = vrot.lane.b32.xlu0 %v3238, 124
      %v3283 = vpop.permute.xlu0 %3282
      %3284 = vrot.lane.b32.xlu0 %v3239, 124
      %v3285 = vpop.permute.xlu0 %3284
      %3286 = vrot.lane.b32.xlu0 %v3240, 124
      %v3287 = vpop.permute.xlu0 %3286
      %3288 = vrot.lane.b32.xlu0 %v3241, 124
      %v3289 = vpop.permute.xlu0 %3288
      %3290 = vrot.lane.b32.xlu0 %v3242, 124
      %v3291 = vpop.permute.xlu0 %3290
      %v3299 = vmax.f32 %v3271, %v3279
      %v3300 = vmax.f32 %v3272, %v3281
      %v3301 = vmax.f32 %v3273, %v3283
      %v3302 = vmax.f32 %v3274, %v3285
      %v3303 = vmax.f32 %v3275, %v3287
      %v3304 = vmax.f32 %v3276, %v3289
      %v3305 = vmax.f32 %v3277, %v3291
      %v3306 = vmax.f32 %v3299, %v3300
      %v3307 = vmax.f32 %v3300, %v3301
      %v3308 = vmax.f32 %v3301, %v3302
      %v3309 = vmax.f32 %v3302, %v3303
      %v3310 = vmax.f32 %v3303, %v3304
      %v3311 = vmax.f32 %v3304, %v3305
      %v3318 = vrot.slane %v3306, 1
      %v3319 = vrot.slane %v3307, 1
      %v3320 = vrot.slane %v3308, 1
      %v3321 = vrot.slane %v3309, 1
      %v3322 = vrot.slane %v3310, 1
      %v3323 = vrot.slane %v3311, 1
      %v3330 = vmax.f32 %v3306, %v3318
      %v3331 = vmax.f32 %v3307, %v3319
      %v3332 = vmax.f32 %v3308, %v3320
      %v3333 = vmax.f32 %v3309, %v3321
      %v3334 = vmax.f32 %v3310, %v3322
      %v3335 = vmax.f32 %v3311, %v3323
      %3342 = vrot.lane.b32.xlu0 %v3330, 127
      %v3343 = vpop.permute.xlu0 %3342
      %3344 = vrot.lane.b32.xlu0 %v3331, 127
      %v3345 = vpop.permute.xlu0 %3344
      %3346 = vrot.lane.b32.xlu0 %v3332, 127
      %v3347 = vpop.permute.xlu0 %3346
      %3348 = vrot.lane.b32.xlu0 %v3333, 127
      %v3349 = vpop.permute.xlu0 %3348
      %3350 = vrot.lane.b32.xlu0 %v3334, 127
      %v3351 = vpop.permute.xlu0 %3350
      %3352 = vrot.lane.b32.xlu0 %v3335, 127
      %v3353 = vpop.permute.xlu0 %3352
      %v3360 = vmax.f32 %v3330, %v3343
      %v3361 = vmax.f32 %v3331, %v3345
      %v3362 = vmax.f32 %v3332, %v3347
      %v3363 = vmax.f32 %v3333, %v3349
      %v3364 = vmax.f32 %v3334, %v3351
      %v3365 = vmax.f32 %v3335, %v3353
      %v3372 = vrot.slane -inf, 6
      %v3373 = vrot.slane %v3360, 6
      %v3374 = vrot.slane %v3361, 6
      %v3375 = vrot.slane %v3362, 6
      %v3376 = vrot.slane %v3363, 6
      %v3377 = vrot.slane %v3364, 6
      %v3378 = vrot.slane %v3365, 6
      %v3386 = vsel %vm1044, -inf, %v3372
      %v3387 = vsel %vm1044, -inf, %v3373
      %v3388 = vsel %vm1044, -inf, %v3374
      %v3389 = vsel %vm1044, -inf, %v3375
      %v3390 = vsel %vm1044, -inf, %v3376
      %v3391 = vsel %vm1044, -inf, %v3377
      %v3392 = vsel %vm1044, -inf, %v3378
      %v3393 = vsel %vm1055, %v3386, -inf
      %v3394 = vsel %vm1055, %v3387, -inf
      %v3395 = vsel %vm1055, %v3388, -inf
      %v3396 = vsel %vm1055, %v3389, -inf
      %v3397 = vsel %vm1055, %v3390, -inf
      %v3398 = vsel %vm1055, %v3391, -inf
      %v3399 = vsel %vm1055, %v3392, -inf
      %3407 = vrot.lane.b32.xlu0 %v3393, 2
      %v3408 = vpop.permute.xlu0 %3407
      %3409 = vrot.lane.b32.xlu0 %v3394, 2
      %v3410 = vpop.permute.xlu0 %3409
      %3411 = vrot.lane.b32.xlu0 %v3395, 2
      %v3412 = vpop.permute.xlu0 %3411
      %3413 = vrot.lane.b32.xlu0 %v3396, 2
      %v3414 = vpop.permute.xlu0 %3413
      %3415 = vrot.lane.b32.xlu0 %v3397, 2
      %v3416 = vpop.permute.xlu0 %3415
      %3417 = vrot.lane.b32.xlu0 %v3398, 2
      %v3418 = vpop.permute.xlu0 %3417
      %3419 = vrot.lane.b32.xlu0 %v3399, 2
      %v3420 = vpop.permute.xlu0 %3419
      %v3428 = vsel %vm1879, -inf, %v3408
      %v3429 = vsel %vm1879, -inf, %v3410
      %v3430 = vsel %vm1879, -inf, %v3412
      %v3431 = vsel %vm1879, -inf, %v3414
      %v3432 = vsel %vm1879, -inf, %v3416
      %v3433 = vsel %vm1879, -inf, %v3418
      %v3434 = vsel %vm1879, -inf, %v3420
      %v3435 = vsel %vm1900, %v3428, -inf
      %v3436 = vsel %vm1900, %v3429, -inf
      %v3437 = vsel %vm1900, %v3430, -inf
      %v3438 = vsel %vm1900, %v3431, -inf
      %v3439 = vsel %vm1900, %v3432, -inf
      %v3440 = vsel %vm1900, %v3433, -inf
      %v3441 = vsel %vm1900, %v3434, -inf
      %vm3442 = vcmp.gt.f32.partialorder %v3435, -inf
      %vm3443 = vcmp.gt.f32.partialorder %v3436, -inf
      %vm3444 = vcmp.gt.f32.partialorder %v3437, -inf
      %vm3445 = vcmp.gt.f32.partialorder %v3438, -inf
      %vm3446 = vcmp.gt.f32.partialorder %v3439, -inf
      %v3447 = vsel %vm3442, %v3435, -inf
      %v3448 = vsel %vm3443, %v3436, -inf
      %v3449 = vsel %vm3444, %v3437, -inf
      %v3450 = vsel %vm3445, %v3438, -inf
      %v3451 = vsel %vm3446, %v3439, -inf
      %v3452 = vsel %vm3442, 4294967292, 0
      %v3453 = vsel %vm3443, 4294967292, 0
      %v3454 = vsel %vm3444, 4294967292, 0
      %v3455 = vsel %vm3445, 4294967292, 0
      %v3456 = vsel %vm3446, 4294967292, 0
      %3462 = vrot.lane.b32.xlu0 %v3447, 1
      %v3463 = vpop.permute.xlu0 %3462
      %3464 = vrot.lane.b32.xlu0 %v3448, 1
      %v3465 = vpop.permute.xlu0 %3464
      %3466 = vrot.lane.b32.xlu0 %v3449, 1
      %v3467 = vpop.permute.xlu0 %3466
      %3468 = vrot.lane.b32.xlu0 %v3450, 1
      %v3469 = vpop.permute.xlu0 %3468
      %3470 = vrot.lane.b32.xlu0 %v3451, 1
      %v3471 = vpop.permute.xlu0 %3470
      %vm3477 = vcmp.gt.f32.partialorder %v3435, %v3463
      %vm3478 = vcmp.gt.f32.partialorder %v3436, %v3465
      %vm3479 = vcmp.gt.f32.partialorder %v3437, %v3467
      %vm3480 = vcmp.gt.f32.partialorder %v3438, %v3469
      %vm3481 = vcmp.gt.f32.partialorder %v3439, %v3471
      %v3482 = vsel %vm3477, %v3435, %v3463
      %v3483 = vsel %vm3478, %v3436, %v3465
      %v3484 = vsel %vm3479, %v3437, %v3467
      %v3485 = vsel %vm3480, %v3438, %v3469
      %v3486 = vsel %vm3481, %v3439, %v3471
      %3487 = vrot.lane.b32.xlu0 %v3452, 1
      %v3488 = vpop.permute.xlu0 %3487
      %3489 = vrot.lane.b32.xlu0 %v3453, 1
      %v3490 = vpop.permute.xlu0 %3489
      %3491 = vrot.lane.b32.xlu0 %v3454, 1
      %v3492 = vpop.permute.xlu0 %3491
      %3493 = vrot.lane.b32.xlu0 %v3455, 1
      %v3494 = vpop.permute.xlu0 %3493
      %3495 = vrot.lane.b32.xlu0 %v3456, 1
      %v3496 = vpop.permute.xlu0 %3495
      %v3497 = vsel %vm3477, 4294967293, %v3488
      %v3498 = vsel %vm3478, 4294967293, %v3490
      %v3499 = vsel %vm3479, 4294967293, %v3492
      %v3500 = vsel %vm3480, 4294967293, %v3494
      %v3501 = vsel %vm3481, 4294967293, %v3496
      %v3507 = vrot.slane %v3482, 7
      %v3508 = vrot.slane %v3483, 7
      %v3509 = vrot.slane %v3484, 7
      %v3510 = vrot.slane %v3485, 7
      %v3511 = vrot.slane %v3486, 7
      %3512 = vrot.lane.b32.xlu0 %v3507, 127
      %v3513 = vpop.permute.xlu0 %3512
      %3514 = vrot.lane.b32.xlu0 %v3508, 127
      %v3515 = vpop.permute.xlu0 %3514
      %3516 = vrot.lane.b32.xlu0 %v3509, 127
      %v3517 = vpop.permute.xlu0 %3516
      %3518 = vrot.lane.b32.xlu0 %v3510, 127
      %v3519 = vpop.permute.xlu0 %3518
      %3520 = vrot.lane.b32.xlu0 %v3511, 127
      %v3521 = vpop.permute.xlu0 %3520
      %vm3527 = vcmp.gt.f32.partialorder %v3435, %v3513
      %vm3528 = vcmp.gt.f32.partialorder %v3436, %v3515
      %vm3529 = vcmp.gt.f32.partialorder %v3437, %v3517
      %vm3530 = vcmp.gt.f32.partialorder %v3438, %v3519
      %vm3531 = vcmp.gt.f32.partialorder %v3439, %v3521
      %v3532 = vsel %vm3527, %v3435, %v3513
      %v3533 = vsel %vm3528, %v3436, %v3515
      %v3534 = vsel %vm3529, %v3437, %v3517
      %v3535 = vsel %vm3530, %v3438, %v3519
      %v3536 = vsel %vm3531, %v3439, %v3521
      %v3537 = vrot.slane %v3497, 7
      %v3538 = vrot.slane %v3498, 7
      %v3539 = vrot.slane %v3499, 7
      %v3540 = vrot.slane %v3500, 7
      %v3541 = vrot.slane %v3501, 7
      %3542 = vrot.lane.b32.xlu0 %v3537, 127
      %v3543 = vpop.permute.xlu0 %3542
      %3544 = vrot.lane.b32.xlu0 %v3538, 127
      %v3545 = vpop.permute.xlu0 %3544
      %3546 = vrot.lane.b32.xlu0 %v3539, 127
      %v3547 = vpop.permute.xlu0 %3546
      %3548 = vrot.lane.b32.xlu0 %v3540, 127
      %v3549 = vpop.permute.xlu0 %3548
      %3550 = vrot.lane.b32.xlu0 %v3541, 127
      %v3551 = vpop.permute.xlu0 %3550
      %v3552 = vsel %vm3527, 4294967293, %v3543
      %v3553 = vsel %vm3528, 4294967293, %v3545
      %v3554 = vsel %vm3529, 4294967293, %v3547
      %v3555 = vsel %vm3530, 4294967293, %v3549
      %v3556 = vsel %vm3531, 4294967293, %v3551
      %3562 = vrot.lane.b32.xlu0 %v3532, 1
      %v3563 = vpop.permute.xlu0 %3562
      %3564 = vrot.lane.b32.xlu0 %v3533, 1
      %v3565 = vpop.permute.xlu0 %3564
      %3566 = vrot.lane.b32.xlu0 %v3534, 1
      %v3567 = vpop.permute.xlu0 %3566
      %3568 = vrot.lane.b32.xlu0 %v3535, 1
      %v3569 = vpop.permute.xlu0 %3568
      %3570 = vrot.lane.b32.xlu0 %v3536, 1
      %v3571 = vpop.permute.xlu0 %3570
      %vm3577 = vcmp.gt.f32.partialorder %v3435, %v3563
      %vm3578 = vcmp.gt.f32.partialorder %v3436, %v3565
      %vm3579 = vcmp.gt.f32.partialorder %v3437, %v3567
      %vm3580 = vcmp.gt.f32.partialorder %v3438, %v3569
      %vm3581 = vcmp.gt.f32.partialorder %v3439, %v3571
      %v3582 = vsel %vm3577, %v3435, %v3563
      %v3583 = vsel %vm3578, %v3436, %v3565
      %v3584 = vsel %vm3579, %v3437, %v3567
      %v3585 = vsel %vm3580, %v3438, %v3569
      %v3586 = vsel %vm3581, %v3439, %v3571
      %3587 = vrot.lane.b32.xlu0 %v3552, 1
      %v3588 = vpop.permute.xlu0 %3587
      %3589 = vrot.lane.b32.xlu0 %v3553, 1
      %v3590 = vpop.permute.xlu0 %3589
      %3591 = vrot.lane.b32.xlu0 %v3554, 1
      %v3592 = vpop.permute.xlu0 %3591
      %3593 = vrot.lane.b32.xlu0 %v3555, 1
      %v3594 = vpop.permute.xlu0 %3593
      %3595 = vrot.lane.b32.xlu0 %v3556, 1
      %v3596 = vpop.permute.xlu0 %3595
      %v3597 = vsel %vm3577, 4294967294, %v3588
      %v3598 = vsel %vm3578, 4294967294, %v3590
      %v3599 = vsel %vm3579, 4294967294, %v3592
      %v3600 = vsel %vm3580, 4294967294, %v3594
      %v3601 = vsel %vm3581, 4294967294, %v3596
      %v3607 = vrot.slane %v3582, 1
      %v3608 = vrot.slane %v3583, 1
      %v3609 = vrot.slane %v3584, 1
      %v3610 = vrot.slane %v3585, 1
      %v3611 = vrot.slane %v3586, 1
      %3612 = vrot.lane.b32.xlu0 %v3607, 127
      %v3613 = vpop.permute.xlu0 %3612
      %3614 = vrot.lane.b32.xlu0 %v3608, 127
      %v3615 = vpop.permute.xlu0 %3614
      %3616 = vrot.lane.b32.xlu0 %v3609, 127
      %v3617 = vpop.permute.xlu0 %3616
      %3618 = vrot.lane.b32.xlu0 %v3610, 127
      %v3619 = vpop.permute.xlu0 %3618
      %3620 = vrot.lane.b32.xlu0 %v3611, 127
      %v3621 = vpop.permute.xlu0 %3620
      %vm3627 = vcmp.gt.f32.partialorder %v3435, %v3613
      %vm3628 = vcmp.gt.f32.partialorder %v3436, %v3613
      %vm3629 = vcmp.gt.f32.partialorder %v3437, %v3615
      %vm3630 = vcmp.gt.f32.partialorder %v3438, %v3617
      %vm3631 = vcmp.gt.f32.partialorder %v3439, %v3619
      %vm3632 = vcmp.gt.f32.partialorder %v3440, %v3621
      %v3633 = vsel %vm3627, %v3435, %v3613
      %v3634 = vsel %vm3628, %v3436, %v3613
      %v3635 = vsel %vm3629, %v3437, %v3615
      %v3636 = vsel %vm3630, %v3438, %v3617
      %v3637 = vsel %vm3631, %v3439, %v3619
      %v3638 = vsel %vm3632, %v3440, %v3621
      %v3639 = vrot.slane %v3597, 1
      %v3640 = vrot.slane %v3598, 1
      %v3641 = vrot.slane %v3599, 1
      %v3642 = vrot.slane %v3600, 1
      %v3643 = vrot.slane %v3601, 1
      %3644 = vrot.lane.b32.xlu0 %v3639, 127
      %v3645 = vpop.permute.xlu0 %3644
      %3646 = vrot.lane.b32.xlu0 %v3640, 127
      %v3647 = vpop.permute.xlu0 %3646
      %3648 = vrot.lane.b32.xlu0 %v3641, 127
      %v3649 = vpop.permute.xlu0 %3648
      %3650 = vrot.lane.b32.xlu0 %v3642, 127
      %v3651 = vpop.permute.xlu0 %3650
      %3652 = vrot.lane.b32.xlu0 %v3643, 127
      %v3653 = vpop.permute.xlu0 %3652
      %v3654 = vsel %vm3627, 4294967293, %v3645
      %v3655 = vsel %vm3628, 4294967293, %v3645
      %v3656 = vsel %vm3629, 4294967293, %v3647
      %v3657 = vsel %vm3630, 4294967293, %v3649
      %v3658 = vsel %vm3631, 4294967293, %v3651
      %v3659 = vsel %vm3632, 4294967293, %v3653
      %3666 = vrot.lane.b32.xlu0 %v3633, 1
      %v3667 = vpop.permute.xlu0 %3666
      %3668 = vrot.lane.b32.xlu0 %v3634, 1
      %v3669 = vpop.permute.xlu0 %3668
      %3670 = vrot.lane.b32.xlu0 %v3635, 1
      %v3671 = vpop.permute.xlu0 %3670
      %3672 = vrot.lane.b32.xlu0 %v3636, 1
      %v3673 = vpop.permute.xlu0 %3672
      %3674 = vrot.lane.b32.xlu0 %v3637, 1
      %v3675 = vpop.permute.xlu0 %3674
      %3676 = vrot.lane.b32.xlu0 %v3638, 1
      %v3677 = vpop.permute.xlu0 %3676
      %vm3684 = vcmp.gt.f32.partialorder %v3435, %v3667
      %vm3685 = vcmp.gt.f32.partialorder %v3436, %v3669
      %vm3686 = vcmp.gt.f32.partialorder %v3437, %v3671
      %vm3687 = vcmp.gt.f32.partialorder %v3438, %v3673
      %vm3688 = vcmp.gt.f32.partialorder %v3439, %v3675
      %vm3689 = vcmp.gt.f32.partialorder %v3440, %v3677
      %v3690 = vsel %vm3684, %v3435, %v3667
      %v3691 = vsel %vm3685, %v3436, %v3669
      %v3692 = vsel %vm3686, %v3437, %v3671
      %v3693 = vsel %vm3687, %v3438, %v3673
      %v3694 = vsel %vm3688, %v3439, %v3675
      %v3695 = vsel %vm3689, %v3440, %v3677
      %3696 = vrot.lane.b32.xlu0 %v3654, 1
      %v3697 = vpop.permute.xlu0 %3696
      %3698 = vrot.lane.b32.xlu0 %v3655, 1
      %v3699 = vpop.permute.xlu0 %3698
      %3700 = vrot.lane.b32.xlu0 %v3656, 1
      %v3701 = vpop.permute.xlu0 %3700
      %3702 = vrot.lane.b32.xlu0 %v3657, 1
      %v3703 = vpop.permute.xlu0 %3702
      %3704 = vrot.lane.b32.xlu0 %v3658, 1
      %v3705 = vpop.permute.xlu0 %3704
      %3706 = vrot.lane.b32.xlu0 %v3659, 1
      %v3707 = vpop.permute.xlu0 %3706
      %v3708 = vsel %vm3684, 4294967294, %v3697
      %v3709 = vsel %vm3685, 4294967294, %v3699
      %v3710 = vsel %vm3686, 4294967294, %v3701
      %v3711 = vsel %vm3687, 4294967294, %v3703
      %v3712 = vsel %vm3688, 4294967294, %v3705
      %v3713 = vsel %vm3689, 4294967294, %v3707
      %v3720 = vrot.slane %v3690, 7
      %v3721 = vrot.slane %v3691, 7
      %v3722 = vrot.slane %v3692, 7
      %v3723 = vrot.slane %v3693, 7
      %v3724 = vrot.slane %v3694, 7
      %v3725 = vrot.slane %v3695, 7
      %3726 = vrot.lane.b32.xlu0 %v3720, 127
      %v3727 = vpop.permute.xlu0 %3726
      %3728 = vrot.lane.b32.xlu0 %v3721, 127
      %v3729 = vpop.permute.xlu0 %3728
      %3730 = vrot.lane.b32.xlu0 %v3722, 127
      %v3731 = vpop.permute.xlu0 %3730
      %3732 = vrot.lane.b32.xlu0 %v3723, 127
      %v3733 = vpop.permute.xlu0 %3732
      %3734 = vrot.lane.b32.xlu0 %v3724, 127
      %v3735 = vpop.permute.xlu0 %3734
      %3736 = vrot.lane.b32.xlu0 %v3725, 127
      %v3737 = vpop.permute.xlu0 %3736
      %vm3744 = vcmp.gt.f32.partialorder %v3435, %v3727
      %vm3745 = vcmp.gt.f32.partialorder %v3436, %v3729
      %vm3746 = vcmp.gt.f32.partialorder %v3437, %v3731
      %vm3747 = vcmp.gt.f32.partialorder %v3438, %v3733
      %vm3748 = vcmp.gt.f32.partialorder %v3439, %v3735
      %vm3749 = vcmp.gt.f32.partialorder %v3440, %v3737
      %v3750 = vsel %vm3744, %v3435, %v3727
      %v3751 = vsel %vm3745, %v3436, %v3729
      %v3752 = vsel %vm3746, %v3437, %v3731
      %v3753 = vsel %vm3747, %v3438, %v3733
      %v3754 = vsel %vm3748, %v3439, %v3735
      %v3755 = vsel %vm3749, %v3440, %v3737
      %v3756 = vrot.slane %v3708, 7
      %v3757 = vrot.slane %v3709, 7
      %v3758 = vrot.slane %v3710, 7
      %v3759 = vrot.slane %v3711, 7
      %v3760 = vrot.slane %v3712, 7
      %v3761 = vrot.slane %v3713, 7
      %3762 = vrot.lane.b32.xlu0 %v3756, 127
      %v3763 = vpop.permute.xlu0 %3762
      %3764 = vrot.lane.b32.xlu0 %v3757, 127
      %v3765 = vpop.permute.xlu0 %3764
      %3766 = vrot.lane.b32.xlu0 %v3758, 127
      %v3767 = vpop.permute.xlu0 %3766
      %3768 = vrot.lane.b32.xlu0 %v3759, 127
      %v3769 = vpop.permute.xlu0 %3768
      %3770 = vrot.lane.b32.xlu0 %v3760, 127
      %v3771 = vpop.permute.xlu0 %3770
      %3772 = vrot.lane.b32.xlu0 %v3761, 127
      %v3773 = vpop.permute.xlu0 %3772
      %v3774 = vsel %vm3744, 4294967294, %v3763
      %v3775 = vsel %vm3745, 4294967294, %v3765
      %v3776 = vsel %vm3746, 4294967294, %v3767
      %v3777 = vsel %vm3747, 4294967294, %v3769
      %v3778 = vsel %vm3748, 4294967294, %v3771
      %v3779 = vsel %vm3749, 4294967294, %v3773
      %3786 = vrot.lane.b32.xlu0 %v3750, 1
      %v3787 = vpop.permute.xlu0 %3786
      %3788 = vrot.lane.b32.xlu0 %v3751, 1
      %v3789 = vpop.permute.xlu0 %3788
      %3790 = vrot.lane.b32.xlu0 %v3752, 1
      %v3791 = vpop.permute.xlu0 %3790
      %3792 = vrot.lane.b32.xlu0 %v3753, 1
      %v3793 = vpop.permute.xlu0 %3792
      %3794 = vrot.lane.b32.xlu0 %v3754, 1
      %v3795 = vpop.permute.xlu0 %3794
      %3796 = vrot.lane.b32.xlu0 %v3755, 1
      %v3797 = vpop.permute.xlu0 %3796
      %vm3804 = vcmp.gt.f32.partialorder %v3435, %v3787
      %vm3805 = vcmp.gt.f32.partialorder %v3436, %v3789
      %vm3806 = vcmp.gt.f32.partialorder %v3437, %v3791
      %vm3807 = vcmp.gt.f32.partialorder %v3438, %v3793
      %vm3808 = vcmp.gt.f32.partialorder %v3439, %v3795
      %vm3809 = vcmp.gt.f32.partialorder %v3440, %v3797
      %v3810 = vsel %vm3804, %v3435, %v3787
      %v3811 = vsel %vm3805, %v3436, %v3789
      %v3812 = vsel %vm3806, %v3437, %v3791
      %v3813 = vsel %vm3807, %v3438, %v3793
      %v3814 = vsel %vm3808, %v3439, %v3795
      %v3815 = vsel %vm3809, %v3440, %v3797
      %3816 = vrot.lane.b32.xlu0 %v3774, 1
      %v3817 = vpop.permute.xlu0 %3816
      %3818 = vrot.lane.b32.xlu0 %v3775, 1
      %v3819 = vpop.permute.xlu0 %3818
      %3820 = vrot.lane.b32.xlu0 %v3776, 1
      %v3821 = vpop.permute.xlu0 %3820
      %3822 = vrot.lane.b32.xlu0 %v3777, 1
      %v3823 = vpop.permute.xlu0 %3822
      %3824 = vrot.lane.b32.xlu0 %v3778, 1
      %v3825 = vpop.permute.xlu0 %3824
      %3826 = vrot.lane.b32.xlu0 %v3779, 1
      %v3827 = vpop.permute.xlu0 %3826
      %v3828 = vsel %vm3804, 4294967295, %v3817
      %v3829 = vsel %vm3805, 4294967295, %v3819
      %v3830 = vsel %vm3806, 4294967295, %v3821
      %v3831 = vsel %vm3807, 4294967295, %v3823
      %v3832 = vsel %vm3808, 4294967295, %v3825
      %v3833 = vsel %vm3809, 4294967295, %v3827
      %v3840 = vrot.slane %v3810, 1
      %v3841 = vrot.slane %v3811, 1
      %v3842 = vrot.slane %v3812, 1
      %v3843 = vrot.slane %v3813, 1
      %v3844 = vrot.slane %v3814, 1
      %v3845 = vrot.slane %v3815, 1
      %3846 = vrot.lane.b32.xlu0 %v3840, 127
      %v3847 = vpop.permute.xlu0 %3846
      %3848 = vrot.lane.b32.xlu0 %v3841, 127
      %v3849 = vpop.permute.xlu0 %3848
      %3850 = vrot.lane.b32.xlu0 %v3842, 127
      %v3851 = vpop.permute.xlu0 %3850
      %3852 = vrot.lane.b32.xlu0 %v3843, 127
      %v3853 = vpop.permute.xlu0 %3852
      %3854 = vrot.lane.b32.xlu0 %v3844, 127
      %v3855 = vpop.permute.xlu0 %3854
      %3856 = vrot.lane.b32.xlu0 %v3845, 127
      %v3857 = vpop.permute.xlu0 %3856
      %vm3864 = vcmp.gt.f32.partialorder %v3436, %v3847
      %vm3865 = vcmp.gt.f32.partialorder %v3437, %v3849
      %vm3866 = vcmp.gt.f32.partialorder %v3438, %v3851
      %vm3867 = vcmp.gt.f32.partialorder %v3439, %v3853
      %vm3868 = vcmp.gt.f32.partialorder %v3440, %v3855
      %vm3869 = vcmp.gt.f32.partialorder %v3441, %v3857
      %v3870 = vsel %vm3864, %v3436, %v3847
      %v3871 = vsel %vm3865, %v3437, %v3849
      %v3872 = vsel %vm3866, %v3438, %v3851
      %v3873 = vsel %vm3867, %v3439, %v3853
      %v3874 = vsel %vm3868, %v3440, %v3855
      %v3875 = vsel %vm3869, %v3441, %v3857
      %v3876 = vrot.slane %v3828, 1
      %v3877 = vrot.slane %v3829, 1
      %v3878 = vrot.slane %v3830, 1
      %v3879 = vrot.slane %v3831, 1
      %v3880 = vrot.slane %v3832, 1
      %v3881 = vrot.slane %v3833, 1
      %3882 = vrot.lane.b32.xlu0 %v3876, 127
      %v3883 = vpop.permute.xlu0 %3882
      %3884 = vrot.lane.b32.xlu0 %v3877, 127
      %v3885 = vpop.permute.xlu0 %3884
      %3886 = vrot.lane.b32.xlu0 %v3878, 127
      %v3887 = vpop.permute.xlu0 %3886
      %3888 = vrot.lane.b32.xlu0 %v3879, 127
      %v3889 = vpop.permute.xlu0 %3888
      %3890 = vrot.lane.b32.xlu0 %v3880, 127
      %v3891 = vpop.permute.xlu0 %3890
      %3892 = vrot.lane.b32.xlu0 %v3881, 127
      %v3893 = vpop.permute.xlu0 %3892
      %v3894 = vsel %vm3864, 4294967294, %v3883
      %v3895 = vsel %vm3865, 4294967294, %v3885
      %v3896 = vsel %vm3866, 4294967294, %v3887
      %v3897 = vsel %vm3867, 4294967294, %v3889
      %v3898 = vsel %vm3868, 4294967294, %v3891
      %v3899 = vsel %vm3869, 4294967294, %v3893
      %3906 = vrot.lane.b32.xlu0 %v3870, 1
      %v3907 = vpop.permute.xlu0 %3906
      %3908 = vrot.lane.b32.xlu0 %v3871, 1
      %v3909 = vpop.permute.xlu0 %3908
      %3910 = vrot.lane.b32.xlu0 %v3872, 1
      %v3911 = vpop.permute.xlu0 %3910
      %3912 = vrot.lane.b32.xlu0 %v3873, 1
      %v3913 = vpop.permute.xlu0 %3912
      %3914 = vrot.lane.b32.xlu0 %v3874, 1
      %v3915 = vpop.permute.xlu0 %3914
      %3916 = vrot.lane.b32.xlu0 %v3875, 1
      %v3917 = vpop.permute.xlu0 %3916
      %vm3924 = vcmp.gt.f32.partialorder %v3436, %v3907
      %vm3925 = vcmp.gt.f32.partialorder %v3437, %v3909
      %vm3926 = vcmp.gt.f32.partialorder %v3438, %v3911
      %vm3927 = vcmp.gt.f32.partialorder %v3439, %v3913
      %vm3928 = vcmp.gt.f32.partialorder %v3440, %v3915
      %vm3929 = vcmp.gt.f32.partialorder %v3441, %v3917
      %v3930 = vsel %vm3924, %v3436, %v3907
      %v3931 = vsel %vm3925, %v3437, %v3909
      %v3932 = vsel %vm3926, %v3438, %v3911
      %v3933 = vsel %vm3927, %v3439, %v3913
      %v3934 = vsel %vm3928, %v3440, %v3915
      %v3935 = vsel %vm3929, %v3441, %v3917
      %3936 = vrot.lane.b32.xlu0 %v3894, 1
      %v3937 = vpop.permute.xlu0 %3936
      %3938 = vrot.lane.b32.xlu0 %v3895, 1
      %v3939 = vpop.permute.xlu0 %3938
      %3940 = vrot.lane.b32.xlu0 %v3896, 1
      %v3941 = vpop.permute.xlu0 %3940
      %3942 = vrot.lane.b32.xlu0 %v3897, 1
      %v3943 = vpop.permute.xlu0 %3942
      %3944 = vrot.lane.b32.xlu0 %v3898, 1
      %v3945 = vpop.permute.xlu0 %3944
      %3946 = vrot.lane.b32.xlu0 %v3899, 1
      %v3947 = vpop.permute.xlu0 %3946
      %v3948 = vsel %vm3924, 4294967295, %v3937
      %v3949 = vsel %vm3925, 4294967295, %v3939
      %v3950 = vsel %vm3926, 4294967295, %v3941
      %v3951 = vsel %vm3927, 4294967295, %v3943
      %v3952 = vsel %vm3928, 4294967295, %v3945
      %v3953 = vsel %vm3929, 4294967295, %v3947
      %v3960 = vrot.slane %v3930, 7
      %v3961 = vrot.slane %v3931, 7
      %v3962 = vrot.slane %v3932, 7
      %v3963 = vrot.slane %v3933, 7
      %v3964 = vrot.slane %v3934, 7
      %v3965 = vrot.slane %v3935, 7
      %3966 = vrot.lane.b32.xlu0 %v3960, 127
      %v3967 = vpop.permute.xlu0 %3966
      %3968 = vrot.lane.b32.xlu0 %v3961, 127
      %v3969 = vpop.permute.xlu0 %3968
      %3970 = vrot.lane.b32.xlu0 %v3962, 127
      %v3971 = vpop.permute.xlu0 %3970
      %3972 = vrot.lane.b32.xlu0 %v3963, 127
      %v3973 = vpop.permute.xlu0 %3972
      %3974 = vrot.lane.b32.xlu0 %v3964, 127
      %v3975 = vpop.permute.xlu0 %3974
      %3976 = vrot.lane.b32.xlu0 %v3965, 127
      %v3977 = vpop.permute.xlu0 %3976
      %vm3984 = vcmp.gt.f32.partialorder %v3436, %v3967
      %vm3985 = vcmp.gt.f32.partialorder %v3437, %v3969
      %vm3986 = vcmp.gt.f32.partialorder %v3438, %v3971
      %vm3987 = vcmp.gt.f32.partialorder %v3439, %v3973
      %vm3988 = vcmp.gt.f32.partialorder %v3440, %v3975
      %vm3989 = vcmp.gt.f32.partialorder %v3441, %v3977
      %v3990 = vsel %vm3984, %v3436, %v3967
      %v3991 = vsel %vm3985, %v3437, %v3969
      %v3992 = vsel %vm3986, %v3438, %v3971
      %v3993 = vsel %vm3987, %v3439, %v3973
      %v3994 = vsel %vm3988, %v3440, %v3975
      %v3995 = vsel %vm3989, %v3441, %v3977
      %v3996 = vrot.slane %v3948, 7
      %v3997 = vrot.slane %v3949, 7
      %v3998 = vrot.slane %v3950, 7
      %v3999 = vrot.slane %v3951, 7
      %v4000 = vrot.slane %v3952, 7
      %v4001 = vrot.slane %v3953, 7
      %4002 = vrot.lane.b32.xlu0 %v3996, 127
      %v4003 = vpop.permute.xlu0 %4002
      %4004 = vrot.lane.b32.xlu0 %v3997, 127
      %v4005 = vpop.permute.xlu0 %4004
      %4006 = vrot.lane.b32.xlu0 %v3998, 127
      %v4007 = vpop.permute.xlu0 %4006
      %4008 = vrot.lane.b32.xlu0 %v3999, 127
      %v4009 = vpop.permute.xlu0 %4008
      %4010 = vrot.lane.b32.xlu0 %v4000, 127
      %v4011 = vpop.permute.xlu0 %4010
      %4012 = vrot.lane.b32.xlu0 %v4001, 127
      %v4013 = vpop.permute.xlu0 %4012
      %v4014 = vsel %vm3984, 4294967295, %v4003
      %v4015 = vsel %vm3985, 4294967295, %v4005
      %v4016 = vsel %vm3986, 4294967295, %v4007
      %v4017 = vsel %vm3987, 4294967295, %v4009
      %v4018 = vsel %vm3988, 4294967295, %v4011
      %v4019 = vsel %vm3989, 4294967295, %v4013
      %4026 = vrot.lane.b32.xlu0 %v3990, 1
      %v4027 = vpop.permute.xlu0 %4026
      %4028 = vrot.lane.b32.xlu0 %v3991, 1
      %v4029 = vpop.permute.xlu0 %4028
      %4030 = vrot.lane.b32.xlu0 %v3992, 1
      %v4031 = vpop.permute.xlu0 %4030
      %4032 = vrot.lane.b32.xlu0 %v3993, 1
      %v4033 = vpop.permute.xlu0 %4032
      %4034 = vrot.lane.b32.xlu0 %v3994, 1
      %v4035 = vpop.permute.xlu0 %4034
      %4036 = vrot.lane.b32.xlu0 %v3995, 1
      %v4037 = vpop.permute.xlu0 %4036
      %vm4044 = vcmp.gt.f32.partialorder %v3436, %v4027
      %vm4045 = vcmp.gt.f32.partialorder %v3437, %v4029
      %vm4046 = vcmp.gt.f32.partialorder %v3438, %v4031
      %vm4047 = vcmp.gt.f32.partialorder %v3439, %v4033
      %vm4048 = vcmp.gt.f32.partialorder %v3440, %v4035
      %vm4049 = vcmp.gt.f32.partialorder %v3441, %v4037
      %v4050 = vsel %vm4044, %v3436, %v4027
      %v4051 = vsel %vm4045, %v3437, %v4029
      %v4052 = vsel %vm4046, %v3438, %v4031
      %v4053 = vsel %vm4047, %v3439, %v4033
      %v4054 = vsel %vm4048, %v3440, %v4035
      %v4055 = vsel %vm4049, %v3441, %v4037
      %4056 = vrot.lane.b32.xlu0 %v4014, 1
      %v4057 = vpop.permute.xlu0 %4056
      %4058 = vrot.lane.b32.xlu0 %v4015, 1
      %v4059 = vpop.permute.xlu0 %4058
      %4060 = vrot.lane.b32.xlu0 %v4016, 1
      %v4061 = vpop.permute.xlu0 %4060
      %4062 = vrot.lane.b32.xlu0 %v4017, 1
      %v4063 = vpop.permute.xlu0 %4062
      %4064 = vrot.lane.b32.xlu0 %v4018, 1
      %v4065 = vpop.permute.xlu0 %4064
      %4066 = vrot.lane.b32.xlu0 %v4019, 1
      %v4067 = vpop.permute.xlu0 %4066
      %v4068 = vsel %vm4044, 0, %v4057
      %v4069 = vsel %vm4045, 0, %v4059
      %v4070 = vsel %vm4046, 0, %v4061
      %v4071 = vsel %vm4047, 0, %v4063
      %v4072 = vsel %vm4048, 0, %v4065
      %v4073 = vsel %vm4049, 0, %v4067
      %v4080 = vrot.slane %v4050, 1
      %v4081 = vrot.slane %v4051, 1
      %v4082 = vrot.slane %v4052, 1
      %v4083 = vrot.slane %v4053, 1
      %v4084 = vrot.slane %v4054, 1
      %v4085 = vrot.slane %v4055, 1
      %4086 = vrot.lane.b32.xlu0 %v4080, 127
      %v4087 = vpop.permute.xlu0 %4086
      %4088 = vrot.lane.b32.xlu0 %v4081, 127
      %v4089 = vpop.permute.xlu0 %4088
      %4090 = vrot.lane.b32.xlu0 %v4082, 127
      %v4091 = vpop.permute.xlu0 %4090
      %4092 = vrot.lane.b32.xlu0 %v4083, 127
      %v4093 = vpop.permute.xlu0 %4092
      %4094 = vrot.lane.b32.xlu0 %v4084, 127
      %v4095 = vpop.permute.xlu0 %4094
      %4096 = vrot.lane.b32.xlu0 %v4085, 127
      %v4097 = vpop.permute.xlu0 %4096
      %vm4104 = vcmp.gt.f32.partialorder %v3437, %v4087
      %vm4105 = vcmp.gt.f32.partialorder %v3438, %v4089
      %vm4106 = vcmp.gt.f32.partialorder %v3439, %v4091
      %vm4107 = vcmp.gt.f32.partialorder %v3440, %v4093
      %vm4108 = vcmp.gt.f32.partialorder %v3441, %v4095
      %vm4109 = vcmp.gt.f32.partialorder %v3435, %v4097
      %v4110 = vsel %vm4104, %v3437, %v4087
      %v4111 = vsel %vm4105, %v3438, %v4089
      %v4112 = vsel %vm4106, %v3439, %v4091
      %v4113 = vsel %vm4107, %v3440, %v4093
      %v4114 = vsel %vm4108, %v3441, %v4095
      %v4115 = vsel %vm4109, %v3435, %v4097
      %v4116 = vrot.slane %v4068, 1
      %v4117 = vrot.slane %v4069, 1
      %v4118 = vrot.slane %v4070, 1
      %v4119 = vrot.slane %v4071, 1
      %v4120 = vrot.slane %v4072, 1
      %v4121 = vrot.slane %v4073, 1
      %4122 = vrot.lane.b32.xlu0 %v4116, 127
      %v4123 = vpop.permute.xlu0 %4122
      %4124 = vrot.lane.b32.xlu0 %v4117, 127
      %v4125 = vpop.permute.xlu0 %4124
      %4126 = vrot.lane.b32.xlu0 %v4118, 127
      %v4127 = vpop.permute.xlu0 %4126
      %4128 = vrot.lane.b32.xlu0 %v4119, 127
      %v4129 = vpop.permute.xlu0 %4128
      %4130 = vrot.lane.b32.xlu0 %v4120, 127
      %v4131 = vpop.permute.xlu0 %4130
      %4132 = vrot.lane.b32.xlu0 %v4121, 127
      %v4133 = vpop.permute.xlu0 %4132
      %v4134 = vsel %vm4104, 4294967295, %v4123
      %v4135 = vsel %vm4105, 4294967295, %v4125
      %v4136 = vsel %vm4106, 4294967295, %v4127
      %v4137 = vsel %vm4107, 4294967295, %v4129
      %v4138 = vsel %vm4108, 4294967295, %v4131
      %v4139 = vsel %vm4109, 4294967295, %v4133
      %4146 = vrot.lane.b32.xlu0 %v4110, 1
      %v4147 = vpop.permute.xlu0 %4146
      %4148 = vrot.lane.b32.xlu0 %v4111, 1
      %v4149 = vpop.permute.xlu0 %4148
      %4150 = vrot.lane.b32.xlu0 %v4112, 1
      %v4151 = vpop.permute.xlu0 %4150
      %4152 = vrot.lane.b32.xlu0 %v4113, 1
      %v4153 = vpop.permute.xlu0 %4152
      %4154 = vrot.lane.b32.xlu0 %v4114, 1
      %v4155 = vpop.permute.xlu0 %4154
      %4156 = vrot.lane.b32.xlu0 %v4115, 1
      %v4157 = vpop.permute.xlu0 %4156
      %vm4164 = vcmp.gt.f32.partialorder %v3437, %v4147
      %vm4165 = vcmp.gt.f32.partialorder %v3438, %v4149
      %vm4166 = vcmp.gt.f32.partialorder %v3439, %v4151
      %vm4167 = vcmp.gt.f32.partialorder %v3440, %v4153
      %vm4168 = vcmp.gt.f32.partialorder %v3441, %v4155
      %vm4169 = vcmp.gt.f32.partialorder %v3435, %v4157
      %v4170 = vsel %vm4164, %v3437, %v4147
      %v4171 = vsel %vm4165, %v3438, %v4149
      %v4172 = vsel %vm4166, %v3439, %v4151
      %v4173 = vsel %vm4167, %v3440, %v4153
      %v4174 = vsel %vm4168, %v3441, %v4155
      %v4175 = vsel %vm4169, %v3435, %v4157
      %4176 = vrot.lane.b32.xlu0 %v4134, 1
      %v4177 = vpop.permute.xlu0 %4176
      %4178 = vrot.lane.b32.xlu0 %v4135, 1
      %v4179 = vpop.permute.xlu0 %4178
      %4180 = vrot.lane.b32.xlu0 %v4136, 1
      %v4181 = vpop.permute.xlu0 %4180
      %4182 = vrot.lane.b32.xlu0 %v4137, 1
      %v4183 = vpop.permute.xlu0 %4182
      %4184 = vrot.lane.b32.xlu0 %v4138, 1
      %v4185 = vpop.permute.xlu0 %4184
      %4186 = vrot.lane.b32.xlu0 %v4139, 1
      %v4187 = vpop.permute.xlu0 %4186
      %v4188 = vsel %vm4164, 0, %v4177
      %v4189 = vsel %vm4165, 0, %v4179
      %v4190 = vsel %vm4166, 0, %v4181
      %v4191 = vsel %vm4167, 0, %v4183
      %v4192 = vsel %vm4168, 0, %v4185
      %v4193 = vsel %vm4169, 0, %v4187
      %v4200 = vrot.slane %v4170, 7
      %v4201 = vrot.slane %v4171, 7
      %v4202 = vrot.slane %v4172, 7
      %v4203 = vrot.slane %v4173, 7
      %v4204 = vrot.slane %v4174, 7
      %v4205 = vrot.slane %v4175, 7
      %4206 = vrot.lane.b32.xlu0 %v4200, 127
      %v4207 = vpop.permute.xlu0 %4206
      %4208 = vrot.lane.b32.xlu0 %v4201, 127
      %v4209 = vpop.permute.xlu0 %4208
      %4210 = vrot.lane.b32.xlu0 %v4202, 127
      %v4211 = vpop.permute.xlu0 %4210
      %4212 = vrot.lane.b32.xlu0 %v4203, 127
      %v4213 = vpop.permute.xlu0 %4212
      %4214 = vrot.lane.b32.xlu0 %v4204, 127
      %v4215 = vpop.permute.xlu0 %4214
      %4216 = vrot.lane.b32.xlu0 %v4205, 127
      %v4217 = vpop.permute.xlu0 %4216
      %vm4224 = vcmp.gt.f32.partialorder %v3437, %v4207
      %vm4225 = vcmp.gt.f32.partialorder %v3438, %v4209
      %vm4226 = vcmp.gt.f32.partialorder %v3439, %v4211
      %vm4227 = vcmp.gt.f32.partialorder %v3440, %v4213
      %vm4228 = vcmp.gt.f32.partialorder %v3441, %v4215
      %vm4229 = vcmp.gt.f32.partialorder %v3435, %v4217
      %v4230 = vsel %vm4224, %v3437, %v4207
      %v4231 = vsel %vm4225, %v3438, %v4209
      %v4232 = vsel %vm4226, %v3439, %v4211
      %v4233 = vsel %vm4227, %v3440, %v4213
      %v4234 = vsel %vm4228, %v3441, %v4215
      %v4235 = vsel %vm4229, %v3435, %v4217
      %v4236 = vrot.slane %v4188, 7
      %v4237 = vrot.slane %v4189, 7
      %v4238 = vrot.slane %v4190, 7
      %v4239 = vrot.slane %v4191, 7
      %v4240 = vrot.slane %v4192, 7
      %v4241 = vrot.slane %v4193, 7
      %4242 = vrot.lane.b32.xlu0 %v4236, 127
      %v4243 = vpop.permute.xlu0 %4242
      %4244 = vrot.lane.b32.xlu0 %v4237, 127
      %v4245 = vpop.permute.xlu0 %4244
      %4246 = vrot.lane.b32.xlu0 %v4238, 127
      %v4247 = vpop.permute.xlu0 %4246
      %4248 = vrot.lane.b32.xlu0 %v4239, 127
      %v4249 = vpop.permute.xlu0 %4248
      %4250 = vrot.lane.b32.xlu0 %v4240, 127
      %v4251 = vpop.permute.xlu0 %4250
      %4252 = vrot.lane.b32.xlu0 %v4241, 127
      %v4253 = vpop.permute.xlu0 %4252
      %v4254 = vsel %vm4224, 0, %v4243
      %v4255 = vsel %vm4225, 0, %v4245
      %v4256 = vsel %vm4226, 0, %v4247
      %v4257 = vsel %vm4227, 0, %v4249
      %v4258 = vsel %vm4228, 0, %v4251
      %v4259 = vsel %vm4229, 0, %v4253
      %4266 = vrot.lane.b32.xlu0 %v4230, 1
      %v4267 = vpop.permute.xlu0 %4266
      %4268 = vrot.lane.b32.xlu0 %v4231, 1
      %v4269 = vpop.permute.xlu0 %4268
      %4270 = vrot.lane.b32.xlu0 %v4232, 1
      %v4271 = vpop.permute.xlu0 %4270
      %4272 = vrot.lane.b32.xlu0 %v4233, 1
      %v4273 = vpop.permute.xlu0 %4272
      %4274 = vrot.lane.b32.xlu0 %v4234, 1
      %v4275 = vpop.permute.xlu0 %4274
      %4276 = vrot.lane.b32.xlu0 %v4235, 1
      %v4277 = vpop.permute.xlu0 %4276
      %vm4284 = vcmp.gt.f32.partialorder %v3437, %v4267
      %vm4285 = vcmp.gt.f32.partialorder %v3438, %v4269
      %vm4286 = vcmp.gt.f32.partialorder %v3439, %v4271
      %vm4287 = vcmp.gt.f32.partialorder %v3440, %v4273
      %vm4288 = vcmp.gt.f32.partialorder %v3441, %v4275
      %vm4289 = vcmp.gt.f32.partialorder %v3435, %v4277
      %v4290 = vsel %vm4284, %v3437, %v4267
      %v4291 = vsel %vm4285, %v3438, %v4269
      %v4292 = vsel %vm4286, %v3439, %v4271
      %v4293 = vsel %vm4287, %v3440, %v4273
      %v4294 = vsel %vm4288, %v3441, %v4275
      %v4295 = vsel %vm4289, %v3435, %v4277
      %4296 = vrot.lane.b32.xlu0 %v4254, 1
      %v4297 = vpop.permute.xlu0 %4296
      %4298 = vrot.lane.b32.xlu0 %v4255, 1
      %v4299 = vpop.permute.xlu0 %4298
      %4300 = vrot.lane.b32.xlu0 %v4256, 1
      %v4301 = vpop.permute.xlu0 %4300
      %4302 = vrot.lane.b32.xlu0 %v4257, 1
      %v4303 = vpop.permute.xlu0 %4302
      %4304 = vrot.lane.b32.xlu0 %v4258, 1
      %v4305 = vpop.permute.xlu0 %4304
      %4306 = vrot.lane.b32.xlu0 %v4259, 1
      %v4307 = vpop.permute.xlu0 %4306
      %v4308 = vsel %vm4284, 1, %v4297
      %v4309 = vsel %vm4285, 1, %v4299
      %v4310 = vsel %vm4286, 1, %v4301
      %v4311 = vsel %vm4287, 1, %v4303
      %v4312 = vsel %vm4288, 1, %v4305
      %v4313 = vsel %vm4289, 1, %v4307
      %v4320 = vrot.slane %v4290, 1
      %v4321 = vrot.slane %v4291, 1
      %v4322 = vrot.slane %v4292, 1
      %v4323 = vrot.slane %v4293, 1
      %v4324 = vrot.slane %v4294, 1
      %v4325 = vrot.slane %v4295, 1
      %4326 = vrot.lane.b32.xlu0 %v4320, 127
      %v4327 = vpop.permute.xlu0 %4326
      %4328 = vrot.lane.b32.xlu0 %v4321, 127
      %v4329 = vpop.permute.xlu0 %4328
      %4330 = vrot.lane.b32.xlu0 %v4322, 127
      %v4331 = vpop.permute.xlu0 %4330
      %4332 = vrot.lane.b32.xlu0 %v4323, 127
      %v4333 = vpop.permute.xlu0 %4332
      %4334 = vrot.lane.b32.xlu0 %v4324, 127
      %v4335 = vpop.permute.xlu0 %4334
      %4336 = vrot.lane.b32.xlu0 %v4325, 127
      %v4337 = vpop.permute.xlu0 %4336
      %vm4344 = vcmp.gt.f32.partialorder %v3438, %v4327
      %vm4345 = vcmp.gt.f32.partialorder %v3439, %v4329
      %vm4346 = vcmp.gt.f32.partialorder %v3440, %v4331
      %vm4347 = vcmp.gt.f32.partialorder %v3441, %v4333
      %vm4348 = vcmp.gt.f32.partialorder %v3435, %v4335
      %vm4349 = vcmp.gt.f32.partialorder %v3435, %v4337
      %v4350 = vsel %vm4344, %v3438, %v4327
      %v4351 = vsel %vm4345, %v3439, %v4329
      %v4352 = vsel %vm4346, %v3440, %v4331
      %v4353 = vsel %vm4347, %v3441, %v4333
      %v4354 = vsel %vm4348, %v3435, %v4335
      %v4355 = vsel %vm4349, %v3435, %v4337
      %v4356 = vrot.slane %v4308, 1
      %v4357 = vrot.slane %v4309, 1
      %v4358 = vrot.slane %v4310, 1
      %v4359 = vrot.slane %v4311, 1
      %v4360 = vrot.slane %v4312, 1
      %v4361 = vrot.slane %v4313, 1
      %4362 = vrot.lane.b32.xlu0 %v4356, 127
      %v4363 = vpop.permute.xlu0 %4362
      %4364 = vrot.lane.b32.xlu0 %v4357, 127
      %v4365 = vpop.permute.xlu0 %4364
      %4366 = vrot.lane.b32.xlu0 %v4358, 127
      %v4367 = vpop.permute.xlu0 %4366
      %4368 = vrot.lane.b32.xlu0 %v4359, 127
      %v4369 = vpop.permute.xlu0 %4368
      %4370 = vrot.lane.b32.xlu0 %v4360, 127
      %v4371 = vpop.permute.xlu0 %4370
      %4372 = vrot.lane.b32.xlu0 %v4361, 127
      %v4373 = vpop.permute.xlu0 %4372
      %v4374 = vsel %vm4344, 0, %v4363
      %v4375 = vsel %vm4345, 0, %v4365
      %v4376 = vsel %vm4346, 0, %v4367
      %v4377 = vsel %vm4347, 0, %v4369
      %v4378 = vsel %vm4348, 0, %v4371
      %v4379 = vsel %vm4349, 0, %v4373
      %4386 = vrot.lane.b32.xlu0 %v4350, 1
      %v4387 = vpop.permute.xlu0 %4386
      %4388 = vrot.lane.b32.xlu0 %v4351, 1
      %v4389 = vpop.permute.xlu0 %4388
      %4390 = vrot.lane.b32.xlu0 %v4352, 1
      %v4391 = vpop.permute.xlu0 %4390
      %4392 = vrot.lane.b32.xlu0 %v4353, 1
      %v4393 = vpop.permute.xlu0 %4392
      %4394 = vrot.lane.b32.xlu0 %v4354, 1
      %v4395 = vpop.permute.xlu0 %4394
      %4396 = vrot.lane.b32.xlu0 %v4355, 1
      %v4397 = vpop.permute.xlu0 %4396
      %vm4404 = vcmp.gt.f32.partialorder %v3438, %v4387
      %vm4405 = vcmp.gt.f32.partialorder %v3439, %v4389
      %vm4406 = vcmp.gt.f32.partialorder %v3440, %v4391
      %vm4407 = vcmp.gt.f32.partialorder %v3441, %v4393
      %vm4408 = vcmp.gt.f32.partialorder %v3435, %v4395
      %vm4409 = vcmp.gt.f32.partialorder %v3435, %v4397
      %v4410 = vsel %vm4404, %v3438, %v4387
      %v4411 = vsel %vm4405, %v3439, %v4389
      %v4412 = vsel %vm4406, %v3440, %v4391
      %v4413 = vsel %vm4407, %v3441, %v4393
      %v4414 = vsel %vm4408, %v3435, %v4395
      %v4415 = vsel %vm4409, %v3435, %v4397
      %4416 = vrot.lane.b32.xlu0 %v4374, 1
      %v4417 = vpop.permute.xlu0 %4416
      %4418 = vrot.lane.b32.xlu0 %v4375, 1
      %v4419 = vpop.permute.xlu0 %4418
      %4420 = vrot.lane.b32.xlu0 %v4376, 1
      %v4421 = vpop.permute.xlu0 %4420
      %4422 = vrot.lane.b32.xlu0 %v4377, 1
      %v4423 = vpop.permute.xlu0 %4422
      %4424 = vrot.lane.b32.xlu0 %v4378, 1
      %v4425 = vpop.permute.xlu0 %4424
      %4426 = vrot.lane.b32.xlu0 %v4379, 1
      %v4427 = vpop.permute.xlu0 %4426
      %v4428 = vsel %vm4404, 1, %v4417
      %v4429 = vsel %vm4405, 1, %v4419
      %v4430 = vsel %vm4406, 1, %v4421
      %v4431 = vsel %vm4407, 1, %v4423
      %v4432 = vsel %vm4408, 1, %v4425
      %v4433 = vsel %vm4409, 1, %v4427
      %v4440 = vrot.slane %v4410, 7
      %v4441 = vrot.slane %v4411, 7
      %v4442 = vrot.slane %v4412, 7
      %v4443 = vrot.slane %v4413, 7
      %v4444 = vrot.slane %v4414, 7
      %v4445 = vrot.slane %v4415, 7
      %4446 = vrot.lane.b32.xlu0 %v4440, 127
      %v4447 = vpop.permute.xlu0 %4446
      %4448 = vrot.lane.b32.xlu0 %v4441, 127
      %v4449 = vpop.permute.xlu0 %4448
      %4450 = vrot.lane.b32.xlu0 %v4442, 127
      %v4451 = vpop.permute.xlu0 %4450
      %4452 = vrot.lane.b32.xlu0 %v4443, 127
      %v4453 = vpop.permute.xlu0 %4452
      %4454 = vrot.lane.b32.xlu0 %v4444, 127
      %v4455 = vpop.permute.xlu0 %4454
      %4456 = vrot.lane.b32.xlu0 %v4445, 127
      %v4457 = vpop.permute.xlu0 %4456
      %vm4464 = vcmp.gt.f32.partialorder %v3438, %v4447
      %vm4465 = vcmp.gt.f32.partialorder %v3439, %v4449
      %vm4466 = vcmp.gt.f32.partialorder %v3440, %v4451
      %vm4467 = vcmp.gt.f32.partialorder %v3441, %v4453
      %vm4468 = vcmp.gt.f32.partialorder %v3435, %v4455
      %vm4469 = vcmp.gt.f32.partialorder %v3435, %v4457
      %v4470 = vsel %vm4464, %v3438, %v4447
      %v4471 = vsel %vm4465, %v3439, %v4449
      %v4472 = vsel %vm4466, %v3440, %v4451
      %v4473 = vsel %vm4467, %v3441, %v4453
      %v4474 = vsel %vm4468, %v3435, %v4455
      %v4475 = vsel %vm4469, %v3435, %v4457
      %v4476 = vrot.slane %v4428, 7
      %v4477 = vrot.slane %v4429, 7
      %v4478 = vrot.slane %v4430, 7
      %v4479 = vrot.slane %v4431, 7
      %v4480 = vrot.slane %v4432, 7
      %v4481 = vrot.slane %v4433, 7
      %4482 = vrot.lane.b32.xlu0 %v4476, 127
      %v4483 = vpop.permute.xlu0 %4482
      %4484 = vrot.lane.b32.xlu0 %v4477, 127
      %v4485 = vpop.permute.xlu0 %4484
      %4486 = vrot.lane.b32.xlu0 %v4478, 127
      %v4487 = vpop.permute.xlu0 %4486
      %4488 = vrot.lane.b32.xlu0 %v4479, 127
      %v4489 = vpop.permute.xlu0 %4488
      %4490 = vrot.lane.b32.xlu0 %v4480, 127
      %v4491 = vpop.permute.xlu0 %4490
      %4492 = vrot.lane.b32.xlu0 %v4481, 127
      %v4493 = vpop.permute.xlu0 %4492
      %v4494 = vsel %vm4464, 1, %v4483
      %v4495 = vsel %vm4465, 1, %v4485
      %v4496 = vsel %vm4466, 1, %v4487
      %v4497 = vsel %vm4467, 1, %v4489
      %v4498 = vsel %vm4468, 1, %v4491
      %v4499 = vsel %vm4469, 1, %v4493
      %4506 = vrot.lane.b32.xlu0 %v4470, 1
      %v4507 = vpop.permute.xlu0 %4506
      %4508 = vrot.lane.b32.xlu0 %v4471, 1
      %v4509 = vpop.permute.xlu0 %4508
      %4510 = vrot.lane.b32.xlu0 %v4472, 1
      %v4511 = vpop.permute.xlu0 %4510
      %4512 = vrot.lane.b32.xlu0 %v4473, 1
      %v4513 = vpop.permute.xlu0 %4512
      %4514 = vrot.lane.b32.xlu0 %v4474, 1
      %v4515 = vpop.permute.xlu0 %4514
      %4516 = vrot.lane.b32.xlu0 %v4475, 1
      %v4517 = vpop.permute.xlu0 %4516
      %vm4524 = vcmp.gt.f32.partialorder %v3438, %v4507
      %vm4525 = vcmp.gt.f32.partialorder %v3439, %v4509
      %vm4526 = vcmp.gt.f32.partialorder %v3440, %v4511
      %vm4527 = vcmp.gt.f32.partialorder %v3441, %v4513
      %vm4528 = vcmp.gt.f32.partialorder %v3435, %v4515
      %vm4529 = vcmp.gt.f32.partialorder %v3435, %v4517
      %v4530 = vsel %vm4524, %v3438, %v4507
      %v4531 = vsel %vm4525, %v3439, %v4509
      %v4532 = vsel %vm4526, %v3440, %v4511
      %v4533 = vsel %vm4527, %v3441, %v4513
      %v4534 = vsel %vm4528, %v3435, %v4515
      %v4535 = vsel %vm4529, %v3435, %v4517
      %4536 = vrot.lane.b32.xlu0 %v4494, 1
      %v4537 = vpop.permute.xlu0 %4536
      %4538 = vrot.lane.b32.xlu0 %v4495, 1
      %v4539 = vpop.permute.xlu0 %4538
      %4540 = vrot.lane.b32.xlu0 %v4496, 1
      %v4541 = vpop.permute.xlu0 %4540
      %4542 = vrot.lane.b32.xlu0 %v4497, 1
      %v4543 = vpop.permute.xlu0 %4542
      %4544 = vrot.lane.b32.xlu0 %v4498, 1
      %v4545 = vpop.permute.xlu0 %4544
      %4546 = vrot.lane.b32.xlu0 %v4499, 1
      %v4547 = vpop.permute.xlu0 %4546
      %v4548 = vsel %vm4524, 2, %v4537
      %v4549 = vsel %vm4525, 2, %v4539
      %v4550 = vsel %vm4526, 2, %v4541
      %v4551 = vsel %vm4527, 2, %v4543
      %v4552 = vsel %vm4528, 2, %v4545
      %v4553 = vsel %vm4529, 2, %v4547
      %v4554 = vlaneseq
      %v4555 = vshrl.u32 %v4554, 7
      %v4556 = vlaneseq
      %v4557 = vand.u32 %v4556, 127
      %v4558 = vadd.s32 %v4555, 1
      %v4559 = vadd.s32 %v4555, 2
      %v4560 = vadd.s32 %v4555, 3
      %v4561 = vadd.s32 %v4555, 4
      %v4562 = vadd.s32 %v4555, 5
      %v4563 = vadd.s32 %v4555, %v4557
      %v4564 = vadd.s32 %v4558, %v4557
      %v4565 = vadd.s32 %v4559, %v4557
      %v4566 = vadd.s32 %v4560, %v4557
      %v4567 = vadd.s32 %v4561, %v4557
      %v4568 = vadd.s32 %v4562, %v4557
      %v4569 = vrot.slane %v4548, 2
      %v4570 = vrot.slane %v4549, 2
      %v4571 = vrot.slane %v4550, 2
      %v4572 = vrot.slane %v4551, 2
      %v4573 = vrot.slane %v4552, 2
      %v4574 = vrot.slane %v4553, 2
      %4575 = vrot.lane.b32.xlu0 %v4569, 126
      %v4576 = vpop.permute.xlu0 %4575
      %4577 = vrot.lane.b32.xlu0 %v4570, 126
      %v4578 = vpop.permute.xlu0 %4577
      %4579 = vrot.lane.b32.xlu0 %v4571, 126
      %v4580 = vpop.permute.xlu0 %4579
      %4581 = vrot.lane.b32.xlu0 %v4572, 126
      %v4582 = vpop.permute.xlu0 %4581
      %4583 = vrot.lane.b32.xlu0 %v4573, 126
      %v4584 = vpop.permute.xlu0 %4583
      %4585 = vrot.lane.b32.xlu0 %v4574, 126
      %v4586 = vpop.permute.xlu0 %4585
      %v4587 = vadd.s32 %v4563, %v4576
      %v4588 = vadd.s32 %v4564, %v4578
      %v4589 = vadd.s32 %v4565, %v4580
      %v4590 = vadd.s32 %v4566, %v4582
      %v4591 = vadd.s32 %v4567, %v4584
      %v4592 = vadd.s32 %v4568, %v4586
      %4599 = vrot.lane.b32.xlu0 %v4530, 126
      %v4600 = vpop.permute.xlu0 %4599
      %4601 = vrot.lane.b32.xlu0 %v4531, 126
      %v4602 = vpop.permute.xlu0 %4601
      %4603 = vrot.lane.b32.xlu0 %v4532, 126
      %v4604 = vpop.permute.xlu0 %4603
      %4605 = vrot.lane.b32.xlu0 %v4533, 126
      %v4606 = vpop.permute.xlu0 %4605
      %4607 = vrot.lane.b32.xlu0 %v4534, 126
      %v4608 = vpop.permute.xlu0 %4607
      %4609 = vrot.lane.b32.xlu0 %v4535, 126
      %v4610 = vpop.permute.xlu0 %4609
      %vm4617 = vcmask 11266
      %4618 = vst.msk [vmem:[%s293 - $0x2] sm:$0xc] %vm4617, %v4600
      %4619 = vst.msk [vmem:[%s293] sm:$0xc] %vm4617, %v4602
      %4620 = vst.msk [vmem:[%s293 + $0x2] sm:$0xc] %vm4617, %v4604
      %4621 = vst.msk [vmem:[%s293 + $0x4] sm:$0xc] %vm4617, %v4606
      %4622 = vst.msk [vmem:[%s293 + $0x6] sm:$0xc] %vm4617, %v4608
      %4623 = vst.msk [vmem:[%s293 + $0x8] sm:$0xc] %vm4617, %v4610
      %vm4624 = vcmask 9216
      %4625 = vst.msk [vmem:[%s302] sm:$0x3] %vm4624, %v4587
      %4626 = vst.msk [vmem:[%s302 + $0x2] sm:$0x3] %vm4624, %v4588
      %4627 = vst.msk [vmem:[%s302 + $0x4] sm:$0x3] %vm4624, %v4589
      %4628 = vst.msk [vmem:[%s302 + $0x6] sm:$0x3] %vm4624, %v4590
      %4629 = vst.msk [vmem:[%s302 + $0x8] sm:$0x3] %vm4624, %v4591
      %4630 = vst.msk [vmem:[%s302 + $0xa] sm:$0x3] %vm4624, %v4592
      %v4631 = vld [vmem:[%s284] sm:$0xff]
      %v4632 = vld [vmem:[%s284 + $0x8] sm:$0xff]
      %v4633 = vld [vmem:[%s284 + $0x10] sm:$0xff]
      %v4634 = vld [vmem:[%s284 + $0x18] sm:$0xff]
      %v4635 = vld [vmem:[%s284 + $0x20] sm:$0xff]
      %v4636 = vld [vmem:[%s284 + $0x28] sm:$0xff]
      %v4637 = vld [vmem:[%s284 + $0x30] sm:$0xff]
      %v4638 = vld [vmem:[%s284 + $0x38] sm:$0xff]
      %v4639 = vld [vmem:[%s284 + $0x40] sm:$0xff]
      %v4640 = vld [vmem:[%s284 + $0x48] sm:$0xff]
      %v4641 = vld [vmem:[%s284 + $0x50] sm:$0xff]
      %v4642 = vld [vmem:[%s284 + $0x58] sm:$0xff]
      %v4643 = vld [vmem:[%s284 + $0x60] sm:$0xff]
      %v4644 = vld [vmem:[%s284 + $0x68] sm:$0xff]
      %v4645 = vld [vmem:[%s284 + $0x70] sm:$0xff]
      %v4646 = vld [vmem:[%s284 + $0x78] sm:$0xff]
      %v4647 = vld [vmem:[%s284 + $0x80] sm:$0xff]
      %v4648 = vld [vmem:[%s284 + $0x88] sm:$0xff]
      %v4649 = vld [vmem:[%s284 + $0x90] sm:$0xff]
      %v4650 = vld [vmem:[%s284 + $0x98] sm:$0xff]
      %v4651 = vld [vmem:[%s284 + $0xa0] sm:$0xff]
      %v4652 = vld [vmem:[%s284 + $0xa8] sm:$0xff]
      %v4653 = vld [vmem:[%s284 + $0xb0] sm:$0xff]
      %v4654 = vld [vmem:[%s284 + $0xb8] sm:$0xff]
      %v4655 = vld [vmem:[%s284 + $0xc0] sm:$0xff]
      %v4656 = vld [vmem:[%s284 + $0xc8] sm:$0xff]
      %v4657 = vld [vmem:[%s284 + $0xd0] sm:$0xff]
      %v4658 = vld [vmem:[%s284 + $0xd8] sm:$0xff]
      %v4659 = vld [vmem:[%s284 + $0xe0] sm:$0xff]
      %v4660 = vld [vmem:[%s284 + $0xe8] sm:$0xff]
      %v4661 = vld [vmem:[%s284 + $0xf0] sm:$0xff]
      %v4662 = vld [vmem:[%s284 + $0xf8] sm:$0xff]
      %v4663 = vld [vmem:[%s284 + $0x100] sm:$0xff]
      %v4664 = vld [vmem:[%s284 + $0x108] sm:$0xff]
      %v4665 = vld [vmem:[%s284 + $0x110] sm:$0xff]
      %v4666 = vld [vmem:[%s284 + $0x118] sm:$0xff]
      %v4667 = vld [vmem:[%s284 + $0x120] sm:$0xff]
      %v4668 = vld [vmem:[%s284 + $0x128] sm:$0xff]
      %v4669 = vld [vmem:[%s284 + $0x130] sm:$0xff]
      %v4670 = vld [vmem:[%s284 + $0x138] sm:$0xff]
      %v4671 = vld [vmem:[%s284 + $0x140] sm:$0xff]
      %v4672 = vld [vmem:[%s284 + $0x148] sm:$0xff]
      %v4673 = vld [vmem:[%s284 + $0x150] sm:$0xff]
      %v4674 = vld [vmem:[%s284 + $0x158] sm:$0xff]
      %v4675 = vld [vmem:[%s284 + $0x160] sm:$0xff]
      %v4676 = vld [vmem:[%s284 + $0x168] sm:$0xff]
      %v4677 = vld [vmem:[%s284 + $0x170] sm:$0xff]
      %v4678 = vld [vmem:[%s284 + $0x178] sm:$0xff]
      %v4679 = vld [vmem:[%s284 + $0x180] sm:$0xff]
      %v4680 = vld [vmem:[%s284 + $0x188] sm:$0xff]
      %v4681 = vld [vmem:[%s284 + $0x190] sm:$0xff]
      %v4682 = vld [vmem:[%s284 + $0x198] sm:$0xff]
      %v4683 = vld [vmem:[%s284 + $0x1a0] sm:$0xff]
      %v4684 = vld [vmem:[%s284 + $0x1a8] sm:$0xff]
      %v4685 = vld [vmem:[%s284 + $0x1b0] sm:$0xff]
      %v4686 = vld [vmem:[%s284 + $0x1b8] sm:$0xff]
      %v4687 = vld [vmem:[%s284 + $0x1c0] sm:$0xff]
      %v4688 = vld [vmem:[%s284 + $0x1c8] sm:$0xff]
      %v4689 = vld [vmem:[%s284 + $0x1d0] sm:$0xff]
      %v4690 = vld [vmem:[%s284 + $0x1d8] sm:$0xff]
      %v4691 = vld [vmem:[%s284 + $0x1e0] sm:$0xff]
      %v4692 = vld [vmem:[%s284 + $0x1e8] sm:$0xff]
      %v4693 = vld [vmem:[%s284 + $0x1f0] sm:$0xff]
      %v4694 = vld [vmem:[%s284 + $0x1f8] sm:$0xff]
      %v4695 = vld [vmem:[%s284 + $0x200] sm:$0xff]
      %v4696 = vld [vmem:[%s284 + $0x208] sm:$0xff]
      %v4697 = vld [vmem:[%s284 + $0x210] sm:$0xff]
      %v4698 = vld [vmem:[%s284 + $0x218] sm:$0xff]
      %v4699 = vld [vmem:[%s284 + $0x220] sm:$0xff]
      %v4700 = vld [vmem:[%s284 + $0x228] sm:$0xff]
      %v4701 = vld [vmem:[%s284 + $0x230] sm:$0xff]
      %v4702 = vld [vmem:[%s284 + $0x238] sm:$0xff]
      %v4703 = vld [vmem:[%s284 + $0x240] sm:$0xff]
      %v4704 = vld [vmem:[%s284 + $0x248] sm:$0xff]
      %v4705 = vld [vmem:[%s284 + $0x250] sm:$0xff]
      %v4706 = vld [vmem:[%s284 + $0x258] sm:$0xff]
      %v4707 = vld [vmem:[%s284 + $0x260] sm:$0xff]
      %v4708 = vld [vmem:[%s284 + $0x268] sm:$0xff]
      %v4709 = vld [vmem:[%s284 + $0x270] sm:$0xff]
      %v4710 = vld [vmem:[%s284 + $0x278] sm:$0xff]
      %v4711 = vld [vmem:[%s284 + $0x280] sm:$0xff]
      %v4712 = vld [vmem:[%s284 + $0x288] sm:$0xff]
      %v4713 = vld [vmem:[%s284 + $0x290] sm:$0xff]
      %v4714 = vld [vmem:[%s284 + $0x298] sm:$0xff]
      %v4715 = vld [vmem:[%s284 + $0x2a0] sm:$0xff]
      %v4716 = vld [vmem:[%s284 + $0x2a8] sm:$0xff]
      %v4717 = vld [vmem:[%s284 + $0x2b0] sm:$0xff]
      %v4718 = vld [vmem:[%s284 + $0x2b8] sm:$0xff]
      %v4719 = vld [vmem:[%s284 + $0x2c0] sm:$0xff]
      %v4720 = vld [vmem:[%s284 + $0x2c8] sm:$0xff]
      %v4721 = vld [vmem:[%s284 + $0x2d0] sm:$0xff]
      %v4722 = vld [vmem:[%s284 + $0x2d8] sm:$0xff]
      %v4723 = vld [vmem:[%s284 + $0x2e0] sm:$0xff]
      %v4724 = vld [vmem:[%s284 + $0x2e8] sm:$0xff]
      %v4725 = vld [vmem:[%s284 + $0x2f0] sm:$0xff]
      %v4726 = vld [vmem:[%s284 + $0x2f8] sm:$0xff]
      %v4727 = vld [vmem:[%s284 + $0x300] sm:$0xff]
      %v4728 = vld [vmem:[%s284 + $0x308] sm:$0xff]
      %v4729 = vld [vmem:[%s284 + $0x310] sm:$0xff]
      %v4730 = vld [vmem:[%s284 + $0x318] sm:$0xff]
      %v4731 = vld [vmem:[%s284 + $0x320] sm:$0xff]
      %v4732 = vld [vmem:[%s284 + $0x328] sm:$0xff]
      %v4733 = vld [vmem:[%s284 + $0x330] sm:$0xff]
      %v4734 = vld [vmem:[%s284 + $0x338] sm:$0xff]
      %v4735 = vld [vmem:[%s284 + $0x340] sm:$0xff]
      %v4736 = vld [vmem:[%s284 + $0x348] sm:$0xff]
      %v4737 = vld [vmem:[%s284 + $0x350] sm:$0xff]
      %v4738 = vld [vmem:[%s284 + $0x358] sm:$0xff]
      %v4739 = vld [vmem:[%s284 + $0x360] sm:$0xff]
      %v4740 = vld [vmem:[%s284 + $0x368] sm:$0xff]
      %v4741 = vld [vmem:[%s284 + $0x370] sm:$0xff]
      %v4742 = vld [vmem:[%s284 + $0x378] sm:$0xff]
      %v4743 = vld [vmem:[%s284 + $0x380] sm:$0xff]
      %v4744 = vld [vmem:[%s284 + $0x388] sm:$0xff]
      %v4745 = vld [vmem:[%s284 + $0x390] sm:$0xff]
      %v4746 = vld [vmem:[%s284 + $0x398] sm:$0xff]
      %v4747 = vld [vmem:[%s284 + $0x3a0] sm:$0xff]
      %v4748 = vld [vmem:[%s284 + $0x3a8] sm:$0xff]
      %v4749 = vld [vmem:[%s284 + $0x3b0] sm:$0xff]
      %v4750 = vld [vmem:[%s284 + $0x3b8] sm:$0xff]
      %v4751 = vld [vmem:[%s284 + $0x3c0] sm:$0xff]
      %v4752 = vld [vmem:[%s284 + $0x3c8] sm:$0xff]
      %v4753 = vld [vmem:[%s284 + $0x3d0] sm:$0xff]
      %v4754 = vld [vmem:[%s284 + $0x3d8] sm:$0xff]
      %v4755 = vld [vmem:[%s284 + $0x3e0] sm:$0xff]
      %v4756 = vld [vmem:[%s284 + $0x3e8] sm:$0xff]
      %v4757 = vld [vmem:[%s284 + $0x3f0] sm:$0xff]
      %v4758 = vld [vmem:[%s284 + $0x3f8] sm:$0xff]
      %v4759 = vld [vmem:[%s284 + $0x400] sm:$0xff]
      %v4760 = vld [vmem:[%s284 + $0x408] sm:$0xff]
      %v4761 = vld [vmem:[%s284 + $0x410] sm:$0xff]
      %v4762 = vld [vmem:[%s284 + $0x418] sm:$0xff]
      %v4763 = vmax.f32 %v4631, %v4635
      %v4764 = vmax.f32 %v4632, %v4636
      %v4765 = vmax.f32 %v4633, %v4637
      %v4766 = vmax.f32 %v4634, %v4638
      %v4767 = vmax.f32 %v4643, %v4647
      %v4768 = vmax.f32 %v4644, %v4648
      %v4769 = vmax.f32 %v4645, %v4649
      %v4770 = vmax.f32 %v4646, %v4650
      %v4771 = vmax.f32 %v4655, %v4659
      %v4772 = vmax.f32 %v4656, %v4660
      %v4773 = vmax.f32 %v4657, %v4661
      %v4774 = vmax.f32 %v4658, %v4662
      %v4775 = vmax.f32 %v4667, %v4671
      %v4776 = vmax.f32 %v4668, %v4672
      %v4777 = vmax.f32 %v4669, %v4673
      %v4778 = vmax.f32 %v4670, %v4674
      %v4779 = vmax.f32 %v4679, %v4683
      %v4780 = vmax.f32 %v4680, %v4684
      %v4781 = vmax.f32 %v4681, %v4685
      %v4782 = vmax.f32 %v4682, %v4686
      %v4783 = vmax.f32 %v4691, %v4695
      %v4784 = vmax.f32 %v4692, %v4696
      %v4785 = vmax.f32 %v4693, %v4697
      %v4786 = vmax.f32 %v4694, %v4698
      %v4787 = vmax.f32 %v4703, %v4707
      %v4788 = vmax.f32 %v4704, %v4708
      %v4789 = vmax.f32 %v4705, %v4709
      %v4790 = vmax.f32 %v4706, %v4710
      %v4791 = vmax.f32 %v4715, %v4719
      %v4792 = vmax.f32 %v4716, %v4720
      %v4793 = vmax.f32 %v4717, %v4721
      %v4794 = vmax.f32 %v4718, %v4722
      %v4795 = vmax.f32 %v4727, %v4731
      %v4796 = vmax.f32 %v4728, %v4732
      %v4797 = vmax.f32 %v4729, %v4733
      %v4798 = vmax.f32 %v4730, %v4734
      %v4799 = vmax.f32 %v4739, %v4743
      %v4800 = vmax.f32 %v4740, %v4744
      %v4801 = vmax.f32 %v4741, %v4745
      %v4802 = vmax.f32 %v4742, %v4746
      %v4803 = vmax.f32 %v4751, %v4755
      %v4804 = vmax.f32 %v4752, %v4756
      %v4805 = vmax.f32 %v4753, %v4757
      %v4806 = vmax.f32 %v4754, %v4758
      %v4807 = vmax.f32 %v4763, %v4639
      %v4808 = vmax.f32 %v4764, %v4640
      %v4809 = vmax.f32 %v4765, %v4641
      %v4810 = vmax.f32 %v4766, %v4642
      %v4811 = vmax.f32 %v4767, %v4651
      %v4812 = vmax.f32 %v4768, %v4652
      %v4813 = vmax.f32 %v4769, %v4653
      %v4814 = vmax.f32 %v4770, %v4654
      %v4815 = vmax.f32 %v4771, %v4663
      %v4816 = vmax.f32 %v4772, %v4664
      %v4817 = vmax.f32 %v4773, %v4665
      %v4818 = vmax.f32 %v4774, %v4666
      %v4819 = vmax.f32 %v4775, %v4675
      %v4820 = vmax.f32 %v4776, %v4676
      %v4821 = vmax.f32 %v4777, %v4677
      %v4822 = vmax.f32 %v4778, %v4678
      %v4823 = vmax.f32 %v4779, %v4687
      %v4824 = vmax.f32 %v4780, %v4688
      %v4825 = vmax.f32 %v4781, %v4689
      %v4826 = vmax.f32 %v4782, %v4690
      %v4827 = vmax.f32 %v4783, %v4699
      %v4828 = vmax.f32 %v4784, %v4700
      %v4829 = vmax.f32 %v4785, %v4701
      %v4830 = vmax.f32 %v4786, %v4702
      %v4831 = vmax.f32 %v4787, %v4711
      %v4832 = vmax.f32 %v4788, %v4712
      %v4833 = vmax.f32 %v4789, %v4713
      %v4834 = vmax.f32 %v4790, %v4714
      %v4835 = vmax.f32 %v4791, %v4723
      %v4836 = vmax.f32 %v4792, %v4724
      %v4837 = vmax.f32 %v4793, %v4725
      %v4838 = vmax.f32 %v4794, %v4726
      %v4839 = vmax.f32 %v4795, %v4735
      %v4840 = vmax.f32 %v4796, %v4736
      %v4841 = vmax.f32 %v4797, %v4737
      %v4842 = vmax.f32 %v4798, %v4738
      %v4843 = vmax.f32 %v4799, %v4747
      %v4844 = vmax.f32 %v4800, %v4748
      %v4845 = vmax.f32 %v4801, %v4749
      %v4846 = vmax.f32 %v4802, %v4750
      %v4847 = vmax.f32 %v4803, %v4759
      %v4848 = vmax.f32 %v4804, %v4760
      %v4849 = vmax.f32 %v4805, %v4761
      %v4850 = vmax.f32 %v4806, %v4762
      %v4895 = vrot.slane %v4807, 1
      %v4896 = vrot.slane %v4808, 1
      %v4897 = vsel %vm551, %v4895, %v4896
      %v4898 = vrot.slane %v4809, 1
      %v4899 = vsel %vm551, %v4896, %v4898
      %v4900 = vrot.slane %v4810, 1
      %v4901 = vsel %vm551, %v4898, %v4900
      %v4902 = vrot.slane %v4811, 1
      %v4903 = vrot.slane %v4812, 1
      %v4904 = vsel %vm551, %v4902, %v4903
      %v4905 = vrot.slane %v4813, 1
      %v4906 = vsel %vm551, %v4903, %v4905
      %v4907 = vrot.slane %v4814, 1
      %v4908 = vsel %vm551, %v4905, %v4907
      %v4909 = vrot.slane %v4815, 1
      %v4910 = vrot.slane %v4816, 1
      %v4911 = vsel %vm551, %v4909, %v4910
      %v4912 = vrot.slane %v4817, 1
      %v4913 = vsel %vm551, %v4910, %v4912
      %v4914 = vrot.slane %v4818, 1
      %v4915 = vsel %vm551, %v4912, %v4914
      %v4916 = vrot.slane %v4819, 1
      %v4917 = vrot.slane %v4820, 1
      %v4918 = vsel %vm551, %v4916, %v4917
      %v4919 = vrot.slane %v4821, 1
      %v4920 = vsel %vm551, %v4917, %v4919
      %v4921 = vrot.slane %v4822, 1
      %v4922 = vsel %vm551, %v4919, %v4921
      %v4923 = vrot.slane %v4823, 1
      %v4924 = vrot.slane %v4824, 1
      %v4925 = vsel %vm551, %v4923, %v4924
      %v4926 = vrot.slane %v4825, 1
      %v4927 = vsel %vm551, %v4924, %v4926
      %v4928 = vrot.slane %v4826, 1
      %v4929 = vsel %vm551, %v4926, %v4928
      %v4930 = vrot.slane %v4827, 1
      %v4931 = vrot.slane %v4828, 1
      %v4932 = vsel %vm551, %v4930, %v4931
      %v4933 = vrot.slane %v4829, 1
      %v4934 = vsel %vm551, %v4931, %v4933
      %v4935 = vrot.slane %v4830, 1
      %v4936 = vsel %vm551, %v4933, %v4935
      %v4937 = vrot.slane %v4831, 1
      %v4938 = vrot.slane %v4832, 1
      %v4939 = vsel %vm551, %v4937, %v4938
      %v4940 = vrot.slane %v4833, 1
      %v4941 = vsel %vm551, %v4938, %v4940
      %v4942 = vrot.slane %v4834, 1
      %v4943 = vsel %vm551, %v4940, %v4942
      %v4944 = vrot.slane %v4835, 1
      %v4945 = vrot.slane %v4836, 1
      %v4946 = vsel %vm551, %v4944, %v4945
      %v4947 = vrot.slane %v4837, 1
      %v4948 = vsel %vm551, %v4945, %v4947
      %v4949 = vrot.slane %v4838, 1
      %v4950 = vsel %vm551, %v4947, %v4949
      %v4951 = vrot.slane %v4839, 1
      %v4952 = vrot.slane %v4840, 1
      %v4953 = vsel %vm551, %v4951, %v4952
      %v4954 = vrot.slane %v4841, 1
      %v4955 = vsel %vm551, %v4952, %v4954
      %v4956 = vrot.slane %v4842, 1
      %v4957 = vsel %vm551, %v4954, %v4956
      %v4958 = vrot.slane %v4843, 1
      %v4959 = vrot.slane %v4844, 1
      %v4960 = vsel %vm551, %v4958, %v4959
      %v4961 = vrot.slane %v4845, 1
      %v4962 = vsel %vm551, %v4959, %v4961
      %v4963 = vrot.slane %v4846, 1
      %v4964 = vsel %vm551, %v4961, %v4963
      %v4965 = vrot.slane %v4847, 1
      %v4966 = vrot.slane %v4848, 1
      %v4967 = vsel %vm551, %v4965, %v4966
      %v4968 = vrot.slane %v4849, 1
      %v4969 = vsel %vm551, %v4966, %v4968
      %v4970 = vrot.slane %v4850, 1
      %v4971 = vsel %vm551, %v4968, %v4970
      %v5016 = vmax.f32 %v4807, %v4897
      %v5017 = vmax.f32 %v4808, %v4899
      %v5018 = vmax.f32 %v4809, %v4901
      %v5019 = vmax.f32 %v4810, %v4900
      %v5020 = vmax.f32 %v4811, %v4904
      %v5021 = vmax.f32 %v4812, %v4906
      %v5022 = vmax.f32 %v4813, %v4908
      %v5023 = vmax.f32 %v4814, %v4907
      %v5024 = vmax.f32 %v4815, %v4911
      %v5025 = vmax.f32 %v4816, %v4913
      %v5026 = vmax.f32 %v4817, %v4915
      %v5027 = vmax.f32 %v4818, %v4914
      %v5028 = vmax.f32 %v4819, %v4918
      %v5029 = vmax.f32 %v4820, %v4920
      %v5030 = vmax.f32 %v4821, %v4922
      %v5031 = vmax.f32 %v4822, %v4921
      %v5032 = vmax.f32 %v4823, %v4925
      %v5033 = vmax.f32 %v4824, %v4927
      %v5034 = vmax.f32 %v4825, %v4929
      %v5035 = vmax.f32 %v4826, %v4928
      %v5036 = vmax.f32 %v4827, %v4932
      %v5037 = vmax.f32 %v4828, %v4934
      %v5038 = vmax.f32 %v4829, %v4936
      %v5039 = vmax.f32 %v4830, %v4935
      %v5040 = vmax.f32 %v4831, %v4939
      %v5041 = vmax.f32 %v4832, %v4941
      %v5042 = vmax.f32 %v4833, %v4943
      %v5043 = vmax.f32 %v4834, %v4942
      %v5044 = vmax.f32 %v4835, %v4946
      %v5045 = vmax.f32 %v4836, %v4948
      %v5046 = vmax.f32 %v4837, %v4950
      %v5047 = vmax.f32 %v4838, %v4949
      %v5048 = vmax.f32 %v4839, %v4953
      %v5049 = vmax.f32 %v4840, %v4955
      %v5050 = vmax.f32 %v4841, %v4957
      %v5051 = vmax.f32 %v4842, %v4956
      %v5052 = vmax.f32 %v4843, %v4960
      %v5053 = vmax.f32 %v4844, %v4962
      %v5054 = vmax.f32 %v4845, %v4964
      %v5055 = vmax.f32 %v4846, %v4963
      %v5056 = vmax.f32 %v4847, %v4967
      %v5057 = vmax.f32 %v4848, %v4969
      %v5058 = vmax.f32 %v4849, %v4971
      %v5059 = vmax.f32 %v4850, %v4970
      %v5060 = vrot.slane %v4807, 2
      %v5061 = vrot.slane %v4808, 2
      %v5062 = vsel %vm702, %v5060, %v5061
      %v5063 = vrot.slane %v4809, 2
      %v5064 = vsel %vm702, %v5061, %v5063
      %v5065 = vrot.slane %v4810, 2
      %v5066 = vsel %vm702, %v5063, %v5065
      %v5067 = vrot.slane %v4811, 2
      %v5068 = vrot.slane %v4812, 2
      %v5069 = vsel %vm702, %v5067, %v5068
      %v5070 = vrot.slane %v4813, 2
      %v5071 = vsel %vm702, %v5068, %v5070
      %v5072 = vrot.slane %v4814, 2
      %v5073 = vsel %vm702, %v5070, %v5072
      %v5074 = vrot.slane %v4815, 2
      %v5075 = vrot.slane %v4816, 2
      %v5076 = vsel %vm702, %v5074, %v5075
      %v5077 = vrot.slane %v4817, 2
      %v5078 = vsel %vm702, %v5075, %v5077
      %v5079 = vrot.slane %v4818, 2
      %v5080 = vsel %vm702, %v5077, %v5079
      %v5081 = vrot.slane %v4819, 2
      %v5082 = vrot.slane %v4820, 2
      %v5083 = vsel %vm702, %v5081, %v5082
      %v5084 = vrot.slane %v4821, 2
      %v5085 = vsel %vm702, %v5082, %v5084
      %v5086 = vrot.slane %v4822, 2
      %v5087 = vsel %vm702, %v5084, %v5086
      %v5088 = vrot.slane %v4823, 2
      %v5089 = vrot.slane %v4824, 2
      %v5090 = vsel %vm702, %v5088, %v5089
      %v5091 = vrot.slane %v4825, 2
      %v5092 = vsel %vm702, %v5089, %v5091
      %v5093 = vrot.slane %v4826, 2
      %v5094 = vsel %vm702, %v5091, %v5093
      %v5095 = vrot.slane %v4827, 2
      %v5096 = vrot.slane %v4828, 2
      %v5097 = vsel %vm702, %v5095, %v5096
      %v5098 = vrot.slane %v4829, 2
      %v5099 = vsel %vm702, %v5096, %v5098
      %v5100 = vrot.slane %v4830, 2
      %v5101 = vsel %vm702, %v5098, %v5100
      %v5102 = vrot.slane %v4831, 2
      %v5103 = vrot.slane %v4832, 2
      %v5104 = vsel %vm702, %v5102, %v5103
      %v5105 = vrot.slane %v4833, 2
      %v5106 = vsel %vm702, %v5103, %v5105
      %v5107 = vrot.slane %v4834, 2
      %v5108 = vsel %vm702, %v5105, %v5107
      %v5109 = vrot.slane %v4835, 2
      %v5110 = vrot.slane %v4836, 2
      %v5111 = vsel %vm702, %v5109, %v5110
      %v5112 = vrot.slane %v4837, 2
      %v5113 = vsel %vm702, %v5110, %v5112
      %v5114 = vrot.slane %v4838, 2
      %v5115 = vsel %vm702, %v5112, %v5114
      %v5116 = vrot.slane %v4839, 2
      %v5117 = vrot.slane %v4840, 2
      %v5118 = vsel %vm702, %v5116, %v5117
      %v5119 = vrot.slane %v4841, 2
      %v5120 = vsel %vm702, %v5117, %v5119
      %v5121 = vrot.slane %v4842, 2
      %v5122 = vsel %vm702, %v5119, %v5121
      %v5123 = vrot.slane %v4843, 2
      %v5124 = vrot.slane %v4844, 2
      %v5125 = vsel %vm702, %v5123, %v5124
      %v5126 = vrot.slane %v4845, 2
      %v5127 = vsel %vm702, %v5124, %v5126
      %v5128 = vrot.slane %v4846, 2
      %v5129 = vsel %vm702, %v5126, %v5128
      %v5130 = vrot.slane %v4847, 2
      %v5131 = vrot.slane %v4848, 2
      %v5132 = vsel %vm702, %v5130, %v5131
      %v5133 = vrot.slane %v4849, 2
      %v5134 = vsel %vm702, %v5131, %v5133
      %v5135 = vrot.slane %v4850, 2
      %v5136 = vsel %vm702, %v5133, %v5135
      %v5181 = vmax.f32 %v5016, %v5062
      %v5182 = vmax.f32 %v5017, %v5064
      %v5183 = vmax.f32 %v5018, %v5066
      %v5184 = vmax.f32 %v5019, %v5065
      %v5185 = vmax.f32 %v5020, %v5069
      %v5186 = vmax.f32 %v5021, %v5071
      %v5187 = vmax.f32 %v5022, %v5073
      %v5188 = vmax.f32 %v5023, %v5072
      %v5189 = vmax.f32 %v5024, %v5076
      %v5190 = vmax.f32 %v5025, %v5078
      %v5191 = vmax.f32 %v5026, %v5080
      %v5192 = vmax.f32 %v5027, %v5079
      %v5193 = vmax.f32 %v5028, %v5083
      %v5194 = vmax.f32 %v5029, %v5085
      %v5195 = vmax.f32 %v5030, %v5087
      %v5196 = vmax.f32 %v5031, %v5086
      %v5197 = vmax.f32 %v5032, %v5090
      %v5198 = vmax.f32 %v5033, %v5092
      %v5199 = vmax.f32 %v5034, %v5094
      %v5200 = vmax.f32 %v5035, %v5093
      %v5201 = vmax.f32 %v5036, %v5097
      %v5202 = vmax.f32 %v5037, %v5099
      %v5203 = vmax.f32 %v5038, %v5101
      %v5204 = vmax.f32 %v5039, %v5100
      %v5205 = vmax.f32 %v5040, %v5104
      %v5206 = vmax.f32 %v5041, %v5106
      %v5207 = vmax.f32 %v5042, %v5108
      %v5208 = vmax.f32 %v5043, %v5107
      %v5209 = vmax.f32 %v5044, %v5111
      %v5210 = vmax.f32 %v5045, %v5113
      %v5211 = vmax.f32 %v5046, %v5115
      %v5212 = vmax.f32 %v5047, %v5114
      %v5213 = vmax.f32 %v5048, %v5118
      %v5214 = vmax.f32 %v5049, %v5120
      %v5215 = vmax.f32 %v5050, %v5122
      %v5216 = vmax.f32 %v5051, %v5121
      %v5217 = vmax.f32 %v5052, %v5125
      %v5218 = vmax.f32 %v5053, %v5127
      %v5219 = vmax.f32 %v5054, %v5129
      %v5220 = vmax.f32 %v5055, %v5128
      %v5221 = vmax.f32 %v5056, %v5132
      %v5222 = vmax.f32 %v5057, %v5134
      %v5223 = vmax.f32 %v5058, %v5136
      %v5224 = vmax.f32 %v5059, %v5135
      %v5236 = vrot.slane %v5181, 2
      %v5237 = vrot.slane %v5185, 2
      %v5238 = vrot.slane %v5189, 2
      %v5239 = vrot.slane %v5193, 2
      %v5240 = vrot.slane %v5197, 2
      %v5241 = vrot.slane %v5201, 2
      %v5242 = vrot.slane %v5205, 2
      %v5243 = vrot.slane %v5209, 2
      %v5244 = vrot.slane %v5213, 2
      %v5245 = vrot.slane %v5217, 2
      %v5246 = vrot.slane %v5221, 2
      %v5258 = vrot.slane %v5181, 4
      %v5259 = vrot.slane %v5185, 4
      %v5260 = vrot.slane %v5189, 4
      %v5261 = vrot.slane %v5193, 4
      %v5262 = vrot.slane %v5197, 4
      %v5263 = vrot.slane %v5201, 4
      %v5264 = vrot.slane %v5205, 4
      %v5265 = vrot.slane %v5209, 4
      %v5266 = vrot.slane %v5213, 4
      %v5267 = vrot.slane %v5217, 4
      %v5268 = vrot.slane %v5221, 4
      %v5291 = vrot.slane %v5182, 6
      %v5292 = vrot.slane %v5186, 6
      %v5293 = vrot.slane %v5190, 6
      %v5294 = vrot.slane %v5194, 6
      %v5295 = vrot.slane %v5198, 6
      %v5296 = vrot.slane %v5202, 6
      %v5297 = vrot.slane %v5206, 6
      %v5298 = vrot.slane %v5210, 6
      %v5299 = vrot.slane %v5214, 6
      %v5300 = vrot.slane %v5218, 6
      %v5301 = vrot.slane %v5222, 6
      %v5313 = vrot.slane %v5182, 2
      %v5314 = vrot.slane %v5186, 2
      %v5315 = vrot.slane %v5190, 2
      %v5316 = vrot.slane %v5194, 2
      %v5317 = vrot.slane %v5198, 2
      %v5318 = vrot.slane %v5202, 2
      %v5319 = vrot.slane %v5206, 2
      %v5320 = vrot.slane %v5210, 2
      %v5321 = vrot.slane %v5214, 2
      %v5322 = vrot.slane %v5218, 2
      %v5323 = vrot.slane %v5222, 2
      %v5346 = vrot.slane %v5183, 4
      %v5347 = vrot.slane %v5187, 4
      %v5348 = vrot.slane %v5191, 4
      %v5349 = vrot.slane %v5195, 4
      %v5350 = vrot.slane %v5199, 4
      %v5351 = vrot.slane %v5203, 4
      %v5352 = vrot.slane %v5207, 4
      %v5353 = vrot.slane %v5211, 4
      %v5354 = vrot.slane %v5215, 4
      %v5355 = vrot.slane %v5219, 4
      %v5356 = vrot.slane %v5223, 4
      %v5368 = vrot.slane %v5183, 6
      %v5369 = vrot.slane %v5187, 6
      %v5370 = vrot.slane %v5191, 6
      %v5371 = vrot.slane %v5195, 6
      %v5372 = vrot.slane %v5199, 6
      %v5373 = vrot.slane %v5203, 6
      %v5374 = vrot.slane %v5207, 6
      %v5375 = vrot.slane %v5211, 6
      %v5376 = vrot.slane %v5215, 6
      %v5377 = vrot.slane %v5219, 6
      %v5378 = vrot.slane %v5223, 6
      %v5401 = vrot.slane %v5184, 2
      %v5402 = vrot.slane %v5188, 2
      %v5403 = vrot.slane %v5192, 2
      %v5404 = vrot.slane %v5196, 2
      %v5405 = vrot.slane %v5200, 2
      %v5406 = vrot.slane %v5204, 2
      %v5407 = vrot.slane %v5208, 2
      %v5408 = vrot.slane %v5212, 2
      %v5409 = vrot.slane %v5216, 2
      %v5410 = vrot.slane %v5220, 2
      %v5411 = vrot.slane %v5224, 2
      %v5423 = vsel %vm1033, %v5181, %v5236
      %v5424 = vsel %vm1033, %v5185, %v5237
      %v5425 = vsel %vm1033, %v5189, %v5238
      %v5426 = vsel %vm1033, %v5193, %v5239
      %v5427 = vsel %vm1033, %v5197, %v5240
      %v5428 = vsel %vm1033, %v5201, %v5241
      %v5429 = vsel %vm1033, %v5205, %v5242
      %v5430 = vsel %vm1033, %v5209, %v5243
      %v5431 = vsel %vm1033, %v5213, %v5244
      %v5432 = vsel %vm1033, %v5217, %v5245
      %v5433 = vsel %vm1033, %v5221, %v5246
      %v5434 = vsel %vm1044, %v5423, %v5258
      %v5435 = vsel %vm1044, %v5424, %v5259
      %v5436 = vsel %vm1044, %v5425, %v5260
      %v5437 = vsel %vm1044, %v5426, %v5261
      %v5438 = vsel %vm1044, %v5427, %v5262
      %v5439 = vsel %vm1044, %v5428, %v5263
      %v5440 = vsel %vm1044, %v5429, %v5264
      %v5441 = vsel %vm1044, %v5430, %v5265
      %v5442 = vsel %vm1044, %v5431, %v5266
      %v5443 = vsel %vm1044, %v5432, %v5267
      %v5444 = vsel %vm1044, %v5433, %v5268
      %v5445 = vsel %vm1055, %v5434, %v5291
      %v5446 = vsel %vm1055, %v5435, %v5292
      %v5447 = vsel %vm1055, %v5436, %v5293
      %v5448 = vsel %vm1055, %v5437, %v5294
      %v5449 = vsel %vm1055, %v5438, %v5295
      %v5450 = vsel %vm1055, %v5439, %v5296
      %v5451 = vsel %vm1055, %v5440, %v5297
      %v5452 = vsel %vm1055, %v5441, %v5298
      %v5453 = vsel %vm1055, %v5442, %v5299
      %v5454 = vsel %vm1055, %v5443, %v5300
      %v5455 = vsel %vm1055, %v5444, %v5301
      %v5456 = vsel %vm1066, %v5445, %v5182
      %v5457 = vsel %vm1066, %v5446, %v5186
      %v5458 = vsel %vm1066, %v5447, %v5190
      %v5459 = vsel %vm1066, %v5448, %v5194
      %v5460 = vsel %vm1066, %v5449, %v5198
      %v5461 = vsel %vm1066, %v5450, %v5202
      %v5462 = vsel %vm1066, %v5451, %v5206
      %v5463 = vsel %vm1066, %v5452, %v5210
      %v5464 = vsel %vm1066, %v5453, %v5214
      %v5465 = vsel %vm1066, %v5454, %v5218
      %v5466 = vsel %vm1066, %v5455, %v5222
      %v5467 = vsel %vm1077, %v5456, %v5313
      %v5468 = vsel %vm1077, %v5457, %v5314
      %v5469 = vsel %vm1077, %v5458, %v5315
      %v5470 = vsel %vm1077, %v5459, %v5316
      %v5471 = vsel %vm1077, %v5460, %v5317
      %v5472 = vsel %vm1077, %v5461, %v5318
      %v5473 = vsel %vm1077, %v5462, %v5319
      %v5474 = vsel %vm1077, %v5463, %v5320
      %v5475 = vsel %vm1077, %v5464, %v5321
      %v5476 = vsel %vm1077, %v5465, %v5322
      %v5477 = vsel %vm1077, %v5466, %v5323
      %v5478 = vsel %vm702, %v5467, %v5346
      %v5479 = vsel %vm702, %v5468, %v5347
      %v5480 = vsel %vm702, %v5469, %v5348
      %v5481 = vsel %vm702, %v5470, %v5349
      %v5482 = vsel %vm702, %v5471, %v5350
      %v5483 = vsel %vm702, %v5472, %v5351
      %v5484 = vsel %vm702, %v5473, %v5352
      %v5485 = vsel %vm702, %v5474, %v5353
      %v5486 = vsel %vm702, %v5475, %v5354
      %v5487 = vsel %vm702, %v5476, %v5355
      %v5488 = vsel %vm702, %v5477, %v5356
      %v5489 = vsel %vm551, %v5478, %v5368
      %v5490 = vsel %vm551, %v5479, %v5369
      %v5491 = vsel %vm551, %v5480, %v5370
      %v5492 = vsel %vm551, %v5481, %v5371
      %v5493 = vsel %vm551, %v5482, %v5372
      %v5494 = vsel %vm551, %v5483, %v5373
      %v5495 = vsel %vm551, %v5484, %v5374
      %v5496 = vsel %vm551, %v5485, %v5375
      %v5497 = vsel %vm551, %v5486, %v5376
      %v5498 = vsel %vm551, %v5487, %v5377
      %v5499 = vsel %vm551, %v5488, %v5378
      %v5500 = vsel %vm1033, %v5184, %v5401
      %v5501 = vsel %vm1033, %v5188, %v5402
      %v5502 = vsel %vm1033, %v5192, %v5403
      %v5503 = vsel %vm1033, %v5196, %v5404
      %v5504 = vsel %vm1033, %v5200, %v5405
      %v5505 = vsel %vm1033, %v5204, %v5406
      %v5506 = vsel %vm1033, %v5208, %v5407
      %v5507 = vsel %vm1033, %v5212, %v5408
      %v5508 = vsel %vm1033, %v5216, %v5409
      %v5509 = vsel %vm1033, %v5220, %v5410
      %v5510 = vsel %vm1033, %v5224, %v5411
      %5533 = vrot.lane.b32.xlu0 %v5489, 127
      %v5534 = vpop.permute.xlu0 %5533
      %5535 = vrot.lane.b32.xlu0 %v5500, 127
      %v5536 = vpop.permute.xlu0 %5535
      %5537 = vrot.lane.b32.xlu0 %v5490, 127
      %v5538 = vpop.permute.xlu0 %5537
      %5539 = vrot.lane.b32.xlu0 %v5501, 127
      %v5540 = vpop.permute.xlu0 %5539
      %5541 = vrot.lane.b32.xlu0 %v5491, 127
      %v5542 = vpop.permute.xlu0 %5541
      %5543 = vrot.lane.b32.xlu0 %v5502, 127
      %v5544 = vpop.permute.xlu0 %5543
      %5545 = vrot.lane.b32.xlu0 %v5492, 127
      %v5546 = vpop.permute.xlu0 %5545
      %5547 = vrot.lane.b32.xlu0 %v5503, 127
      %v5548 = vpop.permute.xlu0 %5547
      %5549 = vrot.lane.b32.xlu0 %v5493, 127
      %v5550 = vpop.permute.xlu0 %5549
      %5551 = vrot.lane.b32.xlu0 %v5504, 127
      %v5552 = vpop.permute.xlu0 %5551
      %5553 = vrot.lane.b32.xlu0 %v5494, 127
      %v5554 = vpop.permute.xlu0 %5553
      %5555 = vrot.lane.b32.xlu0 %v5505, 127
      %v5556 = vpop.permute.xlu0 %5555
      %5557 = vrot.lane.b32.xlu0 %v5495, 127
      %v5558 = vpop.permute.xlu0 %5557
      %5559 = vrot.lane.b32.xlu0 %v5506, 127
      %v5560 = vpop.permute.xlu0 %5559
      %5561 = vrot.lane.b32.xlu0 %v5496, 127
      %v5562 = vpop.permute.xlu0 %5561
      %5563 = vrot.lane.b32.xlu0 %v5507, 127
      %v5564 = vpop.permute.xlu0 %5563
      %5565 = vrot.lane.b32.xlu0 %v5497, 127
      %v5566 = vpop.permute.xlu0 %5565
      %5567 = vrot.lane.b32.xlu0 %v5508, 127
      %v5568 = vpop.permute.xlu0 %5567
      %5569 = vrot.lane.b32.xlu0 %v5498, 127
      %v5570 = vpop.permute.xlu0 %5569
      %5571 = vrot.lane.b32.xlu0 %v5509, 127
      %v5572 = vpop.permute.xlu0 %5571
      %5573 = vrot.lane.b32.xlu0 %v5499, 127
      %v5574 = vpop.permute.xlu0 %5573
      %5575 = vrot.lane.b32.xlu0 %v5510, 127
      %v5576 = vpop.permute.xlu0 %5575
      %v5599 = vmax.f32 %v5489, %v5534
      %v5600 = vmax.f32 %v5500, %v5536
      %v5601 = vmax.f32 %v5490, %v5538
      %v5602 = vmax.f32 %v5501, %v5540
      %v5603 = vmax.f32 %v5491, %v5542
      %v5604 = vmax.f32 %v5502, %v5544
      %v5605 = vmax.f32 %v5492, %v5546
      %v5606 = vmax.f32 %v5503, %v5548
      %v5607 = vmax.f32 %v5493, %v5550
      %v5608 = vmax.f32 %v5504, %v5552
      %v5609 = vmax.f32 %v5494, %v5554
      %v5610 = vmax.f32 %v5505, %v5556
      %v5611 = vmax.f32 %v5495, %v5558
      %v5612 = vmax.f32 %v5506, %v5560
      %v5613 = vmax.f32 %v5496, %v5562
      %v5614 = vmax.f32 %v5507, %v5564
      %v5615 = vmax.f32 %v5497, %v5566
      %v5616 = vmax.f32 %v5508, %v5568
      %v5617 = vmax.f32 %v5498, %v5570
      %v5618 = vmax.f32 %v5509, %v5572
      %v5619 = vmax.f32 %v5499, %v5574
      %v5620 = vmax.f32 %v5510, %v5576
      %5621 = vrot.lane.b32.xlu0 %v5489, 126
      %v5622 = vpop.permute.xlu0 %5621
      %5623 = vrot.lane.b32.xlu0 %v5500, 126
      %v5624 = vpop.permute.xlu0 %5623
      %5625 = vrot.lane.b32.xlu0 %v5490, 126
      %v5626 = vpop.permute.xlu0 %5625
      %5627 = vrot.lane.b32.xlu0 %v5501, 126
      %v5628 = vpop.permute.xlu0 %5627
      %5629 = vrot.lane.b32.xlu0 %v5491, 126
      %v5630 = vpop.permute.xlu0 %5629
      %5631 = vrot.lane.b32.xlu0 %v5502, 126
      %v5632 = vpop.permute.xlu0 %5631
      %5633 = vrot.lane.b32.xlu0 %v5492, 126
      %v5634 = vpop.permute.xlu0 %5633
      %5635 = vrot.lane.b32.xlu0 %v5503, 126
      %v5636 = vpop.permute.xlu0 %5635
      %5637 = vrot.lane.b32.xlu0 %v5493, 126
      %v5638 = vpop.permute.xlu0 %5637
      %5639 = vrot.lane.b32.xlu0 %v5504, 126
      %v5640 = vpop.permute.xlu0 %5639
      %5641 = vrot.lane.b32.xlu0 %v5494, 126
      %v5642 = vpop.permute.xlu0 %5641
      %5643 = vrot.lane.b32.xlu0 %v5505, 126
      %v5644 = vpop.permute.xlu0 %5643
      %5645 = vrot.lane.b32.xlu0 %v5495, 126
      %v5646 = vpop.permute.xlu0 %5645
      %5647 = vrot.lane.b32.xlu0 %v5506, 126
      %v5648 = vpop.permute.xlu0 %5647
      %5649 = vrot.lane.b32.xlu0 %v5496, 126
      %v5650 = vpop.permute.xlu0 %5649
      %5651 = vrot.lane.b32.xlu0 %v5507, 126
      %v5652 = vpop.permute.xlu0 %5651
      %5653 = vrot.lane.b32.xlu0 %v5497, 126
      %v5654 = vpop.permute.xlu0 %5653
      %5655 = vrot.lane.b32.xlu0 %v5508, 126
      %v5656 = vpop.permute.xlu0 %5655
      %5657 = vrot.lane.b32.xlu0 %v5498, 126
      %v5658 = vpop.permute.xlu0 %5657
      %5659 = vrot.lane.b32.xlu0 %v5509, 126
      %v5660 = vpop.permute.xlu0 %5659
      %5661 = vrot.lane.b32.xlu0 %v5499, 126
      %v5662 = vpop.permute.xlu0 %5661
      %5663 = vrot.lane.b32.xlu0 %v5510, 126
      %v5664 = vpop.permute.xlu0 %5663
      %v5687 = vmax.f32 %v5599, %v5622
      %v5688 = vmax.f32 %v5600, %v5624
      %v5689 = vmax.f32 %v5601, %v5626
      %v5690 = vmax.f32 %v5602, %v5628
      %v5691 = vmax.f32 %v5603, %v5630
      %v5692 = vmax.f32 %v5604, %v5632
      %v5693 = vmax.f32 %v5605, %v5634
      %v5694 = vmax.f32 %v5606, %v5636
      %v5695 = vmax.f32 %v5607, %v5638
      %v5696 = vmax.f32 %v5608, %v5640
      %v5697 = vmax.f32 %v5609, %v5642
      %v5698 = vmax.f32 %v5610, %v5644
      %v5699 = vmax.f32 %v5611, %v5646
      %v5700 = vmax.f32 %v5612, %v5648
      %v5701 = vmax.f32 %v5613, %v5650
      %v5702 = vmax.f32 %v5614, %v5652
      %v5703 = vmax.f32 %v5615, %v5654
      %v5704 = vmax.f32 %v5616, %v5656
      %v5705 = vmax.f32 %v5617, %v5658
      %v5706 = vmax.f32 %v5618, %v5660
      %v5707 = vmax.f32 %v5619, %v5662
      %v5708 = vmax.f32 %v5620, %v5664
      %5731 = vrot.lane.b32.xlu0 %v5687, 126
      %v5732 = vpop.permute.xlu0 %5731
      %5733 = vrot.lane.b32.xlu0 %v5688, 126
      %v5734 = vpop.permute.xlu0 %5733
      %5735 = vrot.lane.b32.xlu0 %v5689, 126
      %v5736 = vpop.permute.xlu0 %5735
      %5737 = vrot.lane.b32.xlu0 %v5690, 126
      %v5738 = vpop.permute.xlu0 %5737
      %5739 = vrot.lane.b32.xlu0 %v5691, 126
      %v5740 = vpop.permute.xlu0 %5739
      %5741 = vrot.lane.b32.xlu0 %v5692, 126
      %v5742 = vpop.permute.xlu0 %5741
      %5743 = vrot.lane.b32.xlu0 %v5693, 126
      %v5744 = vpop.permute.xlu0 %5743
      %5745 = vrot.lane.b32.xlu0 %v5694, 126
      %v5746 = vpop.permute.xlu0 %5745
      %5747 = vrot.lane.b32.xlu0 %v5695, 126
      %v5748 = vpop.permute.xlu0 %5747
      %5749 = vrot.lane.b32.xlu0 %v5696, 126
      %v5750 = vpop.permute.xlu0 %5749
      %5751 = vrot.lane.b32.xlu0 %v5697, 126
      %v5752 = vpop.permute.xlu0 %5751
      %5753 = vrot.lane.b32.xlu0 %v5698, 126
      %v5754 = vpop.permute.xlu0 %5753
      %5755 = vrot.lane.b32.xlu0 %v5699, 126
      %v5756 = vpop.permute.xlu0 %5755
      %5757 = vrot.lane.b32.xlu0 %v5700, 126
      %v5758 = vpop.permute.xlu0 %5757
      %5759 = vrot.lane.b32.xlu0 %v5701, 126
      %v5760 = vpop.permute.xlu0 %5759
      %5761 = vrot.lane.b32.xlu0 %v5702, 126
      %v5762 = vpop.permute.xlu0 %5761
      %5763 = vrot.lane.b32.xlu0 %v5703, 126
      %v5764 = vpop.permute.xlu0 %5763
      %5765 = vrot.lane.b32.xlu0 %v5704, 126
      %v5766 = vpop.permute.xlu0 %5765
      %5767 = vrot.lane.b32.xlu0 %v5705, 126
      %v5768 = vpop.permute.xlu0 %5767
      %5769 = vrot.lane.b32.xlu0 %v5706, 126
      %v5770 = vpop.permute.xlu0 %5769
      %5771 = vrot.lane.b32.xlu0 %v5707, 126
      %v5772 = vpop.permute.xlu0 %5771
      %5773 = vrot.lane.b32.xlu0 %v5708, 126
      %v5774 = vpop.permute.xlu0 %5773
      %5797 = vrot.lane.b32.xlu0 %v5687, 124
      %v5798 = vpop.permute.xlu0 %5797
      %5799 = vrot.lane.b32.xlu0 %v5688, 124
      %v5800 = vpop.permute.xlu0 %5799
      %5801 = vrot.lane.b32.xlu0 %v5689, 124
      %v5802 = vpop.permute.xlu0 %5801
      %5803 = vrot.lane.b32.xlu0 %v5690, 124
      %v5804 = vpop.permute.xlu0 %5803
      %5805 = vrot.lane.b32.xlu0 %v5691, 124
      %v5806 = vpop.permute.xlu0 %5805
      %5807 = vrot.lane.b32.xlu0 %v5692, 124
      %v5808 = vpop.permute.xlu0 %5807
      %5809 = vrot.lane.b32.xlu0 %v5693, 124
      %v5810 = vpop.permute.xlu0 %5809
      %5811 = vrot.lane.b32.xlu0 %v5694, 124
      %v5812 = vpop.permute.xlu0 %5811
      %5813 = vrot.lane.b32.xlu0 %v5695, 124
      %v5814 = vpop.permute.xlu0 %5813
      %5815 = vrot.lane.b32.xlu0 %v5696, 124
      %v5816 = vpop.permute.xlu0 %5815
      %5817 = vrot.lane.b32.xlu0 %v5697, 124
      %v5818 = vpop.permute.xlu0 %5817
      %5819 = vrot.lane.b32.xlu0 %v5698, 124
      %v5820 = vpop.permute.xlu0 %5819
      %5821 = vrot.lane.b32.xlu0 %v5699, 124
      %v5822 = vpop.permute.xlu0 %5821
      %5823 = vrot.lane.b32.xlu0 %v5700, 124
      %v5824 = vpop.permute.xlu0 %5823
      %5825 = vrot.lane.b32.xlu0 %v5701, 124
      %v5826 = vpop.permute.xlu0 %5825
      %5827 = vrot.lane.b32.xlu0 %v5702, 124
      %v5828 = vpop.permute.xlu0 %5827
      %5829 = vrot.lane.b32.xlu0 %v5703, 124
      %v5830 = vpop.permute.xlu0 %5829
      %5831 = vrot.lane.b32.xlu0 %v5704, 124
      %v5832 = vpop.permute.xlu0 %5831
      %5833 = vrot.lane.b32.xlu0 %v5705, 124
      %v5834 = vpop.permute.xlu0 %5833
      %5835 = vrot.lane.b32.xlu0 %v5706, 124
      %v5836 = vpop.permute.xlu0 %5835
      %5837 = vrot.lane.b32.xlu0 %v5707, 124
      %v5838 = vpop.permute.xlu0 %5837
      %5839 = vrot.lane.b32.xlu0 %v5708, 124
      %v5840 = vpop.permute.xlu0 %5839
      %5863 = vrot.lane.b32.xlu0 %v5687, 122
      %v5864 = vpop.permute.xlu0 %5863
      %5865 = vrot.lane.b32.xlu0 %v5688, 122
      %v5866 = vpop.permute.xlu0 %5865
      %5867 = vrot.lane.b32.xlu0 %v5689, 122
      %v5868 = vpop.permute.xlu0 %5867
      %5869 = vrot.lane.b32.xlu0 %v5690, 122
      %v5870 = vpop.permute.xlu0 %5869
      %5871 = vrot.lane.b32.xlu0 %v5691, 122
      %v5872 = vpop.permute.xlu0 %5871
      %5873 = vrot.lane.b32.xlu0 %v5692, 122
      %v5874 = vpop.permute.xlu0 %5873
      %5875 = vrot.lane.b32.xlu0 %v5693, 122
      %v5876 = vpop.permute.xlu0 %5875
      %5877 = vrot.lane.b32.xlu0 %v5694, 122
      %v5878 = vpop.permute.xlu0 %5877
      %5879 = vrot.lane.b32.xlu0 %v5695, 122
      %v5880 = vpop.permute.xlu0 %5879
      %5881 = vrot.lane.b32.xlu0 %v5696, 122
      %v5882 = vpop.permute.xlu0 %5881
      %5883 = vrot.lane.b32.xlu0 %v5697, 122
      %v5884 = vpop.permute.xlu0 %5883
      %5885 = vrot.lane.b32.xlu0 %v5698, 122
      %v5886 = vpop.permute.xlu0 %5885
      %5887 = vrot.lane.b32.xlu0 %v5699, 122
      %v5888 = vpop.permute.xlu0 %5887
      %5889 = vrot.lane.b32.xlu0 %v5700, 122
      %v5890 = vpop.permute.xlu0 %5889
      %5891 = vrot.lane.b32.xlu0 %v5701, 122
      %v5892 = vpop.permute.xlu0 %5891
      %5893 = vrot.lane.b32.xlu0 %v5702, 122
      %v5894 = vpop.permute.xlu0 %5893
      %5895 = vrot.lane.b32.xlu0 %v5703, 122
      %v5896 = vpop.permute.xlu0 %5895
      %5897 = vrot.lane.b32.xlu0 %v5704, 122
      %v5898 = vpop.permute.xlu0 %5897
      %5899 = vrot.lane.b32.xlu0 %v5705, 122
      %v5900 = vpop.permute.xlu0 %5899
      %5901 = vrot.lane.b32.xlu0 %v5706, 122
      %v5902 = vpop.permute.xlu0 %5901
      %5903 = vrot.lane.b32.xlu0 %v5707, 122
      %v5904 = vpop.permute.xlu0 %5903
      %5905 = vrot.lane.b32.xlu0 %v5708, 122
      %v5906 = vpop.permute.xlu0 %5905
      %5929 = vrot.lane.b32.xlu0 %v5687, 120
      %v5930 = vpop.permute.xlu0 %5929
      %5931 = vrot.lane.b32.xlu0 %v5688, 120
      %v5932 = vpop.permute.xlu0 %5931
      %5933 = vrot.lane.b32.xlu0 %v5689, 120
      %v5934 = vpop.permute.xlu0 %5933
      %5935 = vrot.lane.b32.xlu0 %v5690, 120
      %v5936 = vpop.permute.xlu0 %5935
      %5937 = vrot.lane.b32.xlu0 %v5691, 120
      %v5938 = vpop.permute.xlu0 %5937
      %5939 = vrot.lane.b32.xlu0 %v5692, 120
      %v5940 = vpop.permute.xlu0 %5939
      %5941 = vrot.lane.b32.xlu0 %v5693, 120
      %v5942 = vpop.permute.xlu0 %5941
      %5943 = vrot.lane.b32.xlu0 %v5694, 120
      %v5944 = vpop.permute.xlu0 %5943
      %5945 = vrot.lane.b32.xlu0 %v5695, 120
      %v5946 = vpop.permute.xlu0 %5945
      %5947 = vrot.lane.b32.xlu0 %v5696, 120
      %v5948 = vpop.permute.xlu0 %5947
      %5949 = vrot.lane.b32.xlu0 %v5697, 120
      %v5950 = vpop.permute.xlu0 %5949
      %5951 = vrot.lane.b32.xlu0 %v5698, 120
      %v5952 = vpop.permute.xlu0 %5951
      %5953 = vrot.lane.b32.xlu0 %v5699, 120
      %v5954 = vpop.permute.xlu0 %5953
      %5955 = vrot.lane.b32.xlu0 %v5700, 120
      %v5956 = vpop.permute.xlu0 %5955
      %5957 = vrot.lane.b32.xlu0 %v5701, 120
      %v5958 = vpop.permute.xlu0 %5957
      %5959 = vrot.lane.b32.xlu0 %v5702, 120
      %v5960 = vpop.permute.xlu0 %5959
      %5961 = vrot.lane.b32.xlu0 %v5703, 120
      %v5962 = vpop.permute.xlu0 %5961
      %5963 = vrot.lane.b32.xlu0 %v5704, 120
      %v5964 = vpop.permute.xlu0 %5963
      %5965 = vrot.lane.b32.xlu0 %v5705, 120
      %v5966 = vpop.permute.xlu0 %5965
      %5967 = vrot.lane.b32.xlu0 %v5706, 120
      %v5968 = vpop.permute.xlu0 %5967
      %5969 = vrot.lane.b32.xlu0 %v5707, 120
      %v5970 = vpop.permute.xlu0 %5969
      %5971 = vrot.lane.b32.xlu0 %v5708, 120
      %v5972 = vpop.permute.xlu0 %5971
      %5995 = vrot.lane.b32.xlu0 %v5687, 118
      %v5996 = vpop.permute.xlu0 %5995
      %5997 = vrot.lane.b32.xlu0 %v5688, 118
      %v5998 = vpop.permute.xlu0 %5997
      %5999 = vrot.lane.b32.xlu0 %v5689, 118
      %v6000 = vpop.permute.xlu0 %5999
      %6001 = vrot.lane.b32.xlu0 %v5690, 118
      %v6002 = vpop.permute.xlu0 %6001
      %6003 = vrot.lane.b32.xlu0 %v5691, 118
      %v6004 = vpop.permute.xlu0 %6003
      %6005 = vrot.lane.b32.xlu0 %v5692, 118
      %v6006 = vpop.permute.xlu0 %6005
      %6007 = vrot.lane.b32.xlu0 %v5693, 118
      %v6008 = vpop.permute.xlu0 %6007
      %6009 = vrot.lane.b32.xlu0 %v5694, 118
      %v6010 = vpop.permute.xlu0 %6009
      %6011 = vrot.lane.b32.xlu0 %v5695, 118
      %v6012 = vpop.permute.xlu0 %6011
      %6013 = vrot.lane.b32.xlu0 %v5696, 118
      %v6014 = vpop.permute.xlu0 %6013
      %6015 = vrot.lane.b32.xlu0 %v5697, 118
      %v6016 = vpop.permute.xlu0 %6015
      %6017 = vrot.lane.b32.xlu0 %v5698, 118
      %v6018 = vpop.permute.xlu0 %6017
      %6019 = vrot.lane.b32.xlu0 %v5699, 118
      %v6020 = vpop.permute.xlu0 %6019
      %6021 = vrot.lane.b32.xlu0 %v5700, 118
      %v6022 = vpop.permute.xlu0 %6021
      %6023 = vrot.lane.b32.xlu0 %v5701, 118
      %v6024 = vpop.permute.xlu0 %6023
      %6025 = vrot.lane.b32.xlu0 %v5702, 118
      %v6026 = vpop.permute.xlu0 %6025
      %6027 = vrot.lane.b32.xlu0 %v5703, 118
      %v6028 = vpop.permute.xlu0 %6027
      %6029 = vrot.lane.b32.xlu0 %v5704, 118
      %v6030 = vpop.permute.xlu0 %6029
      %6031 = vrot.lane.b32.xlu0 %v5705, 118
      %v6032 = vpop.permute.xlu0 %6031
      %6033 = vrot.lane.b32.xlu0 %v5706, 118
      %v6034 = vpop.permute.xlu0 %6033
      %6035 = vrot.lane.b32.xlu0 %v5707, 118
      %v6036 = vpop.permute.xlu0 %6035
      %6037 = vrot.lane.b32.xlu0 %v5708, 118
      %v6038 = vpop.permute.xlu0 %6037
      %6061 = vrot.lane.b32.xlu0 %v5687, 116
      %v6062 = vpop.permute.xlu0 %6061
      %6063 = vrot.lane.b32.xlu0 %v5688, 116
      %v6064 = vpop.permute.xlu0 %6063
      %6065 = vrot.lane.b32.xlu0 %v5689, 116
      %v6066 = vpop.permute.xlu0 %6065
      %6067 = vrot.lane.b32.xlu0 %v5690, 116
      %v6068 = vpop.permute.xlu0 %6067
      %6069 = vrot.lane.b32.xlu0 %v5691, 116
      %v6070 = vpop.permute.xlu0 %6069
      %6071 = vrot.lane.b32.xlu0 %v5692, 116
      %v6072 = vpop.permute.xlu0 %6071
      %6073 = vrot.lane.b32.xlu0 %v5693, 116
      %v6074 = vpop.permute.xlu0 %6073
      %6075 = vrot.lane.b32.xlu0 %v5694, 116
      %v6076 = vpop.permute.xlu0 %6075
      %6077 = vrot.lane.b32.xlu0 %v5695, 116
      %v6078 = vpop.permute.xlu0 %6077
      %6079 = vrot.lane.b32.xlu0 %v5696, 116
      %v6080 = vpop.permute.xlu0 %6079
      %6081 = vrot.lane.b32.xlu0 %v5697, 116
      %v6082 = vpop.permute.xlu0 %6081
      %6083 = vrot.lane.b32.xlu0 %v5698, 116
      %v6084 = vpop.permute.xlu0 %6083
      %6085 = vrot.lane.b32.xlu0 %v5699, 116
      %v6086 = vpop.permute.xlu0 %6085
      %6087 = vrot.lane.b32.xlu0 %v5700, 116
      %v6088 = vpop.permute.xlu0 %6087
      %6089 = vrot.lane.b32.xlu0 %v5701, 116
      %v6090 = vpop.permute.xlu0 %6089
      %6091 = vrot.lane.b32.xlu0 %v5702, 116
      %v6092 = vpop.permute.xlu0 %6091
      %6093 = vrot.lane.b32.xlu0 %v5703, 116
      %v6094 = vpop.permute.xlu0 %6093
      %6095 = vrot.lane.b32.xlu0 %v5704, 116
      %v6096 = vpop.permute.xlu0 %6095
      %6097 = vrot.lane.b32.xlu0 %v5705, 116
      %v6098 = vpop.permute.xlu0 %6097
      %6099 = vrot.lane.b32.xlu0 %v5706, 116
      %v6100 = vpop.permute.xlu0 %6099
      %6101 = vrot.lane.b32.xlu0 %v5707, 116
      %v6102 = vpop.permute.xlu0 %6101
      %6103 = vrot.lane.b32.xlu0 %v5708, 116
      %v6104 = vpop.permute.xlu0 %6103
      %6127 = vrot.lane.b32.xlu0 %v5687, 114
      %v6128 = vpop.permute.xlu0 %6127
      %6129 = vrot.lane.b32.xlu0 %v5688, 114
      %v6130 = vpop.permute.xlu0 %6129
      %6131 = vrot.lane.b32.xlu0 %v5689, 114
      %v6132 = vpop.permute.xlu0 %6131
      %6133 = vrot.lane.b32.xlu0 %v5690, 114
      %v6134 = vpop.permute.xlu0 %6133
      %6135 = vrot.lane.b32.xlu0 %v5691, 114
      %v6136 = vpop.permute.xlu0 %6135
      %6137 = vrot.lane.b32.xlu0 %v5692, 114
      %v6138 = vpop.permute.xlu0 %6137
      %6139 = vrot.lane.b32.xlu0 %v5693, 114
      %v6140 = vpop.permute.xlu0 %6139
      %6141 = vrot.lane.b32.xlu0 %v5694, 114
      %v6142 = vpop.permute.xlu0 %6141
      %6143 = vrot.lane.b32.xlu0 %v5695, 114
      %v6144 = vpop.permute.xlu0 %6143
      %6145 = vrot.lane.b32.xlu0 %v5696, 114
      %v6146 = vpop.permute.xlu0 %6145
      %6147 = vrot.lane.b32.xlu0 %v5697, 114
      %v6148 = vpop.permute.xlu0 %6147
      %6149 = vrot.lane.b32.xlu0 %v5698, 114
      %v6150 = vpop.permute.xlu0 %6149
      %6151 = vrot.lane.b32.xlu0 %v5699, 114
      %v6152 = vpop.permute.xlu0 %6151
      %6153 = vrot.lane.b32.xlu0 %v5700, 114
      %v6154 = vpop.permute.xlu0 %6153
      %6155 = vrot.lane.b32.xlu0 %v5701, 114
      %v6156 = vpop.permute.xlu0 %6155
      %6157 = vrot.lane.b32.xlu0 %v5702, 114
      %v6158 = vpop.permute.xlu0 %6157
      %6159 = vrot.lane.b32.xlu0 %v5703, 114
      %v6160 = vpop.permute.xlu0 %6159
      %6161 = vrot.lane.b32.xlu0 %v5704, 114
      %v6162 = vpop.permute.xlu0 %6161
      %6163 = vrot.lane.b32.xlu0 %v5705, 114
      %v6164 = vpop.permute.xlu0 %6163
      %6165 = vrot.lane.b32.xlu0 %v5706, 114
      %v6166 = vpop.permute.xlu0 %6165
      %6167 = vrot.lane.b32.xlu0 %v5707, 114
      %v6168 = vpop.permute.xlu0 %6167
      %6169 = vrot.lane.b32.xlu0 %v5708, 114
      %v6170 = vpop.permute.xlu0 %6169
      %6193 = vrot.lane.b32.xlu0 %v5687, 112
      %v6194 = vpop.permute.xlu0 %6193
      %6195 = vrot.lane.b32.xlu0 %v5688, 112
      %v6196 = vpop.permute.xlu0 %6195
      %6197 = vrot.lane.b32.xlu0 %v5689, 112
      %v6198 = vpop.permute.xlu0 %6197
      %6199 = vrot.lane.b32.xlu0 %v5690, 112
      %v6200 = vpop.permute.xlu0 %6199
      %6201 = vrot.lane.b32.xlu0 %v5691, 112
      %v6202 = vpop.permute.xlu0 %6201
      %6203 = vrot.lane.b32.xlu0 %v5692, 112
      %v6204 = vpop.permute.xlu0 %6203
      %6205 = vrot.lane.b32.xlu0 %v5693, 112
      %v6206 = vpop.permute.xlu0 %6205
      %6207 = vrot.lane.b32.xlu0 %v5694, 112
      %v6208 = vpop.permute.xlu0 %6207
      %6209 = vrot.lane.b32.xlu0 %v5695, 112
      %v6210 = vpop.permute.xlu0 %6209
      %6211 = vrot.lane.b32.xlu0 %v5696, 112
      %v6212 = vpop.permute.xlu0 %6211
      %6213 = vrot.lane.b32.xlu0 %v5697, 112
      %v6214 = vpop.permute.xlu0 %6213
      %6215 = vrot.lane.b32.xlu0 %v5698, 112
      %v6216 = vpop.permute.xlu0 %6215
      %6217 = vrot.lane.b32.xlu0 %v5699, 112
      %v6218 = vpop.permute.xlu0 %6217
      %6219 = vrot.lane.b32.xlu0 %v5700, 112
      %v6220 = vpop.permute.xlu0 %6219
      %6221 = vrot.lane.b32.xlu0 %v5701, 112
      %v6222 = vpop.permute.xlu0 %6221
      %6223 = vrot.lane.b32.xlu0 %v5702, 112
      %v6224 = vpop.permute.xlu0 %6223
      %6225 = vrot.lane.b32.xlu0 %v5703, 112
      %v6226 = vpop.permute.xlu0 %6225
      %6227 = vrot.lane.b32.xlu0 %v5704, 112
      %v6228 = vpop.permute.xlu0 %6227
      %6229 = vrot.lane.b32.xlu0 %v5705, 112
      %v6230 = vpop.permute.xlu0 %6229
      %6231 = vrot.lane.b32.xlu0 %v5706, 112
      %v6232 = vpop.permute.xlu0 %6231
      %6233 = vrot.lane.b32.xlu0 %v5707, 112
      %v6234 = vpop.permute.xlu0 %6233
      %6235 = vrot.lane.b32.xlu0 %v5708, 112
      %v6236 = vpop.permute.xlu0 %6235
      %6259 = vrot.lane.b32.xlu0 %v5687, 110
      %v6260 = vpop.permute.xlu0 %6259
      %6261 = vrot.lane.b32.xlu0 %v5688, 110
      %v6262 = vpop.permute.xlu0 %6261
      %6263 = vrot.lane.b32.xlu0 %v5689, 110
      %v6264 = vpop.permute.xlu0 %6263
      %6265 = vrot.lane.b32.xlu0 %v5690, 110
      %v6266 = vpop.permute.xlu0 %6265
      %6267 = vrot.lane.b32.xlu0 %v5691, 110
      %v6268 = vpop.permute.xlu0 %6267
      %6269 = vrot.lane.b32.xlu0 %v5692, 110
      %v6270 = vpop.permute.xlu0 %6269
      %6271 = vrot.lane.b32.xlu0 %v5693, 110
      %v6272 = vpop.permute.xlu0 %6271
      %6273 = vrot.lane.b32.xlu0 %v5694, 110
      %v6274 = vpop.permute.xlu0 %6273
      %6275 = vrot.lane.b32.xlu0 %v5695, 110
      %v6276 = vpop.permute.xlu0 %6275
      %6277 = vrot.lane.b32.xlu0 %v5696, 110
      %v6278 = vpop.permute.xlu0 %6277
      %6279 = vrot.lane.b32.xlu0 %v5697, 110
      %v6280 = vpop.permute.xlu0 %6279
      %6281 = vrot.lane.b32.xlu0 %v5698, 110
      %v6282 = vpop.permute.xlu0 %6281
      %6283 = vrot.lane.b32.xlu0 %v5699, 110
      %v6284 = vpop.permute.xlu0 %6283
      %6285 = vrot.lane.b32.xlu0 %v5700, 110
      %v6286 = vpop.permute.xlu0 %6285
      %6287 = vrot.lane.b32.xlu0 %v5701, 110
      %v6288 = vpop.permute.xlu0 %6287
      %6289 = vrot.lane.b32.xlu0 %v5702, 110
      %v6290 = vpop.permute.xlu0 %6289
      %6291 = vrot.lane.b32.xlu0 %v5703, 110
      %v6292 = vpop.permute.xlu0 %6291
      %6293 = vrot.lane.b32.xlu0 %v5704, 110
      %v6294 = vpop.permute.xlu0 %6293
      %6295 = vrot.lane.b32.xlu0 %v5705, 110
      %v6296 = vpop.permute.xlu0 %6295
      %6297 = vrot.lane.b32.xlu0 %v5706, 110
      %v6298 = vpop.permute.xlu0 %6297
      %6299 = vrot.lane.b32.xlu0 %v5707, 110
      %v6300 = vpop.permute.xlu0 %6299
      %6301 = vrot.lane.b32.xlu0 %v5708, 110
      %v6302 = vpop.permute.xlu0 %6301
      %v6325 = vsel %vm1858, %v5687, %v5732
      %v6326 = vsel %vm1858, %v5688, %v5734
      %v6327 = vsel %vm1858, %v5689, %v5736
      %v6328 = vsel %vm1858, %v5690, %v5738
      %v6329 = vsel %vm1858, %v5691, %v5740
      %v6330 = vsel %vm1858, %v5692, %v5742
      %v6331 = vsel %vm1858, %v5693, %v5744
      %v6332 = vsel %vm1858, %v5694, %v5746
      %v6333 = vsel %vm1858, %v5695, %v5748
      %v6334 = vsel %vm1858, %v5696, %v5750
      %v6335 = vsel %vm1858, %v5697, %v5752
      %v6336 = vsel %vm1858, %v5698, %v5754
      %v6337 = vsel %vm1858, %v5699, %v5756
      %v6338 = vsel %vm1858, %v5700, %v5758
      %v6339 = vsel %vm1858, %v5701, %v5760
      %v6340 = vsel %vm1858, %v5702, %v5762
      %v6341 = vsel %vm1858, %v5703, %v5764
      %v6342 = vsel %vm1858, %v5704, %v5766
      %v6343 = vsel %vm1858, %v5705, %v5768
      %v6344 = vsel %vm1858, %v5706, %v5770
      %v6345 = vsel %vm1858, %v5707, %v5772
      %v6346 = vsel %vm1858, %v5708, %v5774
      %v6347 = vsel %vm1879, %v6325, %v5798
      %v6348 = vsel %vm1879, %v6326, %v5800
      %v6349 = vsel %vm1879, %v6327, %v5802
      %v6350 = vsel %vm1879, %v6328, %v5804
      %v6351 = vsel %vm1879, %v6329, %v5806
      %v6352 = vsel %vm1879, %v6330, %v5808
      %v6353 = vsel %vm1879, %v6331, %v5810
      %v6354 = vsel %vm1879, %v6332, %v5812
      %v6355 = vsel %vm1879, %v6333, %v5814
      %v6356 = vsel %vm1879, %v6334, %v5816
      %v6357 = vsel %vm1879, %v6335, %v5818
      %v6358 = vsel %vm1879, %v6336, %v5820
      %v6359 = vsel %vm1879, %v6337, %v5822
      %v6360 = vsel %vm1879, %v6338, %v5824
      %v6361 = vsel %vm1879, %v6339, %v5826
      %v6362 = vsel %vm1879, %v6340, %v5828
      %v6363 = vsel %vm1879, %v6341, %v5830
      %v6364 = vsel %vm1879, %v6342, %v5832
      %v6365 = vsel %vm1879, %v6343, %v5834
      %v6366 = vsel %vm1879, %v6344, %v5836
      %v6367 = vsel %vm1879, %v6345, %v5838
      %v6368 = vsel %vm1879, %v6346, %v5840
      %v6369 = vsel %vm1900, %v6347, %v5864
      %v6370 = vsel %vm1900, %v6348, %v5866
      %v6371 = vsel %vm1900, %v6349, %v5868
      %v6372 = vsel %vm1900, %v6350, %v5870
      %v6373 = vsel %vm1900, %v6351, %v5872
      %v6374 = vsel %vm1900, %v6352, %v5874
      %v6375 = vsel %vm1900, %v6353, %v5876
      %v6376 = vsel %vm1900, %v6354, %v5878
      %v6377 = vsel %vm1900, %v6355, %v5880
      %v6378 = vsel %vm1900, %v6356, %v5882
      %v6379 = vsel %vm1900, %v6357, %v5884
      %v6380 = vsel %vm1900, %v6358, %v5886
      %v6381 = vsel %vm1900, %v6359, %v5888
      %v6382 = vsel %vm1900, %v6360, %v5890
      %v6383 = vsel %vm1900, %v6361, %v5892
      %v6384 = vsel %vm1900, %v6362, %v5894
      %v6385 = vsel %vm1900, %v6363, %v5896
      %v6386 = vsel %vm1900, %v6364, %v5898
      %v6387 = vsel %vm1900, %v6365, %v5900
      %v6388 = vsel %vm1900, %v6366, %v5902
      %v6389 = vsel %vm1900, %v6367, %v5904
      %v6390 = vsel %vm1900, %v6368, %v5906
      %v6391 = vsel %vm1921, %v6369, %v5930
      %v6392 = vsel %vm1921, %v6370, %v5932
      %v6393 = vsel %vm1921, %v6371, %v5934
      %v6394 = vsel %vm1921, %v6372, %v5936
      %v6395 = vsel %vm1921, %v6373, %v5938
      %v6396 = vsel %vm1921, %v6374, %v5940
      %v6397 = vsel %vm1921, %v6375, %v5942
      %v6398 = vsel %vm1921, %v6376, %v5944
      %v6399 = vsel %vm1921, %v6377, %v5946
      %v6400 = vsel %vm1921, %v6378, %v5948
      %v6401 = vsel %vm1921, %v6379, %v5950
      %v6402 = vsel %vm1921, %v6380, %v5952
      %v6403 = vsel %vm1921, %v6381, %v5954
      %v6404 = vsel %vm1921, %v6382, %v5956
      %v6405 = vsel %vm1921, %v6383, %v5958
      %v6406 = vsel %vm1921, %v6384, %v5960
      %v6407 = vsel %vm1921, %v6385, %v5962
      %v6408 = vsel %vm1921, %v6386, %v5964
      %v6409 = vsel %vm1921, %v6387, %v5966
      %v6410 = vsel %vm1921, %v6388, %v5968
      %v6411 = vsel %vm1921, %v6389, %v5970
      %v6412 = vsel %vm1921, %v6390, %v5972
      %v6413 = vsel %vm1942, %v6391, %v5996
      %v6414 = vsel %vm1942, %v6392, %v5998
      %v6415 = vsel %vm1942, %v6393, %v6000
      %v6416 = vsel %vm1942, %v6394, %v6002
      %v6417 = vsel %vm1942, %v6395, %v6004
      %v6418 = vsel %vm1942, %v6396, %v6006
      %v6419 = vsel %vm1942, %v6397, %v6008
      %v6420 = vsel %vm1942, %v6398, %v6010
      %v6421 = vsel %vm1942, %v6399, %v6012
      %v6422 = vsel %vm1942, %v6400, %v6014
      %v6423 = vsel %vm1942, %v6401, %v6016
      %v6424 = vsel %vm1942, %v6402, %v6018
      %v6425 = vsel %vm1942, %v6403, %v6020
      %v6426 = vsel %vm1942, %v6404, %v6022
      %v6427 = vsel %vm1942, %v6405, %v6024
      %v6428 = vsel %vm1942, %v6406, %v6026
      %v6429 = vsel %vm1942, %v6407, %v6028
      %v6430 = vsel %vm1942, %v6408, %v6030
      %v6431 = vsel %vm1942, %v6409, %v6032
      %v6432 = vsel %vm1942, %v6410, %v6034
      %v6433 = vsel %vm1942, %v6411, %v6036
      %v6434 = vsel %vm1942, %v6412, %v6038
      %v6435 = vsel %vm1963, %v6413, %v6062
      %v6436 = vsel %vm1963, %v6414, %v6064
      %v6437 = vsel %vm1963, %v6415, %v6066
      %v6438 = vsel %vm1963, %v6416, %v6068
      %v6439 = vsel %vm1963, %v6417, %v6070
      %v6440 = vsel %vm1963, %v6418, %v6072
      %v6441 = vsel %vm1963, %v6419, %v6074
      %v6442 = vsel %vm1963, %v6420, %v6076
      %v6443 = vsel %vm1963, %v6421, %v6078
      %v6444 = vsel %vm1963, %v6422, %v6080
      %v6445 = vsel %vm1963, %v6423, %v6082
      %v6446 = vsel %vm1963, %v6424, %v6084
      %v6447 = vsel %vm1963, %v6425, %v6086
      %v6448 = vsel %vm1963, %v6426, %v6088
      %v6449 = vsel %vm1963, %v6427, %v6090
      %v6450 = vsel %vm1963, %v6428, %v6092
      %v6451 = vsel %vm1963, %v6429, %v6094
      %v6452 = vsel %vm1963, %v6430, %v6096
      %v6453 = vsel %vm1963, %v6431, %v6098
      %v6454 = vsel %vm1963, %v6432, %v6100
      %v6455 = vsel %vm1963, %v6433, %v6102
      %v6456 = vsel %vm1963, %v6434, %v6104
      %v6457 = vsel %vm1984, %v6435, %v6128
      %v6458 = vsel %vm1984, %v6436, %v6130
      %v6459 = vsel %vm1984, %v6437, %v6132
      %v6460 = vsel %vm1984, %v6438, %v6134
      %v6461 = vsel %vm1984, %v6439, %v6136
      %v6462 = vsel %vm1984, %v6440, %v6138
      %v6463 = vsel %vm1984, %v6441, %v6140
      %v6464 = vsel %vm1984, %v6442, %v6142
      %v6465 = vsel %vm1984, %v6443, %v6144
      %v6466 = vsel %vm1984, %v6444, %v6146
      %v6467 = vsel %vm1984, %v6445, %v6148
      %v6468 = vsel %vm1984, %v6446, %v6150
      %v6469 = vsel %vm1984, %v6447, %v6152
      %v6470 = vsel %vm1984, %v6448, %v6154
      %v6471 = vsel %vm1984, %v6449, %v6156
      %v6472 = vsel %vm1984, %v6450, %v6158
      %v6473 = vsel %vm1984, %v6451, %v6160
      %v6474 = vsel %vm1984, %v6452, %v6162
      %v6475 = vsel %vm1984, %v6453, %v6164
      %v6476 = vsel %vm1984, %v6454, %v6166
      %v6477 = vsel %vm1984, %v6455, %v6168
      %v6478 = vsel %vm1984, %v6456, %v6170
      %v6479 = vsel %vm2005, %v6457, %v6194
      %v6480 = vsel %vm2005, %v6458, %v6196
      %v6481 = vsel %vm2005, %v6459, %v6198
      %v6482 = vsel %vm2005, %v6460, %v6200
      %v6483 = vsel %vm2005, %v6461, %v6202
      %v6484 = vsel %vm2005, %v6462, %v6204
      %v6485 = vsel %vm2005, %v6463, %v6206
      %v6486 = vsel %vm2005, %v6464, %v6208
      %v6487 = vsel %vm2005, %v6465, %v6210
      %v6488 = vsel %vm2005, %v6466, %v6212
      %v6489 = vsel %vm2005, %v6467, %v6214
      %v6490 = vsel %vm2005, %v6468, %v6216
      %v6491 = vsel %vm2005, %v6469, %v6218
      %v6492 = vsel %vm2005, %v6470, %v6220
      %v6493 = vsel %vm2005, %v6471, %v6222
      %v6494 = vsel %vm2005, %v6472, %v6224
      %v6495 = vsel %vm2005, %v6473, %v6226
      %v6496 = vsel %vm2005, %v6474, %v6228
      %v6497 = vsel %vm2005, %v6475, %v6230
      %v6498 = vsel %vm2005, %v6476, %v6232
      %v6499 = vsel %vm2005, %v6477, %v6234
      %v6500 = vsel %vm2005, %v6478, %v6236
      %v6501 = vsel %vm2026, %v6479, %v6260
      %v6502 = vsel %vm2026, %v6480, %v6262
      %v6503 = vsel %vm2026, %v6481, %v6264
      %v6504 = vsel %vm2026, %v6482, %v6266
      %v6505 = vsel %vm2026, %v6483, %v6268
      %v6506 = vsel %vm2026, %v6484, %v6270
      %v6507 = vsel %vm2026, %v6485, %v6272
      %v6508 = vsel %vm2026, %v6486, %v6274
      %v6509 = vsel %vm2026, %v6487, %v6276
      %v6510 = vsel %vm2026, %v6488, %v6278
      %v6511 = vsel %vm2026, %v6489, %v6280
      %v6512 = vsel %vm2026, %v6490, %v6282
      %v6513 = vsel %vm2026, %v6491, %v6284
      %v6514 = vsel %vm2026, %v6492, %v6286
      %v6515 = vsel %vm2026, %v6493, %v6288
      %v6516 = vsel %vm2026, %v6494, %v6290
      %v6517 = vsel %vm2026, %v6495, %v6292
      %v6518 = vsel %vm2026, %v6496, %v6294
      %v6519 = vsel %vm2026, %v6497, %v6296
      %v6520 = vsel %vm2026, %v6498, %v6298
      %v6521 = vsel %vm2026, %v6499, %v6300
      %v6522 = vsel %vm2026, %v6500, %v6302
      %v6523 = vmax.f32 %v6501, %v6503
      %v6524 = vmax.f32 %v6502, %v6504
      %v6525 = vmax.f32 %v6505, %v6507
      %v6526 = vmax.f32 %v6506, %v6508
      %v6527 = vmax.f32 %v6509, %v6511
      %v6528 = vmax.f32 %v6510, %v6512
      %v6529 = vmax.f32 %v6513, %v6515
      %v6530 = vmax.f32 %v6514, %v6516
      %v6531 = vmax.f32 %v6517, %v6519
      %v6532 = vmax.f32 %v6518, %v6520
      %v6533 = vmax.f32 %v6523, %v6505
      %v6534 = vmax.f32 %v6524, %v6506
      %v6535 = vmax.f32 %v6525, %v6509
      %v6536 = vmax.f32 %v6526, %v6510
      %v6537 = vmax.f32 %v6527, %v6513
      %v6538 = vmax.f32 %v6528, %v6514
      %v6539 = vmax.f32 %v6529, %v6517
      %v6540 = vmax.f32 %v6530, %v6518
      %v6541 = vmax.f32 %v6531, %v6521
      %v6542 = vmax.f32 %v6532, %v6522
      %v6543 = vmax.f32 %v6533, %v6507
      %v6544 = vmax.f32 %v6534, %v6508
      %v6545 = vmax.f32 %v6535, %v6511
      %v6546 = vmax.f32 %v6536, %v6512
      %v6547 = vmax.f32 %v6537, %v6515
      %v6548 = vmax.f32 %v6538, %v6516
      %v6549 = vmax.f32 %v6539, %v6519
      %v6550 = vmax.f32 %v6540, %v6520
      %v6563 = vrot.slane %v6523, 6
      %v6564 = vrot.slane %v6524, 6
      %v6565 = vsel %vm1044, %v6563, %v6564
      %v6566 = vrot.slane %v6543, 6
      %v6567 = vrot.slane %v6544, 6
      %v6568 = vsel %vm1044, %v6566, %v6567
      %v6569 = vrot.slane %v6545, 6
      %v6570 = vrot.slane %v6546, 6
      %v6571 = vsel %vm1044, %v6569, %v6570
      %v6572 = vrot.slane %v6547, 6
      %v6573 = vrot.slane %v6548, 6
      %v6574 = vsel %vm1044, %v6572, %v6573
      %v6575 = vrot.slane %v6549, 6
      %v6576 = vrot.slane %v6550, 6
      %v6577 = vsel %vm1044, %v6575, %v6576
      %v6578 = vrot.slane %v6541, 6
      %v6579 = vrot.slane %v6542, 6
      %v6580 = vsel %vm1044, %v6578, %v6579
      %v6593 = vsel %vm1044, -inf, %v6563
      %v6594 = vsel %vm1044, -inf, %v6566
      %v6595 = vsel %vm1044, -inf, %v6569
      %v6596 = vsel %vm1044, -inf, %v6572
      %v6597 = vsel %vm1044, -inf, %v6575
      %v6598 = vsel %vm1044, -inf, %v6578
      %v6599 = vsel %vm1066, %v6565, -inf
      %v6600 = vsel %vm1066, %v6568, -inf
      %v6601 = vsel %vm1066, %v6571, -inf
      %v6602 = vsel %vm1066, %v6574, -inf
      %v6603 = vsel %vm1066, %v6577, -inf
      %v6604 = vsel %vm1066, %v6580, -inf
      %v6617 = vrot.slane %v6593, 1
      %v6618 = vrot.slane %v6599, 1
      %v6619 = vsel %vm551, %v6617, %v6618
      %v6620 = vrot.slane %v6594, 1
      %v6621 = vrot.slane %v6600, 1
      %v6622 = vsel %vm551, %v6620, %v6621
      %v6623 = vrot.slane %v6595, 1
      %v6624 = vrot.slane %v6601, 1
      %v6625 = vsel %vm551, %v6623, %v6624
      %v6626 = vrot.slane %v6596, 1
      %v6627 = vrot.slane %v6602, 1
      %v6628 = vsel %vm551, %v6626, %v6627
      %v6629 = vrot.slane %v6597, 1
      %v6630 = vrot.slane %v6603, 1
      %v6631 = vsel %vm551, %v6629, %v6630
      %v6632 = vrot.slane %v6598, 1
      %v6633 = vrot.slane %v6604, 1
      %v6634 = vsel %vm551, %v6632, %v6633
      %v6647 = vmax.f32 %v6593, %v6619
      %v6648 = vmax.f32 %v6599, %v6618
      %v6649 = vmax.f32 %v6594, %v6622
      %v6650 = vmax.f32 %v6600, %v6621
      %v6651 = vmax.f32 %v6595, %v6625
      %v6652 = vmax.f32 %v6601, %v6624
      %v6653 = vmax.f32 %v6596, %v6628
      %v6654 = vmax.f32 %v6602, %v6627
      %v6655 = vmax.f32 %v6597, %v6631
      %v6656 = vmax.f32 %v6603, %v6630
      %v6657 = vmax.f32 %v6598, %v6634
      %v6658 = vmax.f32 %v6604, %v6633
      %v6659 = vrot.slane %v6593, 2
      %v6660 = vrot.slane %v6599, 2
      %v6661 = vsel %vm702, %v6659, %v6660
      %v6662 = vrot.slane %v6594, 2
      %v6663 = vrot.slane %v6600, 2
      %v6664 = vsel %vm702, %v6662, %v6663
      %v6665 = vrot.slane %v6595, 2
      %v6666 = vrot.slane %v6601, 2
      %v6667 = vsel %vm702, %v6665, %v6666
      %v6668 = vrot.slane %v6596, 2
      %v6669 = vrot.slane %v6602, 2
      %v6670 = vsel %vm702, %v6668, %v6669
      %v6671 = vrot.slane %v6597, 2
      %v6672 = vrot.slane %v6603, 2
      %v6673 = vsel %vm702, %v6671, %v6672
      %v6674 = vrot.slane %v6598, 2
      %v6675 = vrot.slane %v6604, 2
      %v6676 = vsel %vm702, %v6674, %v6675
      %v6689 = vmax.f32 %v6647, %v6661
      %v6690 = vmax.f32 %v6648, %v6660
      %v6691 = vmax.f32 %v6649, %v6664
      %v6692 = vmax.f32 %v6650, %v6663
      %v6693 = vmax.f32 %v6651, %v6667
      %v6694 = vmax.f32 %v6652, %v6666
      %v6695 = vmax.f32 %v6653, %v6670
      %v6696 = vmax.f32 %v6654, %v6669
      %v6697 = vmax.f32 %v6655, %v6673
      %v6698 = vmax.f32 %v6656, %v6672
      %v6699 = vmax.f32 %v6657, %v6676
      %v6700 = vmax.f32 %v6658, %v6675
      %v6701 = vrot.slane %v6593, 3
      %v6702 = vrot.slane %v6599, 3
      %v6703 = vsel %vm1077, %v6701, %v6702
      %v6704 = vrot.slane %v6594, 3
      %v6705 = vrot.slane %v6600, 3
      %v6706 = vsel %vm1077, %v6704, %v6705
      %v6707 = vrot.slane %v6595, 3
      %v6708 = vrot.slane %v6601, 3
      %v6709 = vsel %vm1077, %v6707, %v6708
      %v6710 = vrot.slane %v6596, 3
      %v6711 = vrot.slane %v6602, 3
      %v6712 = vsel %vm1077, %v6710, %v6711
      %v6713 = vrot.slane %v6597, 3
      %v6714 = vrot.slane %v6603, 3
      %v6715 = vsel %vm1077, %v6713, %v6714
      %v6716 = vrot.slane %v6598, 3
      %v6717 = vrot.slane %v6604, 3
      %v6718 = vsel %vm1077, %v6716, %v6717
      %v6731 = vmax.f32 %v6689, %v6703
      %v6732 = vmax.f32 %v6690, %v6702
      %v6733 = vmax.f32 %v6691, %v6706
      %v6734 = vmax.f32 %v6692, %v6705
      %v6735 = vmax.f32 %v6693, %v6709
      %v6736 = vmax.f32 %v6694, %v6708
      %v6737 = vmax.f32 %v6695, %v6712
      %v6738 = vmax.f32 %v6696, %v6711
      %v6739 = vmax.f32 %v6697, %v6715
      %v6740 = vmax.f32 %v6698, %v6714
      %v6741 = vmax.f32 %v6699, %v6718
      %v6742 = vmax.f32 %v6700, %v6717
      %v6749 = vrot.slane %v6731, 1
      %v6750 = vrot.slane %v6733, 1
      %v6751 = vrot.slane %v6735, 1
      %v6752 = vrot.slane %v6737, 1
      %v6753 = vrot.slane %v6739, 1
      %v6754 = vrot.slane %v6741, 1
      %v6761 = vrot.slane %v6731, 2
      %v6762 = vrot.slane %v6733, 2
      %v6763 = vrot.slane %v6735, 2
      %v6764 = vrot.slane %v6737, 2
      %v6765 = vrot.slane %v6739, 2
      %v6766 = vrot.slane %v6741, 2
      %v6773 = vrot.slane %v6731, 3
      %v6774 = vrot.slane %v6733, 3
      %v6775 = vrot.slane %v6735, 3
      %v6776 = vrot.slane %v6737, 3
      %v6777 = vrot.slane %v6739, 3
      %v6778 = vrot.slane %v6741, 3
      %v6791 = vrot.slane %v6732, 4
      %v6792 = vrot.slane %v6734, 4
      %v6793 = vrot.slane %v6736, 4
      %v6794 = vrot.slane %v6738, 4
      %v6795 = vrot.slane %v6740, 4
      %v6796 = vrot.slane %v6742, 4
      %v6803 = vrot.slane %v6732, 5
      %v6804 = vrot.slane %v6734, 5
      %v6805 = vrot.slane %v6736, 5
      %v6806 = vrot.slane %v6738, 5
      %v6807 = vrot.slane %v6740, 5
      %v6808 = vrot.slane %v6742, 5
      %v6815 = vsel %vm1033, %v6731, %v6749
      %v6816 = vsel %vm1033, %v6733, %v6750
      %v6817 = vsel %vm1033, %v6735, %v6751
      %v6818 = vsel %vm1033, %v6737, %v6752
      %v6819 = vsel %vm1033, %v6739, %v6753
      %v6820 = vsel %vm1033, %v6741, %v6754
      %v6821 = vsel %vm1044, %v6815, %v6761
      %v6822 = vsel %vm1044, %v6816, %v6762
      %v6823 = vsel %vm1044, %v6817, %v6763
      %v6824 = vsel %vm1044, %v6818, %v6764
      %v6825 = vsel %vm1044, %v6819, %v6765
      %v6826 = vsel %vm1044, %v6820, %v6766
      %v6827 = vsel %vm1055, %v6821, %v6773
      %v6828 = vsel %vm1055, %v6822, %v6774
      %v6829 = vsel %vm1055, %v6823, %v6775
      %v6830 = vsel %vm1055, %v6824, %v6776
      %v6831 = vsel %vm1055, %v6825, %v6777
      %v6832 = vsel %vm1055, %v6826, %v6778
      %v6833 = vsel %vm1066, %v6827, %v6791
      %v6834 = vsel %vm1066, %v6828, %v6792
      %v6835 = vsel %vm1066, %v6829, %v6793
      %v6836 = vsel %vm1066, %v6830, %v6794
      %v6837 = vsel %vm1066, %v6831, %v6795
      %v6838 = vsel %vm1066, %v6832, %v6796
      %v6839 = vsel %vm1077, %v6833, %v6803
      %v6840 = vsel %vm1077, %v6834, %v6804
      %v6841 = vsel %vm1077, %v6835, %v6805
      %v6842 = vsel %vm1077, %v6836, %v6806
      %v6843 = vsel %vm1077, %v6837, %v6807
      %v6844 = vsel %vm1077, %v6838, %v6808
      %6851 = vrot.lane.b32.xlu0 %v6839, 2
      %v6852 = vpop.permute.xlu0 %6851
      %6853 = vrot.lane.b32.xlu0 %v6840, 2
      %v6854 = vpop.permute.xlu0 %6853
      %6855 = vrot.lane.b32.xlu0 %v6841, 2
      %v6856 = vpop.permute.xlu0 %6855
      %6857 = vrot.lane.b32.xlu0 %v6842, 2
      %v6858 = vpop.permute.xlu0 %6857
      %6859 = vrot.lane.b32.xlu0 %v6843, 2
      %v6860 = vpop.permute.xlu0 %6859
      %6861 = vrot.lane.b32.xlu0 %v6844, 2
      %v6862 = vpop.permute.xlu0 %6861
      %v6869 = vsel %vm1879, -inf, %v6852
      %v6870 = vsel %vm1879, -inf, %v6854
      %v6871 = vsel %vm1879, -inf, %v6856
      %v6872 = vsel %vm1879, -inf, %v6858
      %v6873 = vsel %vm1879, -inf, %v6860
      %v6874 = vsel %vm1879, -inf, %v6862
      %v6875 = vsel %vm2397, %v6869, -inf
      %v6876 = vsel %vm2397, %v6870, -inf
      %v6877 = vsel %vm2397, %v6871, -inf
      %v6878 = vsel %vm2397, %v6872, -inf
      %v6879 = vsel %vm2397, %v6873, -inf
      %v6880 = vsel %vm2397, %v6874, -inf
      %6887 = vrot.lane.b32.xlu0 %v6875, 127
      %v6888 = vpop.permute.xlu0 %6887
      %6889 = vrot.lane.b32.xlu0 %v6876, 127
      %v6890 = vpop.permute.xlu0 %6889
      %6891 = vrot.lane.b32.xlu0 %v6877, 127
      %v6892 = vpop.permute.xlu0 %6891
      %6893 = vrot.lane.b32.xlu0 %v6878, 127
      %v6894 = vpop.permute.xlu0 %6893
      %6895 = vrot.lane.b32.xlu0 %v6879, 127
      %v6896 = vpop.permute.xlu0 %6895
      %6897 = vrot.lane.b32.xlu0 %v6880, 127
      %v6898 = vpop.permute.xlu0 %6897
      %v6905 = vmax.f32 %v6875, %v6888
      %v6906 = vmax.f32 %v6876, %v6890
      %v6907 = vmax.f32 %v6877, %v6892
      %v6908 = vmax.f32 %v6878, %v6894
      %v6909 = vmax.f32 %v6879, %v6896
      %v6910 = vmax.f32 %v6880, %v6898
      %6911 = vrot.lane.b32.xlu0 %v6875, 126
      %v6912 = vpop.permute.xlu0 %6911
      %6913 = vrot.lane.b32.xlu0 %v6876, 126
      %v6914 = vpop.permute.xlu0 %6913
      %6915 = vrot.lane.b32.xlu0 %v6877, 126
      %v6916 = vpop.permute.xlu0 %6915
      %6917 = vrot.lane.b32.xlu0 %v6878, 126
      %v6918 = vpop.permute.xlu0 %6917
      %6919 = vrot.lane.b32.xlu0 %v6879, 126
      %v6920 = vpop.permute.xlu0 %6919
      %6921 = vrot.lane.b32.xlu0 %v6880, 126
      %v6922 = vpop.permute.xlu0 %6921
      %v6929 = vmax.f32 %v6905, %v6912
      %v6930 = vmax.f32 %v6906, %v6914
      %v6931 = vmax.f32 %v6907, %v6916
      %v6932 = vmax.f32 %v6908, %v6918
      %v6933 = vmax.f32 %v6909, %v6920
      %v6934 = vmax.f32 %v6910, %v6922
      %6935 = vrot.lane.b32.xlu0 %v6875, 125
      %v6936 = vpop.permute.xlu0 %6935
      %6937 = vrot.lane.b32.xlu0 %v6876, 125
      %v6938 = vpop.permute.xlu0 %6937
      %6939 = vrot.lane.b32.xlu0 %v6877, 125
      %v6940 = vpop.permute.xlu0 %6939
      %6941 = vrot.lane.b32.xlu0 %v6878, 125
      %v6942 = vpop.permute.xlu0 %6941
      %6943 = vrot.lane.b32.xlu0 %v6879, 125
      %v6944 = vpop.permute.xlu0 %6943
      %6945 = vrot.lane.b32.xlu0 %v6880, 125
      %v6946 = vpop.permute.xlu0 %6945
      %v6953 = vmax.f32 %v6929, %v6936
      %v6954 = vmax.f32 %v6930, %v6938
      %v6955 = vmax.f32 %v6931, %v6940
      %v6956 = vmax.f32 %v6932, %v6942
      %v6957 = vmax.f32 %v6933, %v6944
      %v6958 = vmax.f32 %v6934, %v6946
      %6965 = vrot.lane.b32.xlu0 %v6953, 127
      %v6966 = vpop.permute.xlu0 %6965
      %6967 = vrot.lane.b32.xlu0 %v6954, 127
      %v6968 = vpop.permute.xlu0 %6967
      %6969 = vrot.lane.b32.xlu0 %v6955, 127
      %v6970 = vpop.permute.xlu0 %6969
      %6971 = vrot.lane.b32.xlu0 %v6956, 127
      %v6972 = vpop.permute.xlu0 %6971
      %6973 = vrot.lane.b32.xlu0 %v6957, 127
      %v6974 = vpop.permute.xlu0 %6973
      %6975 = vrot.lane.b32.xlu0 %v6958, 127
      %v6976 = vpop.permute.xlu0 %6975
      %6983 = vrot.lane.b32.xlu0 %v6953, 126
      %v6984 = vpop.permute.xlu0 %6983
      %6985 = vrot.lane.b32.xlu0 %v6954, 126
      %v6986 = vpop.permute.xlu0 %6985
      %6987 = vrot.lane.b32.xlu0 %v6955, 126
      %v6988 = vpop.permute.xlu0 %6987
      %6989 = vrot.lane.b32.xlu0 %v6956, 126
      %v6990 = vpop.permute.xlu0 %6989
      %6991 = vrot.lane.b32.xlu0 %v6957, 126
      %v6992 = vpop.permute.xlu0 %6991
      %6993 = vrot.lane.b32.xlu0 %v6958, 126
      %v6994 = vpop.permute.xlu0 %6993
      %7001 = vrot.lane.b32.xlu0 %v6953, 125
      %v7002 = vpop.permute.xlu0 %7001
      %7003 = vrot.lane.b32.xlu0 %v6954, 125
      %v7004 = vpop.permute.xlu0 %7003
      %7005 = vrot.lane.b32.xlu0 %v6955, 125
      %v7006 = vpop.permute.xlu0 %7005
      %7007 = vrot.lane.b32.xlu0 %v6956, 125
      %v7008 = vpop.permute.xlu0 %7007
      %7009 = vrot.lane.b32.xlu0 %v6957, 125
      %v7010 = vpop.permute.xlu0 %7009
      %7011 = vrot.lane.b32.xlu0 %v6958, 125
      %v7012 = vpop.permute.xlu0 %7011
      %7019 = vrot.lane.b32.xlu0 %v6953, 124
      %v7020 = vpop.permute.xlu0 %7019
      %7021 = vrot.lane.b32.xlu0 %v6954, 124
      %v7022 = vpop.permute.xlu0 %7021
      %7023 = vrot.lane.b32.xlu0 %v6955, 124
      %v7024 = vpop.permute.xlu0 %7023
      %7025 = vrot.lane.b32.xlu0 %v6956, 124
      %v7026 = vpop.permute.xlu0 %7025
      %7027 = vrot.lane.b32.xlu0 %v6957, 124
      %v7028 = vpop.permute.xlu0 %7027
      %7029 = vrot.lane.b32.xlu0 %v6958, 124
      %v7030 = vpop.permute.xlu0 %7029
      %7037 = vrot.lane.b32.xlu0 %v6953, 123
      %v7038 = vpop.permute.xlu0 %7037
      %7039 = vrot.lane.b32.xlu0 %v6954, 123
      %v7040 = vpop.permute.xlu0 %7039
      %7041 = vrot.lane.b32.xlu0 %v6955, 123
      %v7042 = vpop.permute.xlu0 %7041
      %7043 = vrot.lane.b32.xlu0 %v6956, 123
      %v7044 = vpop.permute.xlu0 %7043
      %7045 = vrot.lane.b32.xlu0 %v6957, 123
      %v7046 = vpop.permute.xlu0 %7045
      %7047 = vrot.lane.b32.xlu0 %v6958, 123
      %v7048 = vpop.permute.xlu0 %7047
      %v7055 = vsel %vm1858, %v6953, %v6966
      %v7056 = vsel %vm1858, %v6954, %v6968
      %v7057 = vsel %vm1858, %v6955, %v6970
      %v7058 = vsel %vm1858, %v6956, %v6972
      %v7059 = vsel %vm1858, %v6957, %v6974
      %v7060 = vsel %vm1858, %v6958, %v6976
      %v7061 = vsel %vm1879, %v7055, %v6984
      %v7062 = vsel %vm1879, %v7056, %v6986
      %v7063 = vsel %vm1879, %v7057, %v6988
      %v7064 = vsel %vm1879, %v7058, %v6990
      %v7065 = vsel %vm1879, %v7059, %v6992
      %v7066 = vsel %vm1879, %v7060, %v6994
      %v7067 = vsel %vm1900, %v7061, %v7002
      %v7068 = vsel %vm1900, %v7062, %v7004
      %v7069 = vsel %vm1900, %v7063, %v7006
      %v7070 = vsel %vm1900, %v7064, %v7008
      %v7071 = vsel %vm1900, %v7065, %v7010
      %v7072 = vsel %vm1900, %v7066, %v7012
      %v7073 = vsel %vm1921, %v7067, %v7020
      %v7074 = vsel %vm1921, %v7068, %v7022
      %v7075 = vsel %vm1921, %v7069, %v7024
      %v7076 = vsel %vm1921, %v7070, %v7026
      %v7077 = vsel %vm1921, %v7071, %v7028
      %v7078 = vsel %vm1921, %v7072, %v7030
      %v7079 = vsel %vm1942, %v7073, %v7038
      %v7080 = vsel %vm1942, %v7074, %v7040
      %v7081 = vsel %vm1942, %v7075, %v7042
      %v7082 = vsel %vm1942, %v7076, %v7044
      %v7083 = vsel %vm1942, %v7077, %v7046
      %v7084 = vsel %vm1942, %v7078, %v7048
      %v7091 = vrot.slane %v7079, 1
      %v7092 = vrot.slane %v7080, 1
      %v7093 = vrot.slane %v7081, 1
      %v7094 = vrot.slane %v7082, 1
      %v7095 = vrot.slane %v7083, 1
      %v7096 = vrot.slane %v7084, 1
      %v7103 = vmax.f32 %v7079, %v7091
      %v7104 = vmax.f32 %v7080, %v7092
      %v7105 = vmax.f32 %v7081, %v7093
      %v7106 = vmax.f32 %v7082, %v7094
      %v7107 = vmax.f32 %v7083, %v7095
      %v7108 = vmax.f32 %v7084, %v7096
      %7115 = vrot.lane.b32.xlu0 %v7103, 1
      %v7116 = vpop.permute.xlu0 %7115
      %7117 = vrot.lane.b32.xlu0 %v7104, 1
      %v7118 = vpop.permute.xlu0 %7117
      %7119 = vrot.lane.b32.xlu0 %v7105, 1
      %v7120 = vpop.permute.xlu0 %7119
      %7121 = vrot.lane.b32.xlu0 %v7106, 1
      %v7122 = vpop.permute.xlu0 %7121
      %7123 = vrot.lane.b32.xlu0 %v7107, 1
      %v7124 = vpop.permute.xlu0 %7123
      %7125 = vrot.lane.b32.xlu0 %v7108, 1
      %v7126 = vpop.permute.xlu0 %7125
      %v7133 = vsel %vm1858, -inf, %v7116
      %v7134 = vsel %vm1858, -inf, %v7118
      %v7135 = vsel %vm1858, -inf, %v7120
      %v7136 = vsel %vm1858, -inf, %v7122
      %v7137 = vsel %vm1858, -inf, %v7124
      %v7138 = vsel %vm1858, -inf, %v7126
      %v7139 = vsel %vm1984, %v7133, -inf
      %v7140 = vsel %vm1984, %v7134, -inf
      %v7141 = vsel %vm1984, %v7135, -inf
      %v7142 = vsel %vm1984, %v7136, -inf
      %v7143 = vsel %vm1984, %v7137, -inf
      %v7144 = vsel %vm1984, %v7138, -inf
      %7151 = vrot.lane.b32.xlu0 %v7139, 127
      %v7152 = vpop.permute.xlu0 %7151
      %7153 = vrot.lane.b32.xlu0 %v7140, 127
      %v7154 = vpop.permute.xlu0 %7153
      %7155 = vrot.lane.b32.xlu0 %v7141, 127
      %v7156 = vpop.permute.xlu0 %7155
      %7157 = vrot.lane.b32.xlu0 %v7142, 127
      %v7158 = vpop.permute.xlu0 %7157
      %7159 = vrot.lane.b32.xlu0 %v7143, 127
      %v7160 = vpop.permute.xlu0 %7159
      %7161 = vrot.lane.b32.xlu0 %v7144, 127
      %v7162 = vpop.permute.xlu0 %7161
      %v7169 = vmax.f32 %v7139, %v7152
      %v7170 = vmax.f32 %v7140, %v7154
      %v7171 = vmax.f32 %v7141, %v7156
      %v7172 = vmax.f32 %v7142, %v7158
      %v7173 = vmax.f32 %v7143, %v7160
      %v7174 = vmax.f32 %v7144, %v7162
      %7175 = vrot.lane.b32.xlu0 %v7139, 126
      %v7176 = vpop.permute.xlu0 %7175
      %7177 = vrot.lane.b32.xlu0 %v7140, 126
      %v7178 = vpop.permute.xlu0 %7177
      %7179 = vrot.lane.b32.xlu0 %v7141, 126
      %v7180 = vpop.permute.xlu0 %7179
      %7181 = vrot.lane.b32.xlu0 %v7142, 126
      %v7182 = vpop.permute.xlu0 %7181
      %7183 = vrot.lane.b32.xlu0 %v7143, 126
      %v7184 = vpop.permute.xlu0 %7183
      %7185 = vrot.lane.b32.xlu0 %v7144, 126
      %v7186 = vpop.permute.xlu0 %7185
      %v7193 = vmax.f32 %v7169, %v7176
      %v7194 = vmax.f32 %v7170, %v7178
      %v7195 = vmax.f32 %v7171, %v7180
      %v7196 = vmax.f32 %v7172, %v7182
      %v7197 = vmax.f32 %v7173, %v7184
      %v7198 = vmax.f32 %v7174, %v7186
      %v7199 = vmax.f32 %v7193, %v7194
      %v7200 = vmax.f32 %v7194, %v7195
      %v7201 = vmax.f32 %v7195, %v7196
      %v7202 = vmax.f32 %v7196, %v7197
      %v7203 = vmax.f32 %v7197, %v7198
      %v7204 = vmax.f32 %v7199, %v7195
      %v7205 = vmax.f32 %v7200, %v7196
      %v7206 = vmax.f32 %v7201, %v7197
      %v7207 = vmax.f32 %v7202, %v7198
      %v7214 = vrot.slane %v7199, 6
      %v7215 = vrot.slane %v7204, 6
      %v7216 = vrot.slane %v7205, 6
      %v7217 = vrot.slane %v7206, 6
      %v7218 = vrot.slane %v7207, 6
      %v7219 = vrot.slane %v7203, 6
      %v7226 = vsel %vm1044, -inf, %v7214
      %v7227 = vsel %vm1044, -inf, %v7215
      %v7228 = vsel %vm1044, -inf, %v7216
      %v7229 = vsel %vm1044, -inf, %v7217
      %v7230 = vsel %vm1044, -inf, %v7218
      %v7231 = vsel %vm1044, -inf, %v7219
      %v7232 = vsel %vm551, %v7226, -inf
      %v7233 = vsel %vm551, %v7227, -inf
      %v7234 = vsel %vm551, %v7228, -inf
      %v7235 = vsel %vm551, %v7229, -inf
      %v7236 = vsel %vm551, %v7230, -inf
      %v7237 = vsel %vm551, %v7231, -inf
      %v7244 = vrot.slane %v7232, 1
      %v7245 = vrot.slane %v7233, 1
      %v7246 = vrot.slane %v7234, 1
      %v7247 = vrot.slane %v7235, 1
      %v7248 = vrot.slane %v7236, 1
      %v7249 = vrot.slane %v7237, 1
      %v7256 = vmax.f32 %v7232, %v7244
      %v7257 = vmax.f32 %v7233, %v7245
      %v7258 = vmax.f32 %v7234, %v7246
      %v7259 = vmax.f32 %v7235, %v7247
      %v7260 = vmax.f32 %v7236, %v7248
      %v7261 = vmax.f32 %v7237, %v7249
      %v7262 = vrot.slane %v7232, 2
      %v7263 = vsel %vm702, %v7262, %v2787
      %v7264 = vrot.slane %v7233, 2
      %v7265 = vsel %vm702, %v7264, %v2787
      %v7266 = vrot.slane %v7234, 2
      %v7267 = vsel %vm702, %v7266, %v2787
      %v7268 = vrot.slane %v7235, 2
      %v7269 = vsel %vm702, %v7268, %v2787
      %v7270 = vrot.slane %v7236, 2
      %v7271 = vsel %vm702, %v7270, %v2787
      %v7272 = vrot.slane %v7237, 2
      %v7273 = vsel %vm702, %v7272, %v2787
      %v7280 = vmax.f32 %v7256, %v7263
      %v7281 = vmax.f32 %v7257, %v7265
      %v7282 = vmax.f32 %v7258, %v7267
      %v7283 = vmax.f32 %v7259, %v7269
      %v7284 = vmax.f32 %v7260, %v7271
      %v7285 = vmax.f32 %v7261, %v7273
      %v7286 = vrot.slane %v7232, 3
      %v7287 = vsel %vm1077, %v7286, %v2812
      %v7288 = vrot.slane %v7233, 3
      %v7289 = vsel %vm1077, %v7288, %v2812
      %v7290 = vrot.slane %v7234, 3
      %v7291 = vsel %vm1077, %v7290, %v2812
      %v7292 = vrot.slane %v7235, 3
      %v7293 = vsel %vm1077, %v7292, %v2812
      %v7294 = vrot.slane %v7236, 3
      %v7295 = vsel %vm1077, %v7294, %v2812
      %v7296 = vrot.slane %v7237, 3
      %v7297 = vsel %vm1077, %v7296, %v2812
      %v7304 = vmax.f32 %v7280, %v7287
      %v7305 = vmax.f32 %v7281, %v7289
      %v7306 = vmax.f32 %v7282, %v7291
      %v7307 = vmax.f32 %v7283, %v7293
      %v7308 = vmax.f32 %v7284, %v7295
      %v7309 = vmax.f32 %v7285, %v7297
      %v7316 = vrot.slane %v7304, 1
      %v7317 = vrot.slane %v7305, 1
      %v7318 = vrot.slane %v7306, 1
      %v7319 = vrot.slane %v7307, 1
      %v7320 = vrot.slane %v7308, 1
      %v7321 = vrot.slane %v7309, 1
      %v7328 = vrot.slane %v7304, 2
      %v7329 = vrot.slane %v7305, 2
      %v7330 = vrot.slane %v7306, 2
      %v7331 = vrot.slane %v7307, 2
      %v7332 = vrot.slane %v7308, 2
      %v7333 = vrot.slane %v7309, 2
      %v7340 = vrot.slane %v7304, 3
      %v7341 = vrot.slane %v7305, 3
      %v7342 = vrot.slane %v7306, 3
      %v7343 = vrot.slane %v7307, 3
      %v7344 = vrot.slane %v7308, 3
      %v7345 = vrot.slane %v7309, 3
      %v7352 = vsel %vm1033, %v7304, %v7316
      %v7353 = vsel %vm1033, %v7305, %v7317
      %v7354 = vsel %vm1033, %v7306, %v7318
      %v7355 = vsel %vm1033, %v7307, %v7319
      %v7356 = vsel %vm1033, %v7308, %v7320
      %v7357 = vsel %vm1033, %v7309, %v7321
      %v7358 = vsel %vm1044, %v7352, %v7328
      %v7359 = vsel %vm1044, %v7353, %v7329
      %v7360 = vsel %vm1044, %v7354, %v7330
      %v7361 = vsel %vm1044, %v7355, %v7331
      %v7362 = vsel %vm1044, %v7356, %v7332
      %v7363 = vsel %vm1044, %v7357, %v7333
      %v7364 = vsel %vm1055, %v7358, %v7340
      %v7365 = vsel %vm1055, %v7359, %v7341
      %v7366 = vsel %vm1055, %v7360, %v7342
      %v7367 = vsel %vm1055, %v7361, %v7343
      %v7368 = vsel %vm1055, %v7362, %v7344
      %v7369 = vsel %vm1055, %v7363, %v7345
      %7376 = vrot.lane.b32.xlu0 %v7364, 2
      %v7377 = vpop.permute.xlu0 %7376
      %7378 = vrot.lane.b32.xlu0 %v7365, 2
      %v7379 = vpop.permute.xlu0 %7378
      %7380 = vrot.lane.b32.xlu0 %v7366, 2
      %v7381 = vpop.permute.xlu0 %7380
      %7382 = vrot.lane.b32.xlu0 %v7367, 2
      %v7383 = vpop.permute.xlu0 %7382
      %7384 = vrot.lane.b32.xlu0 %v7368, 2
      %v7385 = vpop.permute.xlu0 %7384
      %7386 = vrot.lane.b32.xlu0 %v7369, 2
      %v7387 = vpop.permute.xlu0 %7386
      %v7394 = vsel %vm1879, -inf, %v7377
      %v7395 = vsel %vm1879, -inf, %v7379
      %v7396 = vsel %vm1879, -inf, %v7381
      %v7397 = vsel %vm1879, -inf, %v7383
      %v7398 = vsel %vm1879, -inf, %v7385
      %v7399 = vsel %vm1879, -inf, %v7387
      %v7400 = vsel %vm2005, %v7394, -inf
      %v7401 = vsel %vm2005, %v7395, -inf
      %v7402 = vsel %vm2005, %v7396, -inf
      %v7403 = vsel %vm2005, %v7397, -inf
      %v7404 = vsel %vm2005, %v7398, -inf
      %v7405 = vsel %vm2005, %v7399, -inf
      %7412 = vrot.lane.b32.xlu0 %v7400, 127
      %v7413 = vpop.permute.xlu0 %7412
      %7414 = vrot.lane.b32.xlu0 %v7401, 127
      %v7415 = vpop.permute.xlu0 %7414
      %7416 = vrot.lane.b32.xlu0 %v7402, 127
      %v7417 = vpop.permute.xlu0 %7416
      %7418 = vrot.lane.b32.xlu0 %v7403, 127
      %v7419 = vpop.permute.xlu0 %7418
      %7420 = vrot.lane.b32.xlu0 %v7404, 127
      %v7421 = vpop.permute.xlu0 %7420
      %7422 = vrot.lane.b32.xlu0 %v7405, 127
      %v7423 = vpop.permute.xlu0 %7422
      %v7430 = vmax.f32 %v7400, %v7413
      %v7431 = vmax.f32 %v7401, %v7415
      %v7432 = vmax.f32 %v7402, %v7417
      %v7433 = vmax.f32 %v7403, %v7419
      %v7434 = vmax.f32 %v7404, %v7421
      %v7435 = vmax.f32 %v7405, %v7423
      %7436 = vrot.lane.b32.xlu0 %v7400, 126
      %v7437 = vpop.permute.xlu0 %7436
      %7438 = vrot.lane.b32.xlu0 %v7401, 126
      %v7439 = vpop.permute.xlu0 %7438
      %7440 = vrot.lane.b32.xlu0 %v7402, 126
      %v7441 = vpop.permute.xlu0 %7440
      %7442 = vrot.lane.b32.xlu0 %v7403, 126
      %v7443 = vpop.permute.xlu0 %7442
      %7444 = vrot.lane.b32.xlu0 %v7404, 126
      %v7445 = vpop.permute.xlu0 %7444
      %7446 = vrot.lane.b32.xlu0 %v7405, 126
      %v7447 = vpop.permute.xlu0 %7446
      %v7454 = vmax.f32 %v7430, %v7437
      %v7455 = vmax.f32 %v7431, %v7439
      %v7456 = vmax.f32 %v7432, %v7441
      %v7457 = vmax.f32 %v7433, %v7443
      %v7458 = vmax.f32 %v7434, %v7445
      %v7459 = vmax.f32 %v7435, %v7447
      %7460 = vrot.lane.b32.xlu0 %v7400, 125
      %v7461 = vpop.permute.xlu0 %7460
      %7462 = vrot.lane.b32.xlu0 %v7401, 125
      %v7463 = vpop.permute.xlu0 %7462
      %7464 = vrot.lane.b32.xlu0 %v7402, 125
      %v7465 = vpop.permute.xlu0 %7464
      %7466 = vrot.lane.b32.xlu0 %v7403, 125
      %v7467 = vpop.permute.xlu0 %7466
      %7468 = vrot.lane.b32.xlu0 %v7404, 125
      %v7469 = vpop.permute.xlu0 %7468
      %7470 = vrot.lane.b32.xlu0 %v7405, 125
      %v7471 = vpop.permute.xlu0 %7470
      %v7478 = vmax.f32 %v7454, %v7461
      %v7479 = vmax.f32 %v7455, %v7463
      %v7480 = vmax.f32 %v7456, %v7465
      %v7481 = vmax.f32 %v7457, %v7467
      %v7482 = vmax.f32 %v7458, %v7469
      %v7483 = vmax.f32 %v7459, %v7471
      %7484 = vrot.lane.b32.xlu0 %v7400, 124
      %v7485 = vpop.permute.xlu0 %7484
      %7486 = vrot.lane.b32.xlu0 %v7401, 124
      %v7487 = vpop.permute.xlu0 %7486
      %7488 = vrot.lane.b32.xlu0 %v7402, 124
      %v7489 = vpop.permute.xlu0 %7488
      %7490 = vrot.lane.b32.xlu0 %v7403, 124
      %v7491 = vpop.permute.xlu0 %7490
      %7492 = vrot.lane.b32.xlu0 %v7404, 124
      %v7493 = vpop.permute.xlu0 %7492
      %7494 = vrot.lane.b32.xlu0 %v7405, 124
      %v7495 = vpop.permute.xlu0 %7494
      %v7502 = vmax.f32 %v7478, %v7485
      %v7503 = vmax.f32 %v7479, %v7487
      %v7504 = vmax.f32 %v7480, %v7489
      %v7505 = vmax.f32 %v7481, %v7491
      %v7506 = vmax.f32 %v7482, %v7493
      %v7507 = vmax.f32 %v7483, %v7495
      %7514 = vrot.lane.b32.xlu0 %v7502, 127
      %v7515 = vpop.permute.xlu0 %7514
      %7516 = vrot.lane.b32.xlu0 %v7503, 127
      %v7517 = vpop.permute.xlu0 %7516
      %7518 = vrot.lane.b32.xlu0 %v7504, 127
      %v7519 = vpop.permute.xlu0 %7518
      %7520 = vrot.lane.b32.xlu0 %v7505, 127
      %v7521 = vpop.permute.xlu0 %7520
      %7522 = vrot.lane.b32.xlu0 %v7506, 127
      %v7523 = vpop.permute.xlu0 %7522
      %7524 = vrot.lane.b32.xlu0 %v7507, 127
      %v7525 = vpop.permute.xlu0 %7524
      %7532 = vrot.lane.b32.xlu0 %v7502, 126
      %v7533 = vpop.permute.xlu0 %7532
      %7534 = vrot.lane.b32.xlu0 %v7503, 126
      %v7535 = vpop.permute.xlu0 %7534
      %7536 = vrot.lane.b32.xlu0 %v7504, 126
      %v7537 = vpop.permute.xlu0 %7536
      %7538 = vrot.lane.b32.xlu0 %v7505, 126
      %v7539 = vpop.permute.xlu0 %7538
      %7540 = vrot.lane.b32.xlu0 %v7506, 126
      %v7541 = vpop.permute.xlu0 %7540
      %7542 = vrot.lane.b32.xlu0 %v7507, 126
      %v7543 = vpop.permute.xlu0 %7542
      %7550 = vrot.lane.b32.xlu0 %v7502, 125
      %v7551 = vpop.permute.xlu0 %7550
      %7552 = vrot.lane.b32.xlu0 %v7503, 125
      %v7553 = vpop.permute.xlu0 %7552
      %7554 = vrot.lane.b32.xlu0 %v7504, 125
      %v7555 = vpop.permute.xlu0 %7554
      %7556 = vrot.lane.b32.xlu0 %v7505, 125
      %v7557 = vpop.permute.xlu0 %7556
      %7558 = vrot.lane.b32.xlu0 %v7506, 125
      %v7559 = vpop.permute.xlu0 %7558
      %7560 = vrot.lane.b32.xlu0 %v7507, 125
      %v7561 = vpop.permute.xlu0 %7560
      %v7568 = vsel %vm1858, %v7502, %v7515
      %v7569 = vsel %vm1858, %v7503, %v7517
      %v7570 = vsel %vm1858, %v7504, %v7519
      %v7571 = vsel %vm1858, %v7505, %v7521
      %v7572 = vsel %vm1858, %v7506, %v7523
      %v7573 = vsel %vm1858, %v7507, %v7525
      %v7574 = vsel %vm1879, %v7568, %v7533
      %v7575 = vsel %vm1879, %v7569, %v7535
      %v7576 = vsel %vm1879, %v7570, %v7537
      %v7577 = vsel %vm1879, %v7571, %v7539
      %v7578 = vsel %vm1879, %v7572, %v7541
      %v7579 = vsel %vm1879, %v7573, %v7543
      %v7580 = vsel %vm1900, %v7574, %v7551
      %v7581 = vsel %vm1900, %v7575, %v7553
      %v7582 = vsel %vm1900, %v7576, %v7555
      %v7583 = vsel %vm1900, %v7577, %v7557
      %v7584 = vsel %vm1900, %v7578, %v7559
      %v7585 = vsel %vm1900, %v7579, %v7561
      %v7586 = vmax.f32 %v7580, %v7581
      %v7587 = vmax.f32 %v7581, %v7582
      %v7588 = vmax.f32 %v7582, %v7583
      %v7589 = vmax.f32 %v7583, %v7584
      %v7590 = vmax.f32 %v7584, %v7585
      %v7598 = vrot.slane %v7580, 7
      %v7599 = vrot.slane %v7586, 7
      %v7600 = vrot.slane %v7587, 7
      %v7601 = vrot.slane %v7588, 7
      %v7602 = vrot.slane %v7589, 7
      %v7603 = vrot.slane %v7590, 7
      %v7604 = vrot.slane %v7585, 7
      %v7612 = vsel %vm1033, -inf, %v7598
      %v7613 = vsel %vm1033, -inf, %v7599
      %v7614 = vsel %vm1033, -inf, %v7600
      %v7615 = vsel %vm1033, -inf, %v7601
      %v7616 = vsel %vm1033, -inf, %v7602
      %v7617 = vsel %vm1033, -inf, %v7603
      %v7618 = vsel %vm1033, -inf, %v7604
      %v7619 = vsel %vm1077, %v7612, -inf
      %v7620 = vsel %vm1077, %v7613, -inf
      %v7621 = vsel %vm1077, %v7614, -inf
      %v7622 = vsel %vm1077, %v7615, -inf
      %v7623 = vsel %vm1077, %v7616, -inf
      %v7624 = vsel %vm1077, %v7617, -inf
      %v7625 = vsel %vm1077, %v7618, -inf
      %v7633 = vrot.slane %v7619, 2
      %v7634 = vrot.slane %v7620, 2
      %v7635 = vrot.slane %v7621, 2
      %v7636 = vrot.slane %v7622, 2
      %v7637 = vrot.slane %v7623, 2
      %v7638 = vrot.slane %v7624, 2
      %v7639 = vrot.slane %v7625, 2
      %v7647 = vmax.f32 %v7619, %v7633
      %v7648 = vmax.f32 %v7620, %v7634
      %v7649 = vmax.f32 %v7621, %v7635
      %v7650 = vmax.f32 %v7622, %v7636
      %v7651 = vmax.f32 %v7623, %v7637
      %v7652 = vmax.f32 %v7624, %v7638
      %v7653 = vmax.f32 %v7625, %v7639
      %v7654 = vrot.slane %v7619, 4
      %v7655 = vrot.slane %v7620, 4
      %v7656 = vrot.slane %v7621, 4
      %v7657 = vrot.slane %v7622, 4
      %v7658 = vrot.slane %v7623, 4
      %v7659 = vrot.slane %v7624, 4
      %v7660 = vrot.slane %v7625, 4
      %v7668 = vmax.f32 %v7647, %v7654
      %v7669 = vmax.f32 %v7648, %v7655
      %v7670 = vmax.f32 %v7649, %v7656
      %v7671 = vmax.f32 %v7650, %v7657
      %v7672 = vmax.f32 %v7651, %v7658
      %v7673 = vmax.f32 %v7652, %v7659
      %v7674 = vmax.f32 %v7653, %v7660
      %7682 = vrot.lane.b32.xlu0 %v7668, 1
      %v7683 = vpop.permute.xlu0 %7682
      %7684 = vrot.lane.b32.xlu0 %v7669, 1
      %v7685 = vpop.permute.xlu0 %7684
      %7686 = vrot.lane.b32.xlu0 %v7670, 1
      %v7687 = vpop.permute.xlu0 %7686
      %7688 = vrot.lane.b32.xlu0 %v7671, 1
      %v7689 = vpop.permute.xlu0 %7688
      %7690 = vrot.lane.b32.xlu0 %v7672, 1
      %v7691 = vpop.permute.xlu0 %7690
      %7692 = vrot.lane.b32.xlu0 %v7673, 1
      %v7693 = vpop.permute.xlu0 %7692
      %7694 = vrot.lane.b32.xlu0 %v7674, 1
      %v7695 = vpop.permute.xlu0 %7694
      %v7703 = vsel %vm1858, -inf, %v7683
      %v7704 = vsel %vm1858, -inf, %v7685
      %v7705 = vsel %vm1858, -inf, %v7687
      %v7706 = vsel %vm1858, -inf, %v7689
      %v7707 = vsel %vm1858, -inf, %v7691
      %v7708 = vsel %vm1858, -inf, %v7693
      %v7709 = vsel %vm1858, -inf, %v7695
      %v7710 = vsel %vm1942, %v7703, -inf
      %v7711 = vsel %vm1942, %v7704, -inf
      %v7712 = vsel %vm1942, %v7705, -inf
      %v7713 = vsel %vm1942, %v7706, -inf
      %v7714 = vsel %vm1942, %v7707, -inf
      %v7715 = vsel %vm1942, %v7708, -inf
      %v7716 = vsel %vm1942, %v7709, -inf
      %7724 = vrot.lane.b32.xlu0 %v7710, 126
      %v7725 = vpop.permute.xlu0 %7724
      %7726 = vrot.lane.b32.xlu0 %v7711, 126
      %v7727 = vpop.permute.xlu0 %7726
      %7728 = vrot.lane.b32.xlu0 %v7712, 126
      %v7729 = vpop.permute.xlu0 %7728
      %7730 = vrot.lane.b32.xlu0 %v7713, 126
      %v7731 = vpop.permute.xlu0 %7730
      %7732 = vrot.lane.b32.xlu0 %v7714, 126
      %v7733 = vpop.permute.xlu0 %7732
      %7734 = vrot.lane.b32.xlu0 %v7715, 126
      %v7735 = vpop.permute.xlu0 %7734
      %7736 = vrot.lane.b32.xlu0 %v7716, 126
      %v7737 = vpop.permute.xlu0 %7736
      %v7745 = vmax.f32 %v7710, %v7725
      %v7746 = vmax.f32 %v7711, %v7727
      %v7747 = vmax.f32 %v7712, %v7729
      %v7748 = vmax.f32 %v7713, %v7731
      %v7749 = vmax.f32 %v7714, %v7733
      %v7750 = vmax.f32 %v7715, %v7735
      %v7751 = vmax.f32 %v7716, %v7737
      %7752 = vrot.lane.b32.xlu0 %v7710, 124
      %v7753 = vpop.permute.xlu0 %7752
      %7754 = vrot.lane.b32.xlu0 %v7711, 124
      %v7755 = vpop.permute.xlu0 %7754
      %7756 = vrot.lane.b32.xlu0 %v7712, 124
      %v7757 = vpop.permute.xlu0 %7756
      %7758 = vrot.lane.b32.xlu0 %v7713, 124
      %v7759 = vpop.permute.xlu0 %7758
      %7760 = vrot.lane.b32.xlu0 %v7714, 124
      %v7761 = vpop.permute.xlu0 %7760
      %7762 = vrot.lane.b32.xlu0 %v7715, 124
      %v7763 = vpop.permute.xlu0 %7762
      %7764 = vrot.lane.b32.xlu0 %v7716, 124
      %v7765 = vpop.permute.xlu0 %7764
      %v7773 = vmax.f32 %v7745, %v7753
      %v7774 = vmax.f32 %v7746, %v7755
      %v7775 = vmax.f32 %v7747, %v7757
      %v7776 = vmax.f32 %v7748, %v7759
      %v7777 = vmax.f32 %v7749, %v7761
      %v7778 = vmax.f32 %v7750, %v7763
      %v7779 = vmax.f32 %v7751, %v7765
      %v7780 = vmax.f32 %v7773, %v7774
      %v7781 = vmax.f32 %v7774, %v7775
      %v7782 = vmax.f32 %v7775, %v7776
      %v7783 = vmax.f32 %v7776, %v7777
      %v7784 = vmax.f32 %v7777, %v7778
      %v7785 = vmax.f32 %v7778, %v7779
      %v7792 = vrot.slane %v7780, 1
      %v7793 = vrot.slane %v7781, 1
      %v7794 = vrot.slane %v7782, 1
      %v7795 = vrot.slane %v7783, 1
      %v7796 = vrot.slane %v7784, 1
      %v7797 = vrot.slane %v7785, 1
      %v7804 = vmax.f32 %v7780, %v7792
      %v7805 = vmax.f32 %v7781, %v7793
      %v7806 = vmax.f32 %v7782, %v7794
      %v7807 = vmax.f32 %v7783, %v7795
      %v7808 = vmax.f32 %v7784, %v7796
      %v7809 = vmax.f32 %v7785, %v7797
      %7816 = vrot.lane.b32.xlu0 %v7804, 127
      %v7817 = vpop.permute.xlu0 %7816
      %7818 = vrot.lane.b32.xlu0 %v7805, 127
      %v7819 = vpop.permute.xlu0 %7818
      %7820 = vrot.lane.b32.xlu0 %v7806, 127
      %v7821 = vpop.permute.xlu0 %7820
      %7822 = vrot.lane.b32.xlu0 %v7807, 127
      %v7823 = vpop.permute.xlu0 %7822
      %7824 = vrot.lane.b32.xlu0 %v7808, 127
      %v7825 = vpop.permute.xlu0 %7824
      %7826 = vrot.lane.b32.xlu0 %v7809, 127
      %v7827 = vpop.permute.xlu0 %7826
      %v7834 = vmax.f32 %v7804, %v7817
      %v7835 = vmax.f32 %v7805, %v7819
      %v7836 = vmax.f32 %v7806, %v7821
      %v7837 = vmax.f32 %v7807, %v7823
      %v7838 = vmax.f32 %v7808, %v7825
      %v7839 = vmax.f32 %v7809, %v7827
      %vm7840 = vcmask 0
      %7841 = vst.msk [vmem:[%s310] sm:$0x1] %vm7840, %v7834
      %7842 = vst.msk [vmem:[%s310 + $0x1] sm:$0x1] %vm7840, %v7835
      %7843 = vst.msk [vmem:[%s310 + $0x2] sm:$0x1] %vm7840, %v7836
      %7844 = vst.msk [vmem:[%s310 + $0x3] sm:$0x1] %vm7840, %v7837
      %7845 = vst.msk [vmem:[%s310 + $0x4] sm:$0x1] %vm7840, %v7838
      %7846 = vst.msk [vmem:[%s310 + $0x5] sm:$0x1] %vm7840, %v7839
      %p7847 = scmp.lt.s32.totalorder %s20, 0
      %s7848 = scalar_select %p7847, %s20, 0
      %p7849 = scmp.lt.s32.totalorder %s21, 1
      %s7850 = scalar_select %p7849, %s21, 1
      %s7851 = smul.addr %s7850, 6
      %s7852 = smul.addr %s7848, 12
      %s7853 = sadd.s32 %s7851, %s7852
      %s7854 = smul.addr %s7853, 2
      %s7855 = scalar_lea.vmem %s2, %s7854
      %p7856 = scmp.lt.s32.totalorder %s20, 0
      %s7857 = scalar_select %p7856, %s20, 0
      %p7858 = scmp.lt.s32.totalorder %s21, 1
      %s7859 = scalar_select %p7858, %s21, 1
      %s7860 = smul.addr %s7859, 6
      %s7861 = smul.addr %s7857, 12
      %s7862 = sadd.s32 %s7860, %s7861
      %s7863 = smul.addr %s7862, 2
      %s7864 = scalar_lea.vmem %s3, %s7863
      %p7865 = scmp.lt.s32.totalorder %s20, 0
      %s7866 = scalar_select %p7865, %s20, 0
      %p7867 = scmp.lt.s32.totalorder %s21, 1
      %s7868 = scalar_select %p7867, %s21, 1
      %s7869 = smul.addr %s7868, 6
      %s7870 = smul.addr %s7866, 12
      %s7871 = sadd.s32 %s7869, %s7870
      %s7872 = scalar_lea.vmem %s4, %s7871
      // Predicated region
      $region29: #{model_forward.1} parent=27 // pred_check
        %p7873 = pneg %p104
      $region30: #{model_forward.1} parent=27 // pred_check_branch
        %7875 = sbr.rel (%p7873) target = $region32
      $region31: #{model_forward.1} parent=27 // pred_region
        _
      $region32: #{model_forward.1} parent=27 // pred_fallthru
        _
      // Predicated region
      $region33: #{model_forward.1} parent=27 // pred_check
        %p7876 = pneg %p132
      $region34: #{model_forward.1} parent=27 // pred_check_branch
        %7878 = sbr.rel (%p7876) target = $region36
      $region35: #{model_forward.1} parent=27 // pred_region
        _
      $region36: #{model_forward.1} parent=27 // pred_fallthru
        _
      // Predicated region
      $region37: #{model_forward.1} parent=27 // pred_check
        %p7879 = pneg %p160
      $region38: #{model_forward.1} parent=27 // pred_check_branch
        %7881 = sbr.rel (%p7879) target = $region40
      $region39: #{model_forward.1} parent=27 // pred_region
        _
      $region40: #{model_forward.1} parent=27 // pred_fallthru
        _
    $region28: #{model_forward.1} parent=5 // pred_fallthru
      _
    %p7882 = scmp.le.s32.totalorder 2, %s11
    // Predicated region
    $region41: #{model_forward.1} parent=5 // pred_check
      %p7883 = pneg %p7882
    $region42: #{model_forward.1} parent=5 // pred_check_branch
      %7885 = sbr.rel (%p7883) target = $region44
    $region43: #{model_forward.1} parent=5 // pred_region
      %s7886 = ssub.s32 %s11, 2
      // Predicated region
      $region45: #{model_forward.1} parent=43 // pred_check
        %p7887 = pneg %p110
      $region46: #{model_forward.1} parent=43 // pred_check_branch
        %7889 = sbr.rel (%p7887) target = $region48
      $region47: #{model_forward.1} parent=43 // pred_region
        %p7890 = scmp.lt.s32.totalorder %s22, 0
        %s7891 = scalar_select %p7890, %s22, 0
        %p7892 = scmp.lt.s32.totalorder %s23, 1
        %s7893 = scalar_select %p7892, %s23, 1
        %s7894 = smul.addr %s7893, 6
        %s7895 = smul.addr %s7891, 12
        %s7896 = sadd.s32 %s7894, %s7895
        %s7897 = smul.addr %s7896, 2
        %s7898 = scalar_lea.vmem %s2, %s7897
      $region48: #{model_forward.1} parent=43 // pred_fallthru
        _
      // Predicated region
      $region49: #{model_forward.1} parent=43 // pred_check
        %p7899 = pneg %p138
      $region50: #{model_forward.1} parent=43 // pred_check_branch
        %7901 = sbr.rel (%p7899) target = $region52
      $region51: #{model_forward.1} parent=43 // pred_region
        %p7902 = scmp.lt.s32.totalorder %s22, 0
        %s7903 = scalar_select %p7902, %s22, 0
        %p7904 = scmp.lt.s32.totalorder %s23, 1
        %s7905 = scalar_select %p7904, %s23, 1
        %s7906 = smul.addr %s7905, 6
        %s7907 = smul.addr %s7903, 12
        %s7908 = sadd.s32 %s7906, %s7907
        %s7909 = smul.addr %s7908, 2
        %s7910 = scalar_lea.vmem %s3, %s7909
      $region52: #{model_forward.1} parent=43 // pred_fallthru
        _
      // Predicated region
      $region53: #{model_forward.1} parent=43 // pred_check
        %p7911 = pneg %p166
      $region54: #{model_forward.1} parent=43 // pred_check_branch
        %7913 = sbr.rel (%p7911) target = $region56
      $region55: #{model_forward.1} parent=43 // pred_region
        %p7914 = scmp.lt.s32.totalorder %s22, 0
        %s7915 = scalar_select %p7914, %s22, 0
        %p7916 = scmp.lt.s32.totalorder %s23, 1
        %s7917 = scalar_select %p7916, %s23, 1
        %s7918 = smul.addr %s7917, 6
        %s7919 = smul.addr %s7915, 12
        %s7920 = sadd.s32 %s7918, %s7919
        %s7921 = scalar_lea.vmem %s4, %s7920
      $region56: #{model_forward.1} parent=43 // pred_fallthru
        _
    $region44: #{model_forward.1} parent=5 // pred_fallthru
      _
  $region6: #{model_forward.1} parent=0 // loop_footer
    %s15 = sadd.s32 1, %s11
  $region7: #{model_forward.1} parent=0 // loop_footer_branch
    %10 = sbr.rel target = $region3
  $region8: #{model_forward.1} parent=0 // loop_exit
    _

</llo_original>
